<compile_context>
chip_gen: v7x
topology: tpu7x:2x2x1
jax: 0.10.0
libtpu: 0.0.40
codegen_flags: <defaults>
</compile_context>

<pallas_src>
import functools

import jax
import jax.numpy as jnp
from jax import lax
from jax.experimental import pallas as pl
from jax.experimental.pallas import tpu as pltpu


# ----------------------------------------------------------------------------
# Dense kernel: act(x @ w + b), bf16 operands, f32 accumulate, row-gridded.
# ----------------------------------------------------------------------------

def _dense_kernel(x_ref, w_ref, b_ref, o_ref, *, activation):
    y = jnp.dot(x_ref[...], w_ref[...], preferred_element_type=jnp.float32)
    y = y + b_ref[...]
    if activation == "relu":
        y = jnp.maximum(y, 0.0)
    elif activation == "sigmoid":
        y = jax.nn.sigmoid(y)
    o_ref[...] = y.astype(o_ref.dtype)


def dense(x, w, b, activation="none", block_rows=512):
    """x:(M,K) @ w:(K,N) + b -> (M,N) f32, with fused activation."""
    M, K = x.shape
    N = w.shape[1]
    xb = x.astype(jnp.bfloat16)
    wb = w.astype(jnp.bfloat16)
    b2 = b.reshape(1, N).astype(jnp.float32)
    tm = M if M <= block_rows else block_rows
    return pl.pallas_call(
        functools.partial(_dense_kernel, activation=activation),
        out_shape=jax.ShapeDtypeStruct((M, N), jnp.float32),
        grid=(pl.cdiv(M, tm),),
        in_specs=[pl.BlockSpec((tm, K), lambda i: (i, 0)),
                  pl.BlockSpec((K, N), lambda i: (0, 0)),
                  pl.BlockSpec((1, N), lambda i: (0, 0))],
        out_specs=pl.BlockSpec((tm, N), lambda i: (i, 0)),
        compiler_params=pltpu.CompilerParams(
            dimension_semantics=("parallel",)),
    )(xb, wb, b2)


# ----------------------------------------------------------------------------
# Fused bidirectional-LSTM recurrence kernel (PyTorch nn.LSTM semantics).
# Gate projections (both directions, bias included) are precomputed; this
# kernel keeps w_hh resident in VMEM and loops over time inside the kernel.
# ----------------------------------------------------------------------------

def _bilstm_rec_kernel(xw_ref, whf_ref, whb_ref, h0_ref, c0_ref,
                       yf_ref, yb_ref, hT_ref, cT_ref):
    L = xw_ref.shape[0]            # xw_ref: (L, B, 8H) f32, time-major
    H = h0_ref.shape[2]
    w_f = whf_ref[...]             # (H, 4H) bf16, resident for every step
    w_b = whb_ref[...]

    def cell(gates, c):            # torch gate order: i, f, g, o (f32 math)
        i_g = jax.nn.sigmoid(gates[:, 0 * H:1 * H])
        f_g = jax.nn.sigmoid(gates[:, 1 * H:2 * H])
        g_g = jnp.tanh(gates[:, 2 * H:3 * H])
        o_g = jax.nn.sigmoid(gates[:, 3 * H:4 * H])
        c = f_g * c + i_g * g_g
        h = o_g * jnp.tanh(c)
        return h, c

    def fwd_body(t, carry):
        h, c = carry
        xw_t = xw_ref[t]                                   # (B, 8H)
        gates = xw_t[:, 0:4 * H] + jnp.dot(
            h.astype(w_f.dtype), w_f, preferred_element_type=jnp.float32)
        h, c = cell(gates, c)
        yf_ref[t] = h
        return (h, c)

    h_f, c_f = lax.fori_loop(0, L, fwd_body, (h0_ref[0], c0_ref[0]),
                             unroll=True)
    hT_ref[0] = h_f
    cT_ref[0] = c_f

    def bwd_body(i, carry):
        h, c = carry
        t = L - 1 - i
        xw_t = xw_ref[t]
        gates = xw_t[:, 4 * H:8 * H] + jnp.dot(
            h.astype(w_b.dtype), w_b, preferred_element_type=jnp.float32)
        h, c = cell(gates, c)
        yb_ref[t] = h
        return (h, c)

    h_b, c_b = lax.fori_loop(0, L, bwd_body, (h0_ref[1], c0_ref[1]),
                             unroll=True)
    hT_ref[1] = h_b
    cT_ref[1] = c_b


def bilstm(x, hidden_state, p):
    """nn.LSTM(bidirectional=True, batch_first=True).
    x:(B,L,I), hidden:(h0,c0) each (2,B,H) -> y:(B,L,2H), (hT,cT)."""
    B, L, I = x.shape
    H = p["w_hh_f"].shape[0]
    h0, c0 = hidden_state
    # Input projections for BOTH directions as one big (time-major) matmul.
    xt = jnp.swapaxes(x, 0, 1).reshape(L * B, I)
    xw = dense(xt, p["w_ih"], p["b"]).reshape(L, B, 8 * H)
    yf, yb, hT, cT = pl.pallas_call(
        _bilstm_rec_kernel,
        out_shape=(jax.ShapeDtypeStruct((L, B, H), jnp.float32),
                   jax.ShapeDtypeStruct((L, B, H), jnp.float32),
                   jax.ShapeDtypeStruct((2, B, H), jnp.float32),
                   jax.ShapeDtypeStruct((2, B, H), jnp.float32)),
        in_specs=[pl.BlockSpec(memory_space=pltpu.MemorySpace.VMEM)] * 5,
        out_specs=tuple(pl.BlockSpec(memory_space=pltpu.MemorySpace.VMEM)
                        for _ in range(4)),
    )(xw, p["w_hh_f"], p["w_hh_b"], h0, c0)
    y = jnp.swapaxes(jnp.concatenate([yf, yb], axis=-1), 0, 1)   # (B, L, 2H)
    return y, (hT, cT)


# ----------------------------------------------------------------------------
# Co-attention kernel: cosine similarity + softmax both ways + attend,
# whole batch in one call, batched einsums only (no explicit cos transpose).
# ----------------------------------------------------------------------------

def _coattn_kernel(s1_ref, s2_ref, a1_ref, a2_ref):
    s1 = s1_ref[...]                                              # (B, L1, D)
    s2 = s2_ref[...]                                              # (B, L2, D)
    eps = 1e-8                                   # torch CosineSimilarity eps
    n1_col = jnp.sqrt(jnp.sum(s1 * s1, axis=-1, keepdims=True))  # (B, L1, 1)
    n2_col = jnp.sqrt(jnp.sum(s2 * s2, axis=-1, keepdims=True))  # (B, L2, 1)
    n1_row = jnp.sqrt(jnp.sum(s1 * s1, axis=-1))[:, None, :]     # (B, 1, L1)
    n2_row = jnp.sqrt(jnp.sum(s2 * s2, axis=-1))[:, None, :]     # (B, 1, L2)

    dots12 = jnp.einsum('bqd,bkd->bqk', s1, s2,
                        preferred_element_type=jnp.float32)       # (B, L1, L2)
    dots21 = jnp.einsum('bqd,bkd->bqk', s2, s1,
                        preferred_element_type=jnp.float32)       # (B, L2, L1)
    cos12 = dots12 / jnp.maximum(n1_col * n2_row, eps)
    cos21 = dots21 / jnp.maximum(n2_col * n1_row, eps)            # == cos12^T

    p1 = jax.nn.softmax(cos12, axis=-1)          # torch softmax(cos, dim=2)
    p2 = jax.nn.softmax(cos21, axis=-1)          # torch softmax(cos^T, dim=2)
    a1_ref[...] = jnp.einsum('bqk,bkd->bqd', p1, s2,
                             preferred_element_type=jnp.float32
                             ).astype(a1_ref.dtype)
    a2_ref[...] = jnp.einsum('bqk,bkd->bqd', p2, s1,
                             preferred_element_type=jnp.float32
                             ).astype(a2_ref.dtype)


def coattention_attend(y1, y2):
    B, L1, D = y1.shape
    _, L2, _ = y2.shape
    return pl.pallas_call(
        _coattn_kernel,
        out_shape=(jax.ShapeDtypeStruct((B, L1, D), jnp.float32),
                   jax.ShapeDtypeStruct((B, L2, D), jnp.float32)),
        in_specs=[pl.BlockSpec(memory_space=pltpu.MemorySpace.VMEM)] * 2,
        out_specs=(pl.BlockSpec(memory_space=pltpu.MemorySpace.VMEM),) * 2,
    )(y1.astype(jnp.float32), y2.astype(jnp.float32))


# ----------------------------------------------------------------------------
# Merge kernel: max-pool over seq + [s1; s2; s1+s2; s1-s2; |s1-s2|],
# written as lane-aligned sliced stores (D = 4H = 128).
# ----------------------------------------------------------------------------

def _merge_kernel(g1_ref, g2_ref, o_ref):
    D = g1_ref.shape[2]
    m1 = jnp.max(g1_ref[...], axis=1)                             # (B, D)
    m2 = jnp.max(g2_ref[...], axis=1)
    add = m1 + m2
    sub = m1 - m2
    o_ref[:, 0 * D:1 * D] = m1
    o_ref[:, 1 * D:2 * D] = m2
    o_ref[:, 2 * D:3 * D] = add
    o_ref[:, 3 * D:4 * D] = sub
    o_ref[:, 4 * D:5 * D] = jnp.abs(sub)


def merge_features(g1, g2):
    B, _, D = g1.shape
    return pl.pallas_call(
        _merge_kernel,
        out_shape=jax.ShapeDtypeStruct((B, 5 * D), jnp.float32),
        in_specs=[pl.BlockSpec(memory_space=pltpu.MemorySpace.VMEM)] * 2,
        out_specs=pl.BlockSpec(memory_space=pltpu.MemorySpace.VMEM),
    )(g1.astype(jnp.float32), g2.astype(jnp.float32))


# ----------------------------------------------------------------------------
# CoAttention block + 3-D linear (s1 and s2 stacked along batch).
# ----------------------------------------------------------------------------

def coattention_block(x_both, hidden_both, lstm_p, B):
    y_both, hidden_both = bilstm(x_both, hidden_both, lstm_p)     # (2B, L, 2H)
    a1, a2 = coattention_attend(y_both[:B], y_both[B:])
    a_both = jnp.concatenate([a1, a2], axis=0)
    g_both = jnp.concatenate([x_both, y_both, a_both], axis=-1)
    return g_both, hidden_both


def linear3d(x, wb, activation):
    w, b = wb
    B, L, D = x.shape
    return dense(x.reshape(B * L, D), w, b, activation).reshape(B, L, w.shape[1])


# ----------------------------------------------------------------------------
# DRCN forward
# ----------------------------------------------------------------------------

def drcn_forward(params, s1, s2, s1_hidden, s2_hidden):
    # TODO(synk): s1/s2 are stacked along batch through the shared layers,
    # which assumes equal sequence lengths (true for this demo); unequal
    # lengths would need a non-stacked fallback path.
    B = s1.shape[0]
    emb = params["embedding"]
    # embedding1 is a frozen copy of embedding2 -> the [e; e] concat is folded
    # into the first LSTM / Linear weights, so we embed only once.
    x_both = emb[jnp.concatenate([s1, s2], axis=0)]               # (2B, L, E)
    hidden = (jnp.concatenate([s1_hidden[0], s2_hidden[0]], axis=1),
              jnp.concatenate([s1_hidden[1], s2_hidden[1]], axis=1))

    g, hidden = coattention_block(x_both, hidden, params["lstm1"], B)
    g = linear3d(g, params["linear1"], "relu")
    g, hidden = coattention_block(g, hidden, params["lstm2"], B)
    g = linear3d(g, params["linear2"], "relu")
    g, hidden = coattention_block(g, hidden, params["lstm3"], B)
    g = linear3d(g, params["linear3"], "relu")

    merged = merge_features(g[:B], g[B:])                         # (B, 20H)
    # TODO(synk): nn.Dropout treated as identity (inference mode).
    h = dense(merged, *params["mlp"], activation="relu")          # (B, 10H)
    return dense(h, *params["out"], activation="sigmoid")         # (B, C)


# ----------------------------------------------------------------------------
# Deterministic parameter construction (torch layout) + kernel-side prep.
# ----------------------------------------------------------------------------

def init_params(key, vocab, E, H, C):
    keys = iter(jax.random.split(key, 128))

    def xavier(shape):
        std = (2.0 / (shape[0] + shape[1])) ** 0.5
        return std * jax.random.normal(next(keys), shape, jnp.float32)

    def lstm_u(shape):
        bound = 1.0 / (H ** 0.5)
        return jax.random.uniform(next(keys), shape, jnp.float32, -bound, bound)

    def lstm_params(in_dim):
        return dict(
            w_ih_f=lstm_u((4 * H, in_dim)), w_hh_f=lstm_u((4 * H, H)),
            b_ih_f=lstm_u((4 * H,)), b_hh_f=lstm_u((4 * H,)),
            w_ih_b=lstm_u((4 * H, in_dim)), w_hh_b=lstm_u((4 * H, H)),
            b_ih_b=lstm_u((4 * H,)), b_hh_b=lstm_u((4 * H,)),
        )

    embedding = xavier((vocab, E)).at[0].set(0.0)   # <pad> row zeroed
    return dict(
        embedding=embedding,
        lstm1=lstm_params(2 * E),
        lstm2=lstm_params(4 * H),
        lstm3=lstm_params(4 * H),
        linear1=(xavier((2 * E + 4 * H, 4 * H)), jnp.zeros((4 * H,), jnp.float32)),
        linear2=(xavier((8 * H, 4 * H)), jnp.zeros((4 * H,), jnp.float32)),
        linear3=(xavier((8 * H, 4 * H)), jnp.zeros((4 * H,), jnp.float32)),
        mlp=(xavier((20 * H, 10 * H)), jnp.zeros((10 * H,), jnp.float32)),
        out=(xavier((10 * H, C)), jnp.zeros((C,), jnp.float32)),
    )


def prepare_params(raw, E, H):
    """Fold the duplicated embedding, pre-transpose, pre-sum biases, cast bf16."""
    def prep_lstm(p, fold_dup_embed):
        def ih(w):                           # torch (4H, in) -> (in, 4H)
            if fold_dup_embed:               # input was concat([e, e])
                w = w[:, :E] + w[:, E:]
            return w.T
        w_ih = jnp.concatenate([ih(p["w_ih_f"]), ih(p["w_ih_b"])],
                               axis=1).astype(jnp.bfloat16)       # (in, 8H)
        b = jnp.concatenate([p["b_ih_f"] + p["b_hh_f"],
                             p["b_ih_b"] + p["b_hh_b"]]).reshape(1, 8 * H)
        return dict(w_ih=w_ih, b=b.astype(jnp.float32),
                    w_hh_f=p["w_hh_f"].T.astype(jnp.bfloat16),    # (H, 4H)
                    w_hh_b=p["w_hh_b"].T.astype(jnp.bfloat16))

    def prep_linear(wb, fold_dup_embed=False):
        w, b = wb                            # w: (in, out)
        if fold_dup_embed:                   # rows 0:E and E:2E both see e
            w = jnp.concatenate([w[:E] + w[E:2 * E], w[2 * E:]], axis=0)
        return (w.astype(jnp.bfloat16), b.reshape(1, -1).astype(jnp.float32))

    return dict(
        embedding=raw["embedding"].astype(jnp.float32),
        lstm1=prep_lstm(raw["lstm1"], True),
        lstm2=prep_lstm(raw["lstm2"], False),
        lstm3=prep_lstm(raw["lstm3"], False),
        linear1=prep_linear(raw["linear1"], True),
        linear2=prep_linear(raw["linear2"]),
        linear3=prep_linear(raw["linear3"]),
        mlp=prep_linear(raw["mlp"]),
        out=prep_linear(raw["out"]),
    )


# ----------------------------------------------------------------------------

if __name__ == "__main__":
    VOCAB, EMBED, HIDDEN, CLASSES = 50, 32, 32, 3
    B, L = 2, 8

    key = jax.random.PRNGKey(0)
    k_param, k_s1, k_s2 = jax.random.split(key, 3)

    raw_params = init_params(k_param, VOCAB, EMBED, HIDDEN, CLASSES)
    params = prepare_params(raw_params, EMBED, HIDDEN)

    s1 = jax.random.randint(k_s1, (B, L), 0, VOCAB, dtype=jnp.int32)
    s2 = jax.random.randint(k_s2, (B, L), 0, VOCAB, dtype=jnp.int32)
    zeros = jnp.zeros((2, B, HIDDEN), jnp.float32)
    s1_hidden = (zeros, zeros)       # init_hidden(): zeros for (h, c)
    s2_hidden = (zeros, zeros)

    fwd = jax.jit(drcn_forward)
    out = jax.block_until_ready(fwd(params, s1, s2, s1_hidden, s2_hidden))

    assert out.shape == (B, CLASSES)
    assert bool(jnp.all(jnp.isfinite(out)))
    assert bool(jnp.all((out >= 0.0) & (out <= 1.0)))
    print("KERNEL_OK")
</pallas_src>

<mosaic_0001>
module attributes {stable_mosaic.version = 11 : i64} {
  func.func @_dense_kernel(%arg0: i32, %arg1: memref<32x32xbf16, #tpu.memory_space<vmem>>, %arg2: memref<32x256xbf16, #tpu.memory_space<vmem>>, %arg3: memref<1x256xf32, #tpu.memory_space<vmem>>, %arg4: memref<32x256xf32, #tpu.memory_space<vmem>>) attributes {dimension_semantics = [#tpu.dimension_semantics<parallel>], iteration_bounds = array<i64: 1>, scalar_prefetch = 0 : i64, scratch_operands = 0 : i64, tpu.core_type = #tpu.core_type<tc>, window_params = [{transform_indices = @transform_0, window_bounds = array<i64: 32, 32>}, {pipeline_mode = #tpu.pipeline_mode<synchronous>, transform_indices = @transform_1, window_bounds = array<i64: 32, 256>}, {pipeline_mode = #tpu.pipeline_mode<synchronous>, transform_indices = @transform_2, window_bounds = array<i64: 1, 256>}, {transform_indices = @transform_3, window_bounds = array<i64: 32, 256>}]} {
    %c0 = arith.constant 0 : index
    %c0_0 = arith.constant 0 : index
    %0 = vector.load %arg1[%c0, %c0_0] : memref<32x32xbf16, #tpu.memory_space<vmem>>, vector<32x32xbf16>
    %c0_1 = arith.constant 0 : index
    %c0_2 = arith.constant 0 : index
    %1 = vector.load %arg2[%c0_1, %c0_2] : memref<32x256xbf16, #tpu.memory_space<vmem>>, vector<32x256xbf16>
    %cst = arith.constant dense<0.000000e+00> : vector<32x256xf32>
    %2 = tpu.matmul %0, %1, %cst {dimension_numbers = #tpu.dot_dimension_numbers<[1], [0], [0], [1], [0, 0, 1, 1], [], []>} : vector<32x32xbf16>, vector<32x256xbf16>, vector<32x256xf32> -> vector<32x256xf32>
    %c0_3 = arith.constant 0 : index
    %c0_4 = arith.constant 0 : index
    %3 = vector.load %arg3[%c0_3, %c0_4] : memref<1x256xf32, #tpu.memory_space<vmem>>, vector<1x256xf32>
    %4 = vector.broadcast %3 : vector<1x256xf32> to vector<32x256xf32>
    %5 = arith.addf %2, %4 : vector<32x256xf32>
    %c0_5 = arith.constant 0 : index
    %c0_6 = arith.constant 0 : index
    %6 = vector.load %arg4[%c0_5, %c0_6] : memref<32x256xf32, #tpu.memory_space<vmem>>, vector<32x256xf32>
    tpu.vector_store %arg4[%c0_5, %c0_6], %5 {strides = array<i32>} : memref<32x256xf32, #tpu.memory_space<vmem>>, vector<32x256xf32>,
    return
  }
  func.func @transform_0(%arg0: i32) -> (i32, i32) {
    %c0_i32 = arith.constant 0 : i32
    %c0_i32_0 = arith.constant 0 : i32
    return %arg0, %c0_i32 : i32, i32
  }
  func.func @transform_1(%arg0: i32) -> (i32, i32) {
    %c0_i32 = arith.constant 0 : i32
    %c0_i32_0 = arith.constant 0 : i32
    %c0_i32_1 = arith.constant 0 : i32
    return %c0_i32, %c0_i32_0 : i32, i32
  }
  func.func @transform_2(%arg0: i32) -> (i32, i32) {
    %c0_i32 = arith.constant 0 : i32
    %c0_i32_0 = arith.constant 0 : i32
    %c0_i32_1 = arith.constant 0 : i32
    return %c0_i32, %c0_i32_0 : i32, i32
  }
  func.func @transform_3(%arg0: i32) -> (i32, i32) {
    %c0_i32 = arith.constant 0 : i32
    %c0_i32_0 = arith.constant 0 : i32
    return %arg0, %c0_i32 : i32, i32
  }
}

module attributes {stable_mosaic.version = 11 : i64} {
  func.func @_bilstm_rec_kernel(%arg0: memref<8x4x256xf32, #tpu.memory_space<vmem>>, %arg1: memref<32x128xbf16, #tpu.memory_space<vmem>>, %arg2: memref<32x128xbf16, #tpu.memory_space<vmem>>, %arg3: memref<2x4x32xf32, #tpu.memory_space<vmem>>, %arg4: memref<2x4x32xf32, #tpu.memory_space<vmem>>, %arg5: memref<8x4x32xf32, #tpu.memory_space<vmem>>, %arg6: memref<8x4x32xf32, #tpu.memory_space<vmem>>, %arg7: memref<2x4x32xf32, #tpu.memory_space<vmem>>, %arg8: memref<2x4x32xf32, #tpu.memory_space<vmem>>) attributes {dimension_semantics = [], scalar_prefetch = 0 : i64, scratch_operands = 0 : i64, tpu.core_type = #tpu.core_type<tc>} {
    %c0 = arith.constant 0 : index
    %c0_0 = arith.constant 0 : index
    %0 = vector.load %arg1[%c0, %c0_0] : memref<32x128xbf16, #tpu.memory_space<vmem>>, vector<32x128xbf16>
    %c0_1 = arith.constant 0 : index
    %c0_2 = arith.constant 0 : index
    %1 = vector.load %arg2[%c0_1, %c0_2] : memref<32x128xbf16, #tpu.memory_space<vmem>>, vector<32x128xbf16>
    %c0_3 = arith.constant 0 : index
    %c0_4 = arith.constant 0 : index
    %c0_5 = arith.constant 0 : index
    %2 = vector.load %arg3[%c0_3, %c0_4, %c0_5] : memref<2x4x32xf32, #tpu.memory_space<vmem>>, vector<1x4x32xf32>
    %3 = vector.shape_cast %2 : vector<1x4x32xf32> to vector<4x32xf32>
    %c0_6 = arith.constant 0 : index
    %c0_7 = arith.constant 0 : index
    %c0_8 = arith.constant 0 : index
    %4 = vector.load %arg4[%c0_6, %c0_7, %c0_8] : memref<2x4x32xf32, #tpu.memory_space<vmem>>, vector<1x4x32xf32>
    %5 = vector.shape_cast %4 : vector<1x4x32xf32> to vector<4x32xf32>
    %c0_i32 = arith.constant 0 : i32
    %6 = arith.index_cast %c0_i32 : i32 to index
    %c0_9 = arith.constant 0 : index
    %c0_10 = arith.constant 0 : index
    %7 = vector.load %arg0[%6, %c0_9, %c0_10] : memref<8x4x256xf32, #tpu.memory_space<vmem>>, vector<1x4x256xf32>
    %8 = vector.shape_cast %7 : vector<1x4x256xf32> to vector<4x256xf32>
    %9 = vector.extract_strided_slice %8 {offsets = [0, 0], sizes = [4, 128], strides = [1, 1]} : vector<4x256xf32> to vector<4x128xf32>
    %10 = arith.truncf %3 : vector<4x32xf32> to vector<4x32xbf16>
    %cst = arith.constant dense<0.000000e+00> : vector<4x128xf32>
    %11 = tpu.matmul %10, %0, %cst {dimension_numbers = #tpu.dot_dimension_numbers<[1], [0], [0], [1], [0, 0, 1, 1], [], []>} : vector<4x32xbf16>, vector<32x128xbf16>, vector<4x128xf32> -> vector<4x128xf32>
    %12 = arith.addf %9, %11 : vector<4x128xf32>
    %13 = vector.extract_strided_slice %12 {offsets = [0, 0], sizes = [4, 32], strides = [1, 1]} : vector<4x128xf32> to vector<4x32xf32>
    %14 = arith.negf %13 : vector<4x32xf32>
    %15 = math.exp %14 : vector<4x32xf32>
    %cst_11 = arith.constant 1.000000e+00 : f32
    %16 = vector.broadcast %cst_11 : f32 to vector<4x32xf32>
    %17 = arith.addf %16, %15 : vector<4x32xf32>
    %18 = arith.divf %16, %17 : vector<4x32xf32>
    %19 = vector.extract_strided_slice %12 {offsets = [0, 32], sizes = [4, 32], strides = [1, 1]} : vector<4x128xf32> to vector<4x32xf32>
    %20 = arith.negf %19 : vector<4x32xf32>
    %21 = math.exp %20 : vector<4x32xf32>
    %cst_12 = arith.constant 1.000000e+00 : f32
    %22 = vector.broadcast %cst_12 : f32 to vector<4x32xf32>
    %23 = arith.addf %22, %21 : vector<4x32xf32>
    %24 = arith.divf %22, %23 : vector<4x32xf32>
    %25 = vector.extract_strided_slice %12 {offsets = [0, 64], sizes = [4, 32], strides = [1, 1]} : vector<4x128xf32> to vector<4x32xf32>
    %26 = math.tanh %25 : vector<4x32xf32>
    %27 = vector.extract_strided_slice %12 {offsets = [0, 96], sizes = [4, 32], strides = [1, 1]} : vector<4x128xf32> to vector<4x32xf32>
    %28 = arith.negf %27 : vector<4x32xf32>
    %29 = math.exp %28 : vector<4x32xf32>
    %cst_13 = arith.constant 1.000000e+00 : f32
    %30 = vector.broadcast %cst_13 : f32 to vector<4x32xf32>
    %31 = arith.addf %30, %29 : vector<4x32xf32>
    %32 = arith.divf %30, %31 : vector<4x32xf32>
    %33 = arith.mulf %24, %5 : vector<4x32xf32>
    %34 = arith.mulf %18, %26 : vector<4x32xf32>
    %35 = arith.addf %33, %34 : vector<4x32xf32>
    %36 = math.tanh %35 : vector<4x32xf32>
    %37 = arith.mulf %32, %36 : vector<4x32xf32>
    %38 = arith.index_cast %c0_i32 : i32 to index
    %c0_14 = arith.constant 0 : index
    %c0_15 = arith.constant 0 : index
    %39 = vector.load %arg5[%38, %c0_14, %c0_15] : memref<8x4x32xf32, #tpu.memory_space<vmem>>, vector<1x4x32xf32>
    %40 = vector.shape_cast %39 : vector<1x4x32xf32> to vector<4x32xf32>
    %41 = vector.shape_cast %37 : vector<4x32xf32> to vector<1x4x32xf32>
    tpu.vector_store %arg5[%38, %c0_14, %c0_15], %41 {strides = array<i32>} : memref<8x4x32xf32, #tpu.memory_space<vmem>>, vector<1x4x32xf32>,
    %c1_i32 = arith.constant 1 : i32
    %42 = arith.index_cast %c1_i32 : i32 to index
    %c0_16 = arith.constant 0 : index
    %c0_17 = arith.constant 0 : index
    %43 = vector.load %arg0[%42, %c0_16, %c0_17] : memref<8x4x256xf32, #tpu.memory_space<vmem>>, vector<1x4x256xf32>
    %44 = vector.shape_cast %43 : vector<1x4x256xf32> to vector<4x256xf32>
    %45 = vector.extract_strided_slice %44 {offsets = [0, 0], sizes = [4, 128], strides = [1, 1]} : vector<4x256xf32> to vector<4x128xf32>
    %46 = arith.truncf %37 : vector<4x32xf32> to vector<4x32xbf16>
    %cst_18 = arith.constant dense<0.000000e+00> : vector<4x128xf32>
    %47 = tpu.matmul %46, %0, %cst_18 {dimension_numbers = #tpu.dot_dimension_numbers<[1], [0], [0], [1], [0, 0, 1, 1], [], []>} : vector<4x32xbf16>, vector<32x128xbf16>, vector<4x128xf32> -> vector<4x128xf32>
    %48 = arith.addf %45, %47 : vector<4x128xf32>
    %49 = vector.extract_strided_slice %48 {offsets = [0, 0], sizes = [4, 32], strides = [1, 1]} : vector<4x128xf32> to vector<4x32xf32>
    %50 = arith.negf %49 : vector<4x32xf32>
    %51 = math.exp %50 : vector<4x32xf32>
    %cst_19 = arith.constant 1.000000e+00 : f32
    %52 = vector.broadcast %cst_19 : f32 to vector<4x32xf32>
    %53 = arith.addf %52, %51 : vector<4x32xf32>
    %54 = arith.divf %52, %53 : vector<4x32xf32>
    %55 = vector.extract_strided_slice %48 {offsets = [0, 32], sizes = [4, 32], strides = [1, 1]} : vector<4x128xf32> to vector<4x32xf32>
    %56 = arith.negf %55 : vector<4x32xf32>
    %57 = math.exp %56 : vector<4x32xf32>
    %cst_20 = arith.constant 1.000000e+00 : f32
    %58 = vector.broadcast %cst_20 : f32 to vector<4x32xf32>
    %59 = arith.addf %58, %57 : vector<4x32xf32>
    %60 = arith.divf %58, %59 : vector<4x32xf32>
    %61 = vector.extract_strided_slice %48 {offsets = [0, 64], sizes = [4, 32], strides = [1, 1]} : vector<4x128xf32> to vector<4x32xf32>
    %62 = math.tanh %61 : vector<4x32xf32>
    %63 = vector.extract_strided_slice %48 {offsets = [0, 96], sizes = [4, 32], strides = [1, 1]} : vector<4x128xf32> to vector<4x32xf32>
    %64 = arith.negf %63 : vector<4x32xf32>
    %65 = math.exp %64 : vector<4x32xf32>
    %cst_21 = arith.constant 1.000000e+00 : f32
    %66 = vector.broadcast %cst_21 : f32 to vector<4x32xf32>
    %67 = arith.addf %66, %65 : vector<4x32xf32>
    %68 = arith.divf %66, %67 : vector<4x32xf32>
    %69 = arith.mulf %60, %35 : vector<4x32xf32>
    %70 = arith.mulf %54, %62 : vector<4x32xf32>
    %71 = arith.addf %69, %70 : vector<4x32xf32>
    %72 = math.tanh %71 : vector<4x32xf32>
    %73 = arith.mulf %68, %72 : vector<4x32xf32>
    %74 = arith.index_cast %c1_i32 : i32 to index
    %c0_22 = arith.constant 0 : index
    %c0_23 = arith.constant 0 : index
    %75 = vector.load %arg5[%74, %c0_22, %c0_23] : memref<8x4x32xf32, #tpu.memory_space<vmem>>, vector<1x4x32xf32>
    %76 = vector.shape_cast %75 : vector<1x4x32xf32> to vector<4x32xf32>
    %77 = vector.shape_cast %73 : vector<4x32xf32> to vector<1x4x32xf32>
    tpu.vector_store %arg5[%74, %c0_22, %c0_23], %77 {strides = array<i32>} : memref<8x4x32xf32, #tpu.memory_space<vmem>>, vector<1x4x32xf32>,
    %c2_i32 = arith.constant 2 : i32
    %78 = arith.index_cast %c2_i32 : i32 to index
    %c0_24 = arith.constant 0 : index
    %c0_25 = arith.constant 0 : index
    %79 = vector.load %arg0[%78, %c0_24, %c0_25] : memref<8x4x256xf32, #tpu.memory_space<vmem>>, vector<1x4x256xf32>
    %80 = vector.shape_cast %79 : vector<1x4x256xf32> to vector<4x256xf32>
    %81 = vector.extract_strided_slice %80 {offsets = [0, 0], sizes = [4, 128], strides = [1, 1]} : vector<4x256xf32> to vector<4x128xf32>
    %82 = arith.truncf %73 : vector<4x32xf32> to vector<4x32xbf16>
    %cst_26 = arith.constant dense<0.000000e+00> : vector<4x128xf32>
    %83 = tpu.matmul %82, %0, %cst_26 {dimension_numbers = #tpu.dot_dimension_numbers<[1], [0], [0], [1], [0, 0, 1, 1], [], []>} : vector<4x32xbf16>, vector<32x128xbf16>, vector<4x128xf32> -> vector<4x128xf32>
    %84 = arith.addf %81, %83 : vector<4x128xf32>
    %85 = vector.extract_strided_slice %84 {offsets = [0, 0], sizes = [4, 32], strides = [1, 1]} : vector<4x128xf32> to vector<4x32xf32>
    %86 = arith.negf %85 : vector<4x32xf32>
    %87 = math.exp %86 : vector<4x32xf32>
    %cst_27 = arith.constant 1.000000e+00 : f32
    %88 = vector.broadcast %cst_27 : f32 to vector<4x32xf32>
    %89 = arith.addf %88, %87 : vector<4x32xf32>
    %90 = arith.divf %88, %89 : vector<4x32xf32>
    %91 = vector.extract_strided_slice %84 {offsets = [0, 32], sizes = [4, 32], strides = [1, 1]} : vector<4x128xf32> to vector<4x32xf32>
    %92 = arith.negf %91 : vector<4x32xf32>
    %93 = math.exp %92 : vector<4x32xf32>
    %cst_28 = arith.constant 1.000000e+00 : f32
    %94 = vector.broadcast %cst_28 : f32 to vector<4x32xf32>
    %95 = arith.addf %94, %93 : vector<4x32xf32>
    %96 = arith.divf %94, %95 : vector<4x32xf32>
    %97 = vector.extract_strided_slice %84 {offsets = [0, 64], sizes = [4, 32], strides = [1, 1]} : vector<4x128xf32> to vector<4x32xf32>
    %98 = math.tanh %97 : vector<4x32xf32>
    %99 = vector.extract_strided_slice %84 {offsets = [0, 96], sizes = [4, 32], strides = [1, 1]} : vector<4x128xf32> to vector<4x32xf32>
    %100 = arith.negf %99 : vector<4x32xf32>
    %101 = math.exp %100 : vector<4x32xf32>
    %cst_29 = arith.constant 1.000000e+00 : f32
    %102 = vector.broadcast %cst_29 : f32 to vector<4x32xf32>
    %103 = arith.addf %102, %101 : vector<4x32xf32>
    %104 = arith.divf %102, %103 : vector<4x32xf32>
    %105 = arith.mulf %96, %71 : vector<4x32xf32>
    %106 = arith.mulf %90, %98 : vector<4x32xf32>
    %107 = arith.addf %105, %106 : vector<4x32xf32>
    %108 = math.tanh %107 : vector<4x32xf32>
    %109 = arith.mulf %104, %108 : vector<4x32xf32>
    %110 = arith.index_cast %c2_i32 : i32 to index
    %c0_30 = arith.constant 0 : index
    %c0_31 = arith.constant 0 : index
    %111 = vector.load %arg5[%110, %c0_30, %c0_31] : memref<8x4x32xf32, #tpu.memory_space<vmem>>, vector<1x4x32xf32>
    %112 = vector.shape_cast %111 : vector<1x4x32xf32> to vector<4x32xf32>
    %113 = vector.shape_cast %109 : vector<4x32xf32> to vector<1x4x32xf32>
    tpu.vector_store %arg5[%110, %c0_30, %c0_31], %113 {strides = array<i32>} : memref<8x4x32xf32, #tpu.memory_space<vmem>>, vector<1x4x32xf32>,
    %c3_i32 = arith.constant 3 : i32
    %114 = arith.index_cast %c3_i32 : i32 to index
    %c0_32 = arith.constant 0 : index
    %c0_33 = arith.constant 0 : index
    %115 = vector.load %arg0[%114, %c0_32, %c0_33] : memref<8x4x256xf32, #tpu.memory_space<vmem>>, vector<1x4x256xf32>
    %116 = vector.shape_cast %115 : vector<1x4x256xf32> to vector<4x256xf32>
    %117 = vector.extract_strided_slice %116 {offsets = [0, 0], sizes = [4, 128], strides = [1, 1]} : vector<4x256xf32> to vector<4x128xf32>
    %118 = arith.truncf %109 : vector<4x32xf32> to vector<4x32xbf16>
    %cst_34 = arith.constant dense<0.000000e+00> : vector<4x128xf32>
    %119 = tpu.matmul %118, %0, %cst_34 {dimension_numbers = #tpu.dot_dimension_numbers<[1], [0], [0], [1], [0, 0, 1, 1], [], []>} : vector<4x32xbf16>, vector<32x128xbf16>, vector<4x128xf32> -> vector<4x128xf32>
    %120 = arith.addf %117, %119 : vector<4x128xf32>
    %121 = vector.extract_strided_slice %120 {offsets = [0, 0], sizes = [4, 32], strides = [1, 1]} : vector<4x128xf32> to vector<4x32xf32>
    %122 = arith.negf %121 : vector<4x32xf32>
    %123 = math.exp %122 : vector<4x32xf32>
    %cst_35 = arith.constant 1.000000e+00 : f32
    %124 = vector.broadcast %cst_35 : f32 to vector<4x32xf32>
    %125 = arith.addf %124, %123 : vector<4x32xf32>
    %126 = arith.divf %124, %125 : vector<4x32xf32>
    %127 = vector.extract_strided_slice %120 {offsets = [0, 32], sizes = [4, 32], strides = [1, 1]} : vector<4x128xf32> to vector<4x32xf32>
    %128 = arith.negf %127 : vector<4x32xf32>
    %129 = math.exp %128 : vector<4x32xf32>
    %cst_36 = arith.constant 1.000000e+00 : f32
    %130 = vector.broadcast %cst_36 : f32 to vector<4x32xf32>
    %131 = arith.addf %130, %129 : vector<4x32xf32>
    %132 = arith.divf %130, %131 : vector<4x32xf32>
    %133 = vector.extract_strided_slice %120 {offsets = [0, 64], sizes = [4, 32], strides = [1, 1]} : vector<4x128xf32> to vector<4x32xf32>
    %134 = math.tanh %133 : vector<4x32xf32>
    %135 = vector.extract_strided_slice %120 {offsets = [0, 96], sizes = [4, 32], strides = [1, 1]} : vector<4x128xf32> to vector<4x32xf32>
    %136 = arith.negf %135 : vector<4x32xf32>
    %137 = math.exp %136 : vector<4x32xf32>
    %cst_37 = arith.constant 1.000000e+00 : f32
    %138 = vector.broadcast %cst_37 : f32 to vector<4x32xf32>
    %139 = arith.addf %138, %137 : vector<4x32xf32>
    %140 = arith.divf %138, %139 : vector<4x32xf32>
    %141 = arith.mulf %132, %107 : vector<4x32xf32>
    %142 = arith.mulf %126, %134 : vector<4x32xf32>
    %143 = arith.addf %141, %142 : vector<4x32xf32>
    %144 = math.tanh %143 : vector<4x32xf32>
    %145 = arith.mulf %140, %144 : vector<4x32xf32>
    %146 = arith.index_cast %c3_i32 : i32 to index
    %c0_38 = arith.constant 0 : index
    %c0_39 = arith.constant 0 : index
    %147 = vector.load %arg5[%146, %c0_38, %c0_39] : memref<8x4x32xf32, #tpu.memory_space<vmem>>, vector<1x4x32xf32>
    %148 = vector.shape_cast %147 : vector<1x4x32xf32> to vector<4x32xf32>
    %149 = vector.shape_cast %145 : vector<4x32xf32> to vector<1x4x32xf32>
    tpu.vector_store %arg5[%146, %c0_38, %c0_39], %149 {strides = array<i32>} : memref<8x4x32xf32, #tpu.memory_space<vmem>>, vector<1x4x32xf32>,
    %c4_i32 = arith.constant 4 : i32
    %150 = arith.index_cast %c4_i32 : i32 to index
    %c0_40 = arith.constant 0 : index
    %c0_41 = arith.constant 0 : index
    %151 = vector.load %arg0[%150, %c0_40, %c0_41] : memref<8x4x256xf32, #tpu.memory_space<vmem>>, vector<1x4x256xf32>
    %152 = vector.shape_cast %151 : vector<1x4x256xf32> to vector<4x256xf32>
    %153 = vector.extract_strided_slice %152 {offsets = [0, 0], sizes = [4, 128], strides = [1, 1]} : vector<4x256xf32> to vector<4x128xf32>
    %154 = arith.truncf %145 : vector<4x32xf32> to vector<4x32xbf16>
    %cst_42 = arith.constant dense<0.000000e+00> : vector<4x128xf32>
    %155 = tpu.matmul %154, %0, %cst_42 {dimension_numbers = #tpu.dot_dimension_numbers<[1], [0], [0], [1], [0, 0, 1, 1], [], []>} : vector<4x32xbf16>, vector<32x128xbf16>, vector<4x128xf32> -> vector<4x128xf32>
    %156 = arith.addf %153, %155 : vector<4x128xf32>
    %157 = vector.extract_strided_slice %156 {offsets = [0, 0], sizes = [4, 32], strides = [1, 1]} : vector<4x128xf32> to vector<4x32xf32>
    %158 = arith.negf %157 : vector<4x32xf32>
    %159 = math.exp %158 : vector<4x32xf32>
    %cst_43 = arith.constant 1.000000e+00 : f32
    %160 = vector.broadcast %cst_43 : f32 to vector<4x32xf32>
    %161 = arith.addf %160, %159 : vector<4x32xf32>
    %162 = arith.divf %160, %161 : vector<4x32xf32>
    %163 = vector.extract_strided_slice %156 {offsets = [0, 32], sizes = [4, 32], strides = [1, 1]} : vector<4x128xf32> to vector<4x32xf32>
    %164 = arith.negf %163 : vector<4x32xf32>
    %165 = math.exp %164 : vector<4x32xf32>
    %cst_44 = arith.constant 1.000000e+00 : f32
    %166 = vector.broadcast %cst_44 : f32 to vector<4x32xf32>
    %167 = arith.addf %166, %165 : vector<4x32xf32>
    %168 = arith.divf %166, %167 : vector<4x32xf32>
    %169 = vector.extract_strided_slice %156 {offsets = [0, 64], sizes = [4, 32], strides = [1, 1]} : vector<4x128xf32> to vector<4x32xf32>
    %170 = math.tanh %169 : vector<4x32xf32>
    %171 = vector.extract_strided_slice %156 {offsets = [0, 96], sizes = [4, 32], strides = [1, 1]} : vector<4x128xf32> to vector<4x32xf32>
    %172 = arith.negf %171 : vector<4x32xf32>
    %173 = math.exp %172 : vector<4x32xf32>
    %cst_45 = arith.constant 1.000000e+00 : f32
    %174 = vector.broadcast %cst_45 : f32 to vector<4x32xf32>
    %175 = arith.addf %174, %173 : vector<4x32xf32>
    %176 = arith.divf %174, %175 : vector<4x32xf32>
    %177 = arith.mulf %168, %143 : vector<4x32xf32>
    %178 = arith.mulf %162, %170 : vector<4x32xf32>
    %179 = arith.addf %177, %178 : vector<4x32xf32>
    %180 = math.tanh %179 : vector<4x32xf32>
    %181 = arith.mulf %176, %180 : vector<4x32xf32>
    %182 = arith.index_cast %c4_i32 : i32 to index
    %c0_46 = arith.constant 0 : index
    %c0_47 = arith.constant 0 : index
    %183 = vector.load %arg5[%182, %c0_46, %c0_47] : memref<8x4x32xf32, #tpu.memory_space<vmem>>, vector<1x4x32xf32>
    %184 = vector.shape_cast %183 : vector<1x4x32xf32> to vector<4x32xf32>
    %185 = vector.shape_cast %181 : vector<4x32xf32> to vector<1x4x32xf32>
    tpu.vector_store %arg5[%182, %c0_46, %c0_47], %185 {strides = array<i32>} : memref<8x4x32xf32, #tpu.memory_space<vmem>>, vector<1x4x32xf32>,
    %c5_i32 = arith.constant 5 : i32
    %186 = arith.index_cast %c5_i32 : i32 to index
    %c0_48 = arith.constant 0 : index
    %c0_49 = arith.constant 0 : index
    %187 = vector.load %arg0[%186, %c0_48, %c0_49] : memref<8x4x256xf32, #tpu.memory_space<vmem>>, vector<1x4x256xf32>
    %188 = vector.shape_cast %187 : vector<1x4x256xf32> to vector<4x256xf32>
    %189 = vector.extract_strided_slice %188 {offsets = [0, 0], sizes = [4, 128], strides = [1, 1]} : vector<4x256xf32> to vector<4x128xf32>
    %190 = arith.truncf %181 : vector<4x32xf32> to vector<4x32xbf16>
    %cst_50 = arith.constant dense<0.000000e+00> : vector<4x128xf32>
    %191 = tpu.matmul %190, %0, %cst_50 {dimension_numbers = #tpu.dot_dimension_numbers<[1], [0], [0], [1], [0, 0, 1, 1], [], []>} : vector<4x32xbf16>, vector<32x128xbf16>, vector<4x128xf32> -> vector<4x128xf32>
    %192 = arith.addf %189, %191 : vector<4x128xf32>
    %193 = vector.extract_strided_slice %192 {offsets = [0, 0], sizes = [4, 32], strides = [1, 1]} : vector<4x128xf32> to vector<4x32xf32>
    %194 = arith.negf %193 : vector<4x32xf32>
    %195 = math.exp %194 : vector<4x32xf32>
    %cst_51 = arith.constant 1.000000e+00 : f32
    %196 = vector.broadcast %cst_51 : f32 to vector<4x32xf32>
    %197 = arith.addf %196, %195 : vector<4x32xf32>
    %198 = arith.divf %196, %197 : vector<4x32xf32>
    %199 = vector.extract_strided_slice %192 {offsets = [0, 32], sizes = [4, 32], strides = [1, 1]} : vector<4x128xf32> to vector<4x32xf32>
    %200 = arith.negf %199 : vector<4x32xf32>
    %201 = math.exp %200 : vector<4x32xf32>
    %cst_52 = arith.constant 1.000000e+00 : f32
    %202 = vector.broadcast %cst_52 : f32 to vector<4x32xf32>
    %203 = arith.addf %202, %201 : vector<4x32xf32>
    %204 = arith.divf %202, %203 : vector<4x32xf32>
    %205 = vector.extract_strided_slice %192 {offsets = [0, 64], sizes = [4, 32], strides = [1, 1]} : vector<4x128xf32> to vector<4x32xf32>
    %206 = math.tanh %205 : vector<4x32xf32>
    %207 = vector.extract_strided_slice %192 {offsets = [0, 96], sizes = [4, 32], strides = [1, 1]} : vector<4x128xf32> to vector<4x32xf32>
    %208 = arith.negf %207 : vector<4x32xf32>
    %209 = math.exp %208 : vector<4x32xf32>
    %cst_53 = arith.constant 1.000000e+00 : f32
    %210 = vector.broadcast %cst_53 : f32 to vector<4x32xf32>
    %211 = arith.addf %210, %209 : vector<4x32xf32>
    %212 = arith.divf %210, %211 : vector<4x32xf32>
    %213 = arith.mulf %204, %179 : vector<4x32xf32>
    %214 = arith.mulf %198, %206 : vector<4x32xf32>
    %215 = arith.addf %213, %214 : vector<4x32xf32>
    %216 = math.tanh %215 : vector<4x32xf32>
    %217 = arith.mulf %212, %216 : vector<4x32xf32>
    %218 = arith.index_cast %c5_i32 : i32 to index
    %c0_54 = arith.constant 0 : index
    %c0_55 = arith.constant 0 : index
    %219 = vector.load %arg5[%218, %c0_54, %c0_55] : memref<8x4x32xf32, #tpu.memory_space<vmem>>, vector<1x4x32xf32>
    %220 = vector.shape_cast %219 : vector<1x4x32xf32> to vector<4x32xf32>
    %221 = vector.shape_cast %217 : vector<4x32xf32> to vector<1x4x32xf32>
    tpu.vector_store %arg5[%218, %c0_54, %c0_55], %221 {strides = array<i32>} : memref<8x4x32xf32, #tpu.memory_space<vmem>>, vector<1x4x32xf32>,
    %c6_i32 = arith.constant 6 : i32
    %222 = arith.index_cast %c6_i32 : i32 to index
    %c0_56 = arith.constant 0 : index
    %c0_57 = arith.constant 0 : index
    %223 = vector.load %arg0[%222, %c0_56, %c0_57] : memref<8x4x256xf32, #tpu.memory_space<vmem>>, vector<1x4x256xf32>
    %224 = vector.shape_cast %223 : vector<1x4x256xf32> to vector<4x256xf32>
    %225 = vector.extract_strided_slice %224 {offsets = [0, 0], sizes = [4, 128], strides = [1, 1]} : vector<4x256xf32> to vector<4x128xf32>
    %226 = arith.truncf %217 : vector<4x32xf32> to vector<4x32xbf16>
    %cst_58 = arith.constant dense<0.000000e+00> : vector<4x128xf32>
    %227 = tpu.matmul %226, %0, %cst_58 {dimension_numbers = #tpu.dot_dimension_numbers<[1], [0], [0], [1], [0, 0, 1, 1], [], []>} : vector<4x32xbf16>, vector<32x128xbf16>, vector<4x128xf32> -> vector<4x128xf32>
    %228 = arith.addf %225, %227 : vector<4x128xf32>
    %229 = vector.extract_strided_slice %228 {offsets = [0, 0], sizes = [4, 32], strides = [1, 1]} : vector<4x128xf32> to vector<4x32xf32>
    %230 = arith.negf %229 : vector<4x32xf32>
    %231 = math.exp %230 : vector<4x32xf32>
    %cst_59 = arith.constant 1.000000e+00 : f32
    %232 = vector.broadcast %cst_59 : f32 to vector<4x32xf32>
    %233 = arith.addf %232, %231 : vector<4x32xf32>
    %234 = arith.divf %232, %233 : vector<4x32xf32>
    %235 = vector.extract_strided_slice %228 {offsets = [0, 32], sizes = [4, 32], strides = [1, 1]} : vector<4x128xf32> to vector<4x32xf32>
    %236 = arith.negf %235 : vector<4x32xf32>
    %237 = math.exp %236 : vector<4x32xf32>
    %cst_60 = arith.constant 1.000000e+00 : f32
    %238 = vector.broadcast %cst_60 : f32 to vector<4x32xf32>
    %239 = arith.addf %238, %237 : vector<4x32xf32>
    %240 = arith.divf %238, %239 : vector<4x32xf32>
    %241 = vector.extract_strided_slice %228 {offsets = [0, 64], sizes = [4, 32], strides = [1, 1]} : vector<4x128xf32> to vector<4x32xf32>
    %242 = math.tanh %241 : vector<4x32xf32>
    %243 = vector.extract_strided_slice %228 {offsets = [0, 96], sizes = [4, 32], strides = [1, 1]} : vector<4x128xf32> to vector<4x32xf32>
    %244 = arith.negf %243 : vector<4x32xf32>
    %245 = math.exp %244 : vector<4x32xf32>
    %cst_61 = arith.constant 1.000000e+00 : f32
    %246 = vector.broadcast %cst_61 : f32 to vector<4x32xf32>
    %247 = arith.addf %246, %245 : vector<4x32xf32>
    %248 = arith.divf %246, %247 : vector<4x32xf32>
    %249 = arith.mulf %240, %215 : vector<4x32xf32>
    %250 = arith.mulf %234, %242 : vector<4x32xf32>
    %251 = arith.addf %249, %250 : vector<4x32xf32>
    %252 = math.tanh %251 : vector<4x32xf32>
    %253 = arith.mulf %248, %252 : vector<4x32xf32>
    %254 = arith.index_cast %c6_i32 : i32 to index
    %c0_62 = arith.constant 0 : index
    %c0_63 = arith.constant 0 : index
    %255 = vector.load %arg5[%254, %c0_62, %c0_63] : memref<8x4x32xf32, #tpu.memory_space<vmem>>, vector<1x4x32xf32>
    %256 = vector.shape_cast %255 : vector<1x4x32xf32> to vector<4x32xf32>
    %257 = vector.shape_cast %253 : vector<4x32xf32> to vector<1x4x32xf32>
    tpu.vector_store %arg5[%254, %c0_62, %c0_63], %257 {strides = array<i32>} : memref<8x4x32xf32, #tpu.memory_space<vmem>>, vector<1x4x32xf32>,
    %c7_i32 = arith.constant 7 : i32
    %258 = arith.index_cast %c7_i32 : i32 to index
    %c0_64 = arith.constant 0 : index
    %c0_65 = arith.constant 0 : index
    %259 = vector.load %arg0[%258, %c0_64, %c0_65] : memref<8x4x256xf32, #tpu.memory_space<vmem>>, vector<1x4x256xf32>
    %260 = vector.shape_cast %259 : vector<1x4x256xf32> to vector<4x256xf32>
    %261 = vector.extract_strided_slice %260 {offsets = [0, 0], sizes = [4, 128], strides = [1, 1]} : vector<4x256xf32> to vector<4x128xf32>
    %262 = arith.truncf %253 : vector<4x32xf32> to vector<4x32xbf16>
    %cst_66 = arith.constant dense<0.000000e+00> : vector<4x128xf32>
    %263 = tpu.matmul %262, %0, %cst_66 {dimension_numbers = #tpu.dot_dimension_numbers<[1], [0], [0], [1], [0, 0, 1, 1], [], []>} : vector<4x32xbf16>, vector<32x128xbf16>, vector<4x128xf32> -> vector<4x128xf32>
    %264 = arith.addf %261, %263 : vector<4x128xf32>
    %265 = vector.extract_strided_slice %264 {offsets = [0, 0], sizes = [4, 32], strides = [1, 1]} : vector<4x128xf32> to vector<4x32xf32>
    %266 = arith.negf %265 : vector<4x32xf32>
    %267 = math.exp %266 : vector<4x32xf32>
    %cst_67 = arith.constant 1.000000e+00 : f32
    %268 = vector.broadcast %cst_67 : f32 to vector<4x32xf32>
    %269 = arith.addf %268, %267 : vector<4x32xf32>
    %270 = arith.divf %268, %269 : vector<4x32xf32>
    %271 = vector.extract_strided_slice %264 {offsets = [0, 32], sizes = [4, 32], strides = [1, 1]} : vector<4x128xf32> to vector<4x32xf32>
    %272 = arith.negf %271 : vector<4x32xf32>
    %273 = math.exp %272 : vector<4x32xf32>
    %cst_68 = arith.constant 1.000000e+00 : f32
    %274 = vector.broadcast %cst_68 : f32 to vector<4x32xf32>
    %275 = arith.addf %274, %273 : vector<4x32xf32>
    %276 = arith.divf %274, %275 : vector<4x32xf32>
    %277 = vector.extract_strided_slice %264 {offsets = [0, 64], sizes = [4, 32], strides = [1, 1]} : vector<4x128xf32> to vector<4x32xf32>
    %278 = math.tanh %277 : vector<4x32xf32>
    %279 = vector.extract_strided_slice %264 {offsets = [0, 96], sizes = [4, 32], strides = [1, 1]} : vector<4x128xf32> to vector<4x32xf32>
    %280 = arith.negf %279 : vector<4x32xf32>
    %281 = math.exp %280 : vector<4x32xf32>
    %cst_69 = arith.constant 1.000000e+00 : f32
    %282 = vector.broadcast %cst_69 : f32 to vector<4x32xf32>
    %283 = arith.addf %282, %281 : vector<4x32xf32>
    %284 = arith.divf %282, %283 : vector<4x32xf32>
    %285 = arith.mulf %276, %251 : vector<4x32xf32>
    %286 = arith.mulf %270, %278 : vector<4x32xf32>
    %287 = arith.addf %285, %286 : vector<4x32xf32>
    %288 = math.tanh %287 : vector<4x32xf32>
    %289 = arith.mulf %284, %288 : vector<4x32xf32>
    %290 = arith.index_cast %c7_i32 : i32 to index
    %c0_70 = arith.constant 0 : index
    %c0_71 = arith.constant 0 : index
    %291 = vector.load %arg5[%290, %c0_70, %c0_71] : memref<8x4x32xf32, #tpu.memory_space<vmem>>, vector<1x4x32xf32>
    %292 = vector.shape_cast %291 : vector<1x4x32xf32> to vector<4x32xf32>
    %293 = vector.shape_cast %289 : vector<4x32xf32> to vector<1x4x32xf32>
    tpu.vector_store %arg5[%290, %c0_70, %c0_71], %293 {strides = array<i32>} : memref<8x4x32xf32, #tpu.memory_space<vmem>>, vector<1x4x32xf32>,
    %c8_i32 = arith.constant 8 : i32
    %c0_72 = arith.constant 0 : index
    %c0_73 = arith.constant 0 : index
    %c0_74 = arith.constant 0 : index
    %294 = vector.load %arg7[%c0_72, %c0_73, %c0_74] : memref<2x4x32xf32, #tpu.memory_space<vmem>>, vector<1x4x32xf32>
    %295 = vector.shape_cast %294 : vector<1x4x32xf32> to vector<4x32xf32>
    %296 = vector.shape_cast %289 : vector<4x32xf32> to vector<1x4x32xf32>
    tpu.vector_store %arg7[%c0_72, %c0_73, %c0_74], %296 {strides = array<i32>} : memref<2x4x32xf32, #tpu.memory_space<vmem>>, vector<1x4x32xf32>,
    %c0_75 = arith.constant 0 : index
    %c0_76 = arith.constant 0 : index
    %c0_77 = arith.constant 0 : index
    %297 = vector.load %arg8[%c0_75, %c0_76, %c0_77] : memref<2x4x32xf32, #tpu.memory_space<vmem>>, vector<1x4x32xf32>
    %298 = vector.shape_cast %297 : vector<1x4x32xf32> to vector<4x32xf32>
    %299 = vector.shape_cast %287 : vector<4x32xf32> to vector<1x4x32xf32>
    tpu.vector_store %arg8[%c0_75, %c0_76, %c0_77], %299 {strides = array<i32>} : memref<2x4x32xf32, #tpu.memory_space<vmem>>, vector<1x4x32xf32>,
    %c1 = arith.constant 1 : index
    %c0_78 = arith.constant 0 : index
    %c0_79 = arith.constant 0 : index
    %300 = vector.load %arg3[%c1, %c0_78, %c0_79] : memref<2x4x32xf32, #tpu.memory_space<vmem>>, vector<1x4x32xf32>
    %301 = vector.shape_cast %300 : vector<1x4x32xf32> to vector<4x32xf32>
    %c1_80 = arith.constant 1 : index
    %c0_81 = arith.constant 0 : index
    %c0_82 = arith.constant 0 : index
    %302 = vector.load %arg4[%c1_80, %c0_81, %c0_82] : memref<2x4x32xf32, #tpu.memory_space<vmem>>, vector<1x4x32xf32>
    %303 = vector.shape_cast %302 : vector<1x4x32xf32> to vector<4x32xf32>
    %c0_i32_83 = arith.constant 0 : i32
    %c7_i32_84 = arith.constant 7 : i32
    %304 = arith.subi %c7_i32_84, %c0_i32_83 : i32
    %305 = arith.index_cast %304 : i32 to index
    %c0_85 = arith.constant 0 : index
    %c0_86 = arith.constant 0 : index
    %306 = vector.load %arg0[%305, %c0_85, %c0_86] : memref<8x4x256xf32, #tpu.memory_space<vmem>>, vector<1x4x256xf32>
    %307 = vector.shape_cast %306 : vector<1x4x256xf32> to vector<4x256xf32>
    %308 = vector.extract_strided_slice %307 {offsets = [0, 128], sizes = [4, 128], strides = [1, 1]} : vector<4x256xf32> to vector<4x128xf32>
    %309 = arith.truncf %301 : vector<4x32xf32> to vector<4x32xbf16>
    %cst_87 = arith.constant dense<0.000000e+00> : vector<4x128xf32>
    %310 = tpu.matmul %309, %1, %cst_87 {dimension_numbers = #tpu.dot_dimension_numbers<[1], [0], [0], [1], [0, 0, 1, 1], [], []>} : vector<4x32xbf16>, vector<32x128xbf16>, vector<4x128xf32> -> vector<4x128xf32>
    %311 = arith.addf %308, %310 : vector<4x128xf32>
    %312 = vector.extract_strided_slice %311 {offsets = [0, 0], sizes = [4, 32], strides = [1, 1]} : vector<4x128xf32> to vector<4x32xf32>
    %313 = arith.negf %312 : vector<4x32xf32>
    %314 = math.exp %313 : vector<4x32xf32>
    %cst_88 = arith.constant 1.000000e+00 : f32
    %315 = vector.broadcast %cst_88 : f32 to vector<4x32xf32>
    %316 = arith.addf %315, %314 : vector<4x32xf32>
    %317 = arith.divf %315, %316 : vector<4x32xf32>
    %318 = vector.extract_strided_slice %311 {offsets = [0, 32], sizes = [4, 32], strides = [1, 1]} : vector<4x128xf32> to vector<4x32xf32>
    %319 = arith.negf %318 : vector<4x32xf32>
    %320 = math.exp %319 : vector<4x32xf32>
    %cst_89 = arith.constant 1.000000e+00 : f32
    %321 = vector.broadcast %cst_89 : f32 to vector<4x32xf32>
    %322 = arith.addf %321, %320 : vector<4x32xf32>
    %323 = arith.divf %321, %322 : vector<4x32xf32>
    %324 = vector.extract_strided_slice %311 {offsets = [0, 64], sizes = [4, 32], strides = [1, 1]} : vector<4x128xf32> to vector<4x32xf32>
    %325 = math.tanh %324 : vector<4x32xf32>
    %326 = vector.extract_strided_slice %311 {offsets = [0, 96], sizes = [4, 32], strides = [1, 1]} : vector<4x128xf32> to vector<4x32xf32>
    %327 = arith.negf %326 : vector<4x32xf32>
    %328 = math.exp %327 : vector<4x32xf32>
    %cst_90 = arith.constant 1.000000e+00 : f32
    %329 = vector.broadcast %cst_90 : f32 to vector<4x32xf32>
    %330 = arith.addf %329, %328 : vector<4x32xf32>
    %331 = arith.divf %329, %330 : vector<4x32xf32>
    %332 = arith.mulf %323, %303 : vector<4x32xf32>
    %333 = arith.mulf %317, %325 : vector<4x32xf32>
    %334 = arith.addf %332, %333 : vector<4x32xf32>
    %335 = math.tanh %334 : vector<4x32xf32>
    %336 = arith.mulf %331, %335 : vector<4x32xf32>
    %337 = arith.index_cast %304 : i32 to index
    %c0_91 = arith.constant 0 : index
    %c0_92 = arith.constant 0 : index
    %338 = vector.load %arg6[%337, %c0_91, %c0_92] : memref<8x4x32xf32, #tpu.memory_space<vmem>>, vector<1x4x32xf32>
    %339 = vector.shape_cast %338 : vector<1x4x32xf32> to vector<4x32xf32>
    %340 = vector.shape_cast %336 : vector<4x32xf32> to vector<1x4x32xf32>
    tpu.vector_store %arg6[%337, %c0_91, %c0_92], %340 {strides = array<i32>} : memref<8x4x32xf32, #tpu.memory_space<vmem>>, vector<1x4x32xf32>,
    %c1_i32_93 = arith.constant 1 : i32
    %c7_i32_94 = arith.constant 7 : i32
    %341 = arith.subi %c7_i32_94, %c1_i32_93 : i32
    %342 = arith.index_cast %341 : i32 to index
    %c0_95 = arith.constant 0 : index
    %c0_96 = arith.constant 0 : index
    %343 = vector.load %arg0[%342, %c0_95, %c0_96] : memref<8x4x256xf32, #tpu.memory_space<vmem>>, vector<1x4x256xf32>
    %344 = vector.shape_cast %343 : vector<1x4x256xf32> to vector<4x256xf32>
    %345 = vector.extract_strided_slice %344 {offsets = [0, 128], sizes = [4, 128], strides = [1, 1]} : vector<4x256xf32> to vector<4x128xf32>
    %346 = arith.truncf %336 : vector<4x32xf32> to vector<4x32xbf16>
    %cst_97 = arith.constant dense<0.000000e+00> : vector<4x128xf32>
    %347 = tpu.matmul %346, %1, %cst_97 {dimension_numbers = #tpu.dot_dimension_numbers<[1], [0], [0], [1], [0, 0, 1, 1], [], []>} : vector<4x32xbf16>, vector<32x128xbf16>, vector<4x128xf32> -> vector<4x128xf32>
    %348 = arith.addf %345, %347 : vector<4x128xf32>
    %349 = vector.extract_strided_slice %348 {offsets = [0, 0], sizes = [4, 32], strides = [1, 1]} : vector<4x128xf32> to vector<4x32xf32>
    %350 = arith.negf %349 : vector<4x32xf32>
    %351 = math.exp %350 : vector<4x32xf32>
    %cst_98 = arith.constant 1.000000e+00 : f32
    %352 = vector.broadcast %cst_98 : f32 to vector<4x32xf32>
    %353 = arith.addf %352, %351 : vector<4x32xf32>
    %354 = arith.divf %352, %353 : vector<4x32xf32>
    %355 = vector.extract_strided_slice %348 {offsets = [0, 32], sizes = [4, 32], strides = [1, 1]} : vector<4x128xf32> to vector<4x32xf32>
    %356 = arith.negf %355 : vector<4x32xf32>
    %357 = math.exp %356 : vector<4x32xf32>
    %cst_99 = arith.constant 1.000000e+00 : f32
    %358 = vector.broadcast %cst_99 : f32 to vector<4x32xf32>
    %359 = arith.addf %358, %357 : vector<4x32xf32>
    %360 = arith.divf %358, %359 : vector<4x32xf32>
    %361 = vector.extract_strided_slice %348 {offsets = [0, 64], sizes = [4, 32], strides = [1, 1]} : vector<4x128xf32> to vector<4x32xf32>
    %362 = math.tanh %361 : vector<4x32xf32>
    %363 = vector.extract_strided_slice %348 {offsets = [0, 96], sizes = [4, 32], strides = [1, 1]} : vector<4x128xf32> to vector<4x32xf32>
    %364 = arith.negf %363 : vector<4x32xf32>
    %365 = math.exp %364 : vector<4x32xf32>
    %cst_100 = arith.constant 1.000000e+00 : f32
    %366 = vector.broadcast %cst_100 : f32 to vector<4x32xf32>
    %367 = arith.addf %366, %365 : vector<4x32xf32>
    %368 = arith.divf %366, %367 : vector<4x32xf32>
    %369 = arith.mulf %360, %334 : vector<4x32xf32>
    %370 = arith.mulf %354, %362 : vector<4x32xf32>
    %371 = arith.addf %369, %370 : vector<4x32xf32>
    %372 = math.tanh %371 : vector<4x32xf32>
    %373 = arith.mulf %368, %372 : vector<4x32xf32>
    %374 = arith.index_cast %341 : i32 to index
    %c0_101 = arith.constant 0 : index
    %c0_102 = arith.constant 0 : index
    %375 = vector.load %arg6[%374, %c0_101, %c0_102] : memref<8x4x32xf32, #tpu.memory_space<vmem>>, vector<1x4x32xf32>
    %376 = vector.shape_cast %375 : vector<1x4x32xf32> to vector<4x32xf32>
    %377 = vector.shape_cast %373 : vector<4x32xf32> to vector<1x4x32xf32>
    tpu.vector_store %arg6[%374, %c0_101, %c0_102], %377 {strides = array<i32>} : memref<8x4x32xf32, #tpu.memory_space<vmem>>, vector<1x4x32xf32>,
    %c2_i32_103 = arith.constant 2 : i32
    %c7_i32_104 = arith.constant 7 : i32
    %378 = arith.subi %c7_i32_104, %c2_i32_103 : i32
    %379 = arith.index_cast %378 : i32 to index
    %c0_105 = arith.constant 0 : index
    %c0_106 = arith.constant 0 : index
    %380 = vector.load %arg0[%379, %c0_105, %c0_106] : memref<8x4x256xf32, #tpu.memory_space<vmem>>, vector<1x4x256xf32>
    %381 = vector.shape_cast %380 : vector<1x4x256xf32> to vector<4x256xf32>
    %382 = vector.extract_strided_slice %381 {offsets = [0, 128], sizes = [4, 128], strides = [1, 1]} : vector<4x256xf32> to vector<4x128xf32>
    %383 = arith.truncf %373 : vector<4x32xf32> to vector<4x32xbf16>
    %cst_107 = arith.constant dense<0.000000e+00> : vector<4x128xf32>
    %384 = tpu.matmul %383, %1, %cst_107 {dimension_numbers = #tpu.dot_dimension_numbers<[1], [0], [0], [1], [0, 0, 1, 1], [], []>} : vector<4x32xbf16>, vector<32x128xbf16>, vector<4x128xf32> -> vector<4x128xf32>
    %385 = arith.addf %382, %384 : vector<4x128xf32>
    %386 = vector.extract_strided_slice %385 {offsets = [0, 0], sizes = [4, 32], strides = [1, 1]} : vector<4x128xf32> to vector<4x32xf32>
    %387 = arith.negf %386 : vector<4x32xf32>
    %388 = math.exp %387 : vector<4x32xf32>
    %cst_108 = arith.constant 1.000000e+00 : f32
    %389 = vector.broadcast %cst_108 : f32 to vector<4x32xf32>
    %390 = arith.addf %389, %388 : vector<4x32xf32>
    %391 = arith.divf %389, %390 : vector<4x32xf32>
    %392 = vector.extract_strided_slice %385 {offsets = [0, 32], sizes = [4, 32], strides = [1, 1]} : vector<4x128xf32> to vector<4x32xf32>
    %393 = arith.negf %392 : vector<4x32xf32>
    %394 = math.exp %393 : vector<4x32xf32>
    %cst_109 = arith.constant 1.000000e+00 : f32
    %395 = vector.broadcast %cst_109 : f32 to vector<4x32xf32>
    %396 = arith.addf %395, %394 : vector<4x32xf32>
    %397 = arith.divf %395, %396 : vector<4x32xf32>
    %398 = vector.extract_strided_slice %385 {offsets = [0, 64], sizes = [4, 32], strides = [1, 1]} : vector<4x128xf32> to vector<4x32xf32>
    %399 = math.tanh %398 : vector<4x32xf32>
    %400 = vector.extract_strided_slice %385 {offsets = [0, 96], sizes = [4, 32], strides = [1, 1]} : vector<4x128xf32> to vector<4x32xf32>
    %401 = arith.negf %400 : vector<4x32xf32>
    %402 = math.exp %401 : vector<4x32xf32>
    %cst_110 = arith.constant 1.000000e+00 : f32
    %403 = vector.broadcast %cst_110 : f32 to vector<4x32xf32>
    %404 = arith.addf %403, %402 : vector<4x32xf32>
    %405 = arith.divf %403, %404 : vector<4x32xf32>
    %406 = arith.mulf %397, %371 : vector<4x32xf32>
    %407 = arith.mulf %391, %399 : vector<4x32xf32>
    %408 = arith.addf %406, %407 : vector<4x32xf32>
    %409 = math.tanh %408 : vector<4x32xf32>
    %410 = arith.mulf %405, %409 : vector<4x32xf32>
    %411 = arith.index_cast %378 : i32 to index
    %c0_111 = arith.constant 0 : index
    %c0_112 = arith.constant 0 : index
    %412 = vector.load %arg6[%411, %c0_111, %c0_112] : memref<8x4x32xf32, #tpu.memory_space<vmem>>, vector<1x4x32xf32>
    %413 = vector.shape_cast %412 : vector<1x4x32xf32> to vector<4x32xf32>
    %414 = vector.shape_cast %410 : vector<4x32xf32> to vector<1x4x32xf32>
    tpu.vector_store %arg6[%411, %c0_111, %c0_112], %414 {strides = array<i32>} : memref<8x4x32xf32, #tpu.memory_space<vmem>>, vector<1x4x32xf32>,
    %c3_i32_113 = arith.constant 3 : i32
    %c7_i32_114 = arith.constant 7 : i32
    %415 = arith.subi %c7_i32_114, %c3_i32_113 : i32
    %416 = arith.index_cast %415 : i32 to index
    %c0_115 = arith.constant 0 : index
    %c0_116 = arith.constant 0 : index
    %417 = vector.load %arg0[%416, %c0_115, %c0_116] : memref<8x4x256xf32, #tpu.memory_space<vmem>>, vector<1x4x256xf32>
    %418 = vector.shape_cast %417 : vector<1x4x256xf32> to vector<4x256xf32>
    %419 = vector.extract_strided_slice %418 {offsets = [0, 128], sizes = [4, 128], strides = [1, 1]} : vector<4x256xf32> to vector<4x128xf32>
    %420 = arith.truncf %410 : vector<4x32xf32> to vector<4x32xbf16>
    %cst_117 = arith.constant dense<0.000000e+00> : vector<4x128xf32>
    %421 = tpu.matmul %420, %1, %cst_117 {dimension_numbers = #tpu.dot_dimension_numbers<[1], [0], [0], [1], [0, 0, 1, 1], [], []>} : vector<4x32xbf16>, vector<32x128xbf16>, vector<4x128xf32> -> vector<4x128xf32>
    %422 = arith.addf %419, %421 : vector<4x128xf32>
    %423 = vector.extract_strided_slice %422 {offsets = [0, 0], sizes = [4, 32], strides = [1, 1]} : vector<4x128xf32> to vector<4x32xf32>
    %424 = arith.negf %423 : vector<4x32xf32>
    %425 = math.exp %424 : vector<4x32xf32>
    %cst_118 = arith.constant 1.000000e+00 : f32
    %426 = vector.broadcast %cst_118 : f32 to vector<4x32xf32>
    %427 = arith.addf %426, %425 : vector<4x32xf32>
    %428 = arith.divf %426, %427 : vector<4x32xf32>
    %429 = vector.extract_strided_slice %422 {offsets = [0, 32], sizes = [4, 32], strides = [1, 1]} : vector<4x128xf32> to vector<4x32xf32>
    %430 = arith.negf %429 : vector<4x32xf32>
    %431 = math.exp %430 : vector<4x32xf32>
    %cst_119 = arith.constant 1.000000e+00 : f32
    %432 = vector.broadcast %cst_119 : f32 to vector<4x32xf32>
    %433 = arith.addf %432, %431 : vector<4x32xf32>
    %434 = arith.divf %432, %433 : vector<4x32xf32>
    %435 = vector.extract_strided_slice %422 {offsets = [0, 64], sizes = [4, 32], strides = [1, 1]} : vector<4x128xf32> to vector<4x32xf32>
    %436 = math.tanh %435 : vector<4x32xf32>
    %437 = vector.extract_strided_slice %422 {offsets = [0, 96], sizes = [4, 32], strides = [1, 1]} : vector<4x128xf32> to vector<4x32xf32>
    %438 = arith.negf %437 : vector<4x32xf32>
    %439 = math.exp %438 : vector<4x32xf32>
    %cst_120 = arith.constant 1.000000e+00 : f32
    %440 = vector.broadcast %cst_120 : f32 to vector<4x32xf32>
    %441 = arith.addf %440, %439 : vector<4x32xf32>
    %442 = arith.divf %440, %441 : vector<4x32xf32>
    %443 = arith.mulf %434, %408 : vector<4x32xf32>
    %444 = arith.mulf %428, %436 : vector<4x32xf32>
    %445 = arith.addf %443, %444 : vector<4x32xf32>
    %446 = math.tanh %445 : vector<4x32xf32>
    %447 = arith.mulf %442, %446 : vector<4x32xf32>
    %448 = arith.index_cast %415 : i32 to index
    %c0_121 = arith.constant 0 : index
    %c0_122 = arith.constant 0 : index
    %449 = vector.load %arg6[%448, %c0_121, %c0_122] : memref<8x4x32xf32, #tpu.memory_space<vmem>>, vector<1x4x32xf32>
    %450 = vector.shape_cast %449 : vector<1x4x32xf32> to vector<4x32xf32>
    %451 = vector.shape_cast %447 : vector<4x32xf32> to vector<1x4x32xf32>
    tpu.vector_store %arg6[%448, %c0_121, %c0_122], %451 {strides = array<i32>} : memref<8x4x32xf32, #tpu.memory_space<vmem>>, vector<1x4x32xf32>,
    %c4_i32_123 = arith.constant 4 : i32
    %c7_i32_124 = arith.constant 7 : i32
    %452 = arith.subi %c7_i32_124, %c4_i32_123 : i32
    %453 = arith.index_cast %452 : i32 to index
    %c0_125 = arith.constant 0 : index
    %c0_126 = arith.constant 0 : index
    %454 = vector.load %arg0[%453, %c0_125, %c0_126] : memref<8x4x256xf32, #tpu.memory_space<vmem>>, vector<1x4x256xf32>
    %455 = vector.shape_cast %454 : vector<1x4x256xf32> to vector<4x256xf32>
    %456 = vector.extract_strided_slice %455 {offsets = [0, 128], sizes = [4, 128], strides = [1, 1]} : vector<4x256xf32> to vector<4x128xf32>
    %457 = arith.truncf %447 : vector<4x32xf32> to vector<4x32xbf16>
    %cst_127 = arith.constant dense<0.000000e+00> : vector<4x128xf32>
    %458 = tpu.matmul %457, %1, %cst_127 {dimension_numbers = #tpu.dot_dimension_numbers<[1], [0], [0], [1], [0, 0, 1, 1], [], []>} : vector<4x32xbf16>, vector<32x128xbf16>, vector<4x128xf32> -> vector<4x128xf32>
    %459 = arith.addf %456, %458 : vector<4x128xf32>
    %460 = vector.extract_strided_slice %459 {offsets = [0, 0], sizes = [4, 32], strides = [1, 1]} : vector<4x128xf32> to vector<4x32xf32>
    %461 = arith.negf %460 : vector<4x32xf32>
    %462 = math.exp %461 : vector<4x32xf32>
    %cst_128 = arith.constant 1.000000e+00 : f32
    %463 = vector.broadcast %cst_128 : f32 to vector<4x32xf32>
    %464 = arith.addf %463, %462 : vector<4x32xf32>
    %465 = arith.divf %463, %464 : vector<4x32xf32>
    %466 = vector.extract_strided_slice %459 {offsets = [0, 32], sizes = [4, 32], strides = [1, 1]} : vector<4x128xf32> to vector<4x32xf32>
    %467 = arith.negf %466 : vector<4x32xf32>
    %468 = math.exp %467 : vector<4x32xf32>
    %cst_129 = arith.constant 1.000000e+00 : f32
    %469 = vector.broadcast %cst_129 : f32 to vector<4x32xf32>
    %470 = arith.addf %469, %468 : vector<4x32xf32>
    %471 = arith.divf %469, %470 : vector<4x32xf32>
    %472 = vector.extract_strided_slice %459 {offsets = [0, 64], sizes = [4, 32], strides = [1, 1]} : vector<4x128xf32> to vector<4x32xf32>
    %473 = math.tanh %472 : vector<4x32xf32>
    %474 = vector.extract_strided_slice %459 {offsets = [0, 96], sizes = [4, 32], strides = [1, 1]} : vector<4x128xf32> to vector<4x32xf32>
    %475 = arith.negf %474 : vector<4x32xf32>
    %476 = math.exp %475 : vector<4x32xf32>
    %cst_130 = arith.constant 1.000000e+00 : f32
    %477 = vector.broadcast %cst_130 : f32 to vector<4x32xf32>
    %478 = arith.addf %477, %476 : vector<4x32xf32>
    %479 = arith.divf %477, %478 : vector<4x32xf32>
    %480 = arith.mulf %471, %445 : vector<4x32xf32>
    %481 = arith.mulf %465, %473 : vector<4x32xf32>
    %482 = arith.addf %480, %481 : vector<4x32xf32>
    %483 = math.tanh %482 : vector<4x32xf32>
    %484 = arith.mulf %479, %483 : vector<4x32xf32>
    %485 = arith.index_cast %452 : i32 to index
    %c0_131 = arith.constant 0 : index
    %c0_132 = arith.constant 0 : index
    %486 = vector.load %arg6[%485, %c0_131, %c0_132] : memref<8x4x32xf32, #tpu.memory_space<vmem>>, vector<1x4x32xf32>
    %487 = vector.shape_cast %486 : vector<1x4x32xf32> to vector<4x32xf32>
    %488 = vector.shape_cast %484 : vector<4x32xf32> to vector<1x4x32xf32>
    tpu.vector_store %arg6[%485, %c0_131, %c0_132], %488 {strides = array<i32>} : memref<8x4x32xf32, #tpu.memory_space<vmem>>, vector<1x4x32xf32>,
    %c5_i32_133 = arith.constant 5 : i32
    %c7_i32_134 = arith.constant 7 : i32
    %489 = arith.subi %c7_i32_134, %c5_i32_133 : i32
    %490 = arith.index_cast %489 : i32 to index
    %c0_135 = arith.constant 0 : index
    %c0_136 = arith.constant 0 : index
    %491 = vector.load %arg0[%490, %c0_135, %c0_136] : memref<8x4x256xf32, #tpu.memory_space<vmem>>, vector<1x4x256xf32>
    %492 = vector.shape_cast %491 : vector<1x4x256xf32> to vector<4x256xf32>
    %493 = vector.extract_strided_slice %492 {offsets = [0, 128], sizes = [4, 128], strides = [1, 1]} : vector<4x256xf32> to vector<4x128xf32>
    %494 = arith.truncf %484 : vector<4x32xf32> to vector<4x32xbf16>
    %cst_137 = arith.constant dense<0.000000e+00> : vector<4x128xf32>
    %495 = tpu.matmul %494, %1, %cst_137 {dimension_numbers = #tpu.dot_dimension_numbers<[1], [0], [0], [1], [0, 0, 1, 1], [], []>} : vector<4x32xbf16>, vector<32x128xbf16>, vector<4x128xf32> -> vector<4x128xf32>
    %496 = arith.addf %493, %495 : vector<4x128xf32>
    %497 = vector.extract_strided_slice %496 {offsets = [0, 0], sizes = [4, 32], strides = [1, 1]} : vector<4x128xf32> to vector<4x32xf32>
    %498 = arith.negf %497 : vector<4x32xf32>
    %499 = math.exp %498 : vector<4x32xf32>
    %cst_138 = arith.constant 1.000000e+00 : f32
    %500 = vector.broadcast %cst_138 : f32 to vector<4x32xf32>
    %501 = arith.addf %500, %499 : vector<4x32xf32>
    %502 = arith.divf %500, %501 : vector<4x32xf32>
    %503 = vector.extract_strided_slice %496 {offsets = [0, 32], sizes = [4, 32], strides = [1, 1]} : vector<4x128xf32> to vector<4x32xf32>
    %504 = arith.negf %503 : vector<4x32xf32>
    %505 = math.exp %504 : vector<4x32xf32>
    %cst_139 = arith.constant 1.000000e+00 : f32
    %506 = vector.broadcast %cst_139 : f32 to vector<4x32xf32>
    %507 = arith.addf %506, %505 : vector<4x32xf32>
    %508 = arith.divf %506, %507 : vector<4x32xf32>
    %509 = vector.extract_strided_slice %496 {offsets = [0, 64], sizes = [4, 32], strides = [1, 1]} : vector<4x128xf32> to vector<4x32xf32>
    %510 = math.tanh %509 : vector<4x32xf32>
    %511 = vector.extract_strided_slice %496 {offsets = [0, 96], sizes = [4, 32], strides = [1, 1]} : vector<4x128xf32> to vector<4x32xf32>
    %512 = arith.negf %511 : vector<4x32xf32>
    %513 = math.exp %512 : vector<4x32xf32>
    %cst_140 = arith.constant 1.000000e+00 : f32
    %514 = vector.broadcast %cst_140 : f32 to vector<4x32xf32>
    %515 = arith.addf %514, %513 : vector<4x32xf32>
    %516 = arith.divf %514, %515 : vector<4x32xf32>
    %517 = arith.mulf %508, %482 : vector<4x32xf32>
    %518 = arith.mulf %502, %510 : vector<4x32xf32>
    %519 = arith.addf %517, %518 : vector<4x32xf32>
    %520 = math.tanh %519 : vector<4x32xf32>
    %521 = arith.mulf %516, %520 : vector<4x32xf32>
    %522 = arith.index_cast %489 : i32 to index
    %c0_141 = arith.constant 0 : index
    %c0_142 = arith.constant 0 : index
    %523 = vector.load %arg6[%522, %c0_141, %c0_142] : memref<8x4x32xf32, #tpu.memory_space<vmem>>, vector<1x4x32xf32>
    %524 = vector.shape_cast %523 : vector<1x4x32xf32> to vector<4x32xf32>
    %525 = vector.shape_cast %521 : vector<4x32xf32> to vector<1x4x32xf32>
    tpu.vector_store %arg6[%522, %c0_141, %c0_142], %525 {strides = array<i32>} : memref<8x4x32xf32, #tpu.memory_space<vmem>>, vector<1x4x32xf32>,
    %c6_i32_143 = arith.constant 6 : i32
    %c7_i32_144 = arith.constant 7 : i32
    %526 = arith.subi %c7_i32_144, %c6_i32_143 : i32
    %527 = arith.index_cast %526 : i32 to index
    %c0_145 = arith.constant 0 : index
    %c0_146 = arith.constant 0 : index
    %528 = vector.load %arg0[%527, %c0_145, %c0_146] : memref<8x4x256xf32, #tpu.memory_space<vmem>>, vector<1x4x256xf32>
    %529 = vector.shape_cast %528 : vector<1x4x256xf32> to vector<4x256xf32>
    %530 = vector.extract_strided_slice %529 {offsets = [0, 128], sizes = [4, 128], strides = [1, 1]} : vector<4x256xf32> to vector<4x128xf32>
    %531 = arith.truncf %521 : vector<4x32xf32> to vector<4x32xbf16>
    %cst_147 = arith.constant dense<0.000000e+00> : vector<4x128xf32>
    %532 = tpu.matmul %531, %1, %cst_147 {dimension_numbers = #tpu.dot_dimension_numbers<[1], [0], [0], [1], [0, 0, 1, 1], [], []>} : vector<4x32xbf16>, vector<32x128xbf16>, vector<4x128xf32> -> vector<4x128xf32>
    %533 = arith.addf %530, %532 : vector<4x128xf32>
    %534 = vector.extract_strided_slice %533 {offsets = [0, 0], sizes = [4, 32], strides = [1, 1]} : vector<4x128xf32> to vector<4x32xf32>
    %535 = arith.negf %534 : vector<4x32xf32>
    %536 = math.exp %535 : vector<4x32xf32>
    %cst_148 = arith.constant 1.000000e+00 : f32
    %537 = vector.broadcast %cst_148 : f32 to vector<4x32xf32>
    %538 = arith.addf %537, %536 : vector<4x32xf32>
    %539 = arith.divf %537, %538 : vector<4x32xf32>
    %540 = vector.extract_strided_slice %533 {offsets = [0, 32], sizes = [4, 32], strides = [1, 1]} : vector<4x128xf32> to vector<4x32xf32>
    %541 = arith.negf %540 : vector<4x32xf32>
    %542 = math.exp %541 : vector<4x32xf32>
    %cst_149 = arith.constant 1.000000e+00 : f32
    %543 = vector.broadcast %cst_149 : f32 to vector<4x32xf32>
    %544 = arith.addf %543, %542 : vector<4x32xf32>
    %545 = arith.divf %543, %544 : vector<4x32xf32>
    %546 = vector.extract_strided_slice %533 {offsets = [0, 64], sizes = [4, 32], strides = [1, 1]} : vector<4x128xf32> to vector<4x32xf32>
    %547 = math.tanh %546 : vector<4x32xf32>
    %548 = vector.extract_strided_slice %533 {offsets = [0, 96], sizes = [4, 32], strides = [1, 1]} : vector<4x128xf32> to vector<4x32xf32>
    %549 = arith.negf %548 : vector<4x32xf32>
    %550 = math.exp %549 : vector<4x32xf32>
    %cst_150 = arith.constant 1.000000e+00 : f32
    %551 = vector.broadcast %cst_150 : f32 to vector<4x32xf32>
    %552 = arith.addf %551, %550 : vector<4x32xf32>
    %553 = arith.divf %551, %552 : vector<4x32xf32>
    %554 = arith.mulf %545, %519 : vector<4x32xf32>
    %555 = arith.mulf %539, %547 : vector<4x32xf32>
    %556 = arith.addf %554, %555 : vector<4x32xf32>
    %557 = math.tanh %556 : vector<4x32xf32>
    %558 = arith.mulf %553, %557 : vector<4x32xf32>
    %559 = arith.index_cast %526 : i32 to index
    %c0_151 = arith.constant 0 : index
    %c0_152 = arith.constant 0 : index
    %560 = vector.load %arg6[%559, %c0_151, %c0_152] : memref<8x4x32xf32, #tpu.memory_space<vmem>>, vector<1x4x32xf32>
    %561 = vector.shape_cast %560 : vector<1x4x32xf32> to vector<4x32xf32>
    %562 = vector.shape_cast %558 : vector<4x32xf32> to vector<1x4x32xf32>
    tpu.vector_store %arg6[%559, %c0_151, %c0_152], %562 {strides = array<i32>} : memref<8x4x32xf32, #tpu.memory_space<vmem>>, vector<1x4x32xf32>,
    %c7_i32_153 = arith.constant 7 : i32
    %c7_i32_154 = arith.constant 7 : i32
    %563 = arith.subi %c7_i32_154, %c7_i32_153 : i32
    %564 = arith.index_cast %563 : i32 to index
    %c0_155 = arith.constant 0 : index
    %c0_156 = arith.constant 0 : index
    %565 = vector.load %arg0[%564, %c0_155, %c0_156] : memref<8x4x256xf32, #tpu.memory_space<vmem>>, vector<1x4x256xf32>
    %566 = vector.shape_cast %565 : vector<1x4x256xf32> to vector<4x256xf32>
    %567 = vector.extract_strided_slice %566 {offsets = [0, 128], sizes = [4, 128], strides = [1, 1]} : vector<4x256xf32> to vector<4x128xf32>
    %568 = arith.truncf %558 : vector<4x32xf32> to vector<4x32xbf16>
    %cst_157 = arith.constant dense<0.000000e+00> : vector<4x128xf32>
    %569 = tpu.matmul %568, %1, %cst_157 {dimension_numbers = #tpu.dot_dimension_numbers<[1], [0], [0], [1], [0, 0, 1, 1], [], []>} : vector<4x32xbf16>, vector<32x128xbf16>, vector<4x128xf32> -> vector<4x128xf32>
    %570 = arith.addf %567, %569 : vector<4x128xf32>
    %571 = vector.extract_strided_slice %570 {offsets = [0, 0], sizes = [4, 32], strides = [1, 1]} : vector<4x128xf32> to vector<4x32xf32>
    %572 = arith.negf %571 : vector<4x32xf32>
    %573 = math.exp %572 : vector<4x32xf32>
    %cst_158 = arith.constant 1.000000e+00 : f32
    %574 = vector.broadcast %cst_158 : f32 to vector<4x32xf32>
    %575 = arith.addf %574, %573 : vector<4x32xf32>
    %576 = arith.divf %574, %575 : vector<4x32xf32>
    %577 = vector.extract_strided_slice %570 {offsets = [0, 32], sizes = [4, 32], strides = [1, 1]} : vector<4x128xf32> to vector<4x32xf32>
    %578 = arith.negf %577 : vector<4x32xf32>
    %579 = math.exp %578 : vector<4x32xf32>
    %cst_159 = arith.constant 1.000000e+00 : f32
    %580 = vector.broadcast %cst_159 : f32 to vector<4x32xf32>
    %581 = arith.addf %580, %579 : vector<4x32xf32>
    %582 = arith.divf %580, %581 : vector<4x32xf32>
    %583 = vector.extract_strided_slice %570 {offsets = [0, 64], sizes = [4, 32], strides = [1, 1]} : vector<4x128xf32> to vector<4x32xf32>
    %584 = math.tanh %583 : vector<4x32xf32>
    %585 = vector.extract_strided_slice %570 {offsets = [0, 96], sizes = [4, 32], strides = [1, 1]} : vector<4x128xf32> to vector<4x32xf32>
    %586 = arith.negf %585 : vector<4x32xf32>
    %587 = math.exp %586 : vector<4x32xf32>
    %cst_160 = arith.constant 1.000000e+00 : f32
    %588 = vector.broadcast %cst_160 : f32 to vector<4x32xf32>
    %589 = arith.addf %588, %587 : vector<4x32xf32>
    %590 = arith.divf %588, %589 : vector<4x32xf32>
    %591 = arith.mulf %582, %556 : vector<4x32xf32>
    %592 = arith.mulf %576, %584 : vector<4x32xf32>
    %593 = arith.addf %591, %592 : vector<4x32xf32>
    %594 = math.tanh %593 : vector<4x32xf32>
    %595 = arith.mulf %590, %594 : vector<4x32xf32>
    %596 = arith.index_cast %563 : i32 to index
    %c0_161 = arith.constant 0 : index
    %c0_162 = arith.constant 0 : index
    %597 = vector.load %arg6[%596, %c0_161, %c0_162] : memref<8x4x32xf32, #tpu.memory_space<vmem>>, vector<1x4x32xf32>
    %598 = vector.shape_cast %597 : vector<1x4x32xf32> to vector<4x32xf32>
    %599 = vector.shape_cast %595 : vector<4x32xf32> to vector<1x4x32xf32>
    tpu.vector_store %arg6[%596, %c0_161, %c0_162], %599 {strides = array<i32>} : memref<8x4x32xf32, #tpu.memory_space<vmem>>, vector<1x4x32xf32>,
    %c8_i32_163 = arith.constant 8 : i32
    %c1_164 = arith.constant 1 : index
    %c0_165 = arith.constant 0 : index
    %c0_166 = arith.constant 0 : index
    %600 = vector.load %arg7[%c1_164, %c0_165, %c0_166] : memref<2x4x32xf32, #tpu.memory_space<vmem>>, vector<1x4x32xf32>
    %601 = vector.shape_cast %600 : vector<1x4x32xf32> to vector<4x32xf32>
    %602 = vector.shape_cast %595 : vector<4x32xf32> to vector<1x4x32xf32>
    tpu.vector_store %arg7[%c1_164, %c0_165, %c0_166], %602 {strides = array<i32>} : memref<2x4x32xf32, #tpu.memory_space<vmem>>, vector<1x4x32xf32>,
    %c1_167 = arith.constant 1 : index
    %c0_168 = arith.constant 0 : index
    %c0_169 = arith.constant 0 : index
    %603 = vector.load %arg8[%c1_167, %c0_168, %c0_169] : memref<2x4x32xf32, #tpu.memory_space<vmem>>, vector<1x4x32xf32>
    %604 = vector.shape_cast %603 : vector<1x4x32xf32> to vector<4x32xf32>
    %605 = vector.shape_cast %593 : vector<4x32xf32> to vector<1x4x32xf32>
    tpu.vector_store %arg8[%c1_167, %c0_168, %c0_169], %605 {strides = array<i32>} : memref<2x4x32xf32, #tpu.memory_space<vmem>>, vector<1x4x32xf32>,
    return
  }
}

module attributes {stable_mosaic.version = 11 : i64} {
  func.func @_coattn_kernel(%arg0: memref<2x8x64xf32, #tpu.memory_space<vmem>>, %arg1: memref<2x8x64xf32, #tpu.memory_space<vmem>>, %arg2: memref<2x8x64xf32, #tpu.memory_space<vmem>>, %arg3: memref<2x8x64xf32, #tpu.memory_space<vmem>>) attributes {dimension_semantics = [], scalar_prefetch = 0 : i64, scratch_operands = 0 : i64, tpu.core_type = #tpu.core_type<tc>} {
    %c0 = arith.constant 0 : index
    %c0_0 = arith.constant 0 : index
    %c0_1 = arith.constant 0 : index
    %0 = vector.load %arg0[%c0, %c0_0, %c0_1] : memref<2x8x64xf32, #tpu.memory_space<vmem>>, vector<2x8x64xf32>
    %c0_2 = arith.constant 0 : index
    %c0_3 = arith.constant 0 : index
    %c0_4 = arith.constant 0 : index
    %1 = vector.load %arg1[%c0_2, %c0_3, %c0_4] : memref<2x8x64xf32, #tpu.memory_space<vmem>>, vector<2x8x64xf32>
    %2 = arith.mulf %0, %0 : vector<2x8x64xf32>
    %cst = arith.constant dense<0.000000e+00> : vector<2x8xf32>
    %3 = vector.multi_reduction <add>, %2, %cst [2] : vector<2x8x64xf32> to vector<2x8xf32>
    %4 = vector.shape_cast %3 : vector<2x8xf32> to vector<2x8x1xf32>
    %5 = math.sqrt %4 : vector<2x8x1xf32>
    %6 = arith.mulf %1, %1 : vector<2x8x64xf32>
    %cst_5 = arith.constant dense<0.000000e+00> : vector<2x8xf32>
    %7 = vector.multi_reduction <add>, %6, %cst_5 [2] : vector<2x8x64xf32> to vector<2x8xf32>
    %8 = vector.shape_cast %7 : vector<2x8xf32> to vector<2x8x1xf32>
    %9 = math.sqrt %8 : vector<2x8x1xf32>
    %10 = arith.mulf %0, %0 : vector<2x8x64xf32>
    %cst_6 = arith.constant dense<0.000000e+00> : vector<2x8xf32>
    %11 = vector.multi_reduction <add>, %10, %cst_6 [2] : vector<2x8x64xf32> to vector<2x8xf32>
    %12 = math.sqrt %11 : vector<2x8xf32>
    %13 = vector.shape_cast %12 : vector<2x8xf32> to vector<2x1x8xf32>
    %14 = arith.mulf %1, %1 : vector<2x8x64xf32>
    %cst_7 = arith.constant dense<0.000000e+00> : vector<2x8xf32>
    %15 = vector.multi_reduction <add>, %14, %cst_7 [2] : vector<2x8x64xf32> to vector<2x8xf32>
    %16 = math.sqrt %15 : vector<2x8xf32>
    %17 = vector.shape_cast %16 : vector<2x8xf32> to vector<2x1x8xf32>
    "tpu.trace_start"() <{level = 10 : i32, message = "bqd,bkd->bqk"}> : () -> ()
    %cst_8 = arith.constant dense<0.000000e+00> : vector<2x8x8xf32>
    %18 = tpu.matmul %0, %1, %cst_8 {dimension_numbers = #tpu.dot_dimension_numbers<[2], [2], [1], [1], [0, 0, 0, 1, 1, 1], [0], [0]>} : vector<2x8x64xf32>, vector<2x8x64xf32>, vector<2x8x8xf32> -> vector<2x8x8xf32>
    %cst_9 = arith.constant dense<0.000000e+00> : vector<2x8x8xf32>
    %19 = tpu.matmul %1, %0, %cst_9 {dimension_numbers = #tpu.dot_dimension_numbers<[2], [2], [1], [1], [0, 0, 0, 1, 1, 1], [0], [0]>} : vector<2x8x64xf32>, vector<2x8x64xf32>, vector<2x8x8xf32> -> vector<2x8x8xf32>
    "tpu.trace_stop"() : () -> ()
    %20 = vector.broadcast %5 : vector<2x8x1xf32> to vector<2x8x8xf32>
    %21 = vector.broadcast %17 : vector<2x1x8xf32> to vector<2x8x8xf32>
    %22 = arith.mulf %20, %21 : vector<2x8x8xf32>
    %cst_10 = arith.constant 9.99999993E-9 : f32
    %23 = vector.broadcast %cst_10 : f32 to vector<2x8x8xf32>
    %24 = arith.maximumf %22, %23 : vector<2x8x8xf32>
    %25 = arith.divf %18, %24 : vector<2x8x8xf32>
    %26 = vector.broadcast %9 : vector<2x8x1xf32> to vector<2x8x8xf32>
    %27 = vector.broadcast %13 : vector<2x1x8xf32> to vector<2x8x8xf32>
    %28 = arith.mulf %26, %27 : vector<2x8x8xf32>
    %cst_11 = arith.constant 9.99999993E-9 : f32
    %29 = vector.broadcast %cst_11 : f32 to vector<2x8x8xf32>
    %30 = arith.maximumf %28, %29 : vector<2x8x8xf32>
    %31 = arith.divf %19, %30 : vector<2x8x8xf32>
    %cst_12 = arith.constant dense<0xFF800000> : vector<2x8xf32>
    %32 = vector.multi_reduction <maximumf>, %25, %cst_12 [2] : vector<2x8x8xf32> to vector<2x8xf32>
    %cst_13 = arith.constant 0xFF800000 : f32
    %33 = vector.broadcast %cst_13 : f32 to vector<2x8xf32>
    %34 = arith.maximumf %33, %32 : vector<2x8xf32>
    %35 = vector.shape_cast %34 : vector<2x8xf32> to vector<2x8x1xf32>
    %36 = vector.broadcast %35 : vector<2x8x1xf32> to vector<2x8x8xf32>
    %37 = arith.subf %25, %36 : vector<2x8x8xf32>
    %38 = math.exp %37 : vector<2x8x8xf32>
    %cst_14 = arith.constant dense<0.000000e+00> : vector<2x8xf32>
    %39 = vector.multi_reduction <add>, %38, %cst_14 [2] : vector<2x8x8xf32> to vector<2x8xf32>
    %40 = vector.shape_cast %39 : vector<2x8xf32> to vector<2x8x1xf32>
    %41 = vector.broadcast %40 : vector<2x8x1xf32> to vector<2x8x8xf32>
    %42 = arith.divf %38, %41 : vector<2x8x8xf32>
    %cst_15 = arith.constant dense<0xFF800000> : vector<2x8xf32>
    %43 = vector.multi_reduction <maximumf>, %31, %cst_15 [2] : vector<2x8x8xf32> to vector<2x8xf32>
    %cst_16 = arith.constant 0xFF800000 : f32
    %44 = vector.broadcast %cst_16 : f32 to vector<2x8xf32>
    %45 = arith.maximumf %44, %43 : vector<2x8xf32>
    %46 = vector.shape_cast %45 : vector<2x8xf32> to vector<2x8x1xf32>
    %47 = vector.broadcast %46 : vector<2x8x1xf32> to vector<2x8x8xf32>
    %48 = arith.subf %31, %47 : vector<2x8x8xf32>
    %49 = math.exp %48 : vector<2x8x8xf32>
    %cst_17 = arith.constant dense<0.000000e+00> : vector<2x8xf32>
    %50 = vector.multi_reduction <add>, %49, %cst_17 [2] : vector<2x8x8xf32> to vector<2x8xf32>
    %51 = vector.shape_cast %50 : vector<2x8xf32> to vector<2x8x1xf32>
    %52 = vector.broadcast %51 : vector<2x8x1xf32> to vector<2x8x8xf32>
    %53 = arith.divf %49, %52 : vector<2x8x8xf32>
    "tpu.trace_start"() <{level = 10 : i32, message = "bqk,bkd->bqd"}> : () -> ()
    %cst_18 = arith.constant dense<0.000000e+00> : vector<2x8x64xf32>
    %54 = tpu.matmul %42, %1, %cst_18 {dimension_numbers = #tpu.dot_dimension_numbers<[2], [1], [1], [2], [0, 0, 0, 1, 1, 2], [0], [0]>} : vector<2x8x8xf32>, vector<2x8x64xf32>, vector<2x8x64xf32> -> vector<2x8x64xf32>
    "tpu.trace_stop"() : () -> ()
    %c0_19 = arith.constant 0 : index
    %c0_20 = arith.constant 0 : index
    %c0_21 = arith.constant 0 : index
    %55 = vector.load %arg2[%c0_19, %c0_20, %c0_21] : memref<2x8x64xf32, #tpu.memory_space<vmem>>, vector<2x8x64xf32>
    tpu.vector_store %arg2[%c0_19, %c0_20, %c0_21], %54 {strides = array<i32>} : memref<2x8x64xf32, #tpu.memory_space<vmem>>, vector<2x8x64xf32>,
    "tpu.trace_start"() <{level = 10 : i32, message = "bqk,bkd->bqd"}> : () -> ()
    %cst_22 = arith.constant dense<0.000000e+00> : vector<2x8x64xf32>
    %56 = tpu.matmul %53, %0, %cst_22 {dimension_numbers = #tpu.dot_dimension_numbers<[2], [1], [1], [2], [0, 0, 0, 1, 1, 2], [0], [0]>} : vector<2x8x8xf32>, vector<2x8x64xf32>, vector<2x8x64xf32> -> vector<2x8x64xf32>
    "tpu.trace_stop"() : () -> ()
    %c0_23 = arith.constant 0 : index
    %c0_24 = arith.constant 0 : index
    %c0_25 = arith.constant 0 : index
    %57 = vector.load %arg3[%c0_23, %c0_24, %c0_25] : memref<2x8x64xf32, #tpu.memory_space<vmem>>, vector<2x8x64xf32>
    tpu.vector_store %arg3[%c0_23, %c0_24, %c0_25], %56 {strides = array<i32>} : memref<2x8x64xf32, #tpu.memory_space<vmem>>, vector<2x8x64xf32>,
    return
  }
}

module attributes {stable_mosaic.version = 11 : i64} {
  func.func @_dense_kernel(%arg0: i32, %arg1: memref<32x160xbf16, #tpu.memory_space<vmem>>, %arg2: memref<160x128xbf16, #tpu.memory_space<vmem>>, %arg3: memref<1x128xf32, #tpu.memory_space<vmem>>, %arg4: memref<32x128xf32, #tpu.memory_space<vmem>>) attributes {dimension_semantics = [#tpu.dimension_semantics<parallel>], iteration_bounds = array<i64: 1>, scalar_prefetch = 0 : i64, scratch_operands = 0 : i64, tpu.core_type = #tpu.core_type<tc>, window_params = [{transform_indices = @transform_0, window_bounds = array<i64: 32, 160>}, {pipeline_mode = #tpu.pipeline_mode<synchronous>, transform_indices = @transform_1, window_bounds = array<i64: 160, 128>}, {pipeline_mode = #tpu.pipeline_mode<synchronous>, transform_indices = @transform_2, window_bounds = array<i64: 1, 128>}, {transform_indices = @transform_3, window_bounds = array<i64: 32, 128>}]} {
    %c0 = arith.constant 0 : index
    %c0_0 = arith.constant 0 : index
    %0 = vector.load %arg1[%c0, %c0_0] : memref<32x160xbf16, #tpu.memory_space<vmem>>, vector<32x160xbf16>
    %c0_1 = arith.constant 0 : index
    %c0_2 = arith.constant 0 : index
    %1 = vector.load %arg2[%c0_1, %c0_2] : memref<160x128xbf16, #tpu.memory_space<vmem>>, vector<160x128xbf16>
    %cst = arith.constant dense<0.000000e+00> : vector<32x128xf32>
    %2 = tpu.matmul %0, %1, %cst {dimension_numbers = #tpu.dot_dimension_numbers<[1], [0], [0], [1], [0, 0, 1, 1], [], []>} : vector<32x160xbf16>, vector<160x128xbf16>, vector<32x128xf32> -> vector<32x128xf32>
    %c0_3 = arith.constant 0 : index
    %c0_4 = arith.constant 0 : index
    %3 = vector.load %arg3[%c0_3, %c0_4] : memref<1x128xf32, #tpu.memory_space<vmem>>, vector<1x128xf32>
    %4 = vector.broadcast %3 : vector<1x128xf32> to vector<32x128xf32>
    %5 = arith.addf %2, %4 : vector<32x128xf32>
    %cst_5 = arith.constant 0.000000e+00 : f32
    %6 = vector.broadcast %cst_5 : f32 to vector<32x128xf32>
    %7 = arith.maximumf %5, %6 : vector<32x128xf32>
    %c0_6 = arith.constant 0 : index
    %c0_7 = arith.constant 0 : index
    %8 = vector.load %arg4[%c0_6, %c0_7] : memref<32x128xf32, #tpu.memory_space<vmem>>, vector<32x128xf32>
    tpu.vector_store %arg4[%c0_6, %c0_7], %7 {strides = array<i32>} : memref<32x128xf32, #tpu.memory_space<vmem>>, vector<32x128xf32>,
    return
  }
  func.func @transform_0(%arg0: i32) -> (i32, i32) {
    %c0_i32 = arith.constant 0 : i32
    %c0_i32_0 = arith.constant 0 : i32
    return %arg0, %c0_i32 : i32, i32
  }
  func.func @transform_1(%arg0: i32) -> (i32, i32) {
    %c0_i32 = arith.constant 0 : i32
    %c0_i32_0 = arith.constant 0 : i32
    %c0_i32_1 = arith.constant 0 : i32
    return %c0_i32, %c0_i32_0 : i32, i32
  }
  func.func @transform_2(%arg0: i32) -> (i32, i32) {
    %c0_i32 = arith.constant 0 : i32
    %c0_i32_0 = arith.constant 0 : i32
    %c0_i32_1 = arith.constant 0 : i32
    return %c0_i32, %c0_i32_0 : i32, i32
  }
  func.func @transform_3(%arg0: i32) -> (i32, i32) {
    %c0_i32 = arith.constant 0 : i32
    %c0_i32_0 = arith.constant 0 : i32
    return %arg0, %c0_i32 : i32, i32
  }
}

module attributes {stable_mosaic.version = 11 : i64} {
  func.func @_dense_kernel(%arg0: i32, %arg1: memref<32x128xbf16, #tpu.memory_space<vmem>>, %arg2: memref<128x256xbf16, #tpu.memory_space<vmem>>, %arg3: memref<1x256xf32, #tpu.memory_space<vmem>>, %arg4: memref<32x256xf32, #tpu.memory_space<vmem>>) attributes {dimension_semantics = [#tpu.dimension_semantics<parallel>], iteration_bounds = array<i64: 1>, scalar_prefetch = 0 : i64, scratch_operands = 0 : i64, tpu.core_type = #tpu.core_type<tc>, window_params = [{transform_indices = @transform_0, window_bounds = array<i64: 32, 128>}, {pipeline_mode = #tpu.pipeline_mode<synchronous>, transform_indices = @transform_1, window_bounds = array<i64: 128, 256>}, {pipeline_mode = #tpu.pipeline_mode<synchronous>, transform_indices = @transform_2, window_bounds = array<i64: 1, 256>}, {transform_indices = @transform_3, window_bounds = array<i64: 32, 256>}]} {
    %c0 = arith.constant 0 : index
    %c0_0 = arith.constant 0 : index
    %0 = vector.load %arg1[%c0, %c0_0] : memref<32x128xbf16, #tpu.memory_space<vmem>>, vector<32x128xbf16>
    %c0_1 = arith.constant 0 : index
    %c0_2 = arith.constant 0 : index
    %1 = vector.load %arg2[%c0_1, %c0_2] : memref<128x256xbf16, #tpu.memory_space<vmem>>, vector<128x256xbf16>
    %cst = arith.constant dense<0.000000e+00> : vector<32x256xf32>
    %2 = tpu.matmul %0, %1, %cst {dimension_numbers = #tpu.dot_dimension_numbers<[1], [0], [0], [1], [0, 0, 1, 1], [], []>} : vector<32x128xbf16>, vector<128x256xbf16>, vector<32x256xf32> -> vector<32x256xf32>
    %c0_3 = arith.constant 0 : index
    %c0_4 = arith.constant 0 : index
    %3 = vector.load %arg3[%c0_3, %c0_4] : memref<1x256xf32, #tpu.memory_space<vmem>>, vector<1x256xf32>
    %4 = vector.broadcast %3 : vector<1x256xf32> to vector<32x256xf32>
    %5 = arith.addf %2, %4 : vector<32x256xf32>
    %c0_5 = arith.constant 0 : index
    %c0_6 = arith.constant 0 : index
    %6 = vector.load %arg4[%c0_5, %c0_6] : memref<32x256xf32, #tpu.memory_space<vmem>>, vector<32x256xf32>
    tpu.vector_store %arg4[%c0_5, %c0_6], %5 {strides = array<i32>} : memref<32x256xf32, #tpu.memory_space<vmem>>, vector<32x256xf32>,
    return
  }
  func.func @transform_0(%arg0: i32) -> (i32, i32) {
    %c0_i32 = arith.constant 0 : i32
    %c0_i32_0 = arith.constant 0 : i32
    return %arg0, %c0_i32 : i32, i32
  }
  func.func @transform_1(%arg0: i32) -> (i32, i32) {
    %c0_i32 = arith.constant 0 : i32
    %c0_i32_0 = arith.constant 0 : i32
    %c0_i32_1 = arith.constant 0 : i32
    return %c0_i32, %c0_i32_0 : i32, i32
  }
  func.func @transform_2(%arg0: i32) -> (i32, i32) {
    %c0_i32 = arith.constant 0 : i32
    %c0_i32_0 = arith.constant 0 : i32
    %c0_i32_1 = arith.constant 0 : i32
    return %c0_i32, %c0_i32_0 : i32, i32
  }
  func.func @transform_3(%arg0: i32) -> (i32, i32) {
    %c0_i32 = arith.constant 0 : i32
    %c0_i32_0 = arith.constant 0 : i32
    return %arg0, %c0_i32 : i32, i32
  }
}

module attributes {stable_mosaic.version = 11 : i64} {
  func.func @_merge_kernel(%arg0: memref<2x8x128xf32, #tpu.memory_space<vmem>>, %arg1: memref<2x8x128xf32, #tpu.memory_space<vmem>>, %arg2: memref<2x640xf32, #tpu.memory_space<vmem>>) attributes {dimension_semantics = [], scalar_prefetch = 0 : i64, scratch_operands = 0 : i64, tpu.core_type = #tpu.core_type<tc>} {
    %c0 = arith.constant 0 : index
    %c0_0 = arith.constant 0 : index
    %c0_1 = arith.constant 0 : index
    %0 = vector.load %arg0[%c0, %c0_0, %c0_1] : memref<2x8x128xf32, #tpu.memory_space<vmem>>, vector<2x8x128xf32>
    %cst = arith.constant dense<0xFF800000> : vector<2x128xf32>
    %1 = vector.multi_reduction <maximumf>, %0, %cst [1] : vector<2x8x128xf32> to vector<2x128xf32>
    %c0_2 = arith.constant 0 : index
    %c0_3 = arith.constant 0 : index
    %c0_4 = arith.constant 0 : index
    %2 = vector.load %arg1[%c0_2, %c0_3, %c0_4] : memref<2x8x128xf32, #tpu.memory_space<vmem>>, vector<2x8x128xf32>
    %cst_5 = arith.constant dense<0xFF800000> : vector<2x128xf32>
    %3 = vector.multi_reduction <maximumf>, %2, %cst_5 [1] : vector<2x8x128xf32> to vector<2x128xf32>
    %4 = arith.addf %1, %3 : vector<2x128xf32>
    %5 = arith.subf %1, %3 : vector<2x128xf32>
    %c0_6 = arith.constant 0 : index
    %c0_7 = arith.constant 0 : index
    %6 = vector.load %arg2[%c0_6, %c0_7] : memref<2x640xf32, #tpu.memory_space<vmem>>, vector<2x128xf32>
    tpu.vector_store %arg2[%c0_6, %c0_7], %1 {strides = array<i32>} : memref<2x640xf32, #tpu.memory_space<vmem>>, vector<2x128xf32>,
    %c0_8 = arith.constant 0 : index
    %c128 = arith.constant 128 : index
    %7 = vector.load %arg2[%c0_8, %c128] : memref<2x640xf32, #tpu.memory_space<vmem>>, vector<2x128xf32>
    tpu.vector_store %arg2[%c0_8, %c128], %3 {strides = array<i32>} : memref<2x640xf32, #tpu.memory_space<vmem>>, vector<2x128xf32>,
    %c0_9 = arith.constant 0 : index
    %c256 = arith.constant 256 : index
    %8 = vector.load %arg2[%c0_9, %c256] : memref<2x640xf32, #tpu.memory_space<vmem>>, vector<2x128xf32>
    tpu.vector_store %arg2[%c0_9, %c256], %4 {strides = array<i32>} : memref<2x640xf32, #tpu.memory_space<vmem>>, vector<2x128xf32>,
    %c0_10 = arith.constant 0 : index
    %c384 = arith.constant 384 : index
    %9 = vector.load %arg2[%c0_10, %c384] : memref<2x640xf32, #tpu.memory_space<vmem>>, vector<2x128xf32>
    tpu.vector_store %arg2[%c0_10, %c384], %5 {strides = array<i32>} : memref<2x640xf32, #tpu.memory_space<vmem>>, vector<2x128xf32>,
    %10 = math.absf %5 : vector<2x128xf32>
    %c0_11 = arith.constant 0 : index
    %c512 = arith.constant 512 : index
    %11 = vector.load %arg2[%c0_11, %c512] : memref<2x640xf32, #tpu.memory_space<vmem>>, vector<2x128xf32>
    tpu.vector_store %arg2[%c0_11, %c512], %10 {strides = array<i32>} : memref<2x640xf32, #tpu.memory_space<vmem>>, vector<2x128xf32>,
    return
  }
}

module attributes {stable_mosaic.version = 11 : i64} {
  func.func @_dense_kernel(%arg0: i32, %arg1: memref<32x256xbf16, #tpu.memory_space<vmem>>, %arg2: memref<256x128xbf16, #tpu.memory_space<vmem>>, %arg3: memref<1x128xf32, #tpu.memory_space<vmem>>, %arg4: memref<32x128xf32, #tpu.memory_space<vmem>>) attributes {dimension_semantics = [#tpu.dimension_semantics<parallel>], iteration_bounds = array<i64: 1>, scalar_prefetch = 0 : i64, scratch_operands = 0 : i64, tpu.core_type = #tpu.core_type<tc>, window_params = [{transform_indices = @transform_0, window_bounds = array<i64: 32, 256>}, {pipeline_mode = #tpu.pipeline_mode<synchronous>, transform_indices = @transform_1, window_bounds = array<i64: 256, 128>}, {pipeline_mode = #tpu.pipeline_mode<synchronous>, transform_indices = @transform_2, window_bounds = array<i64: 1, 128>}, {transform_indices = @transform_3, window_bounds = array<i64: 32, 128>}]} {
    %c0 = arith.constant 0 : index
    %c0_0 = arith.constant 0 : index
    %0 = vector.load %arg1[%c0, %c0_0] : memref<32x256xbf16, #tpu.memory_space<vmem>>, vector<32x256xbf16>
    %c0_1 = arith.constant 0 : index
    %c0_2 = arith.constant 0 : index
    %1 = vector.load %arg2[%c0_1, %c0_2] : memref<256x128xbf16, #tpu.memory_space<vmem>>, vector<256x128xbf16>
    %cst = arith.constant dense<0.000000e+00> : vector<32x128xf32>
    %2 = tpu.matmul %0, %1, %cst {dimension_numbers = #tpu.dot_dimension_numbers<[1], [0], [0], [1], [0, 0, 1, 1], [], []>} : vector<32x256xbf16>, vector<256x128xbf16>, vector<32x128xf32> -> vector<32x128xf32>
    %c0_3 = arith.constant 0 : index
    %c0_4 = arith.constant 0 : index
    %3 = vector.load %arg3[%c0_3, %c0_4] : memref<1x128xf32, #tpu.memory_space<vmem>>, vector<1x128xf32>
    %4 = vector.broadcast %3 : vector<1x128xf32> to vector<32x128xf32>
    %5 = arith.addf %2, %4 : vector<32x128xf32>
    %cst_5 = arith.constant 0.000000e+00 : f32
    %6 = vector.broadcast %cst_5 : f32 to vector<32x128xf32>
    %7 = arith.maximumf %5, %6 : vector<32x128xf32>
    %c0_6 = arith.constant 0 : index
    %c0_7 = arith.constant 0 : index
    %8 = vector.load %arg4[%c0_6, %c0_7] : memref<32x128xf32, #tpu.memory_space<vmem>>, vector<32x128xf32>
    tpu.vector_store %arg4[%c0_6, %c0_7], %7 {strides = array<i32>} : memref<32x128xf32, #tpu.memory_space<vmem>>, vector<32x128xf32>,
    return
  }
  func.func @transform_0(%arg0: i32) -> (i32, i32) {
    %c0_i32 = arith.constant 0 : i32
    %c0_i32_0 = arith.constant 0 : i32
    return %arg0, %c0_i32 : i32, i32
  }
  func.func @transform_1(%arg0: i32) -> (i32, i32) {
    %c0_i32 = arith.constant 0 : i32
    %c0_i32_0 = arith.constant 0 : i32
    %c0_i32_1 = arith.constant 0 : i32
    return %c0_i32, %c0_i32_0 : i32, i32
  }
  func.func @transform_2(%arg0: i32) -> (i32, i32) {
    %c0_i32 = arith.constant 0 : i32
    %c0_i32_0 = arith.constant 0 : i32
    %c0_i32_1 = arith.constant 0 : i32
    return %c0_i32, %c0_i32_0 : i32, i32
  }
  func.func @transform_3(%arg0: i32) -> (i32, i32) {
    %c0_i32 = arith.constant 0 : i32
    %c0_i32_0 = arith.constant 0 : i32
    return %arg0, %c0_i32 : i32, i32
  }
}

module attributes {stable_mosaic.version = 11 : i64} {
  func.func @_bilstm_rec_kernel(%arg0: memref<8x4x256xf32, #tpu.memory_space<vmem>>, %arg1: memref<32x128xbf16, #tpu.memory_space<vmem>>, %arg2: memref<32x128xbf16, #tpu.memory_space<vmem>>, %arg3: memref<2x4x32xf32, #tpu.memory_space<vmem>>, %arg4: memref<2x4x32xf32, #tpu.memory_space<vmem>>, %arg5: memref<8x4x32xf32, #tpu.memory_space<vmem>>, %arg6: memref<8x4x32xf32, #tpu.memory_space<vmem>>, %arg7: memref<2x4x32xf32, #tpu.memory_space<vmem>>, %arg8: memref<2x4x32xf32, #tpu.memory_space<vmem>>) attributes {dimension_semantics = [], scalar_prefetch = 0 : i64, scratch_operands = 0 : i64, tpu.core_type = #tpu.core_type<tc>} {
    %c0 = arith.constant 0 : index
    %c0_0 = arith.constant 0 : index
    %0 = vector.load %arg1[%c0, %c0_0] : memref<32x128xbf16, #tpu.memory_space<vmem>>, vector<32x128xbf16>
    %c0_1 = arith.constant 0 : index
    %c0_2 = arith.constant 0 : index
    %1 = vector.load %arg2[%c0_1, %c0_2] : memref<32x128xbf16, #tpu.memory_space<vmem>>, vector<32x128xbf16>
    %c0_3 = arith.constant 0 : index
    %c0_4 = arith.constant 0 : index
    %c0_5 = arith.constant 0 : index
    %2 = vector.load %arg3[%c0_3, %c0_4, %c0_5] : memref<2x4x32xf32, #tpu.memory_space<vmem>>, vector<1x4x32xf32>
    %3 = vector.shape_cast %2 : vector<1x4x32xf32> to vector<4x32xf32>
    %c0_6 = arith.constant 0 : index
    %c0_7 = arith.constant 0 : index
    %c0_8 = arith.constant 0 : index
    %4 = vector.load %arg4[%c0_6, %c0_7, %c0_8] : memref<2x4x32xf32, #tpu.memory_space<vmem>>, vector<1x4x32xf32>
    %5 = vector.shape_cast %4 : vector<1x4x32xf32> to vector<4x32xf32>
    %c0_i32 = arith.constant 0 : i32
    %6 = arith.index_cast %c0_i32 : i32 to index
    %c0_9 = arith.constant 0 : index
    %c0_10 = arith.constant 0 : index
    %7 = vector.load %arg0[%6, %c0_9, %c0_10] : memref<8x4x256xf32, #tpu.memory_space<vmem>>, vector<1x4x256xf32>
    %8 = vector.shape_cast %7 : vector<1x4x256xf32> to vector<4x256xf32>
    %9 = vector.extract_strided_slice %8 {offsets = [0, 0], sizes = [4, 128], strides = [1, 1]} : vector<4x256xf32> to vector<4x128xf32>
    %10 = arith.truncf %3 : vector<4x32xf32> to vector<4x32xbf16>
    %cst = arith.constant dense<0.000000e+00> : vector<4x128xf32>
    %11 = tpu.matmul %10, %0, %cst {dimension_numbers = #tpu.dot_dimension_numbers<[1], [0], [0], [1], [0, 0, 1, 1], [], []>} : vector<4x32xbf16>, vector<32x128xbf16>, vector<4x128xf32> -> vector<4x128xf32>
    %12 = arith.addf %9, %11 : vector<4x128xf32>
    %13 = vector.extract_strided_slice %12 {offsets = [0, 0], sizes = [4, 32], strides = [1, 1]} : vector<4x128xf32> to vector<4x32xf32>
    %14 = arith.negf %13 : vector<4x32xf32>
    %15 = math.exp %14 : vector<4x32xf32>
    %cst_11 = arith.constant 1.000000e+00 : f32
    %16 = vector.broadcast %cst_11 : f32 to vector<4x32xf32>
    %17 = arith.addf %16, %15 : vector<4x32xf32>
    %18 = arith.divf %16, %17 : vector<4x32xf32>
    %19 = vector.extract_strided_slice %12 {offsets = [0, 32], sizes = [4, 32], strides = [1, 1]} : vector<4x128xf32> to vector<4x32xf32>
    %20 = arith.negf %19 : vector<4x32xf32>
    %21 = math.exp %20 : vector<4x32xf32>
    %cst_12 = arith.constant 1.000000e+00 : f32
    %22 = vector.broadcast %cst_12 : f32 to vector<4x32xf32>
    %23 = arith.addf %22, %21 : vector<4x32xf32>
    %24 = arith.divf %22, %23 : vector<4x32xf32>
    %25 = vector.extract_strided_slice %12 {offsets = [0, 64], sizes = [4, 32], strides = [1, 1]} : vector<4x128xf32> to vector<4x32xf32>
    %26 = math.tanh %25 : vector<4x32xf32>
    %27 = vector.extract_strided_slice %12 {offsets = [0, 96], sizes = [4, 32], strides = [1, 1]} : vector<4x128xf32> to vector<4x32xf32>
    %28 = arith.negf %27 : vector<4x32xf32>
    %29 = math.exp %28 : vector<4x32xf32>
    %cst_13 = arith.constant 1.000000e+00 : f32
    %30 = vector.broadcast %cst_13 : f32 to vector<4x32xf32>
    %31 = arith.addf %30, %29 : vector<4x32xf32>
    %32 = arith.divf %30, %31 : vector<4x32xf32>
    %33 = arith.mulf %24, %5 : vector<4x32xf32>
    %34 = arith.mulf %18, %26 : vector<4x32xf32>
    %35 = arith.addf %33, %34 : vector<4x32xf32>
    %36 = math.tanh %35 : vector<4x32xf32>
    %37 = arith.mulf %32, %36 : vector<4x32xf32>
    %38 = arith.index_cast %c0_i32 : i32 to index
    %c0_14 = arith.constant 0 : index
    %c0_15 = arith.constant 0 : index
    %39 = vector.load %arg5[%38, %c0_14, %c0_15] : memref<8x4x32xf32, #tpu.memory_space<vmem>>, vector<1x4x32xf32>
    %40 = vector.shape_cast %39 : vector<1x4x32xf32> to vector<4x32xf32>
    %41 = vector.shape_cast %37 : vector<4x32xf32> to vector<1x4x32xf32>
    tpu.vector_store %arg5[%38, %c0_14, %c0_15], %41 {strides = array<i32>} : memref<8x4x32xf32, #tpu.memory_space<vmem>>, vector<1x4x32xf32>,
    %c1_i32 = arith.constant 1 : i32
    %42 = arith.index_cast %c1_i32 : i32 to index
    %c0_16 = arith.constant 0 : index
    %c0_17 = arith.constant 0 : index
    %43 = vector.load %arg0[%42, %c0_16, %c0_17] : memref<8x4x256xf32, #tpu.memory_space<vmem>>, vector<1x4x256xf32>
    %44 = vector.shape_cast %43 : vector<1x4x256xf32> to vector<4x256xf32>
    %45 = vector.extract_strided_slice %44 {offsets = [0, 0], sizes = [4, 128], strides = [1, 1]} : vector<4x256xf32> to vector<4x128xf32>
    %46 = arith.truncf %37 : vector<4x32xf32> to vector<4x32xbf16>
    %cst_18 = arith.constant dense<0.000000e+00> : vector<4x128xf32>
    %47 = tpu.matmul %46, %0, %cst_18 {dimension_numbers = #tpu.dot_dimension_numbers<[1], [0], [0], [1], [0, 0, 1, 1], [], []>} : vector<4x32xbf16>, vector<32x128xbf16>, vector<4x128xf32> -> vector<4x128xf32>
    %48 = arith.addf %45, %47 : vector<4x128xf32>
    %49 = vector.extract_strided_slice %48 {offsets = [0, 0], sizes = [4, 32], strides = [1, 1]} : vector<4x128xf32> to vector<4x32xf32>
    %50 = arith.negf %49 : vector<4x32xf32>
    %51 = math.exp %50 : vector<4x32xf32>
    %cst_19 = arith.constant 1.000000e+00 : f32
    %52 = vector.broadcast %cst_19 : f32 to vector<4x32xf32>
    %53 = arith.addf %52, %51 : vector<4x32xf32>
    %54 = arith.divf %52, %53 : vector<4x32xf32>
    %55 = vector.extract_strided_slice %48 {offsets = [0, 32], sizes = [4, 32], strides = [1, 1]} : vector<4x128xf32> to vector<4x32xf32>
    %56 = arith.negf %55 : vector<4x32xf32>
    %57 = math.exp %56 : vector<4x32xf32>
    %cst_20 = arith.constant 1.000000e+00 : f32
    %58 = vector.broadcast %cst_20 : f32 to vector<4x32xf32>
    %59 = arith.addf %58, %57 : vector<4x32xf32>
    %60 = arith.divf %58, %59 : vector<4x32xf32>
    %61 = vector.extract_strided_slice %48 {offsets = [0, 64], sizes = [4, 32], strides = [1, 1]} : vector<4x128xf32> to vector<4x32xf32>
    %62 = math.tanh %61 : vector<4x32xf32>
    %63 = vector.extract_strided_slice %48 {offsets = [0, 96], sizes = [4, 32], strides = [1, 1]} : vector<4x128xf32> to vector<4x32xf32>
    %64 = arith.negf %63 : vector<4x32xf32>
    %65 = math.exp %64 : vector<4x32xf32>
    %cst_21 = arith.constant 1.000000e+00 : f32
    %66 = vector.broadcast %cst_21 : f32 to vector<4x32xf32>
    %67 = arith.addf %66, %65 : vector<4x32xf32>
    %68 = arith.divf %66, %67 : vector<4x32xf32>
    %69 = arith.mulf %60, %35 : vector<4x32xf32>
    %70 = arith.mulf %54, %62 : vector<4x32xf32>
    %71 = arith.addf %69, %70 : vector<4x32xf32>
    %72 = math.tanh %71 : vector<4x32xf32>
    %73 = arith.mulf %68, %72 : vector<4x32xf32>
    %74 = arith.index_cast %c1_i32 : i32 to index
    %c0_22 = arith.constant 0 : index
    %c0_23 = arith.constant 0 : index
    %75 = vector.load %arg5[%74, %c0_22, %c0_23] : memref<8x4x32xf32, #tpu.memory_space<vmem>>, vector<1x4x32xf32>
    %76 = vector.shape_cast %75 : vector<1x4x32xf32> to vector<4x32xf32>
    %77 = vector.shape_cast %73 : vector<4x32xf32> to vector<1x4x32xf32>
    tpu.vector_store %arg5[%74, %c0_22, %c0_23], %77 {strides = array<i32>} : memref<8x4x32xf32, #tpu.memory_space<vmem>>, vector<1x4x32xf32>,
    %c2_i32 = arith.constant 2 : i32
    %78 = arith.index_cast %c2_i32 : i32 to index
    %c0_24 = arith.constant 0 : index
    %c0_25 = arith.constant 0 : index
    %79 = vector.load %arg0[%78, %c0_24, %c0_25] : memref<8x4x256xf32, #tpu.memory_space<vmem>>, vector<1x4x256xf32>
    %80 = vector.shape_cast %79 : vector<1x4x256xf32> to vector<4x256xf32>
    %81 = vector.extract_strided_slice %80 {offsets = [0, 0], sizes = [4, 128], strides = [1, 1]} : vector<4x256xf32> to vector<4x128xf32>
    %82 = arith.truncf %73 : vector<4x32xf32> to vector<4x32xbf16>
    %cst_26 = arith.constant dense<0.000000e+00> : vector<4x128xf32>
    %83 = tpu.matmul %82, %0, %cst_26 {dimension_numbers = #tpu.dot_dimension_numbers<[1], [0], [0], [1], [0, 0, 1, 1], [], []>} : vector<4x32xbf16>, vector<32x128xbf16>, vector<4x128xf32> -> vector<4x128xf32>
    %84 = arith.addf %81, %83 : vector<4x128xf32>
    %85 = vector.extract_strided_slice %84 {offsets = [0, 0], sizes = [4, 32], strides = [1, 1]} : vector<4x128xf32> to vector<4x32xf32>
    %86 = arith.negf %85 : vector<4x32xf32>
    %87 = math.exp %86 : vector<4x32xf32>
    %cst_27 = arith.constant 1.000000e+00 : f32
    %88 = vector.broadcast %cst_27 : f32 to vector<4x32xf32>
    %89 = arith.addf %88, %87 : vector<4x32xf32>
    %90 = arith.divf %88, %89 : vector<4x32xf32>
    %91 = vector.extract_strided_slice %84 {offsets = [0, 32], sizes = [4, 32], strides = [1, 1]} : vector<4x128xf32> to vector<4x32xf32>
    %92 = arith.negf %91 : vector<4x32xf32>
    %93 = math.exp %92 : vector<4x32xf32>
    %cst_28 = arith.constant 1.000000e+00 : f32
    %94 = vector.broadcast %cst_28 : f32 to vector<4x32xf32>
    %95 = arith.addf %94, %93 : vector<4x32xf32>
    %96 = arith.divf %94, %95 : vector<4x32xf32>
    %97 = vector.extract_strided_slice %84 {offsets = [0, 64], sizes = [4, 32], strides = [1, 1]} : vector<4x128xf32> to vector<4x32xf32>
    %98 = math.tanh %97 : vector<4x32xf32>
    %99 = vector.extract_strided_slice %84 {offsets = [0, 96], sizes = [4, 32], strides = [1, 1]} : vector<4x128xf32> to vector<4x32xf32>
    %100 = arith.negf %99 : vector<4x32xf32>
    %101 = math.exp %100 : vector<4x32xf32>
    %cst_29 = arith.constant 1.000000e+00 : f32
    %102 = vector.broadcast %cst_29 : f32 to vector<4x32xf32>
    %103 = arith.addf %102, %101 : vector<4x32xf32>
    %104 = arith.divf %102, %103 : vector<4x32xf32>
    %105 = arith.mulf %96, %71 : vector<4x32xf32>
    %106 = arith.mulf %90, %98 : vector<4x32xf32>
    %107 = arith.addf %105, %106 : vector<4x32xf32>
    %108 = math.tanh %107 : vector<4x32xf32>
    %109 = arith.mulf %104, %108 : vector<4x32xf32>
    %110 = arith.index_cast %c2_i32 : i32 to index
    %c0_30 = arith.constant 0 : index
    %c0_31 = arith.constant 0 : index
    %111 = vector.load %arg5[%110, %c0_30, %c0_31] : memref<8x4x32xf32, #tpu.memory_space<vmem>>, vector<1x4x32xf32>
    %112 = vector.shape_cast %111 : vector<1x4x32xf32> to vector<4x32xf32>
    %113 = vector.shape_cast %109 : vector<4x32xf32> to vector<1x4x32xf32>
    tpu.vector_store %arg5[%110, %c0_30, %c0_31], %113 {strides = array<i32>} : memref<8x4x32xf32, #tpu.memory_space<vmem>>, vector<1x4x32xf32>,
    %c3_i32 = arith.constant 3 : i32
    %114 = arith.index_cast %c3_i32 : i32 to index
    %c0_32 = arith.constant 0 : index
    %c0_33 = arith.constant 0 : index
    %115 = vector.load %arg0[%114, %c0_32, %c0_33] : memref<8x4x256xf32, #tpu.memory_space<vmem>>, vector<1x4x256xf32>
    %116 = vector.shape_cast %115 : vector<1x4x256xf32> to vector<4x256xf32>
    %117 = vector.extract_strided_slice %116 {offsets = [0, 0], sizes = [4, 128], strides = [1, 1]} : vector<4x256xf32> to vector<4x128xf32>
    %118 = arith.truncf %109 : vector<4x32xf32> to vector<4x32xbf16>
    %cst_34 = arith.constant dense<0.000000e+00> : vector<4x128xf32>
    %119 = tpu.matmul %118, %0, %cst_34 {dimension_numbers = #tpu.dot_dimension_numbers<[1], [0], [0], [1], [0, 0, 1, 1], [], []>} : vector<4x32xbf16>, vector<32x128xbf16>, vector<4x128xf32> -> vector<4x128xf32>
    %120 = arith.addf %117, %119 : vector<4x128xf32>
    %121 = vector.extract_strided_slice %120 {offsets = [0, 0], sizes = [4, 32], strides = [1, 1]} : vector<4x128xf32> to vector<4x32xf32>
    %122 = arith.negf %121 : vector<4x32xf32>
    %123 = math.exp %122 : vector<4x32xf32>
    %cst_35 = arith.constant 1.000000e+00 : f32
    %124 = vector.broadcast %cst_35 : f32 to vector<4x32xf32>
    %125 = arith.addf %124, %123 : vector<4x32xf32>
    %126 = arith.divf %124, %125 : vector<4x32xf32>
    %127 = vector.extract_strided_slice %120 {offsets = [0, 32], sizes = [4, 32], strides = [1, 1]} : vector<4x128xf32> to vector<4x32xf32>
    %128 = arith.negf %127 : vector<4x32xf32>
    %129 = math.exp %128 : vector<4x32xf32>
    %cst_36 = arith.constant 1.000000e+00 : f32
    %130 = vector.broadcast %cst_36 : f32 to vector<4x32xf32>
    %131 = arith.addf %130, %129 : vector<4x32xf32>
    %132 = arith.divf %130, %131 : vector<4x32xf32>
    %133 = vector.extract_strided_slice %120 {offsets = [0, 64], sizes = [4, 32], strides = [1, 1]} : vector<4x128xf32> to vector<4x32xf32>
    %134 = math.tanh %133 : vector<4x32xf32>
    %135 = vector.extract_strided_slice %120 {offsets = [0, 96], sizes = [4, 32], strides = [1, 1]} : vector<4x128xf32> to vector<4x32xf32>
    %136 = arith.negf %135 : vector<4x32xf32>
    %137 = math.exp %136 : vector<4x32xf32>
    %cst_37 = arith.constant 1.000000e+00 : f32
    %138 = vector.broadcast %cst_37 : f32 to vector<4x32xf32>
    %139 = arith.addf %138, %137 : vector<4x32xf32>
    %140 = arith.divf %138, %139 : vector<4x32xf32>
    %141 = arith.mulf %132, %107 : vector<4x32xf32>
    %142 = arith.mulf %126, %134 : vector<4x32xf32>
    %143 = arith.addf %141, %142 : vector<4x32xf32>
    %144 = math.tanh %143 : vector<4x32xf32>
    %145 = arith.mulf %140, %144 : vector<4x32xf32>
    %146 = arith.index_cast %c3_i32 : i32 to index
    %c0_38 = arith.constant 0 : index
    %c0_39 = arith.constant 0 : index
    %147 = vector.load %arg5[%146, %c0_38, %c0_39] : memref<8x4x32xf32, #tpu.memory_space<vmem>>, vector<1x4x32xf32>
    %148 = vector.shape_cast %147 : vector<1x4x32xf32> to vector<4x32xf32>
    %149 = vector.shape_cast %145 : vector<4x32xf32> to vector<1x4x32xf32>
    tpu.vector_store %arg5[%146, %c0_38, %c0_39], %149 {strides = array<i32>} : memref<8x4x32xf32, #tpu.memory_space<vmem>>, vector<1x4x32xf32>,
    %c4_i32 = arith.constant 4 : i32
    %150 = arith.index_cast %c4_i32 : i32 to index
    %c0_40 = arith.constant 0 : index
    %c0_41 = arith.constant 0 : index
    %151 = vector.load %arg0[%150, %c0_40, %c0_41] : memref<8x4x256xf32, #tpu.memory_space<vmem>>, vector<1x4x256xf32>
    %152 = vector.shape_cast %151 : vector<1x4x256xf32> to vector<4x256xf32>
    %153 = vector.extract_strided_slice %152 {offsets = [0, 0], sizes = [4, 128], strides = [1, 1]} : vector<4x256xf32> to vector<4x128xf32>
    %154 = arith.truncf %145 : vector<4x32xf32> to vector<4x32xbf16>
    %cst_42 = arith.constant dense<0.000000e+00> : vector<4x128xf32>
    %155 = tpu.matmul %154, %0, %cst_42 {dimension_numbers = #tpu.dot_dimension_numbers<[1], [0], [0], [1], [0, 0, 1, 1], [], []>} : vector<4x32xbf16>, vector<32x128xbf16>, vector<4x128xf32> -> vector<4x128xf32>
    %156 = arith.addf %153, %155 : vector<4x128xf32>
    %157 = vector.extract_strided_slice %156 {offsets = [0, 0], sizes = [4, 32], strides = [1, 1]} : vector<4x128xf32> to vector<4x32xf32>
    %158 = arith.negf %157 : vector<4x32xf32>
    %159 = math.exp %158 : vector<4x32xf32>
    %cst_43 = arith.constant 1.000000e+00 : f32
    %160 = vector.broadcast %cst_43 : f32 to vector<4x32xf32>
    %161 = arith.addf %160, %159 : vector<4x32xf32>
    %162 = arith.divf %160, %161 : vector<4x32xf32>
    %163 = vector.extract_strided_slice %156 {offsets = [0, 32], sizes = [4, 32], strides = [1, 1]} : vector<4x128xf32> to vector<4x32xf32>
    %164 = arith.negf %163 : vector<4x32xf32>
    %165 = math.exp %164 : vector<4x32xf32>
    %cst_44 = arith.constant 1.000000e+00 : f32
    %166 = vector.broadcast %cst_44 : f32 to vector<4x32xf32>
    %167 = arith.addf %166, %165 : vector<4x32xf32>
    %168 = arith.divf %166, %167 : vector<4x32xf32>
    %169 = vector.extract_strided_slice %156 {offsets = [0, 64], sizes = [4, 32], strides = [1, 1]} : vector<4x128xf32> to vector<4x32xf32>
    %170 = math.tanh %169 : vector<4x32xf32>
    %171 = vector.extract_strided_slice %156 {offsets = [0, 96], sizes = [4, 32], strides = [1, 1]} : vector<4x128xf32> to vector<4x32xf32>
    %172 = arith.negf %171 : vector<4x32xf32>
    %173 = math.exp %172 : vector<4x32xf32>
    %cst_45 = arith.constant 1.000000e+00 : f32
    %174 = vector.broadcast %cst_45 : f32 to vector<4x32xf32>
    %175 = arith.addf %174, %173 : vector<4x32xf32>
    %176 = arith.divf %174, %175 : vector<4x32xf32>
    %177 = arith.mulf %168, %143 : vector<4x32xf32>
    %178 = arith.mulf %162, %170 : vector<4x32xf32>
    %179 = arith.addf %177, %178 : vector<4x32xf32>
    %180 = math.tanh %179 : vector<4x32xf32>
    %181 = arith.mulf %176, %180 : vector<4x32xf32>
    %182 = arith.index_cast %c4_i32 : i32 to index
    %c0_46 = arith.constant 0 : index
    %c0_47 = arith.constant 0 : index
    %183 = vector.load %arg5[%182, %c0_46, %c0_47] : memref<8x4x32xf32, #tpu.memory_space<vmem>>, vector<1x4x32xf32>
    %184 = vector.shape_cast %183 : vector<1x4x32xf32> to vector<4x32xf32>
    %185 = vector.shape_cast %181 : vector<4x32xf32> to vector<1x4x32xf32>
    tpu.vector_store %arg5[%182, %c0_46, %c0_47], %185 {strides = array<i32>} : memref<8x4x32xf32, #tpu.memory_space<vmem>>, vector<1x4x32xf32>,
    %c5_i32 = arith.constant 5 : i32
    %186 = arith.index_cast %c5_i32 : i32 to index
    %c0_48 = arith.constant 0 : index
    %c0_49 = arith.constant 0 : index
    %187 = vector.load %arg0[%186, %c0_48, %c0_49] : memref<8x4x256xf32, #tpu.memory_space<vmem>>, vector<1x4x256xf32>
    %188 = vector.shape_cast %187 : vector<1x4x256xf32> to vector<4x256xf32>
    %189 = vector.extract_strided_slice %188 {offsets = [0, 0], sizes = [4, 128], strides = [1, 1]} : vector<4x256xf32> to vector<4x128xf32>
    %190 = arith.truncf %181 : vector<4x32xf32> to vector<4x32xbf16>
    %cst_50 = arith.constant dense<0.000000e+00> : vector<4x128xf32>
    %191 = tpu.matmul %190, %0, %cst_50 {dimension_numbers = #tpu.dot_dimension_numbers<[1], [0], [0], [1], [0, 0, 1, 1], [], []>} : vector<4x32xbf16>, vector<32x128xbf16>, vector<4x128xf32> -> vector<4x128xf32>
    %192 = arith.addf %189, %191 : vector<4x128xf32>
    %193 = vector.extract_strided_slice %192 {offsets = [0, 0], sizes = [4, 32], strides = [1, 1]} : vector<4x128xf32> to vector<4x32xf32>
    %194 = arith.negf %193 : vector<4x32xf32>
    %195 = math.exp %194 : vector<4x32xf32>
    %cst_51 = arith.constant 1.000000e+00 : f32
    %196 = vector.broadcast %cst_51 : f32 to vector<4x32xf32>
    %197 = arith.addf %196, %195 : vector<4x32xf32>
    %198 = arith.divf %196, %197 : vector<4x32xf32>
    %199 = vector.extract_strided_slice %192 {offsets = [0, 32], sizes = [4, 32], strides = [1, 1]} : vector<4x128xf32> to vector<4x32xf32>
    %200 = arith.negf %199 : vector<4x32xf32>
    %201 = math.exp %200 : vector<4x32xf32>
    %cst_52 = arith.constant 1.000000e+00 : f32
    %202 = vector.broadcast %cst_52 : f32 to vector<4x32xf32>
    %203 = arith.addf %202, %201 : vector<4x32xf32>
    %204 = arith.divf %202, %203 : vector<4x32xf32>
    %205 = vector.extract_strided_slice %192 {offsets = [0, 64], sizes = [4, 32], strides = [1, 1]} : vector<4x128xf32> to vector<4x32xf32>
    %206 = math.tanh %205 : vector<4x32xf32>
    %207 = vector.extract_strided_slice %192 {offsets = [0, 96], sizes = [4, 32], strides = [1, 1]} : vector<4x128xf32> to vector<4x32xf32>
    %208 = arith.negf %207 : vector<4x32xf32>
    %209 = math.exp %208 : vector<4x32xf32>
    %cst_53 = arith.constant 1.000000e+00 : f32
    %210 = vector.broadcast %cst_53 : f32 to vector<4x32xf32>
    %211 = arith.addf %210, %209 : vector<4x32xf32>
    %212 = arith.divf %210, %211 : vector<4x32xf32>
    %213 = arith.mulf %204, %179 : vector<4x32xf32>
    %214 = arith.mulf %198, %206 : vector<4x32xf32>
    %215 = arith.addf %213, %214 : vector<4x32xf32>
    %216 = math.tanh %215 : vector<4x32xf32>
    %217 = arith.mulf %212, %216 : vector<4x32xf32>
    %218 = arith.index_cast %c5_i32 : i32 to index
    %c0_54 = arith.constant 0 : index
    %c0_55 = arith.constant 0 : index
    %219 = vector.load %arg5[%218, %c0_54, %c0_55] : memref<8x4x32xf32, #tpu.memory_space<vmem>>, vector<1x4x32xf32>
    %220 = vector.shape_cast %219 : vector<1x4x32xf32> to vector<4x32xf32>
    %221 = vector.shape_cast %217 : vector<4x32xf32> to vector<1x4x32xf32>
    tpu.vector_store %arg5[%218, %c0_54, %c0_55], %221 {strides = array<i32>} : memref<8x4x32xf32, #tpu.memory_space<vmem>>, vector<1x4x32xf32>,
    %c6_i32 = arith.constant 6 : i32
    %222 = arith.index_cast %c6_i32 : i32 to index
    %c0_56 = arith.constant 0 : index
    %c0_57 = arith.constant 0 : index
    %223 = vector.load %arg0[%222, %c0_56, %c0_57] : memref<8x4x256xf32, #tpu.memory_space<vmem>>, vector<1x4x256xf32>
    %224 = vector.shape_cast %223 : vector<1x4x256xf32> to vector<4x256xf32>
    %225 = vector.extract_strided_slice %224 {offsets = [0, 0], sizes = [4, 128], strides = [1, 1]} : vector<4x256xf32> to vector<4x128xf32>
    %226 = arith.truncf %217 : vector<4x32xf32> to vector<4x32xbf16>
    %cst_58 = arith.constant dense<0.000000e+00> : vector<4x128xf32>
    %227 = tpu.matmul %226, %0, %cst_58 {dimension_numbers = #tpu.dot_dimension_numbers<[1], [0], [0], [1], [0, 0, 1, 1], [], []>} : vector<4x32xbf16>, vector<32x128xbf16>, vector<4x128xf32> -> vector<4x128xf32>
    %228 = arith.addf %225, %227 : vector<4x128xf32>
    %229 = vector.extract_strided_slice %228 {offsets = [0, 0], sizes = [4, 32], strides = [1, 1]} : vector<4x128xf32> to vector<4x32xf32>
    %230 = arith.negf %229 : vector<4x32xf32>
    %231 = math.exp %230 : vector<4x32xf32>
    %cst_59 = arith.constant 1.000000e+00 : f32
    %232 = vector.broadcast %cst_59 : f32 to vector<4x32xf32>
    %233 = arith.addf %232, %231 : vector<4x32xf32>
    %234 = arith.divf %232, %233 : vector<4x32xf32>
    %235 = vector.extract_strided_slice %228 {offsets = [0, 32], sizes = [4, 32], strides = [1, 1]} : vector<4x128xf32> to vector<4x32xf32>
    %236 = arith.negf %235 : vector<4x32xf32>
    %237 = math.exp %236 : vector<4x32xf32>
    %cst_60 = arith.constant 1.000000e+00 : f32
    %238 = vector.broadcast %cst_60 : f32 to vector<4x32xf32>
    %239 = arith.addf %238, %237 : vector<4x32xf32>
    %240 = arith.divf %238, %239 : vector<4x32xf32>
    %241 = vector.extract_strided_slice %228 {offsets = [0, 64], sizes = [4, 32], strides = [1, 1]} : vector<4x128xf32> to vector<4x32xf32>
    %242 = math.tanh %241 : vector<4x32xf32>
    %243 = vector.extract_strided_slice %228 {offsets = [0, 96], sizes = [4, 32], strides = [1, 1]} : vector<4x128xf32> to vector<4x32xf32>
    %244 = arith.negf %243 : vector<4x32xf32>
    %245 = math.exp %244 : vector<4x32xf32>
    %cst_61 = arith.constant 1.000000e+00 : f32
    %246 = vector.broadcast %cst_61 : f32 to vector<4x32xf32>
    %247 = arith.addf %246, %245 : vector<4x32xf32>
    %248 = arith.divf %246, %247 : vector<4x32xf32>
    %249 = arith.mulf %240, %215 : vector<4x32xf32>
    %250 = arith.mulf %234, %242 : vector<4x32xf32>
    %251 = arith.addf %249, %250 : vector<4x32xf32>
    %252 = math.tanh %251 : vector<4x32xf32>
    %253 = arith.mulf %248, %252 : vector<4x32xf32>
    %254 = arith.index_cast %c6_i32 : i32 to index
    %c0_62 = arith.constant 0 : index
    %c0_63 = arith.constant 0 : index
    %255 = vector.load %arg5[%254, %c0_62, %c0_63] : memref<8x4x32xf32, #tpu.memory_space<vmem>>, vector<1x4x32xf32>
    %256 = vector.shape_cast %255 : vector<1x4x32xf32> to vector<4x32xf32>
    %257 = vector.shape_cast %253 : vector<4x32xf32> to vector<1x4x32xf32>
    tpu.vector_store %arg5[%254, %c0_62, %c0_63], %257 {strides = array<i32>} : memref<8x4x32xf32, #tpu.memory_space<vmem>>, vector<1x4x32xf32>,
    %c7_i32 = arith.constant 7 : i32
    %258 = arith.index_cast %c7_i32 : i32 to index
    %c0_64 = arith.constant 0 : index
    %c0_65 = arith.constant 0 : index
    %259 = vector.load %arg0[%258, %c0_64, %c0_65] : memref<8x4x256xf32, #tpu.memory_space<vmem>>, vector<1x4x256xf32>
    %260 = vector.shape_cast %259 : vector<1x4x256xf32> to vector<4x256xf32>
    %261 = vector.extract_strided_slice %260 {offsets = [0, 0], sizes = [4, 128], strides = [1, 1]} : vector<4x256xf32> to vector<4x128xf32>
    %262 = arith.truncf %253 : vector<4x32xf32> to vector<4x32xbf16>
    %cst_66 = arith.constant dense<0.000000e+00> : vector<4x128xf32>
    %263 = tpu.matmul %262, %0, %cst_66 {dimension_numbers = #tpu.dot_dimension_numbers<[1], [0], [0], [1], [0, 0, 1, 1], [], []>} : vector<4x32xbf16>, vector<32x128xbf16>, vector<4x128xf32> -> vector<4x128xf32>
    %264 = arith.addf %261, %263 : vector<4x128xf32>
    %265 = vector.extract_strided_slice %264 {offsets = [0, 0], sizes = [4, 32], strides = [1, 1]} : vector<4x128xf32> to vector<4x32xf32>
    %266 = arith.negf %265 : vector<4x32xf32>
    %267 = math.exp %266 : vector<4x32xf32>
    %cst_67 = arith.constant 1.000000e+00 : f32
    %268 = vector.broadcast %cst_67 : f32 to vector<4x32xf32>
    %269 = arith.addf %268, %267 : vector<4x32xf32>
    %270 = arith.divf %268, %269 : vector<4x32xf32>
    %271 = vector.extract_strided_slice %264 {offsets = [0, 32], sizes = [4, 32], strides = [1, 1]} : vector<4x128xf32> to vector<4x32xf32>
    %272 = arith.negf %271 : vector<4x32xf32>
    %273 = math.exp %272 : vector<4x32xf32>
    %cst_68 = arith.constant 1.000000e+00 : f32
    %274 = vector.broadcast %cst_68 : f32 to vector<4x32xf32>
    %275 = arith.addf %274, %273 : vector<4x32xf32>
    %276 = arith.divf %274, %275 : vector<4x32xf32>
    %277 = vector.extract_strided_slice %264 {offsets = [0, 64], sizes = [4, 32], strides = [1, 1]} : vector<4x128xf32> to vector<4x32xf32>
    %278 = math.tanh %277 : vector<4x32xf32>
    %279 = vector.extract_strided_slice %264 {offsets = [0, 96], sizes = [4, 32], strides = [1, 1]} : vector<4x128xf32> to vector<4x32xf32>
    %280 = arith.negf %279 : vector<4x32xf32>
    %281 = math.exp %280 : vector<4x32xf32>
    %cst_69 = arith.constant 1.000000e+00 : f32
    %282 = vector.broadcast %cst_69 : f32 to vector<4x32xf32>
    %283 = arith.addf %282, %281 : vector<4x32xf32>
    %284 = arith.divf %282, %283 : vector<4x32xf32>
    %285 = arith.mulf %276, %251 : vector<4x32xf32>
    %286 = arith.mulf %270, %278 : vector<4x32xf32>
    %287 = arith.addf %285, %286 : vector<4x32xf32>
    %288 = math.tanh %287 : vector<4x32xf32>
    %289 = arith.mulf %284, %288 : vector<4x32xf32>
    %290 = arith.index_cast %c7_i32 : i32 to index
    %c0_70 = arith.constant 0 : index
    %c0_71 = arith.constant 0 : index
    %291 = vector.load %arg5[%290, %c0_70, %c0_71] : memref<8x4x32xf32, #tpu.memory_space<vmem>>, vector<1x4x32xf32>
    %292 = vector.shape_cast %291 : vector<1x4x32xf32> to vector<4x32xf32>
    %293 = vector.shape_cast %289 : vector<4x32xf32> to vector<1x4x32xf32>
    tpu.vector_store %arg5[%290, %c0_70, %c0_71], %293 {strides = array<i32>} : memref<8x4x32xf32, #tpu.memory_space<vmem>>, vector<1x4x32xf32>,
    %c8_i32 = arith.constant 8 : i32
    %c0_72 = arith.constant 0 : index
    %c0_73 = arith.constant 0 : index
    %c0_74 = arith.constant 0 : index
    %294 = vector.load %arg7[%c0_72, %c0_73, %c0_74] : memref<2x4x32xf32, #tpu.memory_space<vmem>>, vector<1x4x32xf32>
    %295 = vector.shape_cast %294 : vector<1x4x32xf32> to vector<4x32xf32>
    %296 = vector.shape_cast %289 : vector<4x32xf32> to vector<1x4x32xf32>
    tpu.vector_store %arg7[%c0_72, %c0_73, %c0_74], %296 {strides = array<i32>} : memref<2x4x32xf32, #tpu.memory_space<vmem>>, vector<1x4x32xf32>,
    %c0_75 = arith.constant 0 : index
    %c0_76 = arith.constant 0 : index
    %c0_77 = arith.constant 0 : index
    %297 = vector.load %arg8[%c0_75, %c0_76, %c0_77] : memref<2x4x32xf32, #tpu.memory_space<vmem>>, vector<1x4x32xf32>
    %298 = vector.shape_cast %297 : vector<1x4x32xf32> to vector<4x32xf32>
    %299 = vector.shape_cast %287 : vector<4x32xf32> to vector<1x4x32xf32>
    tpu.vector_store %arg8[%c0_75, %c0_76, %c0_77], %299 {strides = array<i32>} : memref<2x4x32xf32, #tpu.memory_space<vmem>>, vector<1x4x32xf32>,
    %c1 = arith.constant 1 : index
    %c0_78 = arith.constant 0 : index
    %c0_79 = arith.constant 0 : index
    %300 = vector.load %arg3[%c1, %c0_78, %c0_79] : memref<2x4x32xf32, #tpu.memory_space<vmem>>, vector<1x4x32xf32>
    %301 = vector.shape_cast %300 : vector<1x4x32xf32> to vector<4x32xf32>
    %c1_80 = arith.constant 1 : index
    %c0_81 = arith.constant 0 : index
    %c0_82 = arith.constant 0 : index
    %302 = vector.load %arg4[%c1_80, %c0_81, %c0_82] : memref<2x4x32xf32, #tpu.memory_space<vmem>>, vector<1x4x32xf32>
    %303 = vector.shape_cast %302 : vector<1x4x32xf32> to vector<4x32xf32>
    %c0_i32_83 = arith.constant 0 : i32
    %c7_i32_84 = arith.constant 7 : i32
    %304 = arith.subi %c7_i32_84, %c0_i32_83 : i32
    %305 = arith.index_cast %304 : i32 to index
    %c0_85 = arith.constant 0 : index
    %c0_86 = arith.constant 0 : index
    %306 = vector.load %arg0[%305, %c0_85, %c0_86] : memref<8x4x256xf32, #tpu.memory_space<vmem>>, vector<1x4x256xf32>
    %307 = vector.shape_cast %306 : vector<1x4x256xf32> to vector<4x256xf32>
    %308 = vector.extract_strided_slice %307 {offsets = [0, 128], sizes = [4, 128], strides = [1, 1]} : vector<4x256xf32> to vector<4x128xf32>
    %309 = arith.truncf %301 : vector<4x32xf32> to vector<4x32xbf16>
    %cst_87 = arith.constant dense<0.000000e+00> : vector<4x128xf32>
    %310 = tpu.matmul %309, %1, %cst_87 {dimension_numbers = #tpu.dot_dimension_numbers<[1], [0], [0], [1], [0, 0, 1, 1], [], []>} : vector<4x32xbf16>, vector<32x128xbf16>, vector<4x128xf32> -> vector<4x128xf32>
    %311 = arith.addf %308, %310 : vector<4x128xf32>
    %312 = vector.extract_strided_slice %311 {offsets = [0, 0], sizes = [4, 32], strides = [1, 1]} : vector<4x128xf32> to vector<4x32xf32>
    %313 = arith.negf %312 : vector<4x32xf32>
    %314 = math.exp %313 : vector<4x32xf32>
    %cst_88 = arith.constant 1.000000e+00 : f32
    %315 = vector.broadcast %cst_88 : f32 to vector<4x32xf32>
    %316 = arith.addf %315, %314 : vector<4x32xf32>
    %317 = arith.divf %315, %316 : vector<4x32xf32>
    %318 = vector.extract_strided_slice %311 {offsets = [0, 32], sizes = [4, 32], strides = [1, 1]} : vector<4x128xf32> to vector<4x32xf32>
    %319 = arith.negf %318 : vector<4x32xf32>
    %320 = math.exp %319 : vector<4x32xf32>
    %cst_89 = arith.constant 1.000000e+00 : f32
    %321 = vector.broadcast %cst_89 : f32 to vector<4x32xf32>
    %322 = arith.addf %321, %320 : vector<4x32xf32>
    %323 = arith.divf %321, %322 : vector<4x32xf32>
    %324 = vector.extract_strided_slice %311 {offsets = [0, 64], sizes = [4, 32], strides = [1, 1]} : vector<4x128xf32> to vector<4x32xf32>
    %325 = math.tanh %324 : vector<4x32xf32>
    %326 = vector.extract_strided_slice %311 {offsets = [0, 96], sizes = [4, 32], strides = [1, 1]} : vector<4x128xf32> to vector<4x32xf32>
    %327 = arith.negf %326 : vector<4x32xf32>
    %328 = math.exp %327 : vector<4x32xf32>
    %cst_90 = arith.constant 1.000000e+00 : f32
    %329 = vector.broadcast %cst_90 : f32 to vector<4x32xf32>
    %330 = arith.addf %329, %328 : vector<4x32xf32>
    %331 = arith.divf %329, %330 : vector<4x32xf32>
    %332 = arith.mulf %323, %303 : vector<4x32xf32>
    %333 = arith.mulf %317, %325 : vector<4x32xf32>
    %334 = arith.addf %332, %333 : vector<4x32xf32>
    %335 = math.tanh %334 : vector<4x32xf32>
    %336 = arith.mulf %331, %335 : vector<4x32xf32>
    %337 = arith.index_cast %304 : i32 to index
    %c0_91 = arith.constant 0 : index
    %c0_92 = arith.constant 0 : index
    %338 = vector.load %arg6[%337, %c0_91, %c0_92] : memref<8x4x32xf32, #tpu.memory_space<vmem>>, vector<1x4x32xf32>
    %339 = vector.shape_cast %338 : vector<1x4x32xf32> to vector<4x32xf32>
    %340 = vector.shape_cast %336 : vector<4x32xf32> to vector<1x4x32xf32>
    tpu.vector_store %arg6[%337, %c0_91, %c0_92], %340 {strides = array<i32>} : memref<8x4x32xf32, #tpu.memory_space<vmem>>, vector<1x4x32xf32>,
    %c1_i32_93 = arith.constant 1 : i32
    %c7_i32_94 = arith.constant 7 : i32
    %341 = arith.subi %c7_i32_94, %c1_i32_93 : i32
    %342 = arith.index_cast %341 : i32 to index
    %c0_95 = arith.constant 0 : index
    %c0_96 = arith.constant 0 : index
    %343 = vector.load %arg0[%342, %c0_95, %c0_96] : memref<8x4x256xf32, #tpu.memory_space<vmem>>, vector<1x4x256xf32>
    %344 = vector.shape_cast %343 : vector<1x4x256xf32> to vector<4x256xf32>
    %345 = vector.extract_strided_slice %344 {offsets = [0, 128], sizes = [4, 128], strides = [1, 1]} : vector<4x256xf32> to vector<4x128xf32>
    %346 = arith.truncf %336 : vector<4x32xf32> to vector<4x32xbf16>
    %cst_97 = arith.constant dense<0.000000e+00> : vector<4x128xf32>
    %347 = tpu.matmul %346, %1, %cst_97 {dimension_numbers = #tpu.dot_dimension_numbers<[1], [0], [0], [1], [0, 0, 1, 1], [], []>} : vector<4x32xbf16>, vector<32x128xbf16>, vector<4x128xf32> -> vector<4x128xf32>
    %348 = arith.addf %345, %347 : vector<4x128xf32>
    %349 = vector.extract_strided_slice %348 {offsets = [0, 0], sizes = [4, 32], strides = [1, 1]} : vector<4x128xf32> to vector<4x32xf32>
    %350 = arith.negf %349 : vector<4x32xf32>
    %351 = math.exp %350 : vector<4x32xf32>
    %cst_98 = arith.constant 1.000000e+00 : f32
    %352 = vector.broadcast %cst_98 : f32 to vector<4x32xf32>
    %353 = arith.addf %352, %351 : vector<4x32xf32>
    %354 = arith.divf %352, %353 : vector<4x32xf32>
    %355 = vector.extract_strided_slice %348 {offsets = [0, 32], sizes = [4, 32], strides = [1, 1]} : vector<4x128xf32> to vector<4x32xf32>
    %356 = arith.negf %355 : vector<4x32xf32>
    %357 = math.exp %356 : vector<4x32xf32>
    %cst_99 = arith.constant 1.000000e+00 : f32
    %358 = vector.broadcast %cst_99 : f32 to vector<4x32xf32>
    %359 = arith.addf %358, %357 : vector<4x32xf32>
    %360 = arith.divf %358, %359 : vector<4x32xf32>
    %361 = vector.extract_strided_slice %348 {offsets = [0, 64], sizes = [4, 32], strides = [1, 1]} : vector<4x128xf32> to vector<4x32xf32>
    %362 = math.tanh %361 : vector<4x32xf32>
    %363 = vector.extract_strided_slice %348 {offsets = [0, 96], sizes = [4, 32], strides = [1, 1]} : vector<4x128xf32> to vector<4x32xf32>
    %364 = arith.negf %363 : vector<4x32xf32>
    %365 = math.exp %364 : vector<4x32xf32>
    %cst_100 = arith.constant 1.000000e+00 : f32
    %366 = vector.broadcast %cst_100 : f32 to vector<4x32xf32>
    %367 = arith.addf %366, %365 : vector<4x32xf32>
    %368 = arith.divf %366, %367 : vector<4x32xf32>
    %369 = arith.mulf %360, %334 : vector<4x32xf32>
    %370 = arith.mulf %354, %362 : vector<4x32xf32>
    %371 = arith.addf %369, %370 : vector<4x32xf32>
    %372 = math.tanh %371 : vector<4x32xf32>
    %373 = arith.mulf %368, %372 : vector<4x32xf32>
    %374 = arith.index_cast %341 : i32 to index
    %c0_101 = arith.constant 0 : index
    %c0_102 = arith.constant 0 : index
    %375 = vector.load %arg6[%374, %c0_101, %c0_102] : memref<8x4x32xf32, #tpu.memory_space<vmem>>, vector<1x4x32xf32>
    %376 = vector.shape_cast %375 : vector<1x4x32xf32> to vector<4x32xf32>
    %377 = vector.shape_cast %373 : vector<4x32xf32> to vector<1x4x32xf32>
    tpu.vector_store %arg6[%374, %c0_101, %c0_102], %377 {strides = array<i32>} : memref<8x4x32xf32, #tpu.memory_space<vmem>>, vector<1x4x32xf32>,
    %c2_i32_103 = arith.constant 2 : i32
    %c7_i32_104 = arith.constant 7 : i32
    %378 = arith.subi %c7_i32_104, %c2_i32_103 : i32
    %379 = arith.index_cast %378 : i32 to index
    %c0_105 = arith.constant 0 : index
    %c0_106 = arith.constant 0 : index
    %380 = vector.load %arg0[%379, %c0_105, %c0_106] : memref<8x4x256xf32, #tpu.memory_space<vmem>>, vector<1x4x256xf32>
    %381 = vector.shape_cast %380 : vector<1x4x256xf32> to vector<4x256xf32>
    %382 = vector.extract_strided_slice %381 {offsets = [0, 128], sizes = [4, 128], strides = [1, 1]} : vector<4x256xf32> to vector<4x128xf32>
    %383 = arith.truncf %373 : vector<4x32xf32> to vector<4x32xbf16>
    %cst_107 = arith.constant dense<0.000000e+00> : vector<4x128xf32>
    %384 = tpu.matmul %383, %1, %cst_107 {dimension_numbers = #tpu.dot_dimension_numbers<[1], [0], [0], [1], [0, 0, 1, 1], [], []>} : vector<4x32xbf16>, vector<32x128xbf16>, vector<4x128xf32> -> vector<4x128xf32>
    %385 = arith.addf %382, %384 : vector<4x128xf32>
    %386 = vector.extract_strided_slice %385 {offsets = [0, 0], sizes = [4, 32], strides = [1, 1]} : vector<4x128xf32> to vector<4x32xf32>
    %387 = arith.negf %386 : vector<4x32xf32>
    %388 = math.exp %387 : vector<4x32xf32>
    %cst_108 = arith.constant 1.000000e+00 : f32
    %389 = vector.broadcast %cst_108 : f32 to vector<4x32xf32>
    %390 = arith.addf %389, %388 : vector<4x32xf32>
    %391 = arith.divf %389, %390 : vector<4x32xf32>
    %392 = vector.extract_strided_slice %385 {offsets = [0, 32], sizes = [4, 32], strides = [1, 1]} : vector<4x128xf32> to vector<4x32xf32>
    %393 = arith.negf %392 : vector<4x32xf32>
    %394 = math.exp %393 : vector<4x32xf32>
    %cst_109 = arith.constant 1.000000e+00 : f32
    %395 = vector.broadcast %cst_109 : f32 to vector<4x32xf32>
    %396 = arith.addf %395, %394 : vector<4x32xf32>
    %397 = arith.divf %395, %396 : vector<4x32xf32>
    %398 = vector.extract_strided_slice %385 {offsets = [0, 64], sizes = [4, 32], strides = [1, 1]} : vector<4x128xf32> to vector<4x32xf32>
    %399 = math.tanh %398 : vector<4x32xf32>
    %400 = vector.extract_strided_slice %385 {offsets = [0, 96], sizes = [4, 32], strides = [1, 1]} : vector<4x128xf32> to vector<4x32xf32>
    %401 = arith.negf %400 : vector<4x32xf32>
    %402 = math.exp %401 : vector<4x32xf32>
    %cst_110 = arith.constant 1.000000e+00 : f32
    %403 = vector.broadcast %cst_110 : f32 to vector<4x32xf32>
    %404 = arith.addf %403, %402 : vector<4x32xf32>
    %405 = arith.divf %403, %404 : vector<4x32xf32>
    %406 = arith.mulf %397, %371 : vector<4x32xf32>
    %407 = arith.mulf %391, %399 : vector<4x32xf32>
    %408 = arith.addf %406, %407 : vector<4x32xf32>
    %409 = math.tanh %408 : vector<4x32xf32>
    %410 = arith.mulf %405, %409 : vector<4x32xf32>
    %411 = arith.index_cast %378 : i32 to index
    %c0_111 = arith.constant 0 : index
    %c0_112 = arith.constant 0 : index
    %412 = vector.load %arg6[%411, %c0_111, %c0_112] : memref<8x4x32xf32, #tpu.memory_space<vmem>>, vector<1x4x32xf32>
    %413 = vector.shape_cast %412 : vector<1x4x32xf32> to vector<4x32xf32>
    %414 = vector.shape_cast %410 : vector<4x32xf32> to vector<1x4x32xf32>
    tpu.vector_store %arg6[%411, %c0_111, %c0_112], %414 {strides = array<i32>} : memref<8x4x32xf32, #tpu.memory_space<vmem>>, vector<1x4x32xf32>,
    %c3_i32_113 = arith.constant 3 : i32
    %c7_i32_114 = arith.constant 7 : i32
    %415 = arith.subi %c7_i32_114, %c3_i32_113 : i32
    %416 = arith.index_cast %415 : i32 to index
    %c0_115 = arith.constant 0 : index
    %c0_116 = arith.constant 0 : index
    %417 = vector.load %arg0[%416, %c0_115, %c0_116] : memref<8x4x256xf32, #tpu.memory_space<vmem>>, vector<1x4x256xf32>
    %418 = vector.shape_cast %417 : vector<1x4x256xf32> to vector<4x256xf32>
    %419 = vector.extract_strided_slice %418 {offsets = [0, 128], sizes = [4, 128], strides = [1, 1]} : vector<4x256xf32> to vector<4x128xf32>
    %420 = arith.truncf %410 : vector<4x32xf32> to vector<4x32xbf16>
    %cst_117 = arith.constant dense<0.000000e+00> : vector<4x128xf32>
    %421 = tpu.matmul %420, %1, %cst_117 {dimension_numbers = #tpu.dot_dimension_numbers<[1], [0], [0], [1], [0, 0, 1, 1], [], []>} : vector<4x32xbf16>, vector<32x128xbf16>, vector<4x128xf32> -> vector<4x128xf32>
    %422 = arith.addf %419, %421 : vector<4x128xf32>
    %423 = vector.extract_strided_slice %422 {offsets = [0, 0], sizes = [4, 32], strides = [1, 1]} : vector<4x128xf32> to vector<4x32xf32>
    %424 = arith.negf %423 : vector<4x32xf32>
    %425 = math.exp %424 : vector<4x32xf32>
    %cst_118 = arith.constant 1.000000e+00 : f32
    %426 = vector.broadcast %cst_118 : f32 to vector<4x32xf32>
    %427 = arith.addf %426, %425 : vector<4x32xf32>
    %428 = arith.divf %426, %427 : vector<4x32xf32>
    %429 = vector.extract_strided_slice %422 {offsets = [0, 32], sizes = [4, 32], strides = [1, 1]} : vector<4x128xf32> to vector<4x32xf32>
    %430 = arith.negf %429 : vector<4x32xf32>
    %431 = math.exp %430 : vector<4x32xf32>
    %cst_119 = arith.constant 1.000000e+00 : f32
    %432 = vector.broadcast %cst_119 : f32 to vector<4x32xf32>
    %433 = arith.addf %432, %431 : vector<4x32xf32>
    %434 = arith.divf %432, %433 : vector<4x32xf32>
    %435 = vector.extract_strided_slice %422 {offsets = [0, 64], sizes = [4, 32], strides = [1, 1]} : vector<4x128xf32> to vector<4x32xf32>
    %436 = math.tanh %435 : vector<4x32xf32>
    %437 = vector.extract_strided_slice %422 {offsets = [0, 96], sizes = [4, 32], strides = [1, 1]} : vector<4x128xf32> to vector<4x32xf32>
    %438 = arith.negf %437 : vector<4x32xf32>
    %439 = math.exp %438 : vector<4x32xf32>
    %cst_120 = arith.constant 1.000000e+00 : f32
    %440 = vector.broadcast %cst_120 : f32 to vector<4x32xf32>
    %441 = arith.addf %440, %439 : vector<4x32xf32>
    %442 = arith.divf %440, %441 : vector<4x32xf32>
    %443 = arith.mulf %434, %408 : vector<4x32xf32>
    %444 = arith.mulf %428, %436 : vector<4x32xf32>
    %445 = arith.addf %443, %444 : vector<4x32xf32>
    %446 = math.tanh %445 : vector<4x32xf32>
    %447 = arith.mulf %442, %446 : vector<4x32xf32>
    %448 = arith.index_cast %415 : i32 to index
    %c0_121 = arith.constant 0 : index
    %c0_122 = arith.constant 0 : index
    %449 = vector.load %arg6[%448, %c0_121, %c0_122] : memref<8x4x32xf32, #tpu.memory_space<vmem>>, vector<1x4x32xf32>
    %450 = vector.shape_cast %449 : vector<1x4x32xf32> to vector<4x32xf32>
    %451 = vector.shape_cast %447 : vector<4x32xf32> to vector<1x4x32xf32>
    tpu.vector_store %arg6[%448, %c0_121, %c0_122], %451 {strides = array<i32>} : memref<8x4x32xf32, #tpu.memory_space<vmem>>, vector<1x4x32xf32>,
    %c4_i32_123 = arith.constant 4 : i32
    %c7_i32_124 = arith.constant 7 : i32
    %452 = arith.subi %c7_i32_124, %c4_i32_123 : i32
    %453 = arith.index_cast %452 : i32 to index
    %c0_125 = arith.constant 0 : index
    %c0_126 = arith.constant 0 : index
    %454 = vector.load %arg0[%453, %c0_125, %c0_126] : memref<8x4x256xf32, #tpu.memory_space<vmem>>, vector<1x4x256xf32>
    %455 = vector.shape_cast %454 : vector<1x4x256xf32> to vector<4x256xf32>
    %456 = vector.extract_strided_slice %455 {offsets = [0, 128], sizes = [4, 128], strides = [1, 1]} : vector<4x256xf32> to vector<4x128xf32>
    %457 = arith.truncf %447 : vector<4x32xf32> to vector<4x32xbf16>
    %cst_127 = arith.constant dense<0.000000e+00> : vector<4x128xf32>
    %458 = tpu.matmul %457, %1, %cst_127 {dimension_numbers = #tpu.dot_dimension_numbers<[1], [0], [0], [1], [0, 0, 1, 1], [], []>} : vector<4x32xbf16>, vector<32x128xbf16>, vector<4x128xf32> -> vector<4x128xf32>
    %459 = arith.addf %456, %458 : vector<4x128xf32>
    %460 = vector.extract_strided_slice %459 {offsets = [0, 0], sizes = [4, 32], strides = [1, 1]} : vector<4x128xf32> to vector<4x32xf32>
    %461 = arith.negf %460 : vector<4x32xf32>
    %462 = math.exp %461 : vector<4x32xf32>
    %cst_128 = arith.constant 1.000000e+00 : f32
    %463 = vector.broadcast %cst_128 : f32 to vector<4x32xf32>
    %464 = arith.addf %463, %462 : vector<4x32xf32>
    %465 = arith.divf %463, %464 : vector<4x32xf32>
    %466 = vector.extract_strided_slice %459 {offsets = [0, 32], sizes = [4, 32], strides = [1, 1]} : vector<4x128xf32> to vector<4x32xf32>
    %467 = arith.negf %466 : vector<4x32xf32>
    %468 = math.exp %467 : vector<4x32xf32>
    %cst_129 = arith.constant 1.000000e+00 : f32
    %469 = vector.broadcast %cst_129 : f32 to vector<4x32xf32>
    %470 = arith.addf %469, %468 : vector<4x32xf32>
    %471 = arith.divf %469, %470 : vector<4x32xf32>
    %472 = vector.extract_strided_slice %459 {offsets = [0, 64], sizes = [4, 32], strides = [1, 1]} : vector<4x128xf32> to vector<4x32xf32>
    %473 = math.tanh %472 : vector<4x32xf32>
    %474 = vector.extract_strided_slice %459 {offsets = [0, 96], sizes = [4, 32], strides = [1, 1]} : vector<4x128xf32> to vector<4x32xf32>
    %475 = arith.negf %474 : vector<4x32xf32>
    %476 = math.exp %475 : vector<4x32xf32>
    %cst_130 = arith.constant 1.000000e+00 : f32
    %477 = vector.broadcast %cst_130 : f32 to vector<4x32xf32>
    %478 = arith.addf %477, %476 : vector<4x32xf32>
    %479 = arith.divf %477, %478 : vector<4x32xf32>
    %480 = arith.mulf %471, %445 : vector<4x32xf32>
    %481 = arith.mulf %465, %473 : vector<4x32xf32>
    %482 = arith.addf %480, %481 : vector<4x32xf32>
    %483 = math.tanh %482 : vector<4x32xf32>
    %484 = arith.mulf %479, %483 : vector<4x32xf32>
    %485 = arith.index_cast %452 : i32 to index
    %c0_131 = arith.constant 0 : index
    %c0_132 = arith.constant 0 : index
    %486 = vector.load %arg6[%485, %c0_131, %c0_132] : memref<8x4x32xf32, #tpu.memory_space<vmem>>, vector<1x4x32xf32>
    %487 = vector.shape_cast %486 : vector<1x4x32xf32> to vector<4x32xf32>
    %488 = vector.shape_cast %484 : vector<4x32xf32> to vector<1x4x32xf32>
    tpu.vector_store %arg6[%485, %c0_131, %c0_132], %488 {strides = array<i32>} : memref<8x4x32xf32, #tpu.memory_space<vmem>>, vector<1x4x32xf32>,
    %c5_i32_133 = arith.constant 5 : i32
    %c7_i32_134 = arith.constant 7 : i32
    %489 = arith.subi %c7_i32_134, %c5_i32_133 : i32
    %490 = arith.index_cast %489 : i32 to index
    %c0_135 = arith.constant 0 : index
    %c0_136 = arith.constant 0 : index
    %491 = vector.load %arg0[%490, %c0_135, %c0_136] : memref<8x4x256xf32, #tpu.memory_space<vmem>>, vector<1x4x256xf32>
    %492 = vector.shape_cast %491 : vector<1x4x256xf32> to vector<4x256xf32>
    %493 = vector.extract_strided_slice %492 {offsets = [0, 128], sizes = [4, 128], strides = [1, 1]} : vector<4x256xf32> to vector<4x128xf32>
    %494 = arith.truncf %484 : vector<4x32xf32> to vector<4x32xbf16>
    %cst_137 = arith.constant dense<0.000000e+00> : vector<4x128xf32>
    %495 = tpu.matmul %494, %1, %cst_137 {dimension_numbers = #tpu.dot_dimension_numbers<[1], [0], [0], [1], [0, 0, 1, 1], [], []>} : vector<4x32xbf16>, vector<32x128xbf16>, vector<4x128xf32> -> vector<4x128xf32>
    %496 = arith.addf %493, %495 : vector<4x128xf32>
    %497 = vector.extract_strided_slice %496 {offsets = [0, 0], sizes = [4, 32], strides = [1, 1]} : vector<4x128xf32> to vector<4x32xf32>
    %498 = arith.negf %497 : vector<4x32xf32>
    %499 = math.exp %498 : vector<4x32xf32>
    %cst_138 = arith.constant 1.000000e+00 : f32
    %500 = vector.broadcast %cst_138 : f32 to vector<4x32xf32>
    %501 = arith.addf %500, %499 : vector<4x32xf32>
    %502 = arith.divf %500, %501 : vector<4x32xf32>
    %503 = vector.extract_strided_slice %496 {offsets = [0, 32], sizes = [4, 32], strides = [1, 1]} : vector<4x128xf32> to vector<4x32xf32>
    %504 = arith.negf %503 : vector<4x32xf32>
    %505 = math.exp %504 : vector<4x32xf32>
    %cst_139 = arith.constant 1.000000e+00 : f32
    %506 = vector.broadcast %cst_139 : f32 to vector<4x32xf32>
    %507 = arith.addf %506, %505 : vector<4x32xf32>
    %508 = arith.divf %506, %507 : vector<4x32xf32>
    %509 = vector.extract_strided_slice %496 {offsets = [0, 64], sizes = [4, 32], strides = [1, 1]} : vector<4x128xf32> to vector<4x32xf32>
    %510 = math.tanh %509 : vector<4x32xf32>
    %511 = vector.extract_strided_slice %496 {offsets = [0, 96], sizes = [4, 32], strides = [1, 1]} : vector<4x128xf32> to vector<4x32xf32>
    %512 = arith.negf %511 : vector<4x32xf32>
    %513 = math.exp %512 : vector<4x32xf32>
    %cst_140 = arith.constant 1.000000e+00 : f32
    %514 = vector.broadcast %cst_140 : f32 to vector<4x32xf32>
    %515 = arith.addf %514, %513 : vector<4x32xf32>
    %516 = arith.divf %514, %515 : vector<4x32xf32>
    %517 = arith.mulf %508, %482 : vector<4x32xf32>
    %518 = arith.mulf %502, %510 : vector<4x32xf32>
    %519 = arith.addf %517, %518 : vector<4x32xf32>
    %520 = math.tanh %519 : vector<4x32xf32>
    %521 = arith.mulf %516, %520 : vector<4x32xf32>
    %522 = arith.index_cast %489 : i32 to index
    %c0_141 = arith.constant 0 : index
    %c0_142 = arith.constant 0 : index
    %523 = vector.load %arg6[%522, %c0_141, %c0_142] : memref<8x4x32xf32, #tpu.memory_space<vmem>>, vector<1x4x32xf32>
    %524 = vector.shape_cast %523 : vector<1x4x32xf32> to vector<4x32xf32>
    %525 = vector.shape_cast %521 : vector<4x32xf32> to vector<1x4x32xf32>
    tpu.vector_store %arg6[%522, %c0_141, %c0_142], %525 {strides = array<i32>} : memref<8x4x32xf32, #tpu.memory_space<vmem>>, vector<1x4x32xf32>,
    %c6_i32_143 = arith.constant 6 : i32
    %c7_i32_144 = arith.constant 7 : i32
    %526 = arith.subi %c7_i32_144, %c6_i32_143 : i32
    %527 = arith.index_cast %526 : i32 to index
    %c0_145 = arith.constant 0 : index
    %c0_146 = arith.constant 0 : index
    %528 = vector.load %arg0[%527, %c0_145, %c0_146] : memref<8x4x256xf32, #tpu.memory_space<vmem>>, vector<1x4x256xf32>
    %529 = vector.shape_cast %528 : vector<1x4x256xf32> to vector<4x256xf32>
    %530 = vector.extract_strided_slice %529 {offsets = [0, 128], sizes = [4, 128], strides = [1, 1]} : vector<4x256xf32> to vector<4x128xf32>
    %531 = arith.truncf %521 : vector<4x32xf32> to vector<4x32xbf16>
    %cst_147 = arith.constant dense<0.000000e+00> : vector<4x128xf32>
    %532 = tpu.matmul %531, %1, %cst_147 {dimension_numbers = #tpu.dot_dimension_numbers<[1], [0], [0], [1], [0, 0, 1, 1], [], []>} : vector<4x32xbf16>, vector<32x128xbf16>, vector<4x128xf32> -> vector<4x128xf32>
    %533 = arith.addf %530, %532 : vector<4x128xf32>
    %534 = vector.extract_strided_slice %533 {offsets = [0, 0], sizes = [4, 32], strides = [1, 1]} : vector<4x128xf32> to vector<4x32xf32>
    %535 = arith.negf %534 : vector<4x32xf32>
    %536 = math.exp %535 : vector<4x32xf32>
    %cst_148 = arith.constant 1.000000e+00 : f32
    %537 = vector.broadcast %cst_148 : f32 to vector<4x32xf32>
    %538 = arith.addf %537, %536 : vector<4x32xf32>
    %539 = arith.divf %537, %538 : vector<4x32xf32>
    %540 = vector.extract_strided_slice %533 {offsets = [0, 32], sizes = [4, 32], strides = [1, 1]} : vector<4x128xf32> to vector<4x32xf32>
    %541 = arith.negf %540 : vector<4x32xf32>
    %542 = math.exp %541 : vector<4x32xf32>
    %cst_149 = arith.constant 1.000000e+00 : f32
    %543 = vector.broadcast %cst_149 : f32 to vector<4x32xf32>
    %544 = arith.addf %543, %542 : vector<4x32xf32>
    %545 = arith.divf %543, %544 : vector<4x32xf32>
    %546 = vector.extract_strided_slice %533 {offsets = [0, 64], sizes = [4, 32], strides = [1, 1]} : vector<4x128xf32> to vector<4x32xf32>
    %547 = math.tanh %546 : vector<4x32xf32>
    %548 = vector.extract_strided_slice %533 {offsets = [0, 96], sizes = [4, 32], strides = [1, 1]} : vector<4x128xf32> to vector<4x32xf32>
    %549 = arith.negf %548 : vector<4x32xf32>
    %550 = math.exp %549 : vector<4x32xf32>
    %cst_150 = arith.constant 1.000000e+00 : f32
    %551 = vector.broadcast %cst_150 : f32 to vector<4x32xf32>
    %552 = arith.addf %551, %550 : vector<4x32xf32>
    %553 = arith.divf %551, %552 : vector<4x32xf32>
    %554 = arith.mulf %545, %519 : vector<4x32xf32>
    %555 = arith.mulf %539, %547 : vector<4x32xf32>
    %556 = arith.addf %554, %555 : vector<4x32xf32>
    %557 = math.tanh %556 : vector<4x32xf32>
    %558 = arith.mulf %553, %557 : vector<4x32xf32>
    %559 = arith.index_cast %526 : i32 to index
    %c0_151 = arith.constant 0 : index
    %c0_152 = arith.constant 0 : index
    %560 = vector.load %arg6[%559, %c0_151, %c0_152] : memref<8x4x32xf32, #tpu.memory_space<vmem>>, vector<1x4x32xf32>
    %561 = vector.shape_cast %560 : vector<1x4x32xf32> to vector<4x32xf32>
    %562 = vector.shape_cast %558 : vector<4x32xf32> to vector<1x4x32xf32>
    tpu.vector_store %arg6[%559, %c0_151, %c0_152], %562 {strides = array<i32>} : memref<8x4x32xf32, #tpu.memory_space<vmem>>, vector<1x4x32xf32>,
    %c7_i32_153 = arith.constant 7 : i32
    %c7_i32_154 = arith.constant 7 : i32
    %563 = arith.subi %c7_i32_154, %c7_i32_153 : i32
    %564 = arith.index_cast %563 : i32 to index
    %c0_155 = arith.constant 0 : index
    %c0_156 = arith.constant 0 : index
    %565 = vector.load %arg0[%564, %c0_155, %c0_156] : memref<8x4x256xf32, #tpu.memory_space<vmem>>, vector<1x4x256xf32>
    %566 = vector.shape_cast %565 : vector<1x4x256xf32> to vector<4x256xf32>
    %567 = vector.extract_strided_slice %566 {offsets = [0, 128], sizes = [4, 128], strides = [1, 1]} : vector<4x256xf32> to vector<4x128xf32>
    %568 = arith.truncf %558 : vector<4x32xf32> to vector<4x32xbf16>
    %cst_157 = arith.constant dense<0.000000e+00> : vector<4x128xf32>
    %569 = tpu.matmul %568, %1, %cst_157 {dimension_numbers = #tpu.dot_dimension_numbers<[1], [0], [0], [1], [0, 0, 1, 1], [], []>} : vector<4x32xbf16>, vector<32x128xbf16>, vector<4x128xf32> -> vector<4x128xf32>
    %570 = arith.addf %567, %569 : vector<4x128xf32>
    %571 = vector.extract_strided_slice %570 {offsets = [0, 0], sizes = [4, 32], strides = [1, 1]} : vector<4x128xf32> to vector<4x32xf32>
    %572 = arith.negf %571 : vector<4x32xf32>
    %573 = math.exp %572 : vector<4x32xf32>
    %cst_158 = arith.constant 1.000000e+00 : f32
    %574 = vector.broadcast %cst_158 : f32 to vector<4x32xf32>
    %575 = arith.addf %574, %573 : vector<4x32xf32>
    %576 = arith.divf %574, %575 : vector<4x32xf32>
    %577 = vector.extract_strided_slice %570 {offsets = [0, 32], sizes = [4, 32], strides = [1, 1]} : vector<4x128xf32> to vector<4x32xf32>
    %578 = arith.negf %577 : vector<4x32xf32>
    %579 = math.exp %578 : vector<4x32xf32>
    %cst_159 = arith.constant 1.000000e+00 : f32
    %580 = vector.broadcast %cst_159 : f32 to vector<4x32xf32>
    %581 = arith.addf %580, %579 : vector<4x32xf32>
    %582 = arith.divf %580, %581 : vector<4x32xf32>
    %583 = vector.extract_strided_slice %570 {offsets = [0, 64], sizes = [4, 32], strides = [1, 1]} : vector<4x128xf32> to vector<4x32xf32>
    %584 = math.tanh %583 : vector<4x32xf32>
    %585 = vector.extract_strided_slice %570 {offsets = [0, 96], sizes = [4, 32], strides = [1, 1]} : vector<4x128xf32> to vector<4x32xf32>
    %586 = arith.negf %585 : vector<4x32xf32>
    %587 = math.exp %586 : vector<4x32xf32>
    %cst_160 = arith.constant 1.000000e+00 : f32
    %588 = vector.broadcast %cst_160 : f32 to vector<4x32xf32>
    %589 = arith.addf %588, %587 : vector<4x32xf32>
    %590 = arith.divf %588, %589 : vector<4x32xf32>
    %591 = arith.mulf %582, %556 : vector<4x32xf32>
    %592 = arith.mulf %576, %584 : vector<4x32xf32>
    %593 = arith.addf %591, %592 : vector<4x32xf32>
    %594 = math.tanh %593 : vector<4x32xf32>
    %595 = arith.mulf %590, %594 : vector<4x32xf32>
    %596 = arith.index_cast %563 : i32 to index
    %c0_161 = arith.constant 0 : index
    %c0_162 = arith.constant 0 : index
    %597 = vector.load %arg6[%596, %c0_161, %c0_162] : memref<8x4x32xf32, #tpu.memory_space<vmem>>, vector<1x4x32xf32>
    %598 = vector.shape_cast %597 : vector<1x4x32xf32> to vector<4x32xf32>
    %599 = vector.shape_cast %595 : vector<4x32xf32> to vector<1x4x32xf32>
    tpu.vector_store %arg6[%596, %c0_161, %c0_162], %599 {strides = array<i32>} : memref<8x4x32xf32, #tpu.memory_space<vmem>>, vector<1x4x32xf32>,
    %c8_i32_163 = arith.constant 8 : i32
    %c1_164 = arith.constant 1 : index
    %c0_165 = arith.constant 0 : index
    %c0_166 = arith.constant 0 : index
    %600 = vector.load %arg7[%c1_164, %c0_165, %c0_166] : memref<2x4x32xf32, #tpu.memory_space<vmem>>, vector<1x4x32xf32>
    %601 = vector.shape_cast %600 : vector<1x4x32xf32> to vector<4x32xf32>
    %602 = vector.shape_cast %595 : vector<4x32xf32> to vector<1x4x32xf32>
    tpu.vector_store %arg7[%c1_164, %c0_165, %c0_166], %602 {strides = array<i32>} : memref<2x4x32xf32, #tpu.memory_space<vmem>>, vector<1x4x32xf32>,
    %c1_167 = arith.constant 1 : index
    %c0_168 = arith.constant 0 : index
    %c0_169 = arith.constant 0 : index
    %603 = vector.load %arg8[%c1_167, %c0_168, %c0_169] : memref<2x4x32xf32, #tpu.memory_space<vmem>>, vector<1x4x32xf32>
    %604 = vector.shape_cast %603 : vector<1x4x32xf32> to vector<4x32xf32>
    %605 = vector.shape_cast %593 : vector<4x32xf32> to vector<1x4x32xf32>
    tpu.vector_store %arg8[%c1_167, %c0_168, %c0_169], %605 {strides = array<i32>} : memref<2x4x32xf32, #tpu.memory_space<vmem>>, vector<1x4x32xf32>,
    return
  }
}

module attributes {stable_mosaic.version = 11 : i64} {
  func.func @_dense_kernel(%arg0: i32, %arg1: memref<2x640xbf16, #tpu.memory_space<vmem>>, %arg2: memref<640x320xbf16, #tpu.memory_space<vmem>>, %arg3: memref<1x320xf32, #tpu.memory_space<vmem>>, %arg4: memref<2x320xf32, #tpu.memory_space<vmem>>) attributes {dimension_semantics = [#tpu.dimension_semantics<parallel>], iteration_bounds = array<i64: 1>, scalar_prefetch = 0 : i64, scratch_operands = 0 : i64, tpu.core_type = #tpu.core_type<tc>, window_params = [{transform_indices = @transform_0, window_bounds = array<i64: 2, 640>}, {pipeline_mode = #tpu.pipeline_mode<synchronous>, transform_indices = @transform_1, window_bounds = array<i64: 640, 320>}, {pipeline_mode = #tpu.pipeline_mode<synchronous>, transform_indices = @transform_2, window_bounds = array<i64: 1, 320>}, {transform_indices = @transform_3, window_bounds = array<i64: 2, 320>}]} {
    %c0 = arith.constant 0 : index
    %c0_0 = arith.constant 0 : index
    %0 = vector.load %arg1[%c0, %c0_0] : memref<2x640xbf16, #tpu.memory_space<vmem>>, vector<2x640xbf16>
    %c0_1 = arith.constant 0 : index
    %c0_2 = arith.constant 0 : index
    %1 = vector.load %arg2[%c0_1, %c0_2] : memref<640x320xbf16, #tpu.memory_space<vmem>>, vector<640x320xbf16>
    %cst = arith.constant dense<0.000000e+00> : vector<2x320xf32>
    %2 = tpu.matmul %0, %1, %cst {dimension_numbers = #tpu.dot_dimension_numbers<[1], [0], [0], [1], [0, 0, 1, 1], [], []>} : vector<2x640xbf16>, vector<640x320xbf16>, vector<2x320xf32> -> vector<2x320xf32>
    %c0_3 = arith.constant 0 : index
    %c0_4 = arith.constant 0 : index
    %3 = vector.load %arg3[%c0_3, %c0_4] : memref<1x320xf32, #tpu.memory_space<vmem>>, vector<1x320xf32>
    %4 = vector.broadcast %3 : vector<1x320xf32> to vector<2x320xf32>
    %5 = arith.addf %2, %4 : vector<2x320xf32>
    %cst_5 = arith.constant 0.000000e+00 : f32
    %6 = vector.broadcast %cst_5 : f32 to vector<2x320xf32>
    %7 = arith.maximumf %5, %6 : vector<2x320xf32>
    %c0_6 = arith.constant 0 : index
    %c0_7 = arith.constant 0 : index
    %8 = vector.load %arg4[%c0_6, %c0_7] : memref<2x320xf32, #tpu.memory_space<vmem>>, vector<2x320xf32>
    tpu.vector_store %arg4[%c0_6, %c0_7], %7 {strides = array<i32>} : memref<2x320xf32, #tpu.memory_space<vmem>>, vector<2x320xf32>,
    return
  }
  func.func @transform_0(%arg0: i32) -> (i32, i32) {
    %c0_i32 = arith.constant 0 : i32
    %c0_i32_0 = arith.constant 0 : i32
    return %arg0, %c0_i32 : i32, i32
  }
  func.func @transform_1(%arg0: i32) -> (i32, i32) {
    %c0_i32 = arith.constant 0 : i32
    %c0_i32_0 = arith.constant 0 : i32
    %c0_i32_1 = arith.constant 0 : i32
    return %c0_i32, %c0_i32_0 : i32, i32
  }
  func.func @transform_2(%arg0: i32) -> (i32, i32) {
    %c0_i32 = arith.constant 0 : i32
    %c0_i32_0 = arith.constant 0 : i32
    %c0_i32_1 = arith.constant 0 : i32
    return %c0_i32, %c0_i32_0 : i32, i32
  }
  func.func @transform_3(%arg0: i32) -> (i32, i32) {
    %c0_i32 = arith.constant 0 : i32
    %c0_i32_0 = arith.constant 0 : i32
    return %arg0, %c0_i32 : i32, i32
  }
}

module attributes {stable_mosaic.version = 11 : i64} {
  func.func @_dense_kernel(%arg0: i32, %arg1: memref<2x320xbf16, #tpu.memory_space<vmem>>, %arg2: memref<320x3xbf16, #tpu.memory_space<vmem>>, %arg3: memref<1x3xf32, #tpu.memory_space<vmem>>, %arg4: memref<2x3xf32, #tpu.memory_space<vmem>>) attributes {dimension_semantics = [#tpu.dimension_semantics<parallel>], iteration_bounds = array<i64: 1>, scalar_prefetch = 0 : i64, scratch_operands = 0 : i64, tpu.core_type = #tpu.core_type<tc>, window_params = [{transform_indices = @transform_0, window_bounds = array<i64: 2, 320>}, {pipeline_mode = #tpu.pipeline_mode<synchronous>, transform_indices = @transform_1, window_bounds = array<i64: 320, 3>}, {pipeline_mode = #tpu.pipeline_mode<synchronous>, transform_indices = @transform_2, window_bounds = array<i64: 1, 3>}, {transform_indices = @transform_3, window_bounds = array<i64: 2, 3>}]} {
    %c0 = arith.constant 0 : index
    %c0_0 = arith.constant 0 : index
    %0 = vector.load %arg1[%c0, %c0_0] : memref<2x320xbf16, #tpu.memory_space<vmem>>, vector<2x320xbf16>
    %c0_1 = arith.constant 0 : index
    %c0_2 = arith.constant 0 : index
    %1 = vector.load %arg2[%c0_1, %c0_2] : memref<320x3xbf16, #tpu.memory_space<vmem>>, vector<320x3xbf16>
    %cst = arith.constant dense<0.000000e+00> : vector<2x3xf32>
    %2 = tpu.matmul %0, %1, %cst {dimension_numbers = #tpu.dot_dimension_numbers<[1], [0], [0], [1], [0, 0, 1, 1], [], []>} : vector<2x320xbf16>, vector<320x3xbf16>, vector<2x3xf32> -> vector<2x3xf32>
    %c0_3 = arith.constant 0 : index
    %c0_4 = arith.constant 0 : index
    %3 = vector.load %arg3[%c0_3, %c0_4] : memref<1x3xf32, #tpu.memory_space<vmem>>, vector<1x3xf32>
    %4 = vector.broadcast %3 : vector<1x3xf32> to vector<2x3xf32>
    %5 = arith.addf %2, %4 : vector<2x3xf32>
    %6 = arith.negf %5 : vector<2x3xf32>
    %7 = math.exp %6 : vector<2x3xf32>
    %cst_5 = arith.constant 1.000000e+00 : f32
    %8 = vector.broadcast %cst_5 : f32 to vector<2x3xf32>
    %9 = arith.addf %8, %7 : vector<2x3xf32>
    %10 = arith.divf %8, %9 : vector<2x3xf32>
    %c0_6 = arith.constant 0 : index
    %c0_7 = arith.constant 0 : index
    %11 = vector.load %arg4[%c0_6, %c0_7] : memref<2x3xf32, #tpu.memory_space<vmem>>, vector<2x3xf32>
    tpu.vector_store %arg4[%c0_6, %c0_7], %10 {strides = array<i32>} : memref<2x3xf32, #tpu.memory_space<vmem>>, vector<2x3xf32>,
    return
  }
  func.func @transform_0(%arg0: i32) -> (i32, i32) {
    %c0_i32 = arith.constant 0 : i32
    %c0_i32_0 = arith.constant 0 : i32
    return %arg0, %c0_i32 : i32, i32
  }
  func.func @transform_1(%arg0: i32) -> (i32, i32) {
    %c0_i32 = arith.constant 0 : i32
    %c0_i32_0 = arith.constant 0 : i32
    %c0_i32_1 = arith.constant 0 : i32
    return %c0_i32, %c0_i32_0 : i32, i32
  }
  func.func @transform_2(%arg0: i32) -> (i32, i32) {
    %c0_i32 = arith.constant 0 : i32
    %c0_i32_0 = arith.constant 0 : i32
    %c0_i32_1 = arith.constant 0 : i32
    return %c0_i32, %c0_i32_0 : i32, i32
  }
  func.func @transform_3(%arg0: i32) -> (i32, i32) {
    %c0_i32 = arith.constant 0 : i32
    %c0_i32_0 = arith.constant 0 : i32
    return %arg0, %c0_i32 : i32, i32
  }
}

</mosaic_0001>

<llo_original>
// kernel: drcn_forward.15
$region0: #{drcn_forward.15}
  #allocation0 [shape = 'u32[]', space=smem, size = 0x4, offset = 0x4, fixed_abs, tag = 'smem constant byte address 0x4 - core index']
  #allocation1 [shape = 'u32[144,128]{1,0:T(1,128)}', space=vmem, size = 0x12000, scoped, tag = 'internal scratch']
  %s0 = inlined_call_operand.vmem [shape: bf16[32,32], index: 0, kind: input, shape index: {}]
  %s1 = inlined_call_operand.vmem [shape: bf16[32,256], index: 1, kind: input, shape index: {}]
  %s2 = inlined_call_operand.vmem [shape: f32[1,256], index: 2, kind: input, shape index: {}]
  %s3 = inlined_call_operand.vmem [shape: f32[32,256], index: 3, kind: output, shape index: {}]
  %s4 = sld [smem:[#allocation0]]
  $region22: #{drcn_forward.15} parent=0
    _
  %s6 = ssub.s32 1, %s4
  %s7 = scalar_select 0, %s6, %s4
  // Predicated region
  $region2: #{drcn_forward.15} parent=0 // pred_check
    _
  $region3: #{drcn_forward.15} parent=0 // pred_check_branch
    %9 = sbr.rel (0) target = $region5
  $region4: #{drcn_forward.15} parent=0 // pred_region
    _
  $region5: #{drcn_forward.15} parent=0 // pred_fallthru
    _
  // Predicated region
  $region6: #{drcn_forward.15} parent=0 // pred_check
    _
  $region7: #{drcn_forward.15} parent=0 // pred_check_branch
    %11 = sbr.rel (0) target = $region9
  $region8: #{drcn_forward.15} parent=0 // pred_region
    _
  $region9: #{drcn_forward.15} parent=0 // pred_fallthru
    _
  // Predicated region
  $region10: #{drcn_forward.15} parent=0 // pred_check
    _
  $region11: #{drcn_forward.15} parent=0 // pred_check_branch
    %13 = sbr.rel (0) target = $region13
  $region12: #{drcn_forward.15} parent=0 // pred_region
    _
  $region13: #{drcn_forward.15} parent=0 // pred_fallthru
    _
  %v15 = vld [vmem:[%s0] sm:$0xf]
  %v16 = vld [vmem:[%s0 + $0x4] sm:$0xf]
  %v17 = vld [vmem:[%s0 + $0x8] sm:$0xf]
  %v18 = vld [vmem:[%s0 + $0xc] sm:$0xf]
  %v19 = vld [vmem:[%s1] sm:$0xff]
  %v20 = vld [vmem:[%s1 + $0x8] sm:$0xff]
  %v21 = vld [vmem:[%s1 + $0x10] sm:$0xff]
  %v22 = vld [vmem:[%s1 + $0x18] sm:$0xff]
  %v23 = vld [vmem:[%s2] sm:$0x3]
  %v25 = vlaneseq
  %v26 = vshrl.u32 %v25, 7
  %v27 = vsub.s32 0, %v26
  %v28 = vrot.slane %v23, %v27
  %v29 = vlaneseq
  %v30 = vshrl.u32 %v29, 7
  %v31 = vsub.s32 1, %v30
  %v32 = vrot.slane %v23, %v31
  %v39 = vunpack.c.l.b16 %v15
  %v40 = vunpack.c.l.b16 %v16
  %v41 = vunpack.c.l.b16 %v17
  %v42 = vunpack.c.l.b16 %v18
  %v43 = vpack.c.b16 %v40, %v39
  %v44 = vpack.c.b16 %v42, %v41
  %v49 = vunpack.c.l.b16 %v19
  %v50 = vunpack.c.h.b16 %v19
  %v51 = vunpack.c.l.b16 %v20
  %v52 = vunpack.c.h.b16 %v20
  %v53 = vunpack.c.l.b16 %v21
  %v54 = vunpack.c.h.b16 %v21
  %v55 = vunpack.c.l.b16 %v22
  %v56 = vunpack.c.h.b16 %v22
  %v57 = vpack.c.b16 %v51, %v49
  %v58 = vpack.c.b16 %v52, %v50
  %v59 = vpack.c.b16 %v55, %v53
  %v60 = vpack.c.b16 %v56, %v54
  %vm65 = vcmask 261120
  %v67 = vsel %vm65, %v43, 0
  %v70 = vsel %vm65, %v44, 0
  %72 = vmatprep.subr.bf16.mxu0 %v58
  %73 = vmatpush1.bf16.msra.mxu0 %v57
  %74 = vmatprep.subr.bf16.mxu0 %v60
  %75 = vmatpush1.bf16.msra.mxu0 %v59
  %76 = vmatprep.subr.bf16.mxu0 0
  %77 = vmatpush1.bf16.msra.mxu0 0
  %78 = vmatprep.subr.bf16.mxu0 0
  %79 = vmatpush1.bf16.msra.mxu0 0
  %80 = vmatprep.subr.bf16.mxu0 0
  %81 = vmatpush1.bf16.msra.mxu0 0
  %82 = vmatprep.subr.bf16.mxu0 0
  %83 = vmatpush1.bf16.msra.mxu0 0
  %84 = vmatprep.subr.bf16.mxu0 0
  %85 = vmatpush1.bf16.msra.mxu0 0
  %86 = vmatprep.subr.bf16.mxu0 0
  %87 = vmatpush1.bf16.msra.mxu0 0
  %88 = vmatprep.subr.bf16.mxu0 0
  %89 = vmatpush1.bf16.msra.mxu0 0
  %90 = vmatprep.subr.bf16.mxu0 0
  %91 = vmatpush1.bf16.msra.mxu0 0
  %92 = vmatprep.subr.bf16.mxu0 0
  %93 = vmatpush1.bf16.msra.mxu0 0
  %94 = vmatprep.subr.bf16.mxu0 0
  %95 = vmatpush1.bf16.msra.mxu0 0
  %96 = vmatprep.subr.bf16.mxu0 0
  %97 = vmatpush1.bf16.msra.mxu0 0
  %98 = vmatprep.subr.bf16.mxu0 0
  %99 = vmatpush1.bf16.msra.mxu0 0
  %100 = vmatprep.subr.bf16.mxu0 0
  %101 = vmatpush1.bf16.msra.mxu0 0
  %102 = vmatprep.subr.bf16.mxu0 0
  %103 = vmatpush1.bf16.msra.mxu0 0
  %104 = vmatprep.mubr.bf16.mxu0 0
  %105 = vmatmul.mubr.bf16.gmra.mrb[0].mxu0 %v67
  %v106 = vpop.f32.mrb[0].mxu0
  %v107 = vadd.f32 %v28, %v106
  %v108 = vpop.f32.mrb[0].mxu0
  %v109 = vadd.f32 %v32, %v108
  %v110 = vpop.f32.mrb[0].mxu0
  %v111 = vadd.f32 %v28, %v110
  %v112 = vpop.f32.mrb[0].mxu0
  %v113 = vadd.f32 %v32, %v112
  %114 = vmatprep.mubr.bf16.mxu0 0
  %115 = vmatmul.mubr.bf16.gmra.mrb[0].mxu0 %v70
  %v116 = vpop.f32.mrb[0].mxu0
  %v117 = vadd.f32 %v28, %v116
  %v118 = vpop.f32.mrb[0].mxu0
  %v119 = vadd.f32 %v32, %v118
  %v120 = vpop.f32.mrb[0].mxu0
  %v121 = vadd.f32 %v28, %v120
  %v122 = vpop.f32.mrb[0].mxu0
  %v123 = vadd.f32 %v32, %v122
  %124 = vdwg.mxu0
  %125 = vst [vmem:[%s3] sm:$0xff] %v107
  %126 = vst [vmem:[%s3 + $0x8] sm:$0xff] %v109
  %127 = vst [vmem:[%s3 + $0x10] sm:$0xff] %v111
  %128 = vst [vmem:[%s3 + $0x18] sm:$0xff] %v113
  %129 = vst [vmem:[%s3 + $0x20] sm:$0xff] %v117
  %130 = vst [vmem:[%s3 + $0x28] sm:$0xff] %v119
  %131 = vst [vmem:[%s3 + $0x30] sm:$0xff] %v121
  %132 = vst [vmem:[%s3 + $0x38] sm:$0xff] %v123
  // Predicated region
  $region14: #{drcn_forward.15} parent=0 // pred_check
    _
  $region15: #{drcn_forward.15} parent=0 // pred_check_branch
    %134 = sbr.rel (0) target = $region17
  $region16: #{drcn_forward.15} parent=0 // pred_region
    _
  $region17: #{drcn_forward.15} parent=0 // pred_fallthru
    _
  // Predicated region
  $region18: #{drcn_forward.15} parent=0 // pred_check
    _
  $region19: #{drcn_forward.15} parent=0 // pred_check_branch
    %136 = sbr.rel (0) target = $region21
  $region20: #{drcn_forward.15} parent=0 // pred_region
    _
  $region21: #{drcn_forward.15} parent=0 // pred_fallthru
    _

// kernel: drcn_forward.17
$region0: #{drcn_forward.17}
  #allocation0 [shape = 'u32[]', space=smem, size = 0x4, offset = 0x4, fixed_abs, tag = 'smem constant byte address 0x4 - core index']
  #allocation1 [shape = 'u32[144,128]{1,0:T(1,128)}', space=vmem, size = 0x12000, scoped, tag = 'internal scratch']
  %s0 = inlined_call_operand.vmem [shape: f32[2,8,64], index: 0, kind: input, shape index: {}]
  %s1 = inlined_call_operand.vmem [shape: f32[2,8,64], index: 1, kind: input, shape index: {}]
  %s2 = inlined_call_operand.vmem [shape: f32[2,8,64], index: 2, kind: output, shape index: {0}]
  %s3 = inlined_call_operand.vmem [shape: f32[2,8,64], index: 3, kind: output, shape index: {1}]
  %4 = xla_tuple %s2, %s3
  %s5 = sld [smem:[#allocation0]]
  $region26: #{drcn_forward.17} parent=0
    _
  %s7 = ssub.s32 1, %s5
  %s8 = scalar_select 0, %s7, %s5
  // Predicated region
  $region2: #{drcn_forward.17} parent=0 // pred_check
    _
  $region3: #{drcn_forward.17} parent=0 // pred_check_branch
    %10 = sbr.rel (0) target = $region5
  $region4: #{drcn_forward.17} parent=0 // pred_region
    _
  $region5: #{drcn_forward.17} parent=0 // pred_fallthru
    _
  // Predicated region
  $region6: #{drcn_forward.17} parent=0 // pred_check
    _
  $region7: #{drcn_forward.17} parent=0 // pred_check_branch
    %12 = sbr.rel (0) target = $region9
  $region8: #{drcn_forward.17} parent=0 // pred_region
    _
  $region9: #{drcn_forward.17} parent=0 // pred_fallthru
    _
  %v13 = vld [vmem:[%s0] sm:$0xff]
  %v14 = vld [vmem:[%s0 + $0x8] sm:$0xff]
  %v15 = vld [vmem:[%s1] sm:$0xff]
  %v16 = vld [vmem:[%s1 + $0x8] sm:$0xff]
  %v17 = vmul.f32 %v13, %v13
  %v18 = vmul.f32 %v14, %v14
  %vm19 = vcmask 523264
  %v20 = vsel %vm19, %v17, 0.0
  %21 = vadd.xlane.f32.xlu0 %v20
  %v22 = vpop.xlane.xlu0 %21
  %v23 = vsel %vm19, %v18, 0.0
  %24 = vadd.xlane.f32.xlu0 %v23
  %v25 = vpop.xlane.xlu0 %24
  %v26 = vrsqrt.pop %v22
  %v27 = vmul.f32 %v22, %v26
  %vm28 = vcmp.eq.f32.partialorder %v22, inf
  %v29 = vsel %vm28, %v22, %v27
  %vm30 = vcmp.eq.f32.partialorder %v22, 0.0
  %v31 = vand.u32 %v22, 2147483648
  %v32 = vsel %vm30, %v31, %v29
  %v33 = vrsqrt.pop %v25
  %v34 = vmul.f32 %v25, %v33
  %vm35 = vcmp.eq.f32.partialorder %v25, inf
  %v36 = vsel %vm35, %v25, %v34
  %vm37 = vcmp.eq.f32.partialorder %v25, 0.0
  %v38 = vand.u32 %v25, 2147483648
  %v39 = vsel %vm37, %v38, %v36
  %v40 = vmul.f32 %v15, %v15
  %v41 = vmul.f32 %v16, %v16
  %v42 = vsel %vm19, %v40, 0.0
  %43 = vadd.xlane.f32.xlu0 %v42
  %v44 = vpop.xlane.xlu0 %43
  %v45 = vsel %vm19, %v41, 0.0
  %46 = vadd.xlane.f32.xlu0 %v45
  %v47 = vpop.xlane.xlu0 %46
  %v48 = vrsqrt.pop %v44
  %v49 = vmul.f32 %v44, %v48
  %vm50 = vcmp.eq.f32.partialorder %v44, inf
  %v51 = vsel %vm50, %v44, %v49
  %vm52 = vcmp.eq.f32.partialorder %v44, 0.0
  %v53 = vand.u32 %v44, 2147483648
  %v54 = vsel %vm52, %v53, %v51
  %v55 = vrsqrt.pop %v47
  %v56 = vmul.f32 %v47, %v55
  %vm57 = vcmp.eq.f32.partialorder %v47, inf
  %v58 = vsel %vm57, %v47, %v56
  %vm59 = vcmp.eq.f32.partialorder %v47, 0.0
  %v60 = vand.u32 %v47, 2147483648
  %v61 = vsel %vm59, %v60, %v58
  %v63 = vsel %vm19, %v13, 0
  %v66 = vsel %vm19, %v15, 0
  %68 = vmatprep.subr.mxu0 0.0
  %69 = vmatpush1.xpose.msra.mxu0 %v66
  %70 = vmatprep.subr.mxu0 0.0
  %71 = vmatpush1.xpose.msra.mxu0 0.0
  %72 = vmatprep.subr.mxu0 0.0
  %73 = vmatpush1.xpose.msra.mxu0 0.0
  %74 = vmatprep.subr.mxu0 0.0
  %75 = vmatpush1.xpose.msra.mxu0 0.0
  %76 = vmatprep.subr.mxu0 0.0
  %77 = vmatpush1.xpose.msra.mxu0 0.0
  %78 = vmatprep.subr.mxu0 0.0
  %79 = vmatpush1.xpose.msra.mxu0 0.0
  %80 = vmatprep.subr.mxu0 0.0
  %81 = vmatpush1.xpose.msra.mxu0 0.0
  %82 = vmatprep.subr.mxu0 0.0
  %83 = vmatpush1.xpose.msra.mxu0 0.0
  %84 = vmatprep.subr.mxu0 0.0
  %85 = vmatpush1.xpose.msra.mxu0 0.0
  %86 = vmatprep.subr.mxu0 0.0
  %87 = vmatpush1.xpose.msra.mxu0 0.0
  %88 = vmatprep.subr.mxu0 0.0
  %89 = vmatpush1.xpose.msra.mxu0 0.0
  %90 = vmatprep.subr.mxu0 0.0
  %91 = vmatpush1.xpose.msra.mxu0 0.0
  %92 = vmatprep.subr.mxu0 0.0
  %93 = vmatpush1.xpose.msra.mxu0 0.0
  %94 = vmatprep.subr.mxu0 0.0
  %95 = vmatpush1.xpose.msra.mxu0 0.0
  %96 = vmatprep.subr.mxu0 0.0
  %97 = vmatpush1.xpose.msra.mxu0 0.0
  %98 = vmatprep.subr.mxu0 0.0
  %99 = vmatpush1.xpose.msra.mxu0 0.0
  %100 = vmatprep.subr.mxu0 0.0
  %101 = vmatpush1.xpose.msra.mxu0 0.0
  %102 = vmatprep.subr.mxu0 0.0
  %103 = vmatpush1.xpose.msra.mxu0 0.0
  %104 = vmatprep.subr.mxu0 0.0
  %105 = vmatpush1.xpose.msra.mxu0 0.0
  %106 = vmatprep.subr.mxu0 0.0
  %107 = vmatpush1.xpose.msra.mxu0 0.0
  %108 = vmatprep.subr.mxu0 0.0
  %109 = vmatpush1.xpose.msra.mxu0 0.0
  %110 = vmatprep.subr.mxu0 0.0
  %111 = vmatpush1.xpose.msra.mxu0 0.0
  %112 = vmatprep.subr.mxu0 0.0
  %113 = vmatpush1.xpose.msra.mxu0 0.0
  %114 = vmatprep.subr.mxu0 0.0
  %115 = vmatpush1.xpose.msra.mxu0 0.0
  %116 = vmatprep.subr.mxu0 0.0
  %117 = vmatpush1.xpose.msra.mxu0 0.0
  %118 = vmatprep.subr.mxu0 0.0
  %119 = vmatpush1.xpose.msra.mxu0 0.0
  %120 = vmatprep.subr.mxu0 0.0
  %121 = vmatpush1.xpose.msra.mxu0 0.0
  %122 = vmatprep.subr.mxu0 0.0
  %123 = vmatpush1.xpose.msra.mxu0 0.0
  %124 = vmatprep.subr.mxu0 0.0
  %125 = vmatpush1.xpose.msra.mxu0 0.0
  %126 = vmatprep.subr.mxu0 0.0
  %127 = vmatpush1.xpose.msra.mxu0 0.0
  %128 = vmatprep.subr.mxu0 0.0
  %129 = vmatpush1.xpose.msra.mxu0 0.0
  %130 = vmatprep.subr.mxu0 0.0
  %131 = vmatpush1.xpose.msra.mxu0 0.0
  %132 = vmatprep.mubr.f32.mxu0 0.0
  %133 = vmatmul.mubr.f32.gmra.mrb[0].mxu0 %v63
  %v134 = vpop.f32.mrb[0].mxu0
  %v135 = vadd.f32 0.0, %v134
  %v136 = vpop.f32.mrb[0].mxu0
  %137 = vdwg.mxu0
  %v139 = vsel %vm19, %v14, 0
  %v142 = vsel %vm19, %v16, 0
  %144 = vmatprep.subr.mxu0 0.0
  %145 = vmatpush1.xpose.msra.mxu0 %v142
  %146 = vmatprep.subr.mxu0 0.0
  %147 = vmatpush1.xpose.msra.mxu0 0.0
  %148 = vmatprep.subr.mxu0 0.0
  %149 = vmatpush1.xpose.msra.mxu0 0.0
  %150 = vmatprep.subr.mxu0 0.0
  %151 = vmatpush1.xpose.msra.mxu0 0.0
  %152 = vmatprep.subr.mxu0 0.0
  %153 = vmatpush1.xpose.msra.mxu0 0.0
  %154 = vmatprep.subr.mxu0 0.0
  %155 = vmatpush1.xpose.msra.mxu0 0.0
  %156 = vmatprep.subr.mxu0 0.0
  %157 = vmatpush1.xpose.msra.mxu0 0.0
  %158 = vmatprep.subr.mxu0 0.0
  %159 = vmatpush1.xpose.msra.mxu0 0.0
  %160 = vmatprep.subr.mxu0 0.0
  %161 = vmatpush1.xpose.msra.mxu0 0.0
  %162 = vmatprep.subr.mxu0 0.0
  %163 = vmatpush1.xpose.msra.mxu0 0.0
  %164 = vmatprep.subr.mxu0 0.0
  %165 = vmatpush1.xpose.msra.mxu0 0.0
  %166 = vmatprep.subr.mxu0 0.0
  %167 = vmatpush1.xpose.msra.mxu0 0.0
  %168 = vmatprep.subr.mxu0 0.0
  %169 = vmatpush1.xpose.msra.mxu0 0.0
  %170 = vmatprep.subr.mxu0 0.0
  %171 = vmatpush1.xpose.msra.mxu0 0.0
  %172 = vmatprep.subr.mxu0 0.0
  %173 = vmatpush1.xpose.msra.mxu0 0.0
  %174 = vmatprep.subr.mxu0 0.0
  %175 = vmatpush1.xpose.msra.mxu0 0.0
  %176 = vmatprep.subr.mxu0 0.0
  %177 = vmatpush1.xpose.msra.mxu0 0.0
  %178 = vmatprep.subr.mxu0 0.0
  %179 = vmatpush1.xpose.msra.mxu0 0.0
  %180 = vmatprep.subr.mxu0 0.0
  %181 = vmatpush1.xpose.msra.mxu0 0.0
  %182 = vmatprep.subr.mxu0 0.0
  %183 = vmatpush1.xpose.msra.mxu0 0.0
  %184 = vmatprep.subr.mxu0 0.0
  %185 = vmatpush1.xpose.msra.mxu0 0.0
  %186 = vmatprep.subr.mxu0 0.0
  %187 = vmatpush1.xpose.msra.mxu0 0.0
  %188 = vmatprep.subr.mxu0 0.0
  %189 = vmatpush1.xpose.msra.mxu0 0.0
  %190 = vmatprep.subr.mxu0 0.0
  %191 = vmatpush1.xpose.msra.mxu0 0.0
  %192 = vmatprep.subr.mxu0 0.0
  %193 = vmatpush1.xpose.msra.mxu0 0.0
  %194 = vmatprep.subr.mxu0 0.0
  %195 = vmatpush1.xpose.msra.mxu0 0.0
  %196 = vmatprep.subr.mxu0 0.0
  %197 = vmatpush1.xpose.msra.mxu0 0.0
  %198 = vmatprep.subr.mxu0 0.0
  %199 = vmatpush1.xpose.msra.mxu0 0.0
  %200 = vmatprep.subr.mxu0 0.0
  %201 = vmatpush1.xpose.msra.mxu0 0.0
  %202 = vmatprep.subr.mxu0 0.0
  %203 = vmatpush1.xpose.msra.mxu0 0.0
  %204 = vmatprep.subr.mxu0 0.0
  %205 = vmatpush1.xpose.msra.mxu0 0.0
  %206 = vmatprep.subr.mxu0 0.0
  %207 = vmatpush1.xpose.msra.mxu0 0.0
  %208 = vmatprep.mubr.f32.mxu0 0.0
  %209 = vmatmul.mubr.f32.gmra.mrb[0].mxu0 %v139
  %v210 = vpop.f32.mrb[0].mxu0
  %v211 = vadd.f32 0.0, %v210
  %v212 = vpop.f32.mrb[0].mxu0
  %213 = vdwg.mxu0
  %214 = vmatprep.subr.mxu0 0.0
  %215 = vmatpush1.xpose.msra.mxu0 %v63
  %216 = vmatprep.subr.mxu0 0.0
  %217 = vmatpush1.xpose.msra.mxu0 0.0
  %218 = vmatprep.subr.mxu0 0.0
  %219 = vmatpush1.xpose.msra.mxu0 0.0
  %220 = vmatprep.subr.mxu0 0.0
  %221 = vmatpush1.xpose.msra.mxu0 0.0
  %222 = vmatprep.subr.mxu0 0.0
  %223 = vmatpush1.xpose.msra.mxu0 0.0
  %224 = vmatprep.subr.mxu0 0.0
  %225 = vmatpush1.xpose.msra.mxu0 0.0
  %226 = vmatprep.subr.mxu0 0.0
  %227 = vmatpush1.xpose.msra.mxu0 0.0
  %228 = vmatprep.subr.mxu0 0.0
  %229 = vmatpush1.xpose.msra.mxu0 0.0
  %230 = vmatprep.subr.mxu0 0.0
  %231 = vmatpush1.xpose.msra.mxu0 0.0
  %232 = vmatprep.subr.mxu0 0.0
  %233 = vmatpush1.xpose.msra.mxu0 0.0
  %234 = vmatprep.subr.mxu0 0.0
  %235 = vmatpush1.xpose.msra.mxu0 0.0
  %236 = vmatprep.subr.mxu0 0.0
  %237 = vmatpush1.xpose.msra.mxu0 0.0
  %238 = vmatprep.subr.mxu0 0.0
  %239 = vmatpush1.xpose.msra.mxu0 0.0
  %240 = vmatprep.subr.mxu0 0.0
  %241 = vmatpush1.xpose.msra.mxu0 0.0
  %242 = vmatprep.subr.mxu0 0.0
  %243 = vmatpush1.xpose.msra.mxu0 0.0
  %244 = vmatprep.subr.mxu0 0.0
  %245 = vmatpush1.xpose.msra.mxu0 0.0
  %246 = vmatprep.subr.mxu0 0.0
  %247 = vmatpush1.xpose.msra.mxu0 0.0
  %248 = vmatprep.subr.mxu0 0.0
  %249 = vmatpush1.xpose.msra.mxu0 0.0
  %250 = vmatprep.subr.mxu0 0.0
  %251 = vmatpush1.xpose.msra.mxu0 0.0
  %252 = vmatprep.subr.mxu0 0.0
  %253 = vmatpush1.xpose.msra.mxu0 0.0
  %254 = vmatprep.subr.mxu0 0.0
  %255 = vmatpush1.xpose.msra.mxu0 0.0
  %256 = vmatprep.subr.mxu0 0.0
  %257 = vmatpush1.xpose.msra.mxu0 0.0
  %258 = vmatprep.subr.mxu0 0.0
  %259 = vmatpush1.xpose.msra.mxu0 0.0
  %260 = vmatprep.subr.mxu0 0.0
  %261 = vmatpush1.xpose.msra.mxu0 0.0
  %262 = vmatprep.subr.mxu0 0.0
  %263 = vmatpush1.xpose.msra.mxu0 0.0
  %264 = vmatprep.subr.mxu0 0.0
  %265 = vmatpush1.xpose.msra.mxu0 0.0
  %266 = vmatprep.subr.mxu0 0.0
  %267 = vmatpush1.xpose.msra.mxu0 0.0
  %268 = vmatprep.subr.mxu0 0.0
  %269 = vmatpush1.xpose.msra.mxu0 0.0
  %270 = vmatprep.subr.mxu0 0.0
  %271 = vmatpush1.xpose.msra.mxu0 0.0
  %272 = vmatprep.subr.mxu0 0.0
  %273 = vmatpush1.xpose.msra.mxu0 0.0
  %274 = vmatprep.subr.mxu0 0.0
  %275 = vmatpush1.xpose.msra.mxu0 0.0
  %276 = vmatprep.subr.mxu0 0.0
  %277 = vmatpush1.xpose.msra.mxu0 0.0
  %278 = vmatprep.mubr.f32.mxu0 0.0
  %279 = vmatmul.mubr.f32.gmra.mrb[0].mxu0 %v66
  %v280 = vpop.f32.mrb[0].mxu0
  %v281 = vadd.f32 0.0, %v280
  %v282 = vpop.f32.mrb[0].mxu0
  %283 = vdwg.mxu0
  %284 = vmatprep.subr.mxu0 0.0
  %285 = vmatpush1.xpose.msra.mxu0 %v139
  %286 = vmatprep.subr.mxu0 0.0
  %287 = vmatpush1.xpose.msra.mxu0 0.0
  %288 = vmatprep.subr.mxu0 0.0
  %289 = vmatpush1.xpose.msra.mxu0 0.0
  %290 = vmatprep.subr.mxu0 0.0
  %291 = vmatpush1.xpose.msra.mxu0 0.0
  %292 = vmatprep.subr.mxu0 0.0
  %293 = vmatpush1.xpose.msra.mxu0 0.0
  %294 = vmatprep.subr.mxu0 0.0
  %295 = vmatpush1.xpose.msra.mxu0 0.0
  %296 = vmatprep.subr.mxu0 0.0
  %297 = vmatpush1.xpose.msra.mxu0 0.0
  %298 = vmatprep.subr.mxu0 0.0
  %299 = vmatpush1.xpose.msra.mxu0 0.0
  %300 = vmatprep.subr.mxu0 0.0
  %301 = vmatpush1.xpose.msra.mxu0 0.0
  %302 = vmatprep.subr.mxu0 0.0
  %303 = vmatpush1.xpose.msra.mxu0 0.0
  %304 = vmatprep.subr.mxu0 0.0
  %305 = vmatpush1.xpose.msra.mxu0 0.0
  %306 = vmatprep.subr.mxu0 0.0
  %307 = vmatpush1.xpose.msra.mxu0 0.0
  %308 = vmatprep.subr.mxu0 0.0
  %309 = vmatpush1.xpose.msra.mxu0 0.0
  %310 = vmatprep.subr.mxu0 0.0
  %311 = vmatpush1.xpose.msra.mxu0 0.0
  %312 = vmatprep.subr.mxu0 0.0
  %313 = vmatpush1.xpose.msra.mxu0 0.0
  %314 = vmatprep.subr.mxu0 0.0
  %315 = vmatpush1.xpose.msra.mxu0 0.0
  %316 = vmatprep.subr.mxu0 0.0
  %317 = vmatpush1.xpose.msra.mxu0 0.0
  %318 = vmatprep.subr.mxu0 0.0
  %319 = vmatpush1.xpose.msra.mxu0 0.0
  %320 = vmatprep.subr.mxu0 0.0
  %321 = vmatpush1.xpose.msra.mxu0 0.0
  %322 = vmatprep.subr.mxu0 0.0
  %323 = vmatpush1.xpose.msra.mxu0 0.0
  %324 = vmatprep.subr.mxu0 0.0
  %325 = vmatpush1.xpose.msra.mxu0 0.0
  %326 = vmatprep.subr.mxu0 0.0
  %327 = vmatpush1.xpose.msra.mxu0 0.0
  %328 = vmatprep.subr.mxu0 0.0
  %329 = vmatpush1.xpose.msra.mxu0 0.0
  %330 = vmatprep.subr.mxu0 0.0
  %331 = vmatpush1.xpose.msra.mxu0 0.0
  %332 = vmatprep.subr.mxu0 0.0
  %333 = vmatpush1.xpose.msra.mxu0 0.0
  %334 = vmatprep.subr.mxu0 0.0
  %335 = vmatpush1.xpose.msra.mxu0 0.0
  %336 = vmatprep.subr.mxu0 0.0
  %337 = vmatpush1.xpose.msra.mxu0 0.0
  %338 = vmatprep.subr.mxu0 0.0
  %339 = vmatpush1.xpose.msra.mxu0 0.0
  %340 = vmatprep.subr.mxu0 0.0
  %341 = vmatpush1.xpose.msra.mxu0 0.0
  %342 = vmatprep.subr.mxu0 0.0
  %343 = vmatpush1.xpose.msra.mxu0 0.0
  %344 = vmatprep.subr.mxu0 0.0
  %345 = vmatpush1.xpose.msra.mxu0 0.0
  %346 = vmatprep.subr.mxu0 0.0
  %347 = vmatpush1.xpose.msra.mxu0 0.0
  %348 = vmatprep.mubr.f32.mxu0 0.0
  %349 = vmatmul.mubr.f32.gmra.mrb[0].mxu0 %v142
  %v350 = vpop.f32.mrb[0].mxu0
  %v351 = vadd.f32 0.0, %v350
  %v352 = vpop.f32.mrb[0].mxu0
  %353 = vdwg.mxu0
  %v356 = vlaneseq
  %v357 = vand.u32 %v356, 127
  %v358 = vlaneseq
  %v359 = vshrl.u32 %v358, 7
  %v360 = vsub.s32 %v357, %v359
  %v361 = vrot.slane %v54, %v360
  %v362 = vlaneseq
  %v363 = vshrl.u32 %v362, 7
  %v364 = vsub.s32 %v357, %v363
  %v365 = vrot.slane %v61, %v364
  %vm366 = vcmask 1042434
  %v367 = vsel %vm366, %v361, %v361
  %vm368 = vcmask 1043459
  %v369 = vsel %vm368, %v361, %v367
  %vm370 = vcmask 1044484
  %v371 = vsel %vm370, %v361, %v369
  %vm372 = vcmask 1045509
  %v373 = vsel %vm372, %v361, %v371
  %vm374 = vcmask 1046534
  %v375 = vsel %vm374, %v361, %v373
  %vm376 = vcmask 1047559
  %v377 = vsel %vm376, %v361, %v375
  %v378 = vsel %vm366, %v365, %v365
  %v379 = vsel %vm368, %v365, %v378
  %v380 = vsel %vm370, %v365, %v379
  %v381 = vsel %vm372, %v365, %v380
  %v382 = vsel %vm374, %v365, %v381
  %v383 = vsel %vm376, %v365, %v382
  %v386 = vmul.f32 %v32, %v377
  %v387 = vmul.f32 %v39, %v383
  %v388 = vmax.f32 %v386, 1e-08
  %v389 = vmax.f32 %v387, 1e-08
  %v390 = vrcp.pop %v388
  %v391 = vmul.f32 %v135, %v390
  %v392 = vrcp.pop %v389
  %v393 = vmul.f32 %v211, %v392
  %v396 = vlaneseq
  %v397 = vshrl.u32 %v396, 7
  %v398 = vsub.s32 %v357, %v397
  %v399 = vrot.slane %v32, %v398
  %v400 = vlaneseq
  %v401 = vshrl.u32 %v400, 7
  %v402 = vsub.s32 %v357, %v401
  %v403 = vrot.slane %v39, %v402
  %v404 = vsel %vm366, %v399, %v399
  %v405 = vsel %vm368, %v399, %v404
  %v406 = vsel %vm370, %v399, %v405
  %v407 = vsel %vm372, %v399, %v406
  %v408 = vsel %vm374, %v399, %v407
  %v409 = vsel %vm376, %v399, %v408
  %v410 = vsel %vm366, %v403, %v403
  %v411 = vsel %vm368, %v403, %v410
  %v412 = vsel %vm370, %v403, %v411
  %v413 = vsel %vm372, %v403, %v412
  %v414 = vsel %vm374, %v403, %v413
  %v415 = vsel %vm376, %v403, %v414
  %v418 = vmul.f32 %v54, %v409
  %v419 = vmul.f32 %v61, %v415
  %v420 = vmax.f32 %v418, 1e-08
  %v421 = vmax.f32 %v419, 1e-08
  %v422 = vrcp.pop %v420
  %v423 = vmul.f32 %v281, %v422
  %v424 = vrcp.pop %v421
  %v425 = vmul.f32 %v351, %v424
  %vm426 = vcmask 64512
  %v427 = vsel %vm426, %v391, -inf
  %428 = vmax.xlane.f32.xlu0 %v427
  %v429 = vpop.xlane.xlu0 %428
  %v430 = vsel %vm426, %v393, -inf
  %431 = vmax.xlane.f32.xlu0 %v430
  %v432 = vpop.xlane.xlu0 %431
  %v433 = vsub.f32 %v391, %v429
  %v434 = vsub.f32 %v393, %v432
  %v435 = vmul.f32 %v433, 1.442695
  %v436 = vpow.pop %v435
  %v437 = vmul.f32 %v434, 1.442695
  %v438 = vpow.pop %v437
  %v439 = vsel %vm426, %v436, 0.0
  %440 = vadd.xlane.f32.xlu0 %v439
  %v441 = vpop.xlane.xlu0 %440
  %v442 = vsel %vm426, %v438, 0.0
  %443 = vadd.xlane.f32.xlu0 %v442
  %v444 = vpop.xlane.xlu0 %443
  %v445 = vrcp.pop %v441
  %v446 = vmul.f32 %v436, %v445
  %v447 = vrcp.pop %v444
  %v448 = vmul.f32 %v438, %v447
  %v449 = vsel %vm426, %v423, -inf
  %450 = vmax.xlane.f32.xlu0 %v449
  %v451 = vpop.xlane.xlu0 %450
  %v452 = vsel %vm426, %v425, -inf
  %453 = vmax.xlane.f32.xlu0 %v452
  %v454 = vpop.xlane.xlu0 %453
  %v455 = vsub.f32 %v423, %v451
  %v456 = vsub.f32 %v425, %v454
  %v457 = vmul.f32 %v455, 1.442695
  %v458 = vpow.pop %v457
  %v459 = vmul.f32 %v456, 1.442695
  %v460 = vpow.pop %v459
  %v461 = vsel %vm426, %v458, 0.0
  %462 = vadd.xlane.f32.xlu0 %v461
  %v463 = vpop.xlane.xlu0 %462
  %v464 = vsel %vm426, %v460, 0.0
  %465 = vadd.xlane.f32.xlu0 %v464
  %v466 = vpop.xlane.xlu0 %465
  %v467 = vrcp.pop %v463
  %v468 = vmul.f32 %v458, %v467
  %v469 = vrcp.pop %v466
  %v470 = vmul.f32 %v460, %v469
  %v472 = vsel %vm426, %v446, 0
  %474 = vmatprep.subr.mxu0 0.0
  %475 = vmatpush1.msra.mxu0 %v15
  %476 = vmatprep.subr.mxu0 0.0
  %477 = vmatpush1.msra.mxu0 0.0
  %478 = vmatprep.subr.mxu0 0.0
  %479 = vmatpush1.msra.mxu0 0.0
  %480 = vmatprep.subr.mxu0 0.0
  %481 = vmatpush1.msra.mxu0 0.0
  %482 = vmatprep.subr.mxu0 0.0
  %483 = vmatpush1.msra.mxu0 0.0
  %484 = vmatprep.subr.mxu0 0.0
  %485 = vmatpush1.msra.mxu0 0.0
  %486 = vmatprep.subr.mxu0 0.0
  %487 = vmatpush1.msra.mxu0 0.0
  %488 = vmatprep.subr.mxu0 0.0
  %489 = vmatpush1.msra.mxu0 0.0
  %490 = vmatprep.subr.mxu0 0.0
  %491 = vmatpush1.msra.mxu0 0.0
  %492 = vmatprep.subr.mxu0 0.0
  %493 = vmatpush1.msra.mxu0 0.0
  %494 = vmatprep.subr.mxu0 0.0
  %495 = vmatpush1.msra.mxu0 0.0
  %496 = vmatprep.subr.mxu0 0.0
  %497 = vmatpush1.msra.mxu0 0.0
  %498 = vmatprep.subr.mxu0 0.0
  %499 = vmatpush1.msra.mxu0 0.0
  %500 = vmatprep.subr.mxu0 0.0
  %501 = vmatpush1.msra.mxu0 0.0
  %502 = vmatprep.subr.mxu0 0.0
  %503 = vmatpush1.msra.mxu0 0.0
  %504 = vmatprep.subr.mxu0 0.0
  %505 = vmatpush1.msra.mxu0 0.0
  %506 = vmatprep.subr.mxu0 0.0
  %507 = vmatpush1.msra.mxu0 0.0
  %508 = vmatprep.subr.mxu0 0.0
  %509 = vmatpush1.msra.mxu0 0.0
  %510 = vmatprep.subr.mxu0 0.0
  %511 = vmatpush1.msra.mxu0 0.0
  %512 = vmatprep.subr.mxu0 0.0
  %513 = vmatpush1.msra.mxu0 0.0
  %514 = vmatprep.subr.mxu0 0.0
  %515 = vmatpush1.msra.mxu0 0.0
  %516 = vmatprep.subr.mxu0 0.0
  %517 = vmatpush1.msra.mxu0 0.0
  %518 = vmatprep.subr.mxu0 0.0
  %519 = vmatpush1.msra.mxu0 0.0
  %520 = vmatprep.subr.mxu0 0.0
  %521 = vmatpush1.msra.mxu0 0.0
  %522 = vmatprep.subr.mxu0 0.0
  %523 = vmatpush1.msra.mxu0 0.0
  %524 = vmatprep.subr.mxu0 0.0
  %525 = vmatpush1.msra.mxu0 0.0
  %526 = vmatprep.subr.mxu0 0.0
  %527 = vmatpush1.msra.mxu0 0.0
  %528 = vmatprep.subr.mxu0 0.0
  %529 = vmatpush1.msra.mxu0 0.0
  %530 = vmatprep.subr.mxu0 0.0
  %531 = vmatpush1.msra.mxu0 0.0
  %532 = vmatprep.subr.mxu0 0.0
  %533 = vmatpush1.msra.mxu0 0.0
  %534 = vmatprep.subr.mxu0 0.0
  %535 = vmatpush1.msra.mxu0 0.0
  %536 = vmatprep.subr.mxu0 0.0
  %537 = vmatpush1.msra.mxu0 0.0
  %538 = vmatprep.mubr.f32.mxu0 0.0
  %539 = vmatmul.mubr.f32.gmra.mrb[0].mxu0 %v472
  %v540 = vpop.f32.mrb[0].mxu0
  %v541 = vadd.f32 0.0, %v540
  %v542 = vpop.f32.mrb[0].mxu0
  %543 = vdwg.mxu0
  %v545 = vsel %vm426, %v448, 0
  %547 = vmatprep.subr.mxu0 0.0
  %548 = vmatpush1.msra.mxu0 %v16
  %549 = vmatprep.subr.mxu0 0.0
  %550 = vmatpush1.msra.mxu0 0.0
  %551 = vmatprep.subr.mxu0 0.0
  %552 = vmatpush1.msra.mxu0 0.0
  %553 = vmatprep.subr.mxu0 0.0
  %554 = vmatpush1.msra.mxu0 0.0
  %555 = vmatprep.subr.mxu0 0.0
  %556 = vmatpush1.msra.mxu0 0.0
  %557 = vmatprep.subr.mxu0 0.0
  %558 = vmatpush1.msra.mxu0 0.0
  %559 = vmatprep.subr.mxu0 0.0
  %560 = vmatpush1.msra.mxu0 0.0
  %561 = vmatprep.subr.mxu0 0.0
  %562 = vmatpush1.msra.mxu0 0.0
  %563 = vmatprep.subr.mxu0 0.0
  %564 = vmatpush1.msra.mxu0 0.0
  %565 = vmatprep.subr.mxu0 0.0
  %566 = vmatpush1.msra.mxu0 0.0
  %567 = vmatprep.subr.mxu0 0.0
  %568 = vmatpush1.msra.mxu0 0.0
  %569 = vmatprep.subr.mxu0 0.0
  %570 = vmatpush1.msra.mxu0 0.0
  %571 = vmatprep.subr.mxu0 0.0
  %572 = vmatpush1.msra.mxu0 0.0
  %573 = vmatprep.subr.mxu0 0.0
  %574 = vmatpush1.msra.mxu0 0.0
  %575 = vmatprep.subr.mxu0 0.0
  %576 = vmatpush1.msra.mxu0 0.0
  %577 = vmatprep.subr.mxu0 0.0
  %578 = vmatpush1.msra.mxu0 0.0
  %579 = vmatprep.subr.mxu0 0.0
  %580 = vmatpush1.msra.mxu0 0.0
  %581 = vmatprep.subr.mxu0 0.0
  %582 = vmatpush1.msra.mxu0 0.0
  %583 = vmatprep.subr.mxu0 0.0
  %584 = vmatpush1.msra.mxu0 0.0
  %585 = vmatprep.subr.mxu0 0.0
  %586 = vmatpush1.msra.mxu0 0.0
  %587 = vmatprep.subr.mxu0 0.0
  %588 = vmatpush1.msra.mxu0 0.0
  %589 = vmatprep.subr.mxu0 0.0
  %590 = vmatpush1.msra.mxu0 0.0
  %591 = vmatprep.subr.mxu0 0.0
  %592 = vmatpush1.msra.mxu0 0.0
  %593 = vmatprep.subr.mxu0 0.0
  %594 = vmatpush1.msra.mxu0 0.0
  %595 = vmatprep.subr.mxu0 0.0
  %596 = vmatpush1.msra.mxu0 0.0
  %597 = vmatprep.subr.mxu0 0.0
  %598 = vmatpush1.msra.mxu0 0.0
  %599 = vmatprep.subr.mxu0 0.0
  %600 = vmatpush1.msra.mxu0 0.0
  %601 = vmatprep.subr.mxu0 0.0
  %602 = vmatpush1.msra.mxu0 0.0
  %603 = vmatprep.subr.mxu0 0.0
  %604 = vmatpush1.msra.mxu0 0.0
  %605 = vmatprep.subr.mxu0 0.0
  %606 = vmatpush1.msra.mxu0 0.0
  %607 = vmatprep.subr.mxu0 0.0
  %608 = vmatpush1.msra.mxu0 0.0
  %609 = vmatprep.subr.mxu0 0.0
  %610 = vmatpush1.msra.mxu0 0.0
  %611 = vmatprep.mubr.f32.mxu0 0.0
  %612 = vmatmul.mubr.f32.gmra.mrb[0].mxu0 %v545
  %v613 = vpop.f32.mrb[0].mxu0
  %v614 = vadd.f32 0.0, %v613
  %v615 = vpop.f32.mrb[0].mxu0
  %616 = vdwg.mxu0
  %617 = vst.msk [vmem:[%s2] sm:$0xff] %vm19, %v541
  %618 = vst.msk [vmem:[%s2 + $0x8] sm:$0xff] %vm19, %v614
  %v620 = vsel %vm426, %v468, 0
  %622 = vmatprep.subr.mxu0 0.0
  %623 = vmatpush1.msra.mxu0 %v13
  %624 = vmatprep.subr.mxu0 0.0
  %625 = vmatpush1.msra.mxu0 0.0
  %626 = vmatprep.subr.mxu0 0.0
  %627 = vmatpush1.msra.mxu0 0.0
  %628 = vmatprep.subr.mxu0 0.0
  %629 = vmatpush1.msra.mxu0 0.0
  %630 = vmatprep.subr.mxu0 0.0
  %631 = vmatpush1.msra.mxu0 0.0
  %632 = vmatprep.subr.mxu0 0.0
  %633 = vmatpush1.msra.mxu0 0.0
  %634 = vmatprep.subr.mxu0 0.0
  %635 = vmatpush1.msra.mxu0 0.0
  %636 = vmatprep.subr.mxu0 0.0
  %637 = vmatpush1.msra.mxu0 0.0
  %638 = vmatprep.subr.mxu0 0.0
  %639 = vmatpush1.msra.mxu0 0.0
  %640 = vmatprep.subr.mxu0 0.0
  %641 = vmatpush1.msra.mxu0 0.0
  %642 = vmatprep.subr.mxu0 0.0
  %643 = vmatpush1.msra.mxu0 0.0
  %644 = vmatprep.subr.mxu0 0.0
  %645 = vmatpush1.msra.mxu0 0.0
  %646 = vmatprep.subr.mxu0 0.0
  %647 = vmatpush1.msra.mxu0 0.0
  %648 = vmatprep.subr.mxu0 0.0
  %649 = vmatpush1.msra.mxu0 0.0
  %650 = vmatprep.subr.mxu0 0.0
  %651 = vmatpush1.msra.mxu0 0.0
  %652 = vmatprep.subr.mxu0 0.0
  %653 = vmatpush1.msra.mxu0 0.0
  %654 = vmatprep.subr.mxu0 0.0
  %655 = vmatpush1.msra.mxu0 0.0
  %656 = vmatprep.subr.mxu0 0.0
  %657 = vmatpush1.msra.mxu0 0.0
  %658 = vmatprep.subr.mxu0 0.0
  %659 = vmatpush1.msra.mxu0 0.0
  %660 = vmatprep.subr.mxu0 0.0
  %661 = vmatpush1.msra.mxu0 0.0
  %662 = vmatprep.subr.mxu0 0.0
  %663 = vmatpush1.msra.mxu0 0.0
  %664 = vmatprep.subr.mxu0 0.0
  %665 = vmatpush1.msra.mxu0 0.0
  %666 = vmatprep.subr.mxu0 0.0
  %667 = vmatpush1.msra.mxu0 0.0
  %668 = vmatprep.subr.mxu0 0.0
  %669 = vmatpush1.msra.mxu0 0.0
  %670 = vmatprep.subr.mxu0 0.0
  %671 = vmatpush1.msra.mxu0 0.0
  %672 = vmatprep.subr.mxu0 0.0
  %673 = vmatpush1.msra.mxu0 0.0
  %674 = vmatprep.subr.mxu0 0.0
  %675 = vmatpush1.msra.mxu0 0.0
  %676 = vmatprep.subr.mxu0 0.0
  %677 = vmatpush1.msra.mxu0 0.0
  %678 = vmatprep.subr.mxu0 0.0
  %679 = vmatpush1.msra.mxu0 0.0
  %680 = vmatprep.subr.mxu0 0.0
  %681 = vmatpush1.msra.mxu0 0.0
  %682 = vmatprep.subr.mxu0 0.0
  %683 = vmatpush1.msra.mxu0 0.0
  %684 = vmatprep.subr.mxu0 0.0
  %685 = vmatpush1.msra.mxu0 0.0
  %686 = vmatprep.mubr.f32.mxu0 0.0
  %687 = vmatmul.mubr.f32.gmra.mrb[0].mxu0 %v620
  %v688 = vpop.f32.mrb[0].mxu0
  %v689 = vadd.f32 0.0, %v688
  %v690 = vpop.f32.mrb[0].mxu0
  %691 = vdwg.mxu0
  %v693 = vsel %vm426, %v470, 0
  %695 = vmatprep.subr.mxu0 0.0
  %696 = vmatpush1.msra.mxu0 %v14
  %697 = vmatprep.subr.mxu0 0.0
  %698 = vmatpush1.msra.mxu0 0.0
  %699 = vmatprep.subr.mxu0 0.0
  %700 = vmatpush1.msra.mxu0 0.0
  %701 = vmatprep.subr.mxu0 0.0
  %702 = vmatpush1.msra.mxu0 0.0
  %703 = vmatprep.subr.mxu0 0.0
  %704 = vmatpush1.msra.mxu0 0.0
  %705 = vmatprep.subr.mxu0 0.0
  %706 = vmatpush1.msra.mxu0 0.0
  %707 = vmatprep.subr.mxu0 0.0
  %708 = vmatpush1.msra.mxu0 0.0
  %709 = vmatprep.subr.mxu0 0.0
  %710 = vmatpush1.msra.mxu0 0.0
  %711 = vmatprep.subr.mxu0 0.0
  %712 = vmatpush1.msra.mxu0 0.0
  %713 = vmatprep.subr.mxu0 0.0
  %714 = vmatpush1.msra.mxu0 0.0
  %715 = vmatprep.subr.mxu0 0.0
  %716 = vmatpush1.msra.mxu0 0.0
  %717 = vmatprep.subr.mxu0 0.0
  %718 = vmatpush1.msra.mxu0 0.0
  %719 = vmatprep.subr.mxu0 0.0
  %720 = vmatpush1.msra.mxu0 0.0
  %721 = vmatprep.subr.mxu0 0.0
  %722 = vmatpush1.msra.mxu0 0.0
  %723 = vmatprep.subr.mxu0 0.0
  %724 = vmatpush1.msra.mxu0 0.0
  %725 = vmatprep.subr.mxu0 0.0
  %726 = vmatpush1.msra.mxu0 0.0
  %727 = vmatprep.subr.mxu0 0.0
  %728 = vmatpush1.msra.mxu0 0.0
  %729 = vmatprep.subr.mxu0 0.0
  %730 = vmatpush1.msra.mxu0 0.0
  %731 = vmatprep.subr.mxu0 0.0
  %732 = vmatpush1.msra.mxu0 0.0
  %733 = vmatprep.subr.mxu0 0.0
  %734 = vmatpush1.msra.mxu0 0.0
  %735 = vmatprep.subr.mxu0 0.0
  %736 = vmatpush1.msra.mxu0 0.0
  %737 = vmatprep.subr.mxu0 0.0
  %738 = vmatpush1.msra.mxu0 0.0
  %739 = vmatprep.subr.mxu0 0.0
  %740 = vmatpush1.msra.mxu0 0.0
  %741 = vmatprep.subr.mxu0 0.0
  %742 = vmatpush1.msra.mxu0 0.0
  %743 = vmatprep.subr.mxu0 0.0
  %744 = vmatpush1.msra.mxu0 0.0
  %745 = vmatprep.subr.mxu0 0.0
  %746 = vmatpush1.msra.mxu0 0.0
  %747 = vmatprep.subr.mxu0 0.0
  %748 = vmatpush1.msra.mxu0 0.0
  %749 = vmatprep.subr.mxu0 0.0
  %750 = vmatpush1.msra.mxu0 0.0
  %751 = vmatprep.subr.mxu0 0.0
  %752 = vmatpush1.msra.mxu0 0.0
  %753 = vmatprep.subr.mxu0 0.0
  %754 = vmatpush1.msra.mxu0 0.0
  %755 = vmatprep.subr.mxu0 0.0
  %756 = vmatpush1.msra.mxu0 0.0
  %757 = vmatprep.subr.mxu0 0.0
  %758 = vmatpush1.msra.mxu0 0.0
  %759 = vmatprep.mubr.f32.mxu0 0.0
  %760 = vmatmul.mubr.f32.gmra.mrb[0].mxu0 %v693
  %v761 = vpop.f32.mrb[0].mxu0
  %v762 = vadd.f32 0.0, %v761
  %v763 = vpop.f32.mrb[0].mxu0
  %764 = vdwg.mxu0
  %765 = vst.msk [vmem:[%s3] sm:$0xff] %vm19, %v689
  %766 = vst.msk [vmem:[%s3 + $0x8] sm:$0xff] %vm19, %v762
  // Predicated region
  $region10: #{drcn_forward.17} parent=0 // pred_check
    _
  $region11: #{drcn_forward.17} parent=0 // pred_check_branch
    %768 = sbr.rel (0) target = $region13
  $region12: #{drcn_forward.17} parent=0 // pred_region
    _
  $region13: #{drcn_forward.17} parent=0 // pred_fallthru
    _
  // Predicated region
  $region14: #{drcn_forward.17} parent=0 // pred_check
    _
  $region15: #{drcn_forward.17} parent=0 // pred_check_branch
    %770 = sbr.rel (0) target = $region17
  $region16: #{drcn_forward.17} parent=0 // pred_region
    _
  $region17: #{drcn_forward.17} parent=0 // pred_fallthru
    _
  // Predicated region
  $region18: #{drcn_forward.17} parent=0 // pred_check
    _
  $region19: #{drcn_forward.17} parent=0 // pred_check_branch
    %772 = sbr.rel (0) target = $region21
  $region20: #{drcn_forward.17} parent=0 // pred_region
    _
  $region21: #{drcn_forward.17} parent=0 // pred_fallthru
    _
  // Predicated region
  $region22: #{drcn_forward.17} parent=0 // pred_check
    _
  $region23: #{drcn_forward.17} parent=0 // pred_check_branch
    %774 = sbr.rel (0) target = $region25
  $region24: #{drcn_forward.17} parent=0 // pred_region
    _
  $region25: #{drcn_forward.17} parent=0 // pred_fallthru
    _

// kernel: drcn_forward.18
$region0: #{drcn_forward.18}
  #allocation0 [shape = 'u32[]', space=smem, size = 0x4, offset = 0x4, fixed_abs, tag = 'smem constant byte address 0x4 - core index']
  #allocation1 [shape = 'u32[144,128]{1,0:T(1,128)}', space=vmem, size = 0x12000, scoped, tag = 'internal scratch']
  %s0 = inlined_call_operand.vmem [shape: bf16[32,160], index: 0, kind: input, shape index: {}]
  %s1 = inlined_call_operand.vmem [shape: bf16[160,128], index: 1, kind: input, shape index: {}]
  %s2 = inlined_call_operand.vmem [shape: f32[1,128], index: 2, kind: input, shape index: {}]
  %s3 = inlined_call_operand.vmem [shape: f32[32,128], index: 3, kind: output, shape index: {}]
  %s4 = sld [smem:[#allocation0]]
  $region22: #{drcn_forward.18} parent=0
    _
  %s6 = ssub.s32 1, %s4
  %s7 = scalar_select 0, %s6, %s4
  // Predicated region
  $region2: #{drcn_forward.18} parent=0 // pred_check
    _
  $region3: #{drcn_forward.18} parent=0 // pred_check_branch
    %9 = sbr.rel (0) target = $region5
  $region4: #{drcn_forward.18} parent=0 // pred_region
    _
  $region5: #{drcn_forward.18} parent=0 // pred_fallthru
    _
  // Predicated region
  $region6: #{drcn_forward.18} parent=0 // pred_check
    _
  $region7: #{drcn_forward.18} parent=0 // pred_check_branch
    %11 = sbr.rel (0) target = $region9
  $region8: #{drcn_forward.18} parent=0 // pred_region
    _
  $region9: #{drcn_forward.18} parent=0 // pred_fallthru
    _
  // Predicated region
  $region10: #{drcn_forward.18} parent=0 // pred_check
    _
  $region11: #{drcn_forward.18} parent=0 // pred_check_branch
    %13 = sbr.rel (0) target = $region13
  $region12: #{drcn_forward.18} parent=0 // pred_region
    _
  $region13: #{drcn_forward.18} parent=0 // pred_fallthru
    _
  %v15 = vld [vmem:[%s0] sm:$0xff]
  %v16 = vld [vmem:[%s0 + $0x8] sm:$0xff]
  %v17 = vld [vmem:[%s0 + $0x10] sm:$0xff]
  %v18 = vld [vmem:[%s0 + $0x18] sm:$0xff]
  %v19 = vld [vmem:[%s1] sm:$0xf]
  %v20 = vld [vmem:[%s1 + $0x4] sm:$0xf]
  %v21 = vld [vmem:[%s1 + $0x8] sm:$0xf]
  %v22 = vld [vmem:[%s1 + $0xc] sm:$0xf]
  %v23 = vld [vmem:[%s1 + $0x10] sm:$0xf]
  %v24 = vld [vmem:[%s1 + $0x14] sm:$0xf]
  %v25 = vld [vmem:[%s1 + $0x18] sm:$0xf]
  %v26 = vld [vmem:[%s1 + $0x1c] sm:$0xf]
  %v27 = vld [vmem:[%s1 + $0x20] sm:$0xf]
  %v28 = vld [vmem:[%s1 + $0x24] sm:$0xf]
  %v29 = vld [vmem:[%s1 + $0x28] sm:$0xf]
  %v30 = vld [vmem:[%s1 + $0x2c] sm:$0xf]
  %v31 = vld [vmem:[%s1 + $0x30] sm:$0xf]
  %v32 = vld [vmem:[%s1 + $0x34] sm:$0xf]
  %v33 = vld [vmem:[%s1 + $0x38] sm:$0xf]
  %v34 = vld [vmem:[%s1 + $0x3c] sm:$0xf]
  %v35 = vld [vmem:[%s1 + $0x40] sm:$0xf]
  %v36 = vld [vmem:[%s1 + $0x44] sm:$0xf]
  %v37 = vld [vmem:[%s1 + $0x48] sm:$0xf]
  %v38 = vld [vmem:[%s1 + $0x4c] sm:$0xf]
  %v39 = vld [vmem:[%s2] sm:$0x1]
  %v41 = vlaneseq
  %v42 = vshrl.u32 %v41, 7
  %v43 = vsub.s32 0, %v42
  %v44 = vrot.slane %v39, %v43
  %v50 = vunpack.c.l.b16 %v15
  %v51 = vunpack.c.h.b16 %v15
  %v52 = vunpack.c.l.b16 %v16
  %v53 = vunpack.c.h.b16 %v16
  %v54 = vunpack.c.l.b16 %v17
  %v55 = vunpack.c.h.b16 %v17
  %v56 = vunpack.c.l.b16 %v18
  %v57 = vunpack.c.h.b16 %v18
  %v58 = vpack.c.b16 %v52, %v50
  %v59 = vpack.c.b16 %v53, %v51
  %v60 = vpack.c.b16 %v56, %v54
  %v61 = vpack.c.b16 %v57, %v55
  %v84 = vunpack.c.l.b16 %v19
  %v85 = vunpack.c.l.b16 %v20
  %v86 = vunpack.c.l.b16 %v21
  %v87 = vunpack.c.l.b16 %v22
  %v88 = vunpack.c.l.b16 %v23
  %v89 = vunpack.c.l.b16 %v24
  %v90 = vunpack.c.l.b16 %v25
  %v91 = vunpack.c.l.b16 %v26
  %v92 = vunpack.c.l.b16 %v27
  %v93 = vunpack.c.l.b16 %v28
  %v94 = vunpack.c.l.b16 %v29
  %v95 = vunpack.c.l.b16 %v30
  %v96 = vunpack.c.l.b16 %v31
  %v97 = vunpack.c.l.b16 %v32
  %v98 = vunpack.c.l.b16 %v33
  %v99 = vunpack.c.l.b16 %v34
  %v100 = vunpack.c.l.b16 %v35
  %v101 = vunpack.c.l.b16 %v36
  %v102 = vunpack.c.l.b16 %v37
  %v103 = vunpack.c.l.b16 %v38
  %v104 = vpack.c.b16 %v85, %v84
  %v105 = vpack.c.b16 %v87, %v86
  %v106 = vpack.c.b16 %v89, %v88
  %v107 = vpack.c.b16 %v91, %v90
  %v108 = vpack.c.b16 %v93, %v92
  %v109 = vpack.c.b16 %v95, %v94
  %v110 = vpack.c.b16 %v97, %v96
  %v111 = vpack.c.b16 %v99, %v98
  %v112 = vpack.c.b16 %v101, %v100
  %v113 = vpack.c.b16 %v103, %v102
  %vm124 = vcmask 261120
  %v126 = vsel %vm124, %v59, 0
  %v129 = vsel %vm124, %v61, 0
  %131 = vmatprep.subr.bf16.mxu0 0
  %132 = vmatpush1.bf16.msra.mxu0 %v104
  %133 = vmatprep.subr.bf16.mxu0 0
  %134 = vmatpush1.bf16.msra.mxu0 %v105
  %135 = vmatprep.subr.bf16.mxu0 0
  %136 = vmatpush1.bf16.msra.mxu0 %v106
  %137 = vmatprep.subr.bf16.mxu0 0
  %138 = vmatpush1.bf16.msra.mxu0 %v107
  %139 = vmatprep.subr.bf16.mxu0 0
  %140 = vmatpush1.bf16.msra.mxu0 %v108
  %141 = vmatprep.subr.bf16.mxu0 0
  %142 = vmatpush1.bf16.msra.mxu0 %v109
  %143 = vmatprep.subr.bf16.mxu0 0
  %144 = vmatpush1.bf16.msra.mxu0 %v110
  %145 = vmatprep.subr.bf16.mxu0 0
  %146 = vmatpush1.bf16.msra.mxu0 %v111
  %147 = vmatprep.subr.bf16.mxu0 0
  %148 = vmatpush1.bf16.msra.mxu0 %v112
  %149 = vmatprep.subr.bf16.mxu0 0
  %150 = vmatpush1.bf16.msra.mxu0 %v113
  %151 = vmatprep.subr.bf16.mxu0 0
  %152 = vmatpush1.bf16.msra.mxu0 0
  %153 = vmatprep.subr.bf16.mxu0 0
  %154 = vmatpush1.bf16.msra.mxu0 0
  %155 = vmatprep.subr.bf16.mxu0 0
  %156 = vmatpush1.bf16.msra.mxu0 0
  %157 = vmatprep.subr.bf16.mxu0 0
  %158 = vmatpush1.bf16.msra.mxu0 0
  %159 = vmatprep.subr.bf16.mxu0 0
  %160 = vmatpush1.bf16.msra.mxu0 0
  %161 = vmatprep.subr.bf16.mxu0 0
  %162 = vmatpush1.bf16.msra.mxu0 0
  %163 = vmatprep.mubr.bf16.mxu0 %v126
  %164 = vmatmul.mubr.bf16.gmra.mrb[0].mxu0 %v58
  %v165 = vpop.f32.mrb[0].mxu0
  %v166 = vadd.f32 %v44, %v165
  %v167 = vpop.f32.mrb[0].mxu0
  %v168 = vpop.f32.mrb[0].mxu0
  %v169 = vadd.f32 %v44, %v168
  %v170 = vpop.f32.mrb[0].mxu0
  %171 = vmatprep.mubr.bf16.mxu0 %v129
  %172 = vmatmul.mubr.bf16.gmra.mrb[0].mxu0 %v60
  %v173 = vpop.f32.mrb[0].mxu0
  %v174 = vadd.f32 %v44, %v173
  %v175 = vpop.f32.mrb[0].mxu0
  %v176 = vpop.f32.mrb[0].mxu0
  %v177 = vadd.f32 %v44, %v176
  %v178 = vpop.f32.mrb[0].mxu0
  %179 = vdwg.mxu0
  %v180 = vmax.f32 %v166, 0.0
  %v181 = vmax.f32 %v169, 0.0
  %v182 = vmax.f32 %v174, 0.0
  %v183 = vmax.f32 %v177, 0.0
  %184 = vst [vmem:[%s3] sm:$0xff] %v180
  %185 = vst [vmem:[%s3 + $0x8] sm:$0xff] %v181
  %186 = vst [vmem:[%s3 + $0x10] sm:$0xff] %v182
  %187 = vst [vmem:[%s3 + $0x18] sm:$0xff] %v183
  // Predicated region
  $region14: #{drcn_forward.18} parent=0 // pred_check
    _
  $region15: #{drcn_forward.18} parent=0 // pred_check_branch
    %189 = sbr.rel (0) target = $region17
  $region16: #{drcn_forward.18} parent=0 // pred_region
    _
  $region17: #{drcn_forward.18} parent=0 // pred_fallthru
    _
  // Predicated region
  $region18: #{drcn_forward.18} parent=0 // pred_check
    _
  $region19: #{drcn_forward.18} parent=0 // pred_check_branch
    %191 = sbr.rel (0) target = $region21
  $region20: #{drcn_forward.18} parent=0 // pred_region
    _
  $region21: #{drcn_forward.18} parent=0 // pred_fallthru
    _

// kernel: drcn_forward.19
$region0: #{drcn_forward.19}
  #allocation0 [shape = 'u32[]', space=smem, size = 0x4, offset = 0x4, fixed_abs, tag = 'smem constant byte address 0x4 - core index']
  #allocation1 [shape = 'u32[144,128]{1,0:T(1,128)}', space=vmem, size = 0x12000, scoped, tag = 'internal scratch']
  %s0 = inlined_call_operand.vmem [shape: bf16[32,128], index: 0, kind: input, shape index: {}]
  %s1 = inlined_call_operand.vmem [shape: bf16[128,256], index: 1, kind: input, shape index: {}]
  %s2 = inlined_call_operand.vmem [shape: f32[1,256], index: 2, kind: input, shape index: {}]
  %s3 = inlined_call_operand.vmem [shape: f32[32,256], index: 3, kind: output, shape index: {}]
  %s4 = sld [smem:[#allocation0]]
  $region22: #{drcn_forward.19} parent=0
    _
  %s6 = ssub.s32 1, %s4
  %s7 = scalar_select 0, %s6, %s4
  // Predicated region
  $region2: #{drcn_forward.19} parent=0 // pred_check
    _
  $region3: #{drcn_forward.19} parent=0 // pred_check_branch
    %9 = sbr.rel (0) target = $region5
  $region4: #{drcn_forward.19} parent=0 // pred_region
    _
  $region5: #{drcn_forward.19} parent=0 // pred_fallthru
    _
  // Predicated region
  $region6: #{drcn_forward.19} parent=0 // pred_check
    _
  $region7: #{drcn_forward.19} parent=0 // pred_check_branch
    %11 = sbr.rel (0) target = $region9
  $region8: #{drcn_forward.19} parent=0 // pred_region
    _
  $region9: #{drcn_forward.19} parent=0 // pred_fallthru
    _
  // Predicated region
  $region10: #{drcn_forward.19} parent=0 // pred_check
    _
  $region11: #{drcn_forward.19} parent=0 // pred_check_branch
    %13 = sbr.rel (0) target = $region13
  $region12: #{drcn_forward.19} parent=0 // pred_region
    _
  $region13: #{drcn_forward.19} parent=0 // pred_fallthru
    _
  %v15 = vld [vmem:[%s0] sm:$0xf]
  %v16 = vld [vmem:[%s0 + $0x4] sm:$0xf]
  %v17 = vld [vmem:[%s0 + $0x8] sm:$0xf]
  %v18 = vld [vmem:[%s0 + $0xc] sm:$0xf]
  %v19 = vld [vmem:[%s1] sm:$0xff]
  %v20 = vld [vmem:[%s1 + $0x8] sm:$0xff]
  %v21 = vld [vmem:[%s1 + $0x10] sm:$0xff]
  %v22 = vld [vmem:[%s1 + $0x18] sm:$0xff]
  %v23 = vld [vmem:[%s1 + $0x20] sm:$0xff]
  %v24 = vld [vmem:[%s1 + $0x28] sm:$0xff]
  %v25 = vld [vmem:[%s1 + $0x30] sm:$0xff]
  %v26 = vld [vmem:[%s1 + $0x38] sm:$0xff]
  %v27 = vld [vmem:[%s1 + $0x40] sm:$0xff]
  %v28 = vld [vmem:[%s1 + $0x48] sm:$0xff]
  %v29 = vld [vmem:[%s1 + $0x50] sm:$0xff]
  %v30 = vld [vmem:[%s1 + $0x58] sm:$0xff]
  %v31 = vld [vmem:[%s1 + $0x60] sm:$0xff]
  %v32 = vld [vmem:[%s1 + $0x68] sm:$0xff]
  %v33 = vld [vmem:[%s1 + $0x70] sm:$0xff]
  %v34 = vld [vmem:[%s1 + $0x78] sm:$0xff]
  %v35 = vld [vmem:[%s2] sm:$0x3]
  %v37 = vlaneseq
  %v38 = vshrl.u32 %v37, 7
  %v39 = vsub.s32 0, %v38
  %v40 = vrot.slane %v35, %v39
  %v41 = vlaneseq
  %v42 = vshrl.u32 %v41, 7
  %v43 = vsub.s32 1, %v42
  %v44 = vrot.slane %v35, %v43
  %v51 = vunpack.c.l.b16 %v15
  %v52 = vunpack.c.l.b16 %v16
  %v53 = vunpack.c.l.b16 %v17
  %v54 = vunpack.c.l.b16 %v18
  %v55 = vpack.c.b16 %v52, %v51
  %v56 = vpack.c.b16 %v54, %v53
  %v75 = vunpack.c.l.b16 %v19
  %v76 = vunpack.c.h.b16 %v19
  %v77 = vunpack.c.l.b16 %v20
  %v78 = vunpack.c.h.b16 %v20
  %v79 = vunpack.c.l.b16 %v21
  %v80 = vunpack.c.h.b16 %v21
  %v81 = vunpack.c.l.b16 %v22
  %v82 = vunpack.c.h.b16 %v22
  %v83 = vunpack.c.l.b16 %v23
  %v84 = vunpack.c.h.b16 %v23
  %v85 = vunpack.c.l.b16 %v24
  %v86 = vunpack.c.h.b16 %v24
  %v87 = vunpack.c.l.b16 %v25
  %v88 = vunpack.c.h.b16 %v25
  %v89 = vunpack.c.l.b16 %v26
  %v90 = vunpack.c.h.b16 %v26
  %v91 = vunpack.c.l.b16 %v27
  %v92 = vunpack.c.h.b16 %v27
  %v93 = vunpack.c.l.b16 %v28
  %v94 = vunpack.c.h.b16 %v28
  %v95 = vunpack.c.l.b16 %v29
  %v96 = vunpack.c.h.b16 %v29
  %v97 = vunpack.c.l.b16 %v30
  %v98 = vunpack.c.h.b16 %v30
  %v99 = vunpack.c.l.b16 %v31
  %v100 = vunpack.c.h.b16 %v31
  %v101 = vunpack.c.l.b16 %v32
  %v102 = vunpack.c.h.b16 %v32
  %v103 = vunpack.c.l.b16 %v33
  %v104 = vunpack.c.h.b16 %v33
  %v105 = vunpack.c.l.b16 %v34
  %v106 = vunpack.c.h.b16 %v34
  %v107 = vpack.c.b16 %v77, %v75
  %v108 = vpack.c.b16 %v78, %v76
  %v109 = vpack.c.b16 %v81, %v79
  %v110 = vpack.c.b16 %v82, %v80
  %v111 = vpack.c.b16 %v85, %v83
  %v112 = vpack.c.b16 %v86, %v84
  %v113 = vpack.c.b16 %v89, %v87
  %v114 = vpack.c.b16 %v90, %v88
  %v115 = vpack.c.b16 %v93, %v91
  %v116 = vpack.c.b16 %v94, %v92
  %v117 = vpack.c.b16 %v97, %v95
  %v118 = vpack.c.b16 %v98, %v96
  %v119 = vpack.c.b16 %v101, %v99
  %v120 = vpack.c.b16 %v102, %v100
  %v121 = vpack.c.b16 %v105, %v103
  %v122 = vpack.c.b16 %v106, %v104
  %139 = vmatprep.subr.bf16.mxu0 %v108
  %140 = vmatpush1.bf16.msra.mxu0 %v107
  %141 = vmatprep.subr.bf16.mxu0 %v110
  %142 = vmatpush1.bf16.msra.mxu0 %v109
  %143 = vmatprep.subr.bf16.mxu0 %v112
  %144 = vmatpush1.bf16.msra.mxu0 %v111
  %145 = vmatprep.subr.bf16.mxu0 %v114
  %146 = vmatpush1.bf16.msra.mxu0 %v113
  %147 = vmatprep.subr.bf16.mxu0 %v116
  %148 = vmatpush1.bf16.msra.mxu0 %v115
  %149 = vmatprep.subr.bf16.mxu0 %v118
  %150 = vmatpush1.bf16.msra.mxu0 %v117
  %151 = vmatprep.subr.bf16.mxu0 %v120
  %152 = vmatpush1.bf16.msra.mxu0 %v119
  %153 = vmatprep.subr.bf16.mxu0 %v122
  %154 = vmatpush1.bf16.msra.mxu0 %v121
  %155 = vmatprep.subr.bf16.mxu0 0
  %156 = vmatpush1.bf16.msra.mxu0 0
  %157 = vmatprep.subr.bf16.mxu0 0
  %158 = vmatpush1.bf16.msra.mxu0 0
  %159 = vmatprep.subr.bf16.mxu0 0
  %160 = vmatpush1.bf16.msra.mxu0 0
  %161 = vmatprep.subr.bf16.mxu0 0
  %162 = vmatpush1.bf16.msra.mxu0 0
  %163 = vmatprep.subr.bf16.mxu0 0
  %164 = vmatpush1.bf16.msra.mxu0 0
  %165 = vmatprep.subr.bf16.mxu0 0
  %166 = vmatpush1.bf16.msra.mxu0 0
  %167 = vmatprep.subr.bf16.mxu0 0
  %168 = vmatpush1.bf16.msra.mxu0 0
  %169 = vmatprep.subr.bf16.mxu0 0
  %170 = vmatpush1.bf16.msra.mxu0 0
  %171 = vmatprep.mubr.bf16.mxu0 0
  %172 = vmatmul.mubr.bf16.gmra.mrb[0].mxu0 %v55
  %v173 = vpop.f32.mrb[0].mxu0
  %v174 = vadd.f32 %v40, %v173
  %v175 = vpop.f32.mrb[0].mxu0
  %v176 = vadd.f32 %v44, %v175
  %v177 = vpop.f32.mrb[0].mxu0
  %v178 = vadd.f32 %v40, %v177
  %v179 = vpop.f32.mrb[0].mxu0
  %v180 = vadd.f32 %v44, %v179
  %181 = vmatprep.mubr.bf16.mxu0 0
  %182 = vmatmul.mubr.bf16.gmra.mrb[0].mxu0 %v56
  %v183 = vpop.f32.mrb[0].mxu0
  %v184 = vadd.f32 %v40, %v183
  %v185 = vpop.f32.mrb[0].mxu0
  %v186 = vadd.f32 %v44, %v185
  %v187 = vpop.f32.mrb[0].mxu0
  %v188 = vadd.f32 %v40, %v187
  %v189 = vpop.f32.mrb[0].mxu0
  %v190 = vadd.f32 %v44, %v189
  %191 = vdwg.mxu0
  %192 = vst [vmem:[%s3] sm:$0xff] %v174
  %193 = vst [vmem:[%s3 + $0x8] sm:$0xff] %v176
  %194 = vst [vmem:[%s3 + $0x10] sm:$0xff] %v178
  %195 = vst [vmem:[%s3 + $0x18] sm:$0xff] %v180
  %196 = vst [vmem:[%s3 + $0x20] sm:$0xff] %v184
  %197 = vst [vmem:[%s3 + $0x28] sm:$0xff] %v186
  %198 = vst [vmem:[%s3 + $0x30] sm:$0xff] %v188
  %199 = vst [vmem:[%s3 + $0x38] sm:$0xff] %v190
  // Predicated region
  $region14: #{drcn_forward.19} parent=0 // pred_check
    _
  $region15: #{drcn_forward.19} parent=0 // pred_check_branch
    %201 = sbr.rel (0) target = $region17
  $region16: #{drcn_forward.19} parent=0 // pred_region
    _
  $region17: #{drcn_forward.19} parent=0 // pred_fallthru
    _
  // Predicated region
  $region18: #{drcn_forward.19} parent=0 // pred_check
    _
  $region19: #{drcn_forward.19} parent=0 // pred_check_branch
    %203 = sbr.rel (0) target = $region21
  $region20: #{drcn_forward.19} parent=0 // pred_region
    _
  $region21: #{drcn_forward.19} parent=0 // pred_fallthru
    _

// kernel: drcn_forward.16
$region0: #{drcn_forward.16}
  #allocation0 [shape = 'u32[]', space=smem, size = 0x4, offset = 0x4, fixed_abs, tag = 'smem constant byte address 0x4 - core index']
  #allocation1 [shape = 'u32[144,128]{1,0:T(1,128)}', space=vmem, size = 0x12000, scoped, tag = 'internal scratch']
  %s0 = inlined_call_operand.vmem [shape: f32[8,4,256], index: 0, kind: input, shape index: {}]
  %s1 = inlined_call_operand.vmem [shape: bf16[32,128], index: 1, kind: input, shape index: {}]
  %s2 = inlined_call_operand.vmem [shape: bf16[32,128], index: 2, kind: input, shape index: {}]
  %s3 = inlined_call_operand.vmem [shape: f32[2,4,32], index: 3, kind: input, shape index: {}]
  %s4 = inlined_call_operand.vmem [shape: f32[2,4,32], index: 4, kind: input, shape index: {}]
  %s5 = inlined_call_operand.vmem [shape: f32[8,4,32], index: 5, kind: output, shape index: {0}]
  %s6 = inlined_call_operand.vmem [shape: f32[8,4,32], index: 6, kind: output, shape index: {1}]
  %s7 = inlined_call_operand.vmem [shape: f32[2,4,32], index: 7, kind: output, shape index: {2}]
  %s8 = inlined_call_operand.vmem [shape: f32[2,4,32], index: 8, kind: output, shape index: {3}]
  %9 = xla_tuple %s5, %s6, %s7, %s8
  %s10 = sld [smem:[#allocation0]]
  $region54: #{drcn_forward.16} parent=0
    _
  %s12 = ssub.s32 1, %s10
  %s13 = scalar_select 0, %s12, %s10
  // Predicated region
  $region2: #{drcn_forward.16} parent=0 // pred_check
    _
  $region3: #{drcn_forward.16} parent=0 // pred_check_branch
    %15 = sbr.rel (0) target = $region5
  $region4: #{drcn_forward.16} parent=0 // pred_region
    _
  $region5: #{drcn_forward.16} parent=0 // pred_fallthru
    _
  // Predicated region
  $region6: #{drcn_forward.16} parent=0 // pred_check
    _
  $region7: #{drcn_forward.16} parent=0 // pred_check_branch
    %17 = sbr.rel (0) target = $region9
  $region8: #{drcn_forward.16} parent=0 // pred_region
    _
  $region9: #{drcn_forward.16} parent=0 // pred_fallthru
    _
  // Predicated region
  $region10: #{drcn_forward.16} parent=0 // pred_check
    _
  $region11: #{drcn_forward.16} parent=0 // pred_check_branch
    %19 = sbr.rel (0) target = $region13
  $region12: #{drcn_forward.16} parent=0 // pred_region
    _
  $region13: #{drcn_forward.16} parent=0 // pred_fallthru
    _
  // Predicated region
  $region14: #{drcn_forward.16} parent=0 // pred_check
    _
  $region15: #{drcn_forward.16} parent=0 // pred_check_branch
    %21 = sbr.rel (0) target = $region17
  $region16: #{drcn_forward.16} parent=0 // pred_region
    _
  $region17: #{drcn_forward.16} parent=0 // pred_fallthru
    _
  // Predicated region
  $region18: #{drcn_forward.16} parent=0 // pred_check
    _
  $region19: #{drcn_forward.16} parent=0 // pred_check_branch
    %23 = sbr.rel (0) target = $region21
  $region20: #{drcn_forward.16} parent=0 // pred_region
    _
  $region21: #{drcn_forward.16} parent=0 // pred_fallthru
    _
  %v25 = vld [vmem:[%s1] sm:$0xf]
  %v26 = vld [vmem:[%s1 + $0x4] sm:$0xf]
  %v27 = vld [vmem:[%s1 + $0x8] sm:$0xf]
  %v28 = vld [vmem:[%s1 + $0xc] sm:$0xf]
  %v29 = vld [vmem:[%s2] sm:$0xf]
  %v30 = vld [vmem:[%s2 + $0x4] sm:$0xf]
  %v31 = vld [vmem:[%s2 + $0x8] sm:$0xf]
  %v32 = vld [vmem:[%s2 + $0xc] sm:$0xf]
  %v33 = vld [vmem:[%s3] sm:$0xf]
  %v34 = vld [vmem:[%s4] sm:$0xf]
  %v35 = vld [vmem:[%s0] sm:$0xff]
  %v36 = vpack.c.bf16 %v33, %v33
  %v41 = vunpack.c.l.b16 %v25
  %v42 = vunpack.c.l.b16 %v26
  %v43 = vunpack.c.l.b16 %v27
  %v44 = vunpack.c.l.b16 %v28
  %v45 = vpack.c.b16 %v42, %v41
  %v46 = vpack.c.b16 %v44, %v43
  %vm49 = vcmask 261120
  %v51 = vsel %vm49, %v36, 0
  %53 = vmatprep.subr.bf16.mxu0 0
  %54 = vmatpush1.bf16.msra.mxu0 %v45
  %55 = vmatprep.subr.bf16.mxu0 0
  %56 = vmatpush1.bf16.msra.mxu0 %v46
  %57 = vmatprep.subr.bf16.mxu0 0
  %58 = vmatpush1.bf16.msra.mxu0 0
  %59 = vmatprep.subr.bf16.mxu0 0
  %60 = vmatpush1.bf16.msra.mxu0 0
  %61 = vmatprep.subr.bf16.mxu0 0
  %62 = vmatpush1.bf16.msra.mxu0 0
  %63 = vmatprep.subr.bf16.mxu0 0
  %64 = vmatpush1.bf16.msra.mxu0 0
  %65 = vmatprep.subr.bf16.mxu0 0
  %66 = vmatpush1.bf16.msra.mxu0 0
  %67 = vmatprep.subr.bf16.mxu0 0
  %68 = vmatpush1.bf16.msra.mxu0 0
  %69 = vmatprep.subr.bf16.mxu0 0
  %70 = vmatpush1.bf16.msra.mxu0 0
  %71 = vmatprep.subr.bf16.mxu0 0
  %72 = vmatpush1.bf16.msra.mxu0 0
  %73 = vmatprep.subr.bf16.mxu0 0
  %74 = vmatpush1.bf16.msra.mxu0 0
  %75 = vmatprep.subr.bf16.mxu0 0
  %76 = vmatpush1.bf16.msra.mxu0 0
  %77 = vmatprep.subr.bf16.mxu0 0
  %78 = vmatpush1.bf16.msra.mxu0 0
  %79 = vmatprep.subr.bf16.mxu0 0
  %80 = vmatpush1.bf16.msra.mxu0 0
  %81 = vmatprep.subr.bf16.mxu0 0
  %82 = vmatpush1.bf16.msra.mxu0 0
  %83 = vmatprep.subr.bf16.mxu0 0
  %84 = vmatpush1.bf16.msra.mxu0 0
  %85 = vmatprep.mubr.bf16.mxu0 0
  %86 = vmatmul.mubr.bf16.gmra.mrb[0].mxu0 %v51
  %v87 = vpop.f32.mrb[0].mxu0
  %v88 = vadd.f32 0.0, %v87
  %v89 = vpop.f32.mrb[0].mxu0
  %v90 = vpop.f32.mrb[0].mxu0
  %v91 = vpop.f32.mrb[0].mxu0
  %92 = vdwg.mxu0
  %v93 = vadd.f32 %v35, %v88
  %v94 = vxor.u32 %v93, 2147483648
  %v95 = vmul.f32 %v94, 1.442695
  %v96 = vpow.pop %v95
  %v97 = vadd.f32 %v96, 1.0
  %v98 = vrcp.pop %v97
  %v99 = vmul.f32 1.0, %v98
  %v100 = vtanh.pop %v93
  %102 = vrot.lane.b32.xlu0 %v34, 32
  %v103 = vpop.permute.xlu0 %102
  %v105 = vmul.f32 %v99, %v103
  %107 = vrot.lane.b32.xlu0 %v100, 64
  %v108 = vpop.permute.xlu0 %107
  %v110 = vmul.f32 %v99, %v108
  %112 = vrot.lane.b32.xlu0 %v110, 32
  %v113 = vpop.permute.xlu0 %112
  %v115 = vadd.f32 %v105, %v113
  %v116 = vtanh.pop %v115
  %118 = vrot.lane.b32.xlu0 %v116, 64
  %v119 = vpop.permute.xlu0 %118
  %v121 = vmul.f32 %v99, %v119
  %123 = vrot.lane.b32.xlu0 %v121, 32
  %v124 = vpop.permute.xlu0 %123
  %vm126 = vcmask 257024
  %127 = vst.msk [vmem:[%s5] sm:$0xf] %vm126, %v124
  %s128 = scalar_lea.vmem %s0, 8
  %v129 = vld [vmem:[%s128] sm:$0xff]
  %v130 = vpack.c.bf16 %v121, %v121
  %132 = vrot.lane.b32.xlu0 %v130, 32
  %v133 = vpop.permute.xlu0 %132
  %v135 = vsel %vm49, %v133, 0
  %137 = vmatprep.subr.bf16.mxu0 0
  %138 = vmatpush1.bf16.msra.mxu0 %v45
  %139 = vmatprep.subr.bf16.mxu0 0
  %140 = vmatpush1.bf16.msra.mxu0 %v46
  %141 = vmatprep.subr.bf16.mxu0 0
  %142 = vmatpush1.bf16.msra.mxu0 0
  %143 = vmatprep.subr.bf16.mxu0 0
  %144 = vmatpush1.bf16.msra.mxu0 0
  %145 = vmatprep.subr.bf16.mxu0 0
  %146 = vmatpush1.bf16.msra.mxu0 0
  %147 = vmatprep.subr.bf16.mxu0 0
  %148 = vmatpush1.bf16.msra.mxu0 0
  %149 = vmatprep.subr.bf16.mxu0 0
  %150 = vmatpush1.bf16.msra.mxu0 0
  %151 = vmatprep.subr.bf16.mxu0 0
  %152 = vmatpush1.bf16.msra.mxu0 0
  %153 = vmatprep.subr.bf16.mxu0 0
  %154 = vmatpush1.bf16.msra.mxu0 0
  %155 = vmatprep.subr.bf16.mxu0 0
  %156 = vmatpush1.bf16.msra.mxu0 0
  %157 = vmatprep.subr.bf16.mxu0 0
  %158 = vmatpush1.bf16.msra.mxu0 0
  %159 = vmatprep.subr.bf16.mxu0 0
  %160 = vmatpush1.bf16.msra.mxu0 0
  %161 = vmatprep.subr.bf16.mxu0 0
  %162 = vmatpush1.bf16.msra.mxu0 0
  %163 = vmatprep.subr.bf16.mxu0 0
  %164 = vmatpush1.bf16.msra.mxu0 0
  %165 = vmatprep.subr.bf16.mxu0 0
  %166 = vmatpush1.bf16.msra.mxu0 0
  %167 = vmatprep.subr.bf16.mxu0 0
  %168 = vmatpush1.bf16.msra.mxu0 0
  %169 = vmatprep.mubr.bf16.mxu0 0
  %170 = vmatmul.mubr.bf16.gmra.mrb[0].mxu0 %v135
  %v171 = vpop.f32.mrb[0].mxu0
  %v172 = vadd.f32 0.0, %v171
  %v173 = vpop.f32.mrb[0].mxu0
  %v174 = vpop.f32.mrb[0].mxu0
  %v175 = vpop.f32.mrb[0].mxu0
  %176 = vdwg.mxu0
  %v177 = vadd.f32 %v129, %v172
  %v178 = vxor.u32 %v177, 2147483648
  %v179 = vmul.f32 %v178, 1.442695
  %v180 = vpow.pop %v179
  %v181 = vadd.f32 %v180, 1.0
  %v182 = vrcp.pop %v181
  %v183 = vmul.f32 1.0, %v182
  %v184 = vtanh.pop %v177
  %v185 = vmul.f32 %v183, %v115
  %187 = vrot.lane.b32.xlu0 %v184, 64
  %v188 = vpop.permute.xlu0 %187
  %v190 = vmul.f32 %v183, %v188
  %192 = vrot.lane.b32.xlu0 %v190, 32
  %v193 = vpop.permute.xlu0 %192
  %v195 = vadd.f32 %v185, %v193
  %v196 = vtanh.pop %v195
  %198 = vrot.lane.b32.xlu0 %v196, 64
  %v199 = vpop.permute.xlu0 %198
  %v201 = vmul.f32 %v183, %v199
  %203 = vrot.lane.b32.xlu0 %v201, 32
  %v204 = vpop.permute.xlu0 %203
  %s206 = scalar_lea.vmem %s5, 4
  %207 = vst.msk [vmem:[%s206] sm:$0xf] %vm126, %v204
  %s208 = scalar_lea.vmem %s0, 16
  %v209 = vld [vmem:[%s208] sm:$0xff]
  %v210 = vpack.c.bf16 %v201, %v201
  %212 = vrot.lane.b32.xlu0 %v210, 32
  %v213 = vpop.permute.xlu0 %212
  %v215 = vsel %vm49, %v213, 0
  %217 = vmatprep.subr.bf16.mxu0 0
  %218 = vmatpush1.bf16.msra.mxu0 %v45
  %219 = vmatprep.subr.bf16.mxu0 0
  %220 = vmatpush1.bf16.msra.mxu0 %v46
  %221 = vmatprep.subr.bf16.mxu0 0
  %222 = vmatpush1.bf16.msra.mxu0 0
  %223 = vmatprep.subr.bf16.mxu0 0
  %224 = vmatpush1.bf16.msra.mxu0 0
  %225 = vmatprep.subr.bf16.mxu0 0
  %226 = vmatpush1.bf16.msra.mxu0 0
  %227 = vmatprep.subr.bf16.mxu0 0
  %228 = vmatpush1.bf16.msra.mxu0 0
  %229 = vmatprep.subr.bf16.mxu0 0
  %230 = vmatpush1.bf16.msra.mxu0 0
  %231 = vmatprep.subr.bf16.mxu0 0
  %232 = vmatpush1.bf16.msra.mxu0 0
  %233 = vmatprep.subr.bf16.mxu0 0
  %234 = vmatpush1.bf16.msra.mxu0 0
  %235 = vmatprep.subr.bf16.mxu0 0
  %236 = vmatpush1.bf16.msra.mxu0 0
  %237 = vmatprep.subr.bf16.mxu0 0
  %238 = vmatpush1.bf16.msra.mxu0 0
  %239 = vmatprep.subr.bf16.mxu0 0
  %240 = vmatpush1.bf16.msra.mxu0 0
  %241 = vmatprep.subr.bf16.mxu0 0
  %242 = vmatpush1.bf16.msra.mxu0 0
  %243 = vmatprep.subr.bf16.mxu0 0
  %244 = vmatpush1.bf16.msra.mxu0 0
  %245 = vmatprep.subr.bf16.mxu0 0
  %246 = vmatpush1.bf16.msra.mxu0 0
  %247 = vmatprep.subr.bf16.mxu0 0
  %248 = vmatpush1.bf16.msra.mxu0 0
  %249 = vmatprep.mubr.bf16.mxu0 0
  %250 = vmatmul.mubr.bf16.gmra.mrb[0].mxu0 %v215
  %v251 = vpop.f32.mrb[0].mxu0
  %v252 = vadd.f32 0.0, %v251
  %v253 = vpop.f32.mrb[0].mxu0
  %v254 = vpop.f32.mrb[0].mxu0
  %v255 = vpop.f32.mrb[0].mxu0
  %256 = vdwg.mxu0
  %v257 = vadd.f32 %v209, %v252
  %v258 = vxor.u32 %v257, 2147483648
  %v259 = vmul.f32 %v258, 1.442695
  %v260 = vpow.pop %v259
  %v261 = vadd.f32 %v260, 1.0
  %v262 = vrcp.pop %v261
  %v263 = vmul.f32 1.0, %v262
  %v264 = vtanh.pop %v257
  %v265 = vmul.f32 %v263, %v195
  %267 = vrot.lane.b32.xlu0 %v264, 64
  %v268 = vpop.permute.xlu0 %267
  %v270 = vmul.f32 %v263, %v268
  %272 = vrot.lane.b32.xlu0 %v270, 32
  %v273 = vpop.permute.xlu0 %272
  %v275 = vadd.f32 %v265, %v273
  %v276 = vtanh.pop %v275
  %278 = vrot.lane.b32.xlu0 %v276, 64
  %v279 = vpop.permute.xlu0 %278
  %v281 = vmul.f32 %v263, %v279
  %283 = vrot.lane.b32.xlu0 %v281, 32
  %v284 = vpop.permute.xlu0 %283
  %s286 = scalar_lea.vmem %s5, 8
  %287 = vst.msk [vmem:[%s286] sm:$0xf] %vm126, %v284
  %s288 = scalar_lea.vmem %s0, 24
  %v289 = vld [vmem:[%s288] sm:$0xff]
  %v290 = vpack.c.bf16 %v281, %v281
  %292 = vrot.lane.b32.xlu0 %v290, 32
  %v293 = vpop.permute.xlu0 %292
  %v295 = vsel %vm49, %v293, 0
  %297 = vmatprep.subr.bf16.mxu0 0
  %298 = vmatpush1.bf16.msra.mxu0 %v45
  %299 = vmatprep.subr.bf16.mxu0 0
  %300 = vmatpush1.bf16.msra.mxu0 %v46
  %301 = vmatprep.subr.bf16.mxu0 0
  %302 = vmatpush1.bf16.msra.mxu0 0
  %303 = vmatprep.subr.bf16.mxu0 0
  %304 = vmatpush1.bf16.msra.mxu0 0
  %305 = vmatprep.subr.bf16.mxu0 0
  %306 = vmatpush1.bf16.msra.mxu0 0
  %307 = vmatprep.subr.bf16.mxu0 0
  %308 = vmatpush1.bf16.msra.mxu0 0
  %309 = vmatprep.subr.bf16.mxu0 0
  %310 = vmatpush1.bf16.msra.mxu0 0
  %311 = vmatprep.subr.bf16.mxu0 0
  %312 = vmatpush1.bf16.msra.mxu0 0
  %313 = vmatprep.subr.bf16.mxu0 0
  %314 = vmatpush1.bf16.msra.mxu0 0
  %315 = vmatprep.subr.bf16.mxu0 0
  %316 = vmatpush1.bf16.msra.mxu0 0
  %317 = vmatprep.subr.bf16.mxu0 0
  %318 = vmatpush1.bf16.msra.mxu0 0
  %319 = vmatprep.subr.bf16.mxu0 0
  %320 = vmatpush1.bf16.msra.mxu0 0
  %321 = vmatprep.subr.bf16.mxu0 0
  %322 = vmatpush1.bf16.msra.mxu0 0
  %323 = vmatprep.subr.bf16.mxu0 0
  %324 = vmatpush1.bf16.msra.mxu0 0
  %325 = vmatprep.subr.bf16.mxu0 0
  %326 = vmatpush1.bf16.msra.mxu0 0
  %327 = vmatprep.subr.bf16.mxu0 0
  %328 = vmatpush1.bf16.msra.mxu0 0
  %329 = vmatprep.mubr.bf16.mxu0 0
  %330 = vmatmul.mubr.bf16.gmra.mrb[0].mxu0 %v295
  %v331 = vpop.f32.mrb[0].mxu0
  %v332 = vadd.f32 0.0, %v331
  %v333 = vpop.f32.mrb[0].mxu0
  %v334 = vpop.f32.mrb[0].mxu0
  %v335 = vpop.f32.mrb[0].mxu0
  %336 = vdwg.mxu0
  %v337 = vadd.f32 %v289, %v332
  %v338 = vxor.u32 %v337, 2147483648
  %v339 = vmul.f32 %v338, 1.442695
  %v340 = vpow.pop %v339
  %v341 = vadd.f32 %v340, 1.0
  %v342 = vrcp.pop %v341
  %v343 = vmul.f32 1.0, %v342
  %v344 = vtanh.pop %v337
  %v345 = vmul.f32 %v343, %v275
  %347 = vrot.lane.b32.xlu0 %v344, 64
  %v348 = vpop.permute.xlu0 %347
  %v350 = vmul.f32 %v343, %v348
  %352 = vrot.lane.b32.xlu0 %v350, 32
  %v353 = vpop.permute.xlu0 %352
  %v355 = vadd.f32 %v345, %v353
  %v356 = vtanh.pop %v355
  %358 = vrot.lane.b32.xlu0 %v356, 64
  %v359 = vpop.permute.xlu0 %358
  %v361 = vmul.f32 %v343, %v359
  %363 = vrot.lane.b32.xlu0 %v361, 32
  %v364 = vpop.permute.xlu0 %363
  %s366 = scalar_lea.vmem %s5, 12
  %367 = vst.msk [vmem:[%s366] sm:$0xf] %vm126, %v364
  %s368 = scalar_lea.vmem %s0, 32
  %v369 = vld [vmem:[%s368] sm:$0xff]
  %v370 = vpack.c.bf16 %v361, %v361
  %372 = vrot.lane.b32.xlu0 %v370, 32
  %v373 = vpop.permute.xlu0 %372
  %v375 = vsel %vm49, %v373, 0
  %377 = vmatprep.subr.bf16.mxu0 0
  %378 = vmatpush1.bf16.msra.mxu0 %v45
  %379 = vmatprep.subr.bf16.mxu0 0
  %380 = vmatpush1.bf16.msra.mxu0 %v46
  %381 = vmatprep.subr.bf16.mxu0 0
  %382 = vmatpush1.bf16.msra.mxu0 0
  %383 = vmatprep.subr.bf16.mxu0 0
  %384 = vmatpush1.bf16.msra.mxu0 0
  %385 = vmatprep.subr.bf16.mxu0 0
  %386 = vmatpush1.bf16.msra.mxu0 0
  %387 = vmatprep.subr.bf16.mxu0 0
  %388 = vmatpush1.bf16.msra.mxu0 0
  %389 = vmatprep.subr.bf16.mxu0 0
  %390 = vmatpush1.bf16.msra.mxu0 0
  %391 = vmatprep.subr.bf16.mxu0 0
  %392 = vmatpush1.bf16.msra.mxu0 0
  %393 = vmatprep.subr.bf16.mxu0 0
  %394 = vmatpush1.bf16.msra.mxu0 0
  %395 = vmatprep.subr.bf16.mxu0 0
  %396 = vmatpush1.bf16.msra.mxu0 0
  %397 = vmatprep.subr.bf16.mxu0 0
  %398 = vmatpush1.bf16.msra.mxu0 0
  %399 = vmatprep.subr.bf16.mxu0 0
  %400 = vmatpush1.bf16.msra.mxu0 0
  %401 = vmatprep.subr.bf16.mxu0 0
  %402 = vmatpush1.bf16.msra.mxu0 0
  %403 = vmatprep.subr.bf16.mxu0 0
  %404 = vmatpush1.bf16.msra.mxu0 0
  %405 = vmatprep.subr.bf16.mxu0 0
  %406 = vmatpush1.bf16.msra.mxu0 0
  %407 = vmatprep.subr.bf16.mxu0 0
  %408 = vmatpush1.bf16.msra.mxu0 0
  %409 = vmatprep.mubr.bf16.mxu0 0
  %410 = vmatmul.mubr.bf16.gmra.mrb[0].mxu0 %v375
  %v411 = vpop.f32.mrb[0].mxu0
  %v412 = vadd.f32 0.0, %v411
  %v413 = vpop.f32.mrb[0].mxu0
  %v414 = vpop.f32.mrb[0].mxu0
  %v415 = vpop.f32.mrb[0].mxu0
  %416 = vdwg.mxu0
  %v417 = vadd.f32 %v369, %v412
  %v418 = vxor.u32 %v417, 2147483648
  %v419 = vmul.f32 %v418, 1.442695
  %v420 = vpow.pop %v419
  %v421 = vadd.f32 %v420, 1.0
  %v422 = vrcp.pop %v421
  %v423 = vmul.f32 1.0, %v422
  %v424 = vtanh.pop %v417
  %v425 = vmul.f32 %v423, %v355
  %427 = vrot.lane.b32.xlu0 %v424, 64
  %v428 = vpop.permute.xlu0 %427
  %v430 = vmul.f32 %v423, %v428
  %432 = vrot.lane.b32.xlu0 %v430, 32
  %v433 = vpop.permute.xlu0 %432
  %v435 = vadd.f32 %v425, %v433
  %v436 = vtanh.pop %v435
  %438 = vrot.lane.b32.xlu0 %v436, 64
  %v439 = vpop.permute.xlu0 %438
  %v441 = vmul.f32 %v423, %v439
  %443 = vrot.lane.b32.xlu0 %v441, 32
  %v444 = vpop.permute.xlu0 %443
  %s446 = scalar_lea.vmem %s5, 16
  %447 = vst.msk [vmem:[%s446] sm:$0xf] %vm126, %v444
  %s448 = scalar_lea.vmem %s0, 40
  %v449 = vld [vmem:[%s448] sm:$0xff]
  %v450 = vpack.c.bf16 %v441, %v441
  %452 = vrot.lane.b32.xlu0 %v450, 32
  %v453 = vpop.permute.xlu0 %452
  %v455 = vsel %vm49, %v453, 0
  %457 = vmatprep.subr.bf16.mxu0 0
  %458 = vmatpush1.bf16.msra.mxu0 %v45
  %459 = vmatprep.subr.bf16.mxu0 0
  %460 = vmatpush1.bf16.msra.mxu0 %v46
  %461 = vmatprep.subr.bf16.mxu0 0
  %462 = vmatpush1.bf16.msra.mxu0 0
  %463 = vmatprep.subr.bf16.mxu0 0
  %464 = vmatpush1.bf16.msra.mxu0 0
  %465 = vmatprep.subr.bf16.mxu0 0
  %466 = vmatpush1.bf16.msra.mxu0 0
  %467 = vmatprep.subr.bf16.mxu0 0
  %468 = vmatpush1.bf16.msra.mxu0 0
  %469 = vmatprep.subr.bf16.mxu0 0
  %470 = vmatpush1.bf16.msra.mxu0 0
  %471 = vmatprep.subr.bf16.mxu0 0
  %472 = vmatpush1.bf16.msra.mxu0 0
  %473 = vmatprep.subr.bf16.mxu0 0
  %474 = vmatpush1.bf16.msra.mxu0 0
  %475 = vmatprep.subr.bf16.mxu0 0
  %476 = vmatpush1.bf16.msra.mxu0 0
  %477 = vmatprep.subr.bf16.mxu0 0
  %478 = vmatpush1.bf16.msra.mxu0 0
  %479 = vmatprep.subr.bf16.mxu0 0
  %480 = vmatpush1.bf16.msra.mxu0 0
  %481 = vmatprep.subr.bf16.mxu0 0
  %482 = vmatpush1.bf16.msra.mxu0 0
  %483 = vmatprep.subr.bf16.mxu0 0
  %484 = vmatpush1.bf16.msra.mxu0 0
  %485 = vmatprep.subr.bf16.mxu0 0
  %486 = vmatpush1.bf16.msra.mxu0 0
  %487 = vmatprep.subr.bf16.mxu0 0
  %488 = vmatpush1.bf16.msra.mxu0 0
  %489 = vmatprep.mubr.bf16.mxu0 0
  %490 = vmatmul.mubr.bf16.gmra.mrb[0].mxu0 %v455
  %v491 = vpop.f32.mrb[0].mxu0
  %v492 = vadd.f32 0.0, %v491
  %v493 = vpop.f32.mrb[0].mxu0
  %v494 = vpop.f32.mrb[0].mxu0
  %v495 = vpop.f32.mrb[0].mxu0
  %496 = vdwg.mxu0
  %v497 = vadd.f32 %v449, %v492
  %v498 = vxor.u32 %v497, 2147483648
  %v499 = vmul.f32 %v498, 1.442695
  %v500 = vpow.pop %v499
  %v501 = vadd.f32 %v500, 1.0
  %v502 = vrcp.pop %v501
  %v503 = vmul.f32 1.0, %v502
  %v504 = vtanh.pop %v497
  %v505 = vmul.f32 %v503, %v435
  %507 = vrot.lane.b32.xlu0 %v504, 64
  %v508 = vpop.permute.xlu0 %507
  %v510 = vmul.f32 %v503, %v508
  %512 = vrot.lane.b32.xlu0 %v510, 32
  %v513 = vpop.permute.xlu0 %512
  %v515 = vadd.f32 %v505, %v513
  %v516 = vtanh.pop %v515
  %518 = vrot.lane.b32.xlu0 %v516, 64
  %v519 = vpop.permute.xlu0 %518
  %v521 = vmul.f32 %v503, %v519
  %523 = vrot.lane.b32.xlu0 %v521, 32
  %v524 = vpop.permute.xlu0 %523
  %s526 = scalar_lea.vmem %s5, 20
  %527 = vst.msk [vmem:[%s526] sm:$0xf] %vm126, %v524
  %s528 = scalar_lea.vmem %s0, 48
  %v529 = vld [vmem:[%s528] sm:$0xff]
  %v530 = vpack.c.bf16 %v521, %v521
  %532 = vrot.lane.b32.xlu0 %v530, 32
  %v533 = vpop.permute.xlu0 %532
  %v535 = vsel %vm49, %v533, 0
  %537 = vmatprep.subr.bf16.mxu0 0
  %538 = vmatpush1.bf16.msra.mxu0 %v45
  %539 = vmatprep.subr.bf16.mxu0 0
  %540 = vmatpush1.bf16.msra.mxu0 %v46
  %541 = vmatprep.subr.bf16.mxu0 0
  %542 = vmatpush1.bf16.msra.mxu0 0
  %543 = vmatprep.subr.bf16.mxu0 0
  %544 = vmatpush1.bf16.msra.mxu0 0
  %545 = vmatprep.subr.bf16.mxu0 0
  %546 = vmatpush1.bf16.msra.mxu0 0
  %547 = vmatprep.subr.bf16.mxu0 0
  %548 = vmatpush1.bf16.msra.mxu0 0
  %549 = vmatprep.subr.bf16.mxu0 0
  %550 = vmatpush1.bf16.msra.mxu0 0
  %551 = vmatprep.subr.bf16.mxu0 0
  %552 = vmatpush1.bf16.msra.mxu0 0
  %553 = vmatprep.subr.bf16.mxu0 0
  %554 = vmatpush1.bf16.msra.mxu0 0
  %555 = vmatprep.subr.bf16.mxu0 0
  %556 = vmatpush1.bf16.msra.mxu0 0
  %557 = vmatprep.subr.bf16.mxu0 0
  %558 = vmatpush1.bf16.msra.mxu0 0
  %559 = vmatprep.subr.bf16.mxu0 0
  %560 = vmatpush1.bf16.msra.mxu0 0
  %561 = vmatprep.subr.bf16.mxu0 0
  %562 = vmatpush1.bf16.msra.mxu0 0
  %563 = vmatprep.subr.bf16.mxu0 0
  %564 = vmatpush1.bf16.msra.mxu0 0
  %565 = vmatprep.subr.bf16.mxu0 0
  %566 = vmatpush1.bf16.msra.mxu0 0
  %567 = vmatprep.subr.bf16.mxu0 0
  %568 = vmatpush1.bf16.msra.mxu0 0
  %569 = vmatprep.mubr.bf16.mxu0 0
  %570 = vmatmul.mubr.bf16.gmra.mrb[0].mxu0 %v535
  %v571 = vpop.f32.mrb[0].mxu0
  %v572 = vadd.f32 0.0, %v571
  %v573 = vpop.f32.mrb[0].mxu0
  %v574 = vpop.f32.mrb[0].mxu0
  %v575 = vpop.f32.mrb[0].mxu0
  %576 = vdwg.mxu0
  %v577 = vadd.f32 %v529, %v572
  %v578 = vxor.u32 %v577, 2147483648
  %v579 = vmul.f32 %v578, 1.442695
  %v580 = vpow.pop %v579
  %v581 = vadd.f32 %v580, 1.0
  %v582 = vrcp.pop %v581
  %v583 = vmul.f32 1.0, %v582
  %v584 = vtanh.pop %v577
  %v585 = vmul.f32 %v583, %v515
  %587 = vrot.lane.b32.xlu0 %v584, 64
  %v588 = vpop.permute.xlu0 %587
  %v590 = vmul.f32 %v583, %v588
  %592 = vrot.lane.b32.xlu0 %v590, 32
  %v593 = vpop.permute.xlu0 %592
  %v595 = vadd.f32 %v585, %v593
  %v596 = vtanh.pop %v595
  %598 = vrot.lane.b32.xlu0 %v596, 64
  %v599 = vpop.permute.xlu0 %598
  %v601 = vmul.f32 %v583, %v599
  %603 = vrot.lane.b32.xlu0 %v601, 32
  %v604 = vpop.permute.xlu0 %603
  %s606 = scalar_lea.vmem %s5, 24
  %607 = vst.msk [vmem:[%s606] sm:$0xf] %vm126, %v604
  %s608 = scalar_lea.vmem %s0, 56
  %v609 = vld [vmem:[%s608] sm:$0xff]
  %v610 = vpack.c.bf16 %v601, %v601
  %612 = vrot.lane.b32.xlu0 %v610, 32
  %v613 = vpop.permute.xlu0 %612
  %v615 = vsel %vm49, %v613, 0
  %617 = vmatprep.subr.bf16.mxu0 0
  %618 = vmatpush1.bf16.msra.mxu0 %v45
  %619 = vmatprep.subr.bf16.mxu0 0
  %620 = vmatpush1.bf16.msra.mxu0 %v46
  %621 = vmatprep.subr.bf16.mxu0 0
  %622 = vmatpush1.bf16.msra.mxu0 0
  %623 = vmatprep.subr.bf16.mxu0 0
  %624 = vmatpush1.bf16.msra.mxu0 0
  %625 = vmatprep.subr.bf16.mxu0 0
  %626 = vmatpush1.bf16.msra.mxu0 0
  %627 = vmatprep.subr.bf16.mxu0 0
  %628 = vmatpush1.bf16.msra.mxu0 0
  %629 = vmatprep.subr.bf16.mxu0 0
  %630 = vmatpush1.bf16.msra.mxu0 0
  %631 = vmatprep.subr.bf16.mxu0 0
  %632 = vmatpush1.bf16.msra.mxu0 0
  %633 = vmatprep.subr.bf16.mxu0 0
  %634 = vmatpush1.bf16.msra.mxu0 0
  %635 = vmatprep.subr.bf16.mxu0 0
  %636 = vmatpush1.bf16.msra.mxu0 0
  %637 = vmatprep.subr.bf16.mxu0 0
  %638 = vmatpush1.bf16.msra.mxu0 0
  %639 = vmatprep.subr.bf16.mxu0 0
  %640 = vmatpush1.bf16.msra.mxu0 0
  %641 = vmatprep.subr.bf16.mxu0 0
  %642 = vmatpush1.bf16.msra.mxu0 0
  %643 = vmatprep.subr.bf16.mxu0 0
  %644 = vmatpush1.bf16.msra.mxu0 0
  %645 = vmatprep.subr.bf16.mxu0 0
  %646 = vmatpush1.bf16.msra.mxu0 0
  %647 = vmatprep.subr.bf16.mxu0 0
  %648 = vmatpush1.bf16.msra.mxu0 0
  %649 = vmatprep.mubr.bf16.mxu0 0
  %650 = vmatmul.mubr.bf16.gmra.mrb[0].mxu0 %v615
  %v651 = vpop.f32.mrb[0].mxu0
  %v652 = vadd.f32 0.0, %v651
  %v653 = vpop.f32.mrb[0].mxu0
  %v654 = vpop.f32.mrb[0].mxu0
  %v655 = vpop.f32.mrb[0].mxu0
  %656 = vdwg.mxu0
  %v657 = vadd.f32 %v609, %v652
  %v658 = vxor.u32 %v657, 2147483648
  %v659 = vmul.f32 %v658, 1.442695
  %v660 = vpow.pop %v659
  %v661 = vadd.f32 %v660, 1.0
  %v662 = vrcp.pop %v661
  %v663 = vmul.f32 1.0, %v662
  %v664 = vtanh.pop %v657
  %v665 = vmul.f32 %v663, %v595
  %667 = vrot.lane.b32.xlu0 %v664, 64
  %v668 = vpop.permute.xlu0 %667
  %v670 = vmul.f32 %v663, %v668
  %672 = vrot.lane.b32.xlu0 %v670, 32
  %v673 = vpop.permute.xlu0 %672
  %v675 = vadd.f32 %v665, %v673
  %v676 = vtanh.pop %v675
  %678 = vrot.lane.b32.xlu0 %v676, 64
  %v679 = vpop.permute.xlu0 %678
  %v681 = vmul.f32 %v663, %v679
  %683 = vrot.lane.b32.xlu0 %v681, 32
  %v684 = vpop.permute.xlu0 %683
  %s686 = scalar_lea.vmem %s5, 28
  %687 = vst.msk [vmem:[%s686] sm:$0xf] %vm126, %v684
  %688 = vst.msk [vmem:[%s7] sm:$0xf] %vm126, %v684
  %690 = vrot.lane.b32.xlu0 %v675, 96
  %v691 = vpop.permute.xlu0 %690
  %693 = vst.msk [vmem:[%s8] sm:$0xf] %vm126, %v691
  %s694 = scalar_lea.vmem %s3, 4
  %v695 = vld [vmem:[%s694] sm:$0xf]
  %s696 = scalar_lea.vmem %s4, 4
  %v697 = vld [vmem:[%s696] sm:$0xf]
  %v698 = vld [vmem:[%s608] sm:$0xff]
  %v699 = vpack.c.bf16 %v695, %v695
  %v704 = vunpack.c.l.b16 %v29
  %v705 = vunpack.c.l.b16 %v30
  %v706 = vunpack.c.l.b16 %v31
  %v707 = vunpack.c.l.b16 %v32
  %v708 = vpack.c.b16 %v705, %v704
  %v709 = vpack.c.b16 %v707, %v706
  %v713 = vsel %vm49, %v699, 0
  %715 = vmatprep.subr.bf16.mxu0 0
  %716 = vmatpush1.bf16.msra.mxu0 %v708
  %717 = vmatprep.subr.bf16.mxu0 0
  %718 = vmatpush1.bf16.msra.mxu0 %v709
  %719 = vmatprep.subr.bf16.mxu0 0
  %720 = vmatpush1.bf16.msra.mxu0 0
  %721 = vmatprep.subr.bf16.mxu0 0
  %722 = vmatpush1.bf16.msra.mxu0 0
  %723 = vmatprep.subr.bf16.mxu0 0
  %724 = vmatpush1.bf16.msra.mxu0 0
  %725 = vmatprep.subr.bf16.mxu0 0
  %726 = vmatpush1.bf16.msra.mxu0 0
  %727 = vmatprep.subr.bf16.mxu0 0
  %728 = vmatpush1.bf16.msra.mxu0 0
  %729 = vmatprep.subr.bf16.mxu0 0
  %730 = vmatpush1.bf16.msra.mxu0 0
  %731 = vmatprep.subr.bf16.mxu0 0
  %732 = vmatpush1.bf16.msra.mxu0 0
  %733 = vmatprep.subr.bf16.mxu0 0
  %734 = vmatpush1.bf16.msra.mxu0 0
  %735 = vmatprep.subr.bf16.mxu0 0
  %736 = vmatpush1.bf16.msra.mxu0 0
  %737 = vmatprep.subr.bf16.mxu0 0
  %738 = vmatpush1.bf16.msra.mxu0 0
  %739 = vmatprep.subr.bf16.mxu0 0
  %740 = vmatpush1.bf16.msra.mxu0 0
  %741 = vmatprep.subr.bf16.mxu0 0
  %742 = vmatpush1.bf16.msra.mxu0 0
  %743 = vmatprep.subr.bf16.mxu0 0
  %744 = vmatpush1.bf16.msra.mxu0 0
  %745 = vmatprep.subr.bf16.mxu0 0
  %746 = vmatpush1.bf16.msra.mxu0 0
  %747 = vmatprep.mubr.bf16.mxu0 0
  %748 = vmatmul.mubr.bf16.gmra.mrb[0].mxu0 %v713
  %v749 = vpop.f32.mrb[0].mxu0
  %v750 = vadd.f32 0.0, %v749
  %v751 = vpop.f32.mrb[0].mxu0
  %v752 = vpop.f32.mrb[0].mxu0
  %v753 = vpop.f32.mrb[0].mxu0
  %754 = vdwg.mxu0
  %v756 = vrot.slane %v698, 4
  %v758 = vadd.f32 %v756, %v750
  %v759 = vxor.u32 %v758, 2147483648
  %v760 = vmul.f32 %v759, 1.442695
  %v761 = vpow.pop %v760
  %v762 = vadd.f32 %v761, 1.0
  %v763 = vrcp.pop %v762
  %v764 = vmul.f32 1.0, %v763
  %v765 = vtanh.pop %v758
  %767 = vrot.lane.b32.xlu0 %v697, 32
  %v768 = vpop.permute.xlu0 %767
  %v770 = vmul.f32 %v764, %v768
  %772 = vrot.lane.b32.xlu0 %v765, 64
  %v773 = vpop.permute.xlu0 %772
  %v775 = vmul.f32 %v764, %v773
  %777 = vrot.lane.b32.xlu0 %v775, 32
  %v778 = vpop.permute.xlu0 %777
  %v780 = vadd.f32 %v770, %v778
  %v781 = vtanh.pop %v780
  %783 = vrot.lane.b32.xlu0 %v781, 64
  %v784 = vpop.permute.xlu0 %783
  %v786 = vmul.f32 %v764, %v784
  %788 = vrot.lane.b32.xlu0 %v786, 32
  %v789 = vpop.permute.xlu0 %788
  %s791 = scalar_lea.vmem %s6, 28
  %792 = vst.msk [vmem:[%s791] sm:$0xf] %vm126, %v789
  %v793 = vld [vmem:[%s528] sm:$0xff]
  %v794 = vpack.c.bf16 %v786, %v786
  %796 = vrot.lane.b32.xlu0 %v794, 32
  %v797 = vpop.permute.xlu0 %796
  %v799 = vsel %vm49, %v797, 0
  %801 = vmatprep.subr.bf16.mxu0 0
  %802 = vmatpush1.bf16.msra.mxu0 %v708
  %803 = vmatprep.subr.bf16.mxu0 0
  %804 = vmatpush1.bf16.msra.mxu0 %v709
  %805 = vmatprep.subr.bf16.mxu0 0
  %806 = vmatpush1.bf16.msra.mxu0 0
  %807 = vmatprep.subr.bf16.mxu0 0
  %808 = vmatpush1.bf16.msra.mxu0 0
  %809 = vmatprep.subr.bf16.mxu0 0
  %810 = vmatpush1.bf16.msra.mxu0 0
  %811 = vmatprep.subr.bf16.mxu0 0
  %812 = vmatpush1.bf16.msra.mxu0 0
  %813 = vmatprep.subr.bf16.mxu0 0
  %814 = vmatpush1.bf16.msra.mxu0 0
  %815 = vmatprep.subr.bf16.mxu0 0
  %816 = vmatpush1.bf16.msra.mxu0 0
  %817 = vmatprep.subr.bf16.mxu0 0
  %818 = vmatpush1.bf16.msra.mxu0 0
  %819 = vmatprep.subr.bf16.mxu0 0
  %820 = vmatpush1.bf16.msra.mxu0 0
  %821 = vmatprep.subr.bf16.mxu0 0
  %822 = vmatpush1.bf16.msra.mxu0 0
  %823 = vmatprep.subr.bf16.mxu0 0
  %824 = vmatpush1.bf16.msra.mxu0 0
  %825 = vmatprep.subr.bf16.mxu0 0
  %826 = vmatpush1.bf16.msra.mxu0 0
  %827 = vmatprep.subr.bf16.mxu0 0
  %828 = vmatpush1.bf16.msra.mxu0 0
  %829 = vmatprep.subr.bf16.mxu0 0
  %830 = vmatpush1.bf16.msra.mxu0 0
  %831 = vmatprep.subr.bf16.mxu0 0
  %832 = vmatpush1.bf16.msra.mxu0 0
  %833 = vmatprep.mubr.bf16.mxu0 0
  %834 = vmatmul.mubr.bf16.gmra.mrb[0].mxu0 %v799
  %v835 = vpop.f32.mrb[0].mxu0
  %v836 = vadd.f32 0.0, %v835
  %v837 = vpop.f32.mrb[0].mxu0
  %v838 = vpop.f32.mrb[0].mxu0
  %v839 = vpop.f32.mrb[0].mxu0
  %840 = vdwg.mxu0
  %v842 = vrot.slane %v793, 4
  %v844 = vadd.f32 %v842, %v836
  %v845 = vxor.u32 %v844, 2147483648
  %v846 = vmul.f32 %v845, 1.442695
  %v847 = vpow.pop %v846
  %v848 = vadd.f32 %v847, 1.0
  %v849 = vrcp.pop %v848
  %v850 = vmul.f32 1.0, %v849
  %v851 = vtanh.pop %v844
  %v852 = vmul.f32 %v850, %v780
  %854 = vrot.lane.b32.xlu0 %v851, 64
  %v855 = vpop.permute.xlu0 %854
  %v857 = vmul.f32 %v850, %v855
  %859 = vrot.lane.b32.xlu0 %v857, 32
  %v860 = vpop.permute.xlu0 %859
  %v862 = vadd.f32 %v852, %v860
  %v863 = vtanh.pop %v862
  %865 = vrot.lane.b32.xlu0 %v863, 64
  %v866 = vpop.permute.xlu0 %865
  %v868 = vmul.f32 %v850, %v866
  %870 = vrot.lane.b32.xlu0 %v868, 32
  %v871 = vpop.permute.xlu0 %870
  %s873 = scalar_lea.vmem %s6, 24
  %874 = vst.msk [vmem:[%s873] sm:$0xf] %vm126, %v871
  %v875 = vld [vmem:[%s448] sm:$0xff]
  %v876 = vpack.c.bf16 %v868, %v868
  %878 = vrot.lane.b32.xlu0 %v876, 32
  %v879 = vpop.permute.xlu0 %878
  %v881 = vsel %vm49, %v879, 0
  %883 = vmatprep.subr.bf16.mxu0 0
  %884 = vmatpush1.bf16.msra.mxu0 %v708
  %885 = vmatprep.subr.bf16.mxu0 0
  %886 = vmatpush1.bf16.msra.mxu0 %v709
  %887 = vmatprep.subr.bf16.mxu0 0
  %888 = vmatpush1.bf16.msra.mxu0 0
  %889 = vmatprep.subr.bf16.mxu0 0
  %890 = vmatpush1.bf16.msra.mxu0 0
  %891 = vmatprep.subr.bf16.mxu0 0
  %892 = vmatpush1.bf16.msra.mxu0 0
  %893 = vmatprep.subr.bf16.mxu0 0
  %894 = vmatpush1.bf16.msra.mxu0 0
  %895 = vmatprep.subr.bf16.mxu0 0
  %896 = vmatpush1.bf16.msra.mxu0 0
  %897 = vmatprep.subr.bf16.mxu0 0
  %898 = vmatpush1.bf16.msra.mxu0 0
  %899 = vmatprep.subr.bf16.mxu0 0
  %900 = vmatpush1.bf16.msra.mxu0 0
  %901 = vmatprep.subr.bf16.mxu0 0
  %902 = vmatpush1.bf16.msra.mxu0 0
  %903 = vmatprep.subr.bf16.mxu0 0
  %904 = vmatpush1.bf16.msra.mxu0 0
  %905 = vmatprep.subr.bf16.mxu0 0
  %906 = vmatpush1.bf16.msra.mxu0 0
  %907 = vmatprep.subr.bf16.mxu0 0
  %908 = vmatpush1.bf16.msra.mxu0 0
  %909 = vmatprep.subr.bf16.mxu0 0
  %910 = vmatpush1.bf16.msra.mxu0 0
  %911 = vmatprep.subr.bf16.mxu0 0
  %912 = vmatpush1.bf16.msra.mxu0 0
  %913 = vmatprep.subr.bf16.mxu0 0
  %914 = vmatpush1.bf16.msra.mxu0 0
  %915 = vmatprep.mubr.bf16.mxu0 0
  %916 = vmatmul.mubr.bf16.gmra.mrb[0].mxu0 %v881
  %v917 = vpop.f32.mrb[0].mxu0
  %v918 = vadd.f32 0.0, %v917
  %v919 = vpop.f32.mrb[0].mxu0
  %v920 = vpop.f32.mrb[0].mxu0
  %v921 = vpop.f32.mrb[0].mxu0
  %922 = vdwg.mxu0
  %v924 = vrot.slane %v875, 4
  %v926 = vadd.f32 %v924, %v918
  %v927 = vxor.u32 %v926, 2147483648
  %v928 = vmul.f32 %v927, 1.442695
  %v929 = vpow.pop %v928
  %v930 = vadd.f32 %v929, 1.0
  %v931 = vrcp.pop %v930
  %v932 = vmul.f32 1.0, %v931
  %v933 = vtanh.pop %v926
  %v934 = vmul.f32 %v932, %v862
  %936 = vrot.lane.b32.xlu0 %v933, 64
  %v937 = vpop.permute.xlu0 %936
  %v939 = vmul.f32 %v932, %v937
  %941 = vrot.lane.b32.xlu0 %v939, 32
  %v942 = vpop.permute.xlu0 %941
  %v944 = vadd.f32 %v934, %v942
  %v945 = vtanh.pop %v944
  %947 = vrot.lane.b32.xlu0 %v945, 64
  %v948 = vpop.permute.xlu0 %947
  %v950 = vmul.f32 %v932, %v948
  %952 = vrot.lane.b32.xlu0 %v950, 32
  %v953 = vpop.permute.xlu0 %952
  %s955 = scalar_lea.vmem %s6, 20
  %956 = vst.msk [vmem:[%s955] sm:$0xf] %vm126, %v953
  %v957 = vld [vmem:[%s368] sm:$0xff]
  %v958 = vpack.c.bf16 %v950, %v950
  %960 = vrot.lane.b32.xlu0 %v958, 32
  %v961 = vpop.permute.xlu0 %960
  %v963 = vsel %vm49, %v961, 0
  %965 = vmatprep.subr.bf16.mxu0 0
  %966 = vmatpush1.bf16.msra.mxu0 %v708
  %967 = vmatprep.subr.bf16.mxu0 0
  %968 = vmatpush1.bf16.msra.mxu0 %v709
  %969 = vmatprep.subr.bf16.mxu0 0
  %970 = vmatpush1.bf16.msra.mxu0 0
  %971 = vmatprep.subr.bf16.mxu0 0
  %972 = vmatpush1.bf16.msra.mxu0 0
  %973 = vmatprep.subr.bf16.mxu0 0
  %974 = vmatpush1.bf16.msra.mxu0 0
  %975 = vmatprep.subr.bf16.mxu0 0
  %976 = vmatpush1.bf16.msra.mxu0 0
  %977 = vmatprep.subr.bf16.mxu0 0
  %978 = vmatpush1.bf16.msra.mxu0 0
  %979 = vmatprep.subr.bf16.mxu0 0
  %980 = vmatpush1.bf16.msra.mxu0 0
  %981 = vmatprep.subr.bf16.mxu0 0
  %982 = vmatpush1.bf16.msra.mxu0 0
  %983 = vmatprep.subr.bf16.mxu0 0
  %984 = vmatpush1.bf16.msra.mxu0 0
  %985 = vmatprep.subr.bf16.mxu0 0
  %986 = vmatpush1.bf16.msra.mxu0 0
  %987 = vmatprep.subr.bf16.mxu0 0
  %988 = vmatpush1.bf16.msra.mxu0 0
  %989 = vmatprep.subr.bf16.mxu0 0
  %990 = vmatpush1.bf16.msra.mxu0 0
  %991 = vmatprep.subr.bf16.mxu0 0
  %992 = vmatpush1.bf16.msra.mxu0 0
  %993 = vmatprep.subr.bf16.mxu0 0
  %994 = vmatpush1.bf16.msra.mxu0 0
  %995 = vmatprep.subr.bf16.mxu0 0
  %996 = vmatpush1.bf16.msra.mxu0 0
  %997 = vmatprep.mubr.bf16.mxu0 0
  %998 = vmatmul.mubr.bf16.gmra.mrb[0].mxu0 %v963
  %v999 = vpop.f32.mrb[0].mxu0
  %v1000 = vadd.f32 0.0, %v999
  %v1001 = vpop.f32.mrb[0].mxu0
  %v1002 = vpop.f32.mrb[0].mxu0
  %v1003 = vpop.f32.mrb[0].mxu0
  %1004 = vdwg.mxu0
  %v1006 = vrot.slane %v957, 4
  %v1008 = vadd.f32 %v1006, %v1000
  %v1009 = vxor.u32 %v1008, 2147483648
  %v1010 = vmul.f32 %v1009, 1.442695
  %v1011 = vpow.pop %v1010
  %v1012 = vadd.f32 %v1011, 1.0
  %v1013 = vrcp.pop %v1012
  %v1014 = vmul.f32 1.0, %v1013
  %v1015 = vtanh.pop %v1008
  %v1016 = vmul.f32 %v1014, %v944
  %1018 = vrot.lane.b32.xlu0 %v1015, 64
  %v1019 = vpop.permute.xlu0 %1018
  %v1021 = vmul.f32 %v1014, %v1019
  %1023 = vrot.lane.b32.xlu0 %v1021, 32
  %v1024 = vpop.permute.xlu0 %1023
  %v1026 = vadd.f32 %v1016, %v1024
  %v1027 = vtanh.pop %v1026
  %1029 = vrot.lane.b32.xlu0 %v1027, 64
  %v1030 = vpop.permute.xlu0 %1029
  %v1032 = vmul.f32 %v1014, %v1030
  %1034 = vrot.lane.b32.xlu0 %v1032, 32
  %v1035 = vpop.permute.xlu0 %1034
  %s1037 = scalar_lea.vmem %s6, 16
  %1038 = vst.msk [vmem:[%s1037] sm:$0xf] %vm126, %v1035
  %v1039 = vld [vmem:[%s288] sm:$0xff]
  %v1040 = vpack.c.bf16 %v1032, %v1032
  %1042 = vrot.lane.b32.xlu0 %v1040, 32
  %v1043 = vpop.permute.xlu0 %1042
  %v1045 = vsel %vm49, %v1043, 0
  %1047 = vmatprep.subr.bf16.mxu0 0
  %1048 = vmatpush1.bf16.msra.mxu0 %v708
  %1049 = vmatprep.subr.bf16.mxu0 0
  %1050 = vmatpush1.bf16.msra.mxu0 %v709
  %1051 = vmatprep.subr.bf16.mxu0 0
  %1052 = vmatpush1.bf16.msra.mxu0 0
  %1053 = vmatprep.subr.bf16.mxu0 0
  %1054 = vmatpush1.bf16.msra.mxu0 0
  %1055 = vmatprep.subr.bf16.mxu0 0
  %1056 = vmatpush1.bf16.msra.mxu0 0
  %1057 = vmatprep.subr.bf16.mxu0 0
  %1058 = vmatpush1.bf16.msra.mxu0 0
  %1059 = vmatprep.subr.bf16.mxu0 0
  %1060 = vmatpush1.bf16.msra.mxu0 0
  %1061 = vmatprep.subr.bf16.mxu0 0
  %1062 = vmatpush1.bf16.msra.mxu0 0
  %1063 = vmatprep.subr.bf16.mxu0 0
  %1064 = vmatpush1.bf16.msra.mxu0 0
  %1065 = vmatprep.subr.bf16.mxu0 0
  %1066 = vmatpush1.bf16.msra.mxu0 0
  %1067 = vmatprep.subr.bf16.mxu0 0
  %1068 = vmatpush1.bf16.msra.mxu0 0
  %1069 = vmatprep.subr.bf16.mxu0 0
  %1070 = vmatpush1.bf16.msra.mxu0 0
  %1071 = vmatprep.subr.bf16.mxu0 0
  %1072 = vmatpush1.bf16.msra.mxu0 0
  %1073 = vmatprep.subr.bf16.mxu0 0
  %1074 = vmatpush1.bf16.msra.mxu0 0
  %1075 = vmatprep.subr.bf16.mxu0 0
  %1076 = vmatpush1.bf16.msra.mxu0 0
  %1077 = vmatprep.subr.bf16.mxu0 0
  %1078 = vmatpush1.bf16.msra.mxu0 0
  %1079 = vmatprep.mubr.bf16.mxu0 0
  %1080 = vmatmul.mubr.bf16.gmra.mrb[0].mxu0 %v1045
  %v1081 = vpop.f32.mrb[0].mxu0
  %v1082 = vadd.f32 0.0, %v1081
  %v1083 = vpop.f32.mrb[0].mxu0
  %v1084 = vpop.f32.mrb[0].mxu0
  %v1085 = vpop.f32.mrb[0].mxu0
  %1086 = vdwg.mxu0
  %v1088 = vrot.slane %v1039, 4
  %v1090 = vadd.f32 %v1088, %v1082
  %v1091 = vxor.u32 %v1090, 2147483648
  %v1092 = vmul.f32 %v1091, 1.442695
  %v1093 = vpow.pop %v1092
  %v1094 = vadd.f32 %v1093, 1.0
  %v1095 = vrcp.pop %v1094
  %v1096 = vmul.f32 1.0, %v1095
  %v1097 = vtanh.pop %v1090
  %v1098 = vmul.f32 %v1096, %v1026
  %1100 = vrot.lane.b32.xlu0 %v1097, 64
  %v1101 = vpop.permute.xlu0 %1100
  %v1103 = vmul.f32 %v1096, %v1101
  %1105 = vrot.lane.b32.xlu0 %v1103, 32
  %v1106 = vpop.permute.xlu0 %1105
  %v1108 = vadd.f32 %v1098, %v1106
  %v1109 = vtanh.pop %v1108
  %1111 = vrot.lane.b32.xlu0 %v1109, 64
  %v1112 = vpop.permute.xlu0 %1111
  %v1114 = vmul.f32 %v1096, %v1112
  %1116 = vrot.lane.b32.xlu0 %v1114, 32
  %v1117 = vpop.permute.xlu0 %1116
  %s1119 = scalar_lea.vmem %s6, 12
  %1120 = vst.msk [vmem:[%s1119] sm:$0xf] %vm126, %v1117
  %v1121 = vld [vmem:[%s208] sm:$0xff]
  %v1122 = vpack.c.bf16 %v1114, %v1114
  %1124 = vrot.lane.b32.xlu0 %v1122, 32
  %v1125 = vpop.permute.xlu0 %1124
  %v1127 = vsel %vm49, %v1125, 0
  %1129 = vmatprep.subr.bf16.mxu0 0
  %1130 = vmatpush1.bf16.msra.mxu0 %v708
  %1131 = vmatprep.subr.bf16.mxu0 0
  %1132 = vmatpush1.bf16.msra.mxu0 %v709
  %1133 = vmatprep.subr.bf16.mxu0 0
  %1134 = vmatpush1.bf16.msra.mxu0 0
  %1135 = vmatprep.subr.bf16.mxu0 0
  %1136 = vmatpush1.bf16.msra.mxu0 0
  %1137 = vmatprep.subr.bf16.mxu0 0
  %1138 = vmatpush1.bf16.msra.mxu0 0
  %1139 = vmatprep.subr.bf16.mxu0 0
  %1140 = vmatpush1.bf16.msra.mxu0 0
  %1141 = vmatprep.subr.bf16.mxu0 0
  %1142 = vmatpush1.bf16.msra.mxu0 0
  %1143 = vmatprep.subr.bf16.mxu0 0
  %1144 = vmatpush1.bf16.msra.mxu0 0
  %1145 = vmatprep.subr.bf16.mxu0 0
  %1146 = vmatpush1.bf16.msra.mxu0 0
  %1147 = vmatprep.subr.bf16.mxu0 0
  %1148 = vmatpush1.bf16.msra.mxu0 0
  %1149 = vmatprep.subr.bf16.mxu0 0
  %1150 = vmatpush1.bf16.msra.mxu0 0
  %1151 = vmatprep.subr.bf16.mxu0 0
  %1152 = vmatpush1.bf16.msra.mxu0 0
  %1153 = vmatprep.subr.bf16.mxu0 0
  %1154 = vmatpush1.bf16.msra.mxu0 0
  %1155 = vmatprep.subr.bf16.mxu0 0
  %1156 = vmatpush1.bf16.msra.mxu0 0
  %1157 = vmatprep.subr.bf16.mxu0 0
  %1158 = vmatpush1.bf16.msra.mxu0 0
  %1159 = vmatprep.subr.bf16.mxu0 0
  %1160 = vmatpush1.bf16.msra.mxu0 0
  %1161 = vmatprep.mubr.bf16.mxu0 0
  %1162 = vmatmul.mubr.bf16.gmra.mrb[0].mxu0 %v1127
  %v1163 = vpop.f32.mrb[0].mxu0
  %v1164 = vadd.f32 0.0, %v1163
  %v1165 = vpop.f32.mrb[0].mxu0
  %v1166 = vpop.f32.mrb[0].mxu0
  %v1167 = vpop.f32.mrb[0].mxu0
  %1168 = vdwg.mxu0
  %v1170 = vrot.slane %v1121, 4
  %v1172 = vadd.f32 %v1170, %v1164
  %v1173 = vxor.u32 %v1172, 2147483648
  %v1174 = vmul.f32 %v1173, 1.442695
  %v1175 = vpow.pop %v1174
  %v1176 = vadd.f32 %v1175, 1.0
  %v1177 = vrcp.pop %v1176
  %v1178 = vmul.f32 1.0, %v1177
  %v1179 = vtanh.pop %v1172
  %v1180 = vmul.f32 %v1178, %v1108
  %1182 = vrot.lane.b32.xlu0 %v1179, 64
  %v1183 = vpop.permute.xlu0 %1182
  %v1185 = vmul.f32 %v1178, %v1183
  %1187 = vrot.lane.b32.xlu0 %v1185, 32
  %v1188 = vpop.permute.xlu0 %1187
  %v1190 = vadd.f32 %v1180, %v1188
  %v1191 = vtanh.pop %v1190
  %1193 = vrot.lane.b32.xlu0 %v1191, 64
  %v1194 = vpop.permute.xlu0 %1193
  %v1196 = vmul.f32 %v1178, %v1194
  %1198 = vrot.lane.b32.xlu0 %v1196, 32
  %v1199 = vpop.permute.xlu0 %1198
  %s1201 = scalar_lea.vmem %s6, 8
  %1202 = vst.msk [vmem:[%s1201] sm:$0xf] %vm126, %v1199
  %v1203 = vld [vmem:[%s128] sm:$0xff]
  %v1204 = vpack.c.bf16 %v1196, %v1196
  %1206 = vrot.lane.b32.xlu0 %v1204, 32
  %v1207 = vpop.permute.xlu0 %1206
  %v1209 = vsel %vm49, %v1207, 0
  %1211 = vmatprep.subr.bf16.mxu0 0
  %1212 = vmatpush1.bf16.msra.mxu0 %v708
  %1213 = vmatprep.subr.bf16.mxu0 0
  %1214 = vmatpush1.bf16.msra.mxu0 %v709
  %1215 = vmatprep.subr.bf16.mxu0 0
  %1216 = vmatpush1.bf16.msra.mxu0 0
  %1217 = vmatprep.subr.bf16.mxu0 0
  %1218 = vmatpush1.bf16.msra.mxu0 0
  %1219 = vmatprep.subr.bf16.mxu0 0
  %1220 = vmatpush1.bf16.msra.mxu0 0
  %1221 = vmatprep.subr.bf16.mxu0 0
  %1222 = vmatpush1.bf16.msra.mxu0 0
  %1223 = vmatprep.subr.bf16.mxu0 0
  %1224 = vmatpush1.bf16.msra.mxu0 0
  %1225 = vmatprep.subr.bf16.mxu0 0
  %1226 = vmatpush1.bf16.msra.mxu0 0
  %1227 = vmatprep.subr.bf16.mxu0 0
  %1228 = vmatpush1.bf16.msra.mxu0 0
  %1229 = vmatprep.subr.bf16.mxu0 0
  %1230 = vmatpush1.bf16.msra.mxu0 0
  %1231 = vmatprep.subr.bf16.mxu0 0
  %1232 = vmatpush1.bf16.msra.mxu0 0
  %1233 = vmatprep.subr.bf16.mxu0 0
  %1234 = vmatpush1.bf16.msra.mxu0 0
  %1235 = vmatprep.subr.bf16.mxu0 0
  %1236 = vmatpush1.bf16.msra.mxu0 0
  %1237 = vmatprep.subr.bf16.mxu0 0
  %1238 = vmatpush1.bf16.msra.mxu0 0
  %1239 = vmatprep.subr.bf16.mxu0 0
  %1240 = vmatpush1.bf16.msra.mxu0 0
  %1241 = vmatprep.subr.bf16.mxu0 0
  %1242 = vmatpush1.bf16.msra.mxu0 0
  %1243 = vmatprep.mubr.bf16.mxu0 0
  %1244 = vmatmul.mubr.bf16.gmra.mrb[0].mxu0 %v1209
  %v1245 = vpop.f32.mrb[0].mxu0
  %v1246 = vadd.f32 0.0, %v1245
  %v1247 = vpop.f32.mrb[0].mxu0
  %v1248 = vpop.f32.mrb[0].mxu0
  %v1249 = vpop.f32.mrb[0].mxu0
  %1250 = vdwg.mxu0
  %v1252 = vrot.slane %v1203, 4
  %v1254 = vadd.f32 %v1252, %v1246
  %v1255 = vxor.u32 %v1254, 2147483648
  %v1256 = vmul.f32 %v1255, 1.442695
  %v1257 = vpow.pop %v1256
  %v1258 = vadd.f32 %v1257, 1.0
  %v1259 = vrcp.pop %v1258
  %v1260 = vmul.f32 1.0, %v1259
  %v1261 = vtanh.pop %v1254
  %v1262 = vmul.f32 %v1260, %v1190
  %1264 = vrot.lane.b32.xlu0 %v1261, 64
  %v1265 = vpop.permute.xlu0 %1264
  %v1267 = vmul.f32 %v1260, %v1265
  %1269 = vrot.lane.b32.xlu0 %v1267, 32
  %v1270 = vpop.permute.xlu0 %1269
  %v1272 = vadd.f32 %v1262, %v1270
  %v1273 = vtanh.pop %v1272
  %1275 = vrot.lane.b32.xlu0 %v1273, 64
  %v1276 = vpop.permute.xlu0 %1275
  %v1278 = vmul.f32 %v1260, %v1276
  %1280 = vrot.lane.b32.xlu0 %v1278, 32
  %v1281 = vpop.permute.xlu0 %1280
  %s1283 = scalar_lea.vmem %s6, 4
  %1284 = vst.msk [vmem:[%s1283] sm:$0xf] %vm126, %v1281
  %v1285 = vld [vmem:[%s0] sm:$0xff]
  %v1286 = vpack.c.bf16 %v1278, %v1278
  %1288 = vrot.lane.b32.xlu0 %v1286, 32
  %v1289 = vpop.permute.xlu0 %1288
  %v1291 = vsel %vm49, %v1289, 0
  %1293 = vmatprep.subr.bf16.mxu0 0
  %1294 = vmatpush1.bf16.msra.mxu0 %v708
  %1295 = vmatprep.subr.bf16.mxu0 0
  %1296 = vmatpush1.bf16.msra.mxu0 %v709
  %1297 = vmatprep.subr.bf16.mxu0 0
  %1298 = vmatpush1.bf16.msra.mxu0 0
  %1299 = vmatprep.subr.bf16.mxu0 0
  %1300 = vmatpush1.bf16.msra.mxu0 0
  %1301 = vmatprep.subr.bf16.mxu0 0
  %1302 = vmatpush1.bf16.msra.mxu0 0
  %1303 = vmatprep.subr.bf16.mxu0 0
  %1304 = vmatpush1.bf16.msra.mxu0 0
  %1305 = vmatprep.subr.bf16.mxu0 0
  %1306 = vmatpush1.bf16.msra.mxu0 0
  %1307 = vmatprep.subr.bf16.mxu0 0
  %1308 = vmatpush1.bf16.msra.mxu0 0
  %1309 = vmatprep.subr.bf16.mxu0 0
  %1310 = vmatpush1.bf16.msra.mxu0 0
  %1311 = vmatprep.subr.bf16.mxu0 0
  %1312 = vmatpush1.bf16.msra.mxu0 0
  %1313 = vmatprep.subr.bf16.mxu0 0
  %1314 = vmatpush1.bf16.msra.mxu0 0
  %1315 = vmatprep.subr.bf16.mxu0 0
  %1316 = vmatpush1.bf16.msra.mxu0 0
  %1317 = vmatprep.subr.bf16.mxu0 0
  %1318 = vmatpush1.bf16.msra.mxu0 0
  %1319 = vmatprep.subr.bf16.mxu0 0
  %1320 = vmatpush1.bf16.msra.mxu0 0
  %1321 = vmatprep.subr.bf16.mxu0 0
  %1322 = vmatpush1.bf16.msra.mxu0 0
  %1323 = vmatprep.subr.bf16.mxu0 0
  %1324 = vmatpush1.bf16.msra.mxu0 0
  %1325 = vmatprep.mubr.bf16.mxu0 0
  %1326 = vmatmul.mubr.bf16.gmra.mrb[0].mxu0 %v1291
  %v1327 = vpop.f32.mrb[0].mxu0
  %v1328 = vadd.f32 0.0, %v1327
  %v1329 = vpop.f32.mrb[0].mxu0
  %v1330 = vpop.f32.mrb[0].mxu0
  %v1331 = vpop.f32.mrb[0].mxu0
  %1332 = vdwg.mxu0
  %v1334 = vrot.slane %v1285, 4
  %v1336 = vadd.f32 %v1334, %v1328
  %v1337 = vxor.u32 %v1336, 2147483648
  %v1338 = vmul.f32 %v1337, 1.442695
  %v1339 = vpow.pop %v1338
  %v1340 = vadd.f32 %v1339, 1.0
  %v1341 = vrcp.pop %v1340
  %v1342 = vmul.f32 1.0, %v1341
  %v1343 = vtanh.pop %v1336
  %v1344 = vmul.f32 %v1342, %v1272
  %1346 = vrot.lane.b32.xlu0 %v1343, 64
  %v1347 = vpop.permute.xlu0 %1346
  %v1349 = vmul.f32 %v1342, %v1347
  %1351 = vrot.lane.b32.xlu0 %v1349, 32
  %v1352 = vpop.permute.xlu0 %1351
  %v1354 = vadd.f32 %v1344, %v1352
  %v1355 = vtanh.pop %v1354
  %1357 = vrot.lane.b32.xlu0 %v1355, 64
  %v1358 = vpop.permute.xlu0 %1357
  %v1360 = vmul.f32 %v1342, %v1358
  %1362 = vrot.lane.b32.xlu0 %v1360, 32
  %v1363 = vpop.permute.xlu0 %1362
  %1365 = vst.msk [vmem:[%s6] sm:$0xf] %vm126, %v1363
  %s1366 = scalar_lea.vmem %s7, 4
  %1367 = vst.msk [vmem:[%s1366] sm:$0xf] %vm126, %v1363
  %1369 = vrot.lane.b32.xlu0 %v1354, 96
  %v1370 = vpop.permute.xlu0 %1369
  %s1372 = scalar_lea.vmem %s8, 4
  %1373 = vst.msk [vmem:[%s1372] sm:$0xf] %vm126, %v1370
  // Predicated region
  $region22: #{drcn_forward.16} parent=0 // pred_check
    _
  $region23: #{drcn_forward.16} parent=0 // pred_check_branch
    %1375 = sbr.rel (0) target = $region25
  $region24: #{drcn_forward.16} parent=0 // pred_region
    _
  $region25: #{drcn_forward.16} parent=0 // pred_fallthru
    _
  // Predicated region
  $region26: #{drcn_forward.16} parent=0 // pred_check
    _
  $region27: #{drcn_forward.16} parent=0 // pred_check_branch
    %1377 = sbr.rel (0) target = $region29
  $region28: #{drcn_forward.16} parent=0 // pred_region
    _
  $region29: #{drcn_forward.16} parent=0 // pred_fallthru
    _
  // Predicated region
  $region30: #{drcn_forward.16} parent=0 // pred_check
    _
  $region31: #{drcn_forward.16} parent=0 // pred_check_branch
    %1379 = sbr.rel (0) target = $region33
  $region32: #{drcn_forward.16} parent=0 // pred_region
    _
  $region33: #{drcn_forward.16} parent=0 // pred_fallthru
    _
  // Predicated region
  $region34: #{drcn_forward.16} parent=0 // pred_check
    _
  $region35: #{drcn_forward.16} parent=0 // pred_check_branch
    %1381 = sbr.rel (0) target = $region37
  $region36: #{drcn_forward.16} parent=0 // pred_region
    _
  $region37: #{drcn_forward.16} parent=0 // pred_fallthru
    _
  // Predicated region
  $region38: #{drcn_forward.16} parent=0 // pred_check
    _
  $region39: #{drcn_forward.16} parent=0 // pred_check_branch
    %1383 = sbr.rel (0) target = $region41
  $region40: #{drcn_forward.16} parent=0 // pred_region
    _
  $region41: #{drcn_forward.16} parent=0 // pred_fallthru
    _
  // Predicated region
  $region42: #{drcn_forward.16} parent=0 // pred_check
    _
  $region43: #{drcn_forward.16} parent=0 // pred_check_branch
    %1385 = sbr.rel (0) target = $region45
  $region44: #{drcn_forward.16} parent=0 // pred_region
    _
  $region45: #{drcn_forward.16} parent=0 // pred_fallthru
    _
  // Predicated region
  $region46: #{drcn_forward.16} parent=0 // pred_check
    _
  $region47: #{drcn_forward.16} parent=0 // pred_check_branch
    %1387 = sbr.rel (0) target = $region49
  $region48: #{drcn_forward.16} parent=0 // pred_region
    _
  $region49: #{drcn_forward.16} parent=0 // pred_fallthru
    _
  // Predicated region
  $region50: #{drcn_forward.16} parent=0 // pred_check
    _
  $region51: #{drcn_forward.16} parent=0 // pred_check_branch
    %1389 = sbr.rel (0) target = $region53
  $region52: #{drcn_forward.16} parent=0 // pred_region
    _
  $region53: #{drcn_forward.16} parent=0 // pred_fallthru
    _

// kernel: drcn_forward.27
$region0: #{drcn_forward.27}
  #allocation0 [shape = 'u32[]', space=smem, size = 0x4, offset = 0x4, fixed_abs, tag = 'smem constant byte address 0x4 - core index']
  #allocation1 [shape = 'u32[144,128]{1,0:T(1,128)}', space=vmem, size = 0x12000, scoped, tag = 'internal scratch']
  %s0 = inlined_call_operand.vmem [shape: f32[2,8,128], index: 0, kind: input, shape index: {}]
  %s1 = inlined_call_operand.vmem [shape: f32[2,8,128], index: 1, kind: input, shape index: {}]
  %s2 = inlined_call_operand.vmem [shape: f32[2,640], index: 2, kind: output, shape index: {}]
  %s3 = sld [smem:[#allocation0]]
  $region18: #{drcn_forward.27} parent=0
    _
  %s5 = ssub.s32 1, %s3
  %s6 = scalar_select 0, %s5, %s3
  // Predicated region
  $region2: #{drcn_forward.27} parent=0 // pred_check
    _
  $region3: #{drcn_forward.27} parent=0 // pred_check_branch
    %8 = sbr.rel (0) target = $region5
  $region4: #{drcn_forward.27} parent=0 // pred_region
    _
  $region5: #{drcn_forward.27} parent=0 // pred_fallthru
    _
  // Predicated region
  $region6: #{drcn_forward.27} parent=0 // pred_check
    _
  $region7: #{drcn_forward.27} parent=0 // pred_check_branch
    %10 = sbr.rel (0) target = $region9
  $region8: #{drcn_forward.27} parent=0 // pred_region
    _
  $region9: #{drcn_forward.27} parent=0 // pred_fallthru
    _
  %v11 = vld [vmem:[%s0] sm:$0xff]
  %v12 = vld [vmem:[%s0 + $0x8] sm:$0xff]
  %v13 = vrot.slane %v11, 4
  %v14 = vmax.f32 %v11, %v13
  %v15 = vrot.slane %v14, 2
  %v16 = vmax.f32 %v14, %v15
  %v17 = vrot.slane %v16, 1
  %v18 = vmax.f32 %v16, %v17
  %v19 = vrot.slane %v12, 4
  %v20 = vmax.f32 %v12, %v19
  %v21 = vrot.slane %v20, 2
  %v22 = vmax.f32 %v20, %v21
  %v23 = vrot.slane %v22, 1
  %v24 = vmax.f32 %v22, %v23
  %v25 = vld [vmem:[%s1] sm:$0xff]
  %v26 = vld [vmem:[%s1 + $0x8] sm:$0xff]
  %v27 = vrot.slane %v25, 4
  %v28 = vmax.f32 %v25, %v27
  %v29 = vrot.slane %v28, 2
  %v30 = vmax.f32 %v28, %v29
  %v31 = vrot.slane %v30, 1
  %v32 = vmax.f32 %v30, %v31
  %v33 = vrot.slane %v26, 4
  %v34 = vmax.f32 %v26, %v33
  %v35 = vrot.slane %v34, 2
  %v36 = vmax.f32 %v34, %v35
  %v37 = vrot.slane %v36, 1
  %v38 = vmax.f32 %v36, %v37
  %v39 = vadd.f32 %v18, %v32
  %v40 = vadd.f32 %v24, %v38
  %v41 = vsub.f32 %v18, %v32
  %v42 = vsub.f32 %v24, %v38
  %v46 = vunpack.c.l.s4 1983009808
  %v47 = vunpack.c.0.s8 %v46
  %v48 = vlaneseq
  %v49 = vshrl.u32 %v48, 7
  %v50 = vsub.s32 %v47, %v49
  %v51 = vrot.slane %v18, %v50
  %v53 = vunpack.c.l.s4 1983009808
  %v54 = vunpack.c.0.s8 %v53
  %v55 = vlaneseq
  %v56 = vshrl.u32 %v55, 7
  %v57 = vsub.s32 %v54, %v56
  %v58 = vrot.slane %v24, %v57
  %vm59 = vcmask 1044484
  %v60 = vsel %vm59, %v51, %v51
  %vm61 = vcmask 1046534
  %v62 = vsel %vm61, %v51, %v60
  %v63 = vrot.slane %v58, 7
  %vm64 = vcmask 1041409
  %v65 = vsel %vm64, %v63, %v62
  %vm66 = vcmask 1043459
  %v67 = vsel %vm66, %v63, %v65
  %vm68 = vcmask 1045509
  %v69 = vsel %vm68, %v63, %v67
  %vm70 = vcmask 1047559
  %v71 = vsel %vm70, %v63, %v69
  %73 = vst [vmem:[%s2] sm:$0x3] %v71
  %v77 = vunpack.c.l.s4 1983009808
  %v78 = vunpack.c.0.s8 %v77
  %v79 = vlaneseq
  %v80 = vshrl.u32 %v79, 7
  %v81 = vsub.s32 %v78, %v80
  %v82 = vrot.slane %v32, %v81
  %v84 = vunpack.c.l.s4 1983009808
  %v85 = vunpack.c.0.s8 %v84
  %v86 = vlaneseq
  %v87 = vshrl.u32 %v86, 7
  %v88 = vsub.s32 %v85, %v87
  %v89 = vrot.slane %v38, %v88
  %v90 = vsel %vm59, %v82, %v82
  %v91 = vsel %vm61, %v82, %v90
  %v92 = vrot.slane %v89, 7
  %v93 = vsel %vm64, %v92, %v91
  %v94 = vsel %vm66, %v92, %v93
  %v95 = vsel %vm68, %v92, %v94
  %v96 = vsel %vm70, %v92, %v95
  %98 = vst [vmem:[%s2 + $0x2] sm:$0x3] %v96
  %v102 = vunpack.c.l.s4 1983009808
  %v103 = vunpack.c.0.s8 %v102
  %v104 = vlaneseq
  %v105 = vshrl.u32 %v104, 7
  %v106 = vsub.s32 %v103, %v105
  %v107 = vrot.slane %v39, %v106
  %v109 = vunpack.c.l.s4 1983009808
  %v110 = vunpack.c.0.s8 %v109
  %v111 = vlaneseq
  %v112 = vshrl.u32 %v111, 7
  %v113 = vsub.s32 %v110, %v112
  %v114 = vrot.slane %v40, %v113
  %v115 = vsel %vm59, %v107, %v107
  %v116 = vsel %vm61, %v107, %v115
  %v117 = vrot.slane %v114, 7
  %v118 = vsel %vm64, %v117, %v116
  %v119 = vsel %vm66, %v117, %v118
  %v120 = vsel %vm68, %v117, %v119
  %v121 = vsel %vm70, %v117, %v120
  %123 = vst [vmem:[%s2 + $0x4] sm:$0x3] %v121
  %v127 = vunpack.c.l.s4 1983009808
  %v128 = vunpack.c.0.s8 %v127
  %v129 = vlaneseq
  %v130 = vshrl.u32 %v129, 7
  %v131 = vsub.s32 %v128, %v130
  %v132 = vrot.slane %v41, %v131
  %v134 = vunpack.c.l.s4 1983009808
  %v135 = vunpack.c.0.s8 %v134
  %v136 = vlaneseq
  %v137 = vshrl.u32 %v136, 7
  %v138 = vsub.s32 %v135, %v137
  %v139 = vrot.slane %v42, %v138
  %v140 = vsel %vm59, %v132, %v132
  %v141 = vsel %vm61, %v132, %v140
  %v142 = vrot.slane %v139, 7
  %v143 = vsel %vm64, %v142, %v141
  %v144 = vsel %vm66, %v142, %v143
  %v145 = vsel %vm68, %v142, %v144
  %v146 = vsel %vm70, %v142, %v145
  %148 = vst [vmem:[%s2 + $0x6] sm:$0x3] %v146
  %v149 = vand.u32 2147483647, %v41
  %v150 = vand.u32 2147483647, %v42
  %v154 = vunpack.c.l.s4 1983009808
  %v155 = vunpack.c.0.s8 %v154
  %v156 = vlaneseq
  %v157 = vshrl.u32 %v156, 7
  %v158 = vsub.s32 %v155, %v157
  %v159 = vrot.slane %v149, %v158
  %v161 = vunpack.c.l.s4 1983009808
  %v162 = vunpack.c.0.s8 %v161
  %v163 = vlaneseq
  %v164 = vshrl.u32 %v163, 7
  %v165 = vsub.s32 %v162, %v164
  %v166 = vrot.slane %v150, %v165
  %v167 = vsel %vm59, %v159, %v159
  %v168 = vsel %vm61, %v159, %v167
  %v169 = vrot.slane %v166, 7
  %v170 = vsel %vm64, %v169, %v168
  %v171 = vsel %vm66, %v169, %v170
  %v172 = vsel %vm68, %v169, %v171
  %v173 = vsel %vm70, %v169, %v172
  %175 = vst [vmem:[%s2 + $0x8] sm:$0x3] %v173
  // Predicated region
  $region10: #{drcn_forward.27} parent=0 // pred_check
    _
  $region11: #{drcn_forward.27} parent=0 // pred_check_branch
    %177 = sbr.rel (0) target = $region13
  $region12: #{drcn_forward.27} parent=0 // pred_region
    _
  $region13: #{drcn_forward.27} parent=0 // pred_fallthru
    _
  // Predicated region
  $region14: #{drcn_forward.27} parent=0 // pred_check
    _
  $region15: #{drcn_forward.27} parent=0 // pred_check_branch
    %179 = sbr.rel (0) target = $region17
  $region16: #{drcn_forward.27} parent=0 // pred_region
    _
  $region17: #{drcn_forward.27} parent=0 // pred_fallthru
    _

// kernel: drcn_forward.22
$region0: #{drcn_forward.22}
  #allocation0 [shape = 'u32[]', space=smem, size = 0x4, offset = 0x4, fixed_abs, tag = 'smem constant byte address 0x4 - core index']
  #allocation1 [shape = 'u32[144,128]{1,0:T(1,128)}', space=vmem, size = 0x12000, scoped, tag = 'internal scratch']
  %s0 = inlined_call_operand.vmem [shape: bf16[32,256], index: 0, kind: input, shape index: {}]
  %s1 = inlined_call_operand.vmem [shape: bf16[256,128], index: 1, kind: input, shape index: {}]
  %s2 = inlined_call_operand.vmem [shape: f32[1,128], index: 2, kind: input, shape index: {}]
  %s3 = inlined_call_operand.vmem [shape: f32[32,128], index: 3, kind: output, shape index: {}]
  %s4 = sld [smem:[#allocation0]]
  $region22: #{drcn_forward.22} parent=0
    _
  %s6 = ssub.s32 1, %s4
  %s7 = scalar_select 0, %s6, %s4
  // Predicated region
  $region2: #{drcn_forward.22} parent=0 // pred_check
    _
  $region3: #{drcn_forward.22} parent=0 // pred_check_branch
    %9 = sbr.rel (0) target = $region5
  $region4: #{drcn_forward.22} parent=0 // pred_region
    _
  $region5: #{drcn_forward.22} parent=0 // pred_fallthru
    _
  // Predicated region
  $region6: #{drcn_forward.22} parent=0 // pred_check
    _
  $region7: #{drcn_forward.22} parent=0 // pred_check_branch
    %11 = sbr.rel (0) target = $region9
  $region8: #{drcn_forward.22} parent=0 // pred_region
    _
  $region9: #{drcn_forward.22} parent=0 // pred_fallthru
    _
  // Predicated region
  $region10: #{drcn_forward.22} parent=0 // pred_check
    _
  $region11: #{drcn_forward.22} parent=0 // pred_check_branch
    %13 = sbr.rel (0) target = $region13
  $region12: #{drcn_forward.22} parent=0 // pred_region
    _
  $region13: #{drcn_forward.22} parent=0 // pred_fallthru
    _
  %v15 = vld [vmem:[%s0] sm:$0xff]
  %v16 = vld [vmem:[%s0 + $0x8] sm:$0xff]
  %v17 = vld [vmem:[%s0 + $0x10] sm:$0xff]
  %v18 = vld [vmem:[%s0 + $0x18] sm:$0xff]
  %v19 = vld [vmem:[%s1] sm:$0xf]
  %v20 = vld [vmem:[%s1 + $0x4] sm:$0xf]
  %v21 = vld [vmem:[%s1 + $0x8] sm:$0xf]
  %v22 = vld [vmem:[%s1 + $0xc] sm:$0xf]
  %v23 = vld [vmem:[%s1 + $0x10] sm:$0xf]
  %v24 = vld [vmem:[%s1 + $0x14] sm:$0xf]
  %v25 = vld [vmem:[%s1 + $0x18] sm:$0xf]
  %v26 = vld [vmem:[%s1 + $0x1c] sm:$0xf]
  %v27 = vld [vmem:[%s1 + $0x20] sm:$0xf]
  %v28 = vld [vmem:[%s1 + $0x24] sm:$0xf]
  %v29 = vld [vmem:[%s1 + $0x28] sm:$0xf]
  %v30 = vld [vmem:[%s1 + $0x2c] sm:$0xf]
  %v31 = vld [vmem:[%s1 + $0x30] sm:$0xf]
  %v32 = vld [vmem:[%s1 + $0x34] sm:$0xf]
  %v33 = vld [vmem:[%s1 + $0x38] sm:$0xf]
  %v34 = vld [vmem:[%s1 + $0x3c] sm:$0xf]
  %v35 = vld [vmem:[%s1 + $0x40] sm:$0xf]
  %v36 = vld [vmem:[%s1 + $0x44] sm:$0xf]
  %v37 = vld [vmem:[%s1 + $0x48] sm:$0xf]
  %v38 = vld [vmem:[%s1 + $0x4c] sm:$0xf]
  %v39 = vld [vmem:[%s1 + $0x50] sm:$0xf]
  %v40 = vld [vmem:[%s1 + $0x54] sm:$0xf]
  %v41 = vld [vmem:[%s1 + $0x58] sm:$0xf]
  %v42 = vld [vmem:[%s1 + $0x5c] sm:$0xf]
  %v43 = vld [vmem:[%s1 + $0x60] sm:$0xf]
  %v44 = vld [vmem:[%s1 + $0x64] sm:$0xf]
  %v45 = vld [vmem:[%s1 + $0x68] sm:$0xf]
  %v46 = vld [vmem:[%s1 + $0x6c] sm:$0xf]
  %v47 = vld [vmem:[%s1 + $0x70] sm:$0xf]
  %v48 = vld [vmem:[%s1 + $0x74] sm:$0xf]
  %v49 = vld [vmem:[%s1 + $0x78] sm:$0xf]
  %v50 = vld [vmem:[%s1 + $0x7c] sm:$0xf]
  %v51 = vld [vmem:[%s2] sm:$0x1]
  %v53 = vlaneseq
  %v54 = vshrl.u32 %v53, 7
  %v55 = vsub.s32 0, %v54
  %v56 = vrot.slane %v51, %v55
  %v62 = vunpack.c.l.b16 %v15
  %v63 = vunpack.c.h.b16 %v15
  %v64 = vunpack.c.l.b16 %v16
  %v65 = vunpack.c.h.b16 %v16
  %v66 = vunpack.c.l.b16 %v17
  %v67 = vunpack.c.h.b16 %v17
  %v68 = vunpack.c.l.b16 %v18
  %v69 = vunpack.c.h.b16 %v18
  %v70 = vpack.c.b16 %v64, %v62
  %v71 = vpack.c.b16 %v65, %v63
  %v72 = vpack.c.b16 %v68, %v66
  %v73 = vpack.c.b16 %v69, %v67
  %v110 = vunpack.c.l.b16 %v19
  %v111 = vunpack.c.l.b16 %v20
  %v112 = vunpack.c.l.b16 %v21
  %v113 = vunpack.c.l.b16 %v22
  %v114 = vunpack.c.l.b16 %v23
  %v115 = vunpack.c.l.b16 %v24
  %v116 = vunpack.c.l.b16 %v25
  %v117 = vunpack.c.l.b16 %v26
  %v118 = vunpack.c.l.b16 %v27
  %v119 = vunpack.c.l.b16 %v28
  %v120 = vunpack.c.l.b16 %v29
  %v121 = vunpack.c.l.b16 %v30
  %v122 = vunpack.c.l.b16 %v31
  %v123 = vunpack.c.l.b16 %v32
  %v124 = vunpack.c.l.b16 %v33
  %v125 = vunpack.c.l.b16 %v34
  %v126 = vunpack.c.l.b16 %v35
  %v127 = vunpack.c.l.b16 %v36
  %v128 = vunpack.c.l.b16 %v37
  %v129 = vunpack.c.l.b16 %v38
  %v130 = vunpack.c.l.b16 %v39
  %v131 = vunpack.c.l.b16 %v40
  %v132 = vunpack.c.l.b16 %v41
  %v133 = vunpack.c.l.b16 %v42
  %v134 = vunpack.c.l.b16 %v43
  %v135 = vunpack.c.l.b16 %v44
  %v136 = vunpack.c.l.b16 %v45
  %v137 = vunpack.c.l.b16 %v46
  %v138 = vunpack.c.l.b16 %v47
  %v139 = vunpack.c.l.b16 %v48
  %v140 = vunpack.c.l.b16 %v49
  %v141 = vunpack.c.l.b16 %v50
  %v142 = vpack.c.b16 %v111, %v110
  %v143 = vpack.c.b16 %v113, %v112
  %v144 = vpack.c.b16 %v115, %v114
  %v145 = vpack.c.b16 %v117, %v116
  %v146 = vpack.c.b16 %v119, %v118
  %v147 = vpack.c.b16 %v121, %v120
  %v148 = vpack.c.b16 %v123, %v122
  %v149 = vpack.c.b16 %v125, %v124
  %v150 = vpack.c.b16 %v127, %v126
  %v151 = vpack.c.b16 %v129, %v128
  %v152 = vpack.c.b16 %v131, %v130
  %v153 = vpack.c.b16 %v133, %v132
  %v154 = vpack.c.b16 %v135, %v134
  %v155 = vpack.c.b16 %v137, %v136
  %v156 = vpack.c.b16 %v139, %v138
  %v157 = vpack.c.b16 %v141, %v140
  %174 = vmatprep.subr.bf16.mxu0 0
  %175 = vmatpush1.bf16.msra.mxu0 %v142
  %176 = vmatprep.subr.bf16.mxu0 0
  %177 = vmatpush1.bf16.msra.mxu0 %v143
  %178 = vmatprep.subr.bf16.mxu0 0
  %179 = vmatpush1.bf16.msra.mxu0 %v144
  %180 = vmatprep.subr.bf16.mxu0 0
  %181 = vmatpush1.bf16.msra.mxu0 %v145
  %182 = vmatprep.subr.bf16.mxu0 0
  %183 = vmatpush1.bf16.msra.mxu0 %v146
  %184 = vmatprep.subr.bf16.mxu0 0
  %185 = vmatpush1.bf16.msra.mxu0 %v147
  %186 = vmatprep.subr.bf16.mxu0 0
  %187 = vmatpush1.bf16.msra.mxu0 %v148
  %188 = vmatprep.subr.bf16.mxu0 0
  %189 = vmatpush1.bf16.msra.mxu0 %v149
  %190 = vmatprep.subr.bf16.mxu0 0
  %191 = vmatpush1.bf16.msra.mxu0 %v150
  %192 = vmatprep.subr.bf16.mxu0 0
  %193 = vmatpush1.bf16.msra.mxu0 %v151
  %194 = vmatprep.subr.bf16.mxu0 0
  %195 = vmatpush1.bf16.msra.mxu0 %v152
  %196 = vmatprep.subr.bf16.mxu0 0
  %197 = vmatpush1.bf16.msra.mxu0 %v153
  %198 = vmatprep.subr.bf16.mxu0 0
  %199 = vmatpush1.bf16.msra.mxu0 %v154
  %200 = vmatprep.subr.bf16.mxu0 0
  %201 = vmatpush1.bf16.msra.mxu0 %v155
  %202 = vmatprep.subr.bf16.mxu0 0
  %203 = vmatpush1.bf16.msra.mxu0 %v156
  %204 = vmatprep.subr.bf16.mxu0 0
  %205 = vmatpush1.bf16.msra.mxu0 %v157
  %206 = vmatprep.mubr.bf16.mxu0 %v71
  %207 = vmatmul.mubr.bf16.gmra.mrb[0].mxu0 %v70
  %v208 = vpop.f32.mrb[0].mxu0
  %v209 = vadd.f32 %v56, %v208
  %v210 = vpop.f32.mrb[0].mxu0
  %v211 = vpop.f32.mrb[0].mxu0
  %v212 = vadd.f32 %v56, %v211
  %v213 = vpop.f32.mrb[0].mxu0
  %214 = vmatprep.mubr.bf16.mxu0 %v73
  %215 = vmatmul.mubr.bf16.gmra.mrb[0].mxu0 %v72
  %v216 = vpop.f32.mrb[0].mxu0
  %v217 = vadd.f32 %v56, %v216
  %v218 = vpop.f32.mrb[0].mxu0
  %v219 = vpop.f32.mrb[0].mxu0
  %v220 = vadd.f32 %v56, %v219
  %v221 = vpop.f32.mrb[0].mxu0
  %222 = vdwg.mxu0
  %v223 = vmax.f32 %v209, 0.0
  %v224 = vmax.f32 %v212, 0.0
  %v225 = vmax.f32 %v217, 0.0
  %v226 = vmax.f32 %v220, 0.0
  %227 = vst [vmem:[%s3] sm:$0xff] %v223
  %228 = vst [vmem:[%s3 + $0x8] sm:$0xff] %v224
  %229 = vst [vmem:[%s3 + $0x10] sm:$0xff] %v225
  %230 = vst [vmem:[%s3 + $0x18] sm:$0xff] %v226
  // Predicated region
  $region14: #{drcn_forward.22} parent=0 // pred_check
    _
  $region15: #{drcn_forward.22} parent=0 // pred_check_branch
    %232 = sbr.rel (0) target = $region17
  $region16: #{drcn_forward.22} parent=0 // pred_region
    _
  $region17: #{drcn_forward.22} parent=0 // pred_fallthru
    _
  // Predicated region
  $region18: #{drcn_forward.22} parent=0 // pred_check
    _
  $region19: #{drcn_forward.22} parent=0 // pred_check_branch
    %234 = sbr.rel (0) target = $region21
  $region20: #{drcn_forward.22} parent=0 // pred_region
    _
  $region21: #{drcn_forward.22} parent=0 // pred_fallthru
    _

// kernel: drcn_forward.29
$region0: #{drcn_forward.29}
  #allocation0 [shape = 'u32[]', space=smem, size = 0x4, offset = 0x4, fixed_abs, tag = 'smem constant byte address 0x4 - core index']
  #allocation1 [shape = 'u32[144,128]{1,0:T(1,128)}', space=vmem, size = 0x12000, scoped, tag = 'internal scratch']
  %s0 = inlined_call_operand.vmem [shape: bf16[2,320], index: 0, kind: input, shape index: {}]
  %s1 = inlined_call_operand.vmem [shape: bf16[320,3], index: 1, kind: input, shape index: {}]
  %s2 = inlined_call_operand.vmem [shape: f32[1,3], index: 2, kind: input, shape index: {}]
  %s3 = inlined_call_operand.hbm [shape: f32[2,3], index: 3, kind: output, shape index: {}]
  %s4 = sld [smem:[#allocation0]]
  $region22: #{drcn_forward.29} parent=0
    _
  %s6 = ssub.s32 1, %s4
  %s7 = scalar_select 0, %s6, %s4
  $region1: #{drcn_forward.29} parent=0
    #allocation2 [shape = 'u8[1024]{0}', space=vmem, size = 0x400, scoped, tag = 'output window, operand 0, single buffered']
    #allocation3 [shape = 's32[1]{0}', space=sflag, size = 0x4, scoped, tag = 'scoped memory for drcn_forward.29']
    %8 = vsyncpa [#allocation3], 0
    // Predicated region
    $region2: #{drcn_forward.29} parent=1 // pred_check
      _
    $region3: #{drcn_forward.29} parent=1 // pred_check_branch
      %10 = sbr.rel (0) target = $region5
    $region4: #{drcn_forward.29} parent=1 // pred_region
      _
    $region5: #{drcn_forward.29} parent=1 // pred_fallthru
      _
    // Predicated region
    $region6: #{drcn_forward.29} parent=1 // pred_check
      _
    $region7: #{drcn_forward.29} parent=1 // pred_check_branch
      %12 = sbr.rel (0) target = $region9
    $region8: #{drcn_forward.29} parent=1 // pred_region
      _
    $region9: #{drcn_forward.29} parent=1 // pred_fallthru
      _
    // Predicated region
    $region10: #{drcn_forward.29} parent=1 // pred_check
      _
    $region11: #{drcn_forward.29} parent=1 // pred_check_branch
      %14 = sbr.rel (0) target = $region13
    $region12: #{drcn_forward.29} parent=1 // pred_region
      _
    $region13: #{drcn_forward.29} parent=1 // pred_fallthru
      _
    %v16 = vld [vmem:[%s0] sm:$0x7]
    %v17 = vld [vmem:[%s1] sm:$0xf]
    %v18 = vld [vmem:[%s1 + $0x4] sm:$0xf]
    %v19 = vld [vmem:[%s1 + $0x8] sm:$0xf]
    %v20 = vld [vmem:[%s1 + $0xc] sm:$0xf]
    %v21 = vld [vmem:[%s1 + $0x10] sm:$0xf]
    %v22 = vld [vmem:[%s1 + $0x14] sm:$0xf]
    %v23 = vld [vmem:[%s1 + $0x18] sm:$0xf]
    %v24 = vld [vmem:[%s1 + $0x1c] sm:$0xf]
    %v25 = vld [vmem:[%s1 + $0x20] sm:$0xf]
    %v26 = vld [vmem:[%s1 + $0x24] sm:$0xf]
    %v27 = vld [vmem:[%s1 + $0x28] sm:$0xf]
    %v28 = vld [vmem:[%s1 + $0x2c] sm:$0xf]
    %v29 = vld [vmem:[%s1 + $0x30] sm:$0xf]
    %v30 = vld [vmem:[%s1 + $0x34] sm:$0xf]
    %v31 = vld [vmem:[%s1 + $0x38] sm:$0xf]
    %v32 = vld [vmem:[%s1 + $0x3c] sm:$0xf]
    %v33 = vld [vmem:[%s1 + $0x40] sm:$0xf]
    %v34 = vld [vmem:[%s1 + $0x44] sm:$0xf]
    %v35 = vld [vmem:[%s1 + $0x48] sm:$0xf]
    %v36 = vld [vmem:[%s1 + $0x4c] sm:$0xf]
    %v37 = vld [vmem:[%s1 + $0x50] sm:$0xf]
    %v38 = vld [vmem:[%s1 + $0x54] sm:$0xf]
    %v39 = vld [vmem:[%s1 + $0x58] sm:$0xf]
    %v40 = vld [vmem:[%s1 + $0x5c] sm:$0xf]
    %v41 = vld [vmem:[%s1 + $0x60] sm:$0xf]
    %v42 = vld [vmem:[%s1 + $0x64] sm:$0xf]
    %v43 = vld [vmem:[%s1 + $0x68] sm:$0xf]
    %v44 = vld [vmem:[%s1 + $0x6c] sm:$0xf]
    %v45 = vld [vmem:[%s1 + $0x70] sm:$0xf]
    %v46 = vld [vmem:[%s1 + $0x74] sm:$0xf]
    %v47 = vld [vmem:[%s1 + $0x78] sm:$0xf]
    %v48 = vld [vmem:[%s1 + $0x7c] sm:$0xf]
    %v49 = vld [vmem:[%s1 + $0x80] sm:$0xf]
    %v50 = vld [vmem:[%s1 + $0x84] sm:$0xf]
    %v51 = vld [vmem:[%s1 + $0x88] sm:$0xf]
    %v52 = vld [vmem:[%s1 + $0x8c] sm:$0xf]
    %v53 = vld [vmem:[%s1 + $0x90] sm:$0xf]
    %v54 = vld [vmem:[%s1 + $0x94] sm:$0xf]
    %v55 = vld [vmem:[%s1 + $0x98] sm:$0xf]
    %v56 = vld [vmem:[%s1 + $0x9c] sm:$0xf]
    %v57 = vld [vmem:[%s2] sm:$0x1]
    %v59 = vlaneseq
    %v60 = vshrl.u32 %v59, 7
    %v61 = vsub.s32 0, %v60
    %v62 = vrot.slane %v57, %v61
    %v66 = vunpack.c.l.s4 1966171168
    %v67 = vunpack.c.0.s8 %v66
    %v68 = vlaneseq
    %v69 = vshrl.u32 %v68, 7
    %v70 = vsub.s32 %v67, %v69
    %v71 = vrot.slane %v16, %v70
    %v72 = vcombine.high %v71, %v71
    %v74 = vunpack.c.l.s4 1966171168
    %v75 = vunpack.c.0.s8 %v74
    %v76 = vlaneseq
    %v77 = vshrl.u32 %v76, 7
    %v78 = vsub.s32 %v75, %v77
    %v79 = vrot.slane %v71, %v78
    %v81 = vunpack.c.l.s4 1966171168
    %v82 = vunpack.c.0.s8 %v81
    %v83 = vlaneseq
    %v84 = vshrl.u32 %v83, 7
    %v85 = vsub.s32 %v82, %v84
    %v86 = vrot.slane %v72, %v85
    %v87 = vcombine.high %v79, %v79
    %v130 = vunpack.c.l.b16 %v17
    %v131 = vunpack.c.l.b16 %v18
    %v132 = vunpack.c.l.b16 %v19
    %v133 = vunpack.c.l.b16 %v20
    %v134 = vunpack.c.l.b16 %v21
    %v135 = vunpack.c.l.b16 %v22
    %v136 = vunpack.c.l.b16 %v23
    %v137 = vunpack.c.l.b16 %v24
    %v138 = vunpack.c.l.b16 %v25
    %v139 = vunpack.c.l.b16 %v26
    %v140 = vunpack.c.l.b16 %v27
    %v141 = vunpack.c.l.b16 %v28
    %v142 = vunpack.c.l.b16 %v29
    %v143 = vunpack.c.l.b16 %v30
    %v144 = vunpack.c.l.b16 %v31
    %v145 = vunpack.c.l.b16 %v32
    %v146 = vunpack.c.l.b16 %v33
    %v147 = vunpack.c.l.b16 %v34
    %v148 = vunpack.c.l.b16 %v35
    %v149 = vunpack.c.l.b16 %v36
    %v150 = vunpack.c.l.b16 %v37
    %v151 = vunpack.c.l.b16 %v38
    %v152 = vunpack.c.l.b16 %v39
    %v153 = vunpack.c.l.b16 %v40
    %v154 = vunpack.c.l.b16 %v41
    %v155 = vunpack.c.l.b16 %v42
    %v156 = vunpack.c.l.b16 %v43
    %v157 = vunpack.c.l.b16 %v44
    %v158 = vunpack.c.l.b16 %v45
    %v159 = vunpack.c.l.b16 %v46
    %v160 = vunpack.c.l.b16 %v47
    %v161 = vunpack.c.l.b16 %v48
    %v162 = vunpack.c.l.b16 %v49
    %v163 = vunpack.c.l.b16 %v50
    %v164 = vunpack.c.l.b16 %v51
    %v165 = vunpack.c.l.b16 %v52
    %v166 = vunpack.c.l.b16 %v53
    %v167 = vunpack.c.l.b16 %v54
    %v168 = vunpack.c.l.b16 %v55
    %v169 = vunpack.c.l.b16 %v56
    %v170 = vpack.c.b16 %v131, %v130
    %v171 = vpack.c.b16 %v133, %v132
    %v172 = vpack.c.b16 %v135, %v134
    %v173 = vpack.c.b16 %v137, %v136
    %v174 = vpack.c.b16 %v139, %v138
    %v175 = vpack.c.b16 %v141, %v140
    %v176 = vpack.c.b16 %v143, %v142
    %v177 = vpack.c.b16 %v145, %v144
    %v178 = vpack.c.b16 %v147, %v146
    %v179 = vpack.c.b16 %v149, %v148
    %v180 = vpack.c.b16 %v151, %v150
    %v181 = vpack.c.b16 %v153, %v152
    %v182 = vpack.c.b16 %v155, %v154
    %v183 = vpack.c.b16 %v157, %v156
    %v184 = vpack.c.b16 %v159, %v158
    %v185 = vpack.c.b16 %v161, %v160
    %v186 = vpack.c.b16 %v163, %v162
    %v187 = vpack.c.b16 %v165, %v164
    %v188 = vpack.c.b16 %v167, %v166
    %v189 = vpack.c.b16 %v169, %v168
    %vm210 = vcmask 523264
    %v212 = vsel %vm210, %v87, 0
    %214 = vmatprep.subr.bf16.mxu0 0
    %215 = vmatpush1.bf16.msra.mxu0 %v170
    %216 = vmatprep.subr.bf16.mxu0 0
    %217 = vmatpush1.bf16.msra.mxu0 %v171
    %218 = vmatprep.subr.bf16.mxu0 0
    %219 = vmatpush1.bf16.msra.mxu0 %v172
    %220 = vmatprep.subr.bf16.mxu0 0
    %221 = vmatpush1.bf16.msra.mxu0 %v173
    %222 = vmatprep.subr.bf16.mxu0 0
    %223 = vmatpush1.bf16.msra.mxu0 %v174
    %224 = vmatprep.subr.bf16.mxu0 0
    %225 = vmatpush1.bf16.msra.mxu0 %v175
    %226 = vmatprep.subr.bf16.mxu0 0
    %227 = vmatpush1.bf16.msra.mxu0 %v176
    %228 = vmatprep.subr.bf16.mxu0 0
    %229 = vmatpush1.bf16.msra.mxu0 %v177
    %230 = vmatprep.subr.bf16.mxu0 0
    %231 = vmatpush1.bf16.msra.mxu0 %v178
    %232 = vmatprep.subr.bf16.mxu0 0
    %233 = vmatpush1.bf16.msra.mxu0 %v179
    %234 = vmatprep.subr.bf16.mxu0 0
    %235 = vmatpush1.bf16.msra.mxu0 %v180
    %236 = vmatprep.subr.bf16.mxu0 0
    %237 = vmatpush1.bf16.msra.mxu0 %v181
    %238 = vmatprep.subr.bf16.mxu0 0
    %239 = vmatpush1.bf16.msra.mxu0 %v182
    %240 = vmatprep.subr.bf16.mxu0 0
    %241 = vmatpush1.bf16.msra.mxu0 %v183
    %242 = vmatprep.subr.bf16.mxu0 0
    %243 = vmatpush1.bf16.msra.mxu0 %v184
    %244 = vmatprep.subr.bf16.mxu0 0
    %245 = vmatpush1.bf16.msra.mxu0 %v185
    %246 = vmatprep.mubr.bf16.mxu0 %v86
    %247 = vmatmul.mubr.bf16.gmra.mrb[0].mxu0 %v79
    %v248 = vpop.f32.mrb[0].mxu0
    %v249 = vadd.f32 %v62, %v248
    %v250 = vpop.f32.mrb[0].mxu0
    %v251 = vpop.f32.mrb[0].mxu0
    %v252 = vpop.f32.mrb[0].mxu0
    %253 = vdwg.mxu0
    %254 = vmatprep.subr.bf16.mxu0 0
    %255 = vmatpush1.bf16.msra.mxu0 %v186
    %256 = vmatprep.subr.bf16.mxu0 0
    %257 = vmatpush1.bf16.msra.mxu0 %v187
    %258 = vmatprep.subr.bf16.mxu0 0
    %259 = vmatpush1.bf16.msra.mxu0 %v188
    %260 = vmatprep.subr.bf16.mxu0 0
    %261 = vmatpush1.bf16.msra.mxu0 %v189
    %262 = vmatprep.subr.bf16.mxu0 0
    %263 = vmatpush1.bf16.msra.mxu0 0
    %264 = vmatprep.subr.bf16.mxu0 0
    %265 = vmatpush1.bf16.msra.mxu0 0
    %266 = vmatprep.subr.bf16.mxu0 0
    %267 = vmatpush1.bf16.msra.mxu0 0
    %268 = vmatprep.subr.bf16.mxu0 0
    %269 = vmatpush1.bf16.msra.mxu0 0
    %270 = vmatprep.subr.bf16.mxu0 0
    %271 = vmatpush1.bf16.msra.mxu0 0
    %272 = vmatprep.subr.bf16.mxu0 0
    %273 = vmatpush1.bf16.msra.mxu0 0
    %274 = vmatprep.subr.bf16.mxu0 0
    %275 = vmatpush1.bf16.msra.mxu0 0
    %276 = vmatprep.subr.bf16.mxu0 0
    %277 = vmatpush1.bf16.msra.mxu0 0
    %278 = vmatprep.subr.bf16.mxu0 0
    %279 = vmatpush1.bf16.msra.mxu0 0
    %280 = vmatprep.subr.bf16.mxu0 0
    %281 = vmatpush1.bf16.msra.mxu0 0
    %282 = vmatprep.subr.bf16.mxu0 0
    %283 = vmatpush1.bf16.msra.mxu0 0
    %284 = vmatprep.subr.bf16.mxu0 0
    %285 = vmatpush1.bf16.msra.mxu0 0
    %286 = vmatprep.mubr.bf16.mxu0 0
    %287 = vmatmul.mubr.bf16.gmra.mrb[0].mxu0 %v212
    %v288 = vpop.f32.mrb[0].mxu0
    %v289 = vadd.f32 %v249, %v288
    %v290 = vpop.f32.mrb[0].mxu0
    %v291 = vpop.f32.mrb[0].mxu0
    %v292 = vpop.f32.mrb[0].mxu0
    %293 = vdwg.mxu0
    %v294 = vxor.u32 %v289, 2147483648
    %v295 = vmul.f32 %v294, 1.442695
    %v296 = vpow.pop %v295
    %v297 = vadd.f32 %v296, 1.0
    %v298 = vrcp.pop %v297
    %v299 = vmul.f32 1.0, %v298
    %vm300 = vcmask 17408
    %301 = vst.msk [vmem:[#allocation2] sm:$0x3] %vm300, %v299
    // Predicated region
    $region14: #{drcn_forward.29} parent=1 // pred_check
      _
    $region15: #{drcn_forward.29} parent=1 // pred_check_branch
      %303 = sbr.rel (0) target = $region17
    $region16: #{drcn_forward.29} parent=1 // pred_region
      %s305 = ssub.s32 32, 32
      %306 = vsyncadd [#allocation3], %s305
      %s308 = sshll.u32 [#allocation2], 4
      %s309 = int_to_ptr.vmem [resolvable:$true] %s308
      %311 = dma.vmem_to_hbm [thread:$0]  %s309, 32, %s3, [#allocation3]
    $region17: #{drcn_forward.29} parent=1 // pred_fallthru
      _
    // Predicated region
    $region18: #{drcn_forward.29} parent=1 // pred_check
      _
    $region19: #{drcn_forward.29} parent=1 // pred_check_branch
      %313 = sbr.rel (0) target = $region21
    $region20: #{drcn_forward.29} parent=1 // pred_region
      %314 = dma.done [#allocation3], 32
    $region21: #{drcn_forward.29} parent=1 // pred_fallthru
      _
    %315 = vsyncpa [#allocation3], 1

// kernel: drcn_forward.24
$region0: #{drcn_forward.24}
  #allocation0 [shape = 'u32[]', space=smem, size = 0x4, offset = 0x4, fixed_abs, tag = 'smem constant byte address 0x4 - core index']
  #allocation1 [shape = 'u32[144,128]{1,0:T(1,128)}', space=vmem, size = 0x12000, scoped, tag = 'internal scratch']
  %s0 = inlined_call_operand.vmem [shape: f32[8,4,256], index: 0, kind: input, shape index: {}]
  %s1 = inlined_call_operand.vmem [shape: bf16[32,128], index: 1, kind: input, shape index: {}]
  %s2 = inlined_call_operand.vmem [shape: bf16[32,128], index: 2, kind: input, shape index: {}]
  %s3 = inlined_call_operand.vmem [shape: f32[2,4,32], index: 3, kind: input, shape index: {}]
  %s4 = inlined_call_operand.vmem [shape: f32[2,4,32], index: 4, kind: input, shape index: {}]
  %s5 = inlined_call_operand.vmem [shape: f32[8,4,32], index: 5, kind: output, shape index: {0}]
  %s6 = inlined_call_operand.vmem [shape: f32[8,4,32], index: 6, kind: output, shape index: {1}]
  %s7 = inlined_call_operand.hbm [shape: f32[2,4,32], index: 7, kind: output, shape index: {2}]
  %s8 = inlined_call_operand.hbm [shape: f32[2,4,32], index: 8, kind: output, shape index: {3}]
  %9 = xla_tuple %s5, %s6, %s7, %s8
  %s10 = sld [smem:[#allocation0]]
  $region54: #{drcn_forward.24} parent=0
    _
  %s12 = ssub.s32 1, %s10
  %s13 = scalar_select 0, %s12, %s10
  $region1: #{drcn_forward.24} parent=0
    #allocation2 [shape = 'u8[4096]{0}', space=vmem, size = 0x1000, scoped, tag = 'output window, operand 2, single buffered']
    #allocation3 [shape = 's32[1]{0}', space=sflag, size = 0x4, scoped, tag = 'scoped memory for drcn_forward.24']
    #allocation4 [shape = 'u8[4096]{0}', space=vmem, size = 0x1000, scoped, tag = 'output window, operand 3, single buffered']
    #allocation5 [shape = 's32[1]{0}', space=sflag, size = 0x4, scoped, tag = 'scoped memory for drcn_forward.24']
    %14 = vsyncpa [#allocation3], 0
    %15 = vsyncpa [#allocation5], 0
    // Predicated region
    $region2: #{drcn_forward.24} parent=1 // pred_check
      _
    $region3: #{drcn_forward.24} parent=1 // pred_check_branch
      %17 = sbr.rel (0) target = $region5
    $region4: #{drcn_forward.24} parent=1 // pred_region
      _
    $region5: #{drcn_forward.24} parent=1 // pred_fallthru
      _
    // Predicated region
    $region6: #{drcn_forward.24} parent=1 // pred_check
      _
    $region7: #{drcn_forward.24} parent=1 // pred_check_branch
      %19 = sbr.rel (0) target = $region9
    $region8: #{drcn_forward.24} parent=1 // pred_region
      _
    $region9: #{drcn_forward.24} parent=1 // pred_fallthru
      _
    // Predicated region
    $region10: #{drcn_forward.24} parent=1 // pred_check
      _
    $region11: #{drcn_forward.24} parent=1 // pred_check_branch
      %21 = sbr.rel (0) target = $region13
    $region12: #{drcn_forward.24} parent=1 // pred_region
      _
    $region13: #{drcn_forward.24} parent=1 // pred_fallthru
      _
    // Predicated region
    $region14: #{drcn_forward.24} parent=1 // pred_check
      _
    $region15: #{drcn_forward.24} parent=1 // pred_check_branch
      %23 = sbr.rel (0) target = $region17
    $region16: #{drcn_forward.24} parent=1 // pred_region
      _
    $region17: #{drcn_forward.24} parent=1 // pred_fallthru
      _
    // Predicated region
    $region18: #{drcn_forward.24} parent=1 // pred_check
      _
    $region19: #{drcn_forward.24} parent=1 // pred_check_branch
      %25 = sbr.rel (0) target = $region21
    $region20: #{drcn_forward.24} parent=1 // pred_region
      _
    $region21: #{drcn_forward.24} parent=1 // pred_fallthru
      _
    %v27 = vld [vmem:[%s1] sm:$0xf]
    %v28 = vld [vmem:[%s1 + $0x4] sm:$0xf]
    %v29 = vld [vmem:[%s1 + $0x8] sm:$0xf]
    %v30 = vld [vmem:[%s1 + $0xc] sm:$0xf]
    %v31 = vld [vmem:[%s2] sm:$0xf]
    %v32 = vld [vmem:[%s2 + $0x4] sm:$0xf]
    %v33 = vld [vmem:[%s2 + $0x8] sm:$0xf]
    %v34 = vld [vmem:[%s2 + $0xc] sm:$0xf]
    %v35 = vld [vmem:[%s3] sm:$0xf]
    %v36 = vld [vmem:[%s4] sm:$0xf]
    %v37 = vld [vmem:[%s0] sm:$0xff]
    %v38 = vpack.c.bf16 %v35, %v35
    %v43 = vunpack.c.l.b16 %v27
    %v44 = vunpack.c.l.b16 %v28
    %v45 = vunpack.c.l.b16 %v29
    %v46 = vunpack.c.l.b16 %v30
    %v47 = vpack.c.b16 %v44, %v43
    %v48 = vpack.c.b16 %v46, %v45
    %vm51 = vcmask 261120
    %v53 = vsel %vm51, %v38, 0
    %55 = vmatprep.subr.bf16.mxu0 0
    %56 = vmatpush1.bf16.msra.mxu0 %v47
    %57 = vmatprep.subr.bf16.mxu0 0
    %58 = vmatpush1.bf16.msra.mxu0 %v48
    %59 = vmatprep.subr.bf16.mxu0 0
    %60 = vmatpush1.bf16.msra.mxu0 0
    %61 = vmatprep.subr.bf16.mxu0 0
    %62 = vmatpush1.bf16.msra.mxu0 0
    %63 = vmatprep.subr.bf16.mxu0 0
    %64 = vmatpush1.bf16.msra.mxu0 0
    %65 = vmatprep.subr.bf16.mxu0 0
    %66 = vmatpush1.bf16.msra.mxu0 0
    %67 = vmatprep.subr.bf16.mxu0 0
    %68 = vmatpush1.bf16.msra.mxu0 0
    %69 = vmatprep.subr.bf16.mxu0 0
    %70 = vmatpush1.bf16.msra.mxu0 0
    %71 = vmatprep.subr.bf16.mxu0 0
    %72 = vmatpush1.bf16.msra.mxu0 0
    %73 = vmatprep.subr.bf16.mxu0 0
    %74 = vmatpush1.bf16.msra.mxu0 0
    %75 = vmatprep.subr.bf16.mxu0 0
    %76 = vmatpush1.bf16.msra.mxu0 0
    %77 = vmatprep.subr.bf16.mxu0 0
    %78 = vmatpush1.bf16.msra.mxu0 0
    %79 = vmatprep.subr.bf16.mxu0 0
    %80 = vmatpush1.bf16.msra.mxu0 0
    %81 = vmatprep.subr.bf16.mxu0 0
    %82 = vmatpush1.bf16.msra.mxu0 0
    %83 = vmatprep.subr.bf16.mxu0 0
    %84 = vmatpush1.bf16.msra.mxu0 0
    %85 = vmatprep.subr.bf16.mxu0 0
    %86 = vmatpush1.bf16.msra.mxu0 0
    %87 = vmatprep.mubr.bf16.mxu0 0
    %88 = vmatmul.mubr.bf16.gmra.mrb[0].mxu0 %v53
    %v89 = vpop.f32.mrb[0].mxu0
    %v90 = vadd.f32 0.0, %v89
    %v91 = vpop.f32.mrb[0].mxu0
    %v92 = vpop.f32.mrb[0].mxu0
    %v93 = vpop.f32.mrb[0].mxu0
    %94 = vdwg.mxu0
    %v95 = vadd.f32 %v37, %v90
    %v96 = vxor.u32 %v95, 2147483648
    %v97 = vmul.f32 %v96, 1.442695
    %v98 = vpow.pop %v97
    %v99 = vadd.f32 %v98, 1.0
    %v100 = vrcp.pop %v99
    %v101 = vmul.f32 1.0, %v100
    %v102 = vtanh.pop %v95
    %104 = vrot.lane.b32.xlu0 %v36, 32
    %v105 = vpop.permute.xlu0 %104
    %v107 = vmul.f32 %v101, %v105
    %109 = vrot.lane.b32.xlu0 %v102, 64
    %v110 = vpop.permute.xlu0 %109
    %v112 = vmul.f32 %v101, %v110
    %114 = vrot.lane.b32.xlu0 %v112, 32
    %v115 = vpop.permute.xlu0 %114
    %v117 = vadd.f32 %v107, %v115
    %v118 = vtanh.pop %v117
    %120 = vrot.lane.b32.xlu0 %v118, 64
    %v121 = vpop.permute.xlu0 %120
    %v123 = vmul.f32 %v101, %v121
    %125 = vrot.lane.b32.xlu0 %v123, 32
    %v126 = vpop.permute.xlu0 %125
    %vm128 = vcmask 257024
    %129 = vst.msk [vmem:[%s5] sm:$0xf] %vm128, %v126
    %s130 = scalar_lea.vmem %s0, 8
    %v131 = vld [vmem:[%s130] sm:$0xff]
    %v132 = vpack.c.bf16 %v123, %v123
    %134 = vrot.lane.b32.xlu0 %v132, 32
    %v135 = vpop.permute.xlu0 %134
    %v137 = vsel %vm51, %v135, 0
    %139 = vmatprep.subr.bf16.mxu0 0
    %140 = vmatpush1.bf16.msra.mxu0 %v47
    %141 = vmatprep.subr.bf16.mxu0 0
    %142 = vmatpush1.bf16.msra.mxu0 %v48
    %143 = vmatprep.subr.bf16.mxu0 0
    %144 = vmatpush1.bf16.msra.mxu0 0
    %145 = vmatprep.subr.bf16.mxu0 0
    %146 = vmatpush1.bf16.msra.mxu0 0
    %147 = vmatprep.subr.bf16.mxu0 0
    %148 = vmatpush1.bf16.msra.mxu0 0
    %149 = vmatprep.subr.bf16.mxu0 0
    %150 = vmatpush1.bf16.msra.mxu0 0
    %151 = vmatprep.subr.bf16.mxu0 0
    %152 = vmatpush1.bf16.msra.mxu0 0
    %153 = vmatprep.subr.bf16.mxu0 0
    %154 = vmatpush1.bf16.msra.mxu0 0
    %155 = vmatprep.subr.bf16.mxu0 0
    %156 = vmatpush1.bf16.msra.mxu0 0
    %157 = vmatprep.subr.bf16.mxu0 0
    %158 = vmatpush1.bf16.msra.mxu0 0
    %159 = vmatprep.subr.bf16.mxu0 0
    %160 = vmatpush1.bf16.msra.mxu0 0
    %161 = vmatprep.subr.bf16.mxu0 0
    %162 = vmatpush1.bf16.msra.mxu0 0
    %163 = vmatprep.subr.bf16.mxu0 0
    %164 = vmatpush1.bf16.msra.mxu0 0
    %165 = vmatprep.subr.bf16.mxu0 0
    %166 = vmatpush1.bf16.msra.mxu0 0
    %167 = vmatprep.subr.bf16.mxu0 0
    %168 = vmatpush1.bf16.msra.mxu0 0
    %169 = vmatprep.subr.bf16.mxu0 0
    %170 = vmatpush1.bf16.msra.mxu0 0
    %171 = vmatprep.mubr.bf16.mxu0 0
    %172 = vmatmul.mubr.bf16.gmra.mrb[0].mxu0 %v137
    %v173 = vpop.f32.mrb[0].mxu0
    %v174 = vadd.f32 0.0, %v173
    %v175 = vpop.f32.mrb[0].mxu0
    %v176 = vpop.f32.mrb[0].mxu0
    %v177 = vpop.f32.mrb[0].mxu0
    %178 = vdwg.mxu0
    %v179 = vadd.f32 %v131, %v174
    %v180 = vxor.u32 %v179, 2147483648
    %v181 = vmul.f32 %v180, 1.442695
    %v182 = vpow.pop %v181
    %v183 = vadd.f32 %v182, 1.0
    %v184 = vrcp.pop %v183
    %v185 = vmul.f32 1.0, %v184
    %v186 = vtanh.pop %v179
    %v187 = vmul.f32 %v185, %v117
    %189 = vrot.lane.b32.xlu0 %v186, 64
    %v190 = vpop.permute.xlu0 %189
    %v192 = vmul.f32 %v185, %v190
    %194 = vrot.lane.b32.xlu0 %v192, 32
    %v195 = vpop.permute.xlu0 %194
    %v197 = vadd.f32 %v187, %v195
    %v198 = vtanh.pop %v197
    %200 = vrot.lane.b32.xlu0 %v198, 64
    %v201 = vpop.permute.xlu0 %200
    %v203 = vmul.f32 %v185, %v201
    %205 = vrot.lane.b32.xlu0 %v203, 32
    %v206 = vpop.permute.xlu0 %205
    %s208 = scalar_lea.vmem %s5, 4
    %209 = vst.msk [vmem:[%s208] sm:$0xf] %vm128, %v206
    %s210 = scalar_lea.vmem %s0, 16
    %v211 = vld [vmem:[%s210] sm:$0xff]
    %v212 = vpack.c.bf16 %v203, %v203
    %214 = vrot.lane.b32.xlu0 %v212, 32
    %v215 = vpop.permute.xlu0 %214
    %v217 = vsel %vm51, %v215, 0
    %219 = vmatprep.subr.bf16.mxu0 0
    %220 = vmatpush1.bf16.msra.mxu0 %v47
    %221 = vmatprep.subr.bf16.mxu0 0
    %222 = vmatpush1.bf16.msra.mxu0 %v48
    %223 = vmatprep.subr.bf16.mxu0 0
    %224 = vmatpush1.bf16.msra.mxu0 0
    %225 = vmatprep.subr.bf16.mxu0 0
    %226 = vmatpush1.bf16.msra.mxu0 0
    %227 = vmatprep.subr.bf16.mxu0 0
    %228 = vmatpush1.bf16.msra.mxu0 0
    %229 = vmatprep.subr.bf16.mxu0 0
    %230 = vmatpush1.bf16.msra.mxu0 0
    %231 = vmatprep.subr.bf16.mxu0 0
    %232 = vmatpush1.bf16.msra.mxu0 0
    %233 = vmatprep.subr.bf16.mxu0 0
    %234 = vmatpush1.bf16.msra.mxu0 0
    %235 = vmatprep.subr.bf16.mxu0 0
    %236 = vmatpush1.bf16.msra.mxu0 0
    %237 = vmatprep.subr.bf16.mxu0 0
    %238 = vmatpush1.bf16.msra.mxu0 0
    %239 = vmatprep.subr.bf16.mxu0 0
    %240 = vmatpush1.bf16.msra.mxu0 0
    %241 = vmatprep.subr.bf16.mxu0 0
    %242 = vmatpush1.bf16.msra.mxu0 0
    %243 = vmatprep.subr.bf16.mxu0 0
    %244 = vmatpush1.bf16.msra.mxu0 0
    %245 = vmatprep.subr.bf16.mxu0 0
    %246 = vmatpush1.bf16.msra.mxu0 0
    %247 = vmatprep.subr.bf16.mxu0 0
    %248 = vmatpush1.bf16.msra.mxu0 0
    %249 = vmatprep.subr.bf16.mxu0 0
    %250 = vmatpush1.bf16.msra.mxu0 0
    %251 = vmatprep.mubr.bf16.mxu0 0
    %252 = vmatmul.mubr.bf16.gmra.mrb[0].mxu0 %v217
    %v253 = vpop.f32.mrb[0].mxu0
    %v254 = vadd.f32 0.0, %v253
    %v255 = vpop.f32.mrb[0].mxu0
    %v256 = vpop.f32.mrb[0].mxu0
    %v257 = vpop.f32.mrb[0].mxu0
    %258 = vdwg.mxu0
    %v259 = vadd.f32 %v211, %v254
    %v260 = vxor.u32 %v259, 2147483648
    %v261 = vmul.f32 %v260, 1.442695
    %v262 = vpow.pop %v261
    %v263 = vadd.f32 %v262, 1.0
    %v264 = vrcp.pop %v263
    %v265 = vmul.f32 1.0, %v264
    %v266 = vtanh.pop %v259
    %v267 = vmul.f32 %v265, %v197
    %269 = vrot.lane.b32.xlu0 %v266, 64
    %v270 = vpop.permute.xlu0 %269
    %v272 = vmul.f32 %v265, %v270
    %274 = vrot.lane.b32.xlu0 %v272, 32
    %v275 = vpop.permute.xlu0 %274
    %v277 = vadd.f32 %v267, %v275
    %v278 = vtanh.pop %v277
    %280 = vrot.lane.b32.xlu0 %v278, 64
    %v281 = vpop.permute.xlu0 %280
    %v283 = vmul.f32 %v265, %v281
    %285 = vrot.lane.b32.xlu0 %v283, 32
    %v286 = vpop.permute.xlu0 %285
    %s288 = scalar_lea.vmem %s5, 8
    %289 = vst.msk [vmem:[%s288] sm:$0xf] %vm128, %v286
    %s290 = scalar_lea.vmem %s0, 24
    %v291 = vld [vmem:[%s290] sm:$0xff]
    %v292 = vpack.c.bf16 %v283, %v283
    %294 = vrot.lane.b32.xlu0 %v292, 32
    %v295 = vpop.permute.xlu0 %294
    %v297 = vsel %vm51, %v295, 0
    %299 = vmatprep.subr.bf16.mxu0 0
    %300 = vmatpush1.bf16.msra.mxu0 %v47
    %301 = vmatprep.subr.bf16.mxu0 0
    %302 = vmatpush1.bf16.msra.mxu0 %v48
    %303 = vmatprep.subr.bf16.mxu0 0
    %304 = vmatpush1.bf16.msra.mxu0 0
    %305 = vmatprep.subr.bf16.mxu0 0
    %306 = vmatpush1.bf16.msra.mxu0 0
    %307 = vmatprep.subr.bf16.mxu0 0
    %308 = vmatpush1.bf16.msra.mxu0 0
    %309 = vmatprep.subr.bf16.mxu0 0
    %310 = vmatpush1.bf16.msra.mxu0 0
    %311 = vmatprep.subr.bf16.mxu0 0
    %312 = vmatpush1.bf16.msra.mxu0 0
    %313 = vmatprep.subr.bf16.mxu0 0
    %314 = vmatpush1.bf16.msra.mxu0 0
    %315 = vmatprep.subr.bf16.mxu0 0
    %316 = vmatpush1.bf16.msra.mxu0 0
    %317 = vmatprep.subr.bf16.mxu0 0
    %318 = vmatpush1.bf16.msra.mxu0 0
    %319 = vmatprep.subr.bf16.mxu0 0
    %320 = vmatpush1.bf16.msra.mxu0 0
    %321 = vmatprep.subr.bf16.mxu0 0
    %322 = vmatpush1.bf16.msra.mxu0 0
    %323 = vmatprep.subr.bf16.mxu0 0
    %324 = vmatpush1.bf16.msra.mxu0 0
    %325 = vmatprep.subr.bf16.mxu0 0
    %326 = vmatpush1.bf16.msra.mxu0 0
    %327 = vmatprep.subr.bf16.mxu0 0
    %328 = vmatpush1.bf16.msra.mxu0 0
    %329 = vmatprep.subr.bf16.mxu0 0
    %330 = vmatpush1.bf16.msra.mxu0 0
    %331 = vmatprep.mubr.bf16.mxu0 0
    %332 = vmatmul.mubr.bf16.gmra.mrb[0].mxu0 %v297
    %v333 = vpop.f32.mrb[0].mxu0
    %v334 = vadd.f32 0.0, %v333
    %v335 = vpop.f32.mrb[0].mxu0
    %v336 = vpop.f32.mrb[0].mxu0
    %v337 = vpop.f32.mrb[0].mxu0
    %338 = vdwg.mxu0
    %v339 = vadd.f32 %v291, %v334
    %v340 = vxor.u32 %v339, 2147483648
    %v341 = vmul.f32 %v340, 1.442695
    %v342 = vpow.pop %v341
    %v343 = vadd.f32 %v342, 1.0
    %v344 = vrcp.pop %v343
    %v345 = vmul.f32 1.0, %v344
    %v346 = vtanh.pop %v339
    %v347 = vmul.f32 %v345, %v277
    %349 = vrot.lane.b32.xlu0 %v346, 64
    %v350 = vpop.permute.xlu0 %349
    %v352 = vmul.f32 %v345, %v350
    %354 = vrot.lane.b32.xlu0 %v352, 32
    %v355 = vpop.permute.xlu0 %354
    %v357 = vadd.f32 %v347, %v355
    %v358 = vtanh.pop %v357
    %360 = vrot.lane.b32.xlu0 %v358, 64
    %v361 = vpop.permute.xlu0 %360
    %v363 = vmul.f32 %v345, %v361
    %365 = vrot.lane.b32.xlu0 %v363, 32
    %v366 = vpop.permute.xlu0 %365
    %s368 = scalar_lea.vmem %s5, 12
    %369 = vst.msk [vmem:[%s368] sm:$0xf] %vm128, %v366
    %s370 = scalar_lea.vmem %s0, 32
    %v371 = vld [vmem:[%s370] sm:$0xff]
    %v372 = vpack.c.bf16 %v363, %v363
    %374 = vrot.lane.b32.xlu0 %v372, 32
    %v375 = vpop.permute.xlu0 %374
    %v377 = vsel %vm51, %v375, 0
    %379 = vmatprep.subr.bf16.mxu0 0
    %380 = vmatpush1.bf16.msra.mxu0 %v47
    %381 = vmatprep.subr.bf16.mxu0 0
    %382 = vmatpush1.bf16.msra.mxu0 %v48
    %383 = vmatprep.subr.bf16.mxu0 0
    %384 = vmatpush1.bf16.msra.mxu0 0
    %385 = vmatprep.subr.bf16.mxu0 0
    %386 = vmatpush1.bf16.msra.mxu0 0
    %387 = vmatprep.subr.bf16.mxu0 0
    %388 = vmatpush1.bf16.msra.mxu0 0
    %389 = vmatprep.subr.bf16.mxu0 0
    %390 = vmatpush1.bf16.msra.mxu0 0
    %391 = vmatprep.subr.bf16.mxu0 0
    %392 = vmatpush1.bf16.msra.mxu0 0
    %393 = vmatprep.subr.bf16.mxu0 0
    %394 = vmatpush1.bf16.msra.mxu0 0
    %395 = vmatprep.subr.bf16.mxu0 0
    %396 = vmatpush1.bf16.msra.mxu0 0
    %397 = vmatprep.subr.bf16.mxu0 0
    %398 = vmatpush1.bf16.msra.mxu0 0
    %399 = vmatprep.subr.bf16.mxu0 0
    %400 = vmatpush1.bf16.msra.mxu0 0
    %401 = vmatprep.subr.bf16.mxu0 0
    %402 = vmatpush1.bf16.msra.mxu0 0
    %403 = vmatprep.subr.bf16.mxu0 0
    %404 = vmatpush1.bf16.msra.mxu0 0
    %405 = vmatprep.subr.bf16.mxu0 0
    %406 = vmatpush1.bf16.msra.mxu0 0
    %407 = vmatprep.subr.bf16.mxu0 0
    %408 = vmatpush1.bf16.msra.mxu0 0
    %409 = vmatprep.subr.bf16.mxu0 0
    %410 = vmatpush1.bf16.msra.mxu0 0
    %411 = vmatprep.mubr.bf16.mxu0 0
    %412 = vmatmul.mubr.bf16.gmra.mrb[0].mxu0 %v377
    %v413 = vpop.f32.mrb[0].mxu0
    %v414 = vadd.f32 0.0, %v413
    %v415 = vpop.f32.mrb[0].mxu0
    %v416 = vpop.f32.mrb[0].mxu0
    %v417 = vpop.f32.mrb[0].mxu0
    %418 = vdwg.mxu0
    %v419 = vadd.f32 %v371, %v414
    %v420 = vxor.u32 %v419, 2147483648
    %v421 = vmul.f32 %v420, 1.442695
    %v422 = vpow.pop %v421
    %v423 = vadd.f32 %v422, 1.0
    %v424 = vrcp.pop %v423
    %v425 = vmul.f32 1.0, %v424
    %v426 = vtanh.pop %v419
    %v427 = vmul.f32 %v425, %v357
    %429 = vrot.lane.b32.xlu0 %v426, 64
    %v430 = vpop.permute.xlu0 %429
    %v432 = vmul.f32 %v425, %v430
    %434 = vrot.lane.b32.xlu0 %v432, 32
    %v435 = vpop.permute.xlu0 %434
    %v437 = vadd.f32 %v427, %v435
    %v438 = vtanh.pop %v437
    %440 = vrot.lane.b32.xlu0 %v438, 64
    %v441 = vpop.permute.xlu0 %440
    %v443 = vmul.f32 %v425, %v441
    %445 = vrot.lane.b32.xlu0 %v443, 32
    %v446 = vpop.permute.xlu0 %445
    %s448 = scalar_lea.vmem %s5, 16
    %449 = vst.msk [vmem:[%s448] sm:$0xf] %vm128, %v446
    %s450 = scalar_lea.vmem %s0, 40
    %v451 = vld [vmem:[%s450] sm:$0xff]
    %v452 = vpack.c.bf16 %v443, %v443
    %454 = vrot.lane.b32.xlu0 %v452, 32
    %v455 = vpop.permute.xlu0 %454
    %v457 = vsel %vm51, %v455, 0
    %459 = vmatprep.subr.bf16.mxu0 0
    %460 = vmatpush1.bf16.msra.mxu0 %v47
    %461 = vmatprep.subr.bf16.mxu0 0
    %462 = vmatpush1.bf16.msra.mxu0 %v48
    %463 = vmatprep.subr.bf16.mxu0 0
    %464 = vmatpush1.bf16.msra.mxu0 0
    %465 = vmatprep.subr.bf16.mxu0 0
    %466 = vmatpush1.bf16.msra.mxu0 0
    %467 = vmatprep.subr.bf16.mxu0 0
    %468 = vmatpush1.bf16.msra.mxu0 0
    %469 = vmatprep.subr.bf16.mxu0 0
    %470 = vmatpush1.bf16.msra.mxu0 0
    %471 = vmatprep.subr.bf16.mxu0 0
    %472 = vmatpush1.bf16.msra.mxu0 0
    %473 = vmatprep.subr.bf16.mxu0 0
    %474 = vmatpush1.bf16.msra.mxu0 0
    %475 = vmatprep.subr.bf16.mxu0 0
    %476 = vmatpush1.bf16.msra.mxu0 0
    %477 = vmatprep.subr.bf16.mxu0 0
    %478 = vmatpush1.bf16.msra.mxu0 0
    %479 = vmatprep.subr.bf16.mxu0 0
    %480 = vmatpush1.bf16.msra.mxu0 0
    %481 = vmatprep.subr.bf16.mxu0 0
    %482 = vmatpush1.bf16.msra.mxu0 0
    %483 = vmatprep.subr.bf16.mxu0 0
    %484 = vmatpush1.bf16.msra.mxu0 0
    %485 = vmatprep.subr.bf16.mxu0 0
    %486 = vmatpush1.bf16.msra.mxu0 0
    %487 = vmatprep.subr.bf16.mxu0 0
    %488 = vmatpush1.bf16.msra.mxu0 0
    %489 = vmatprep.subr.bf16.mxu0 0
    %490 = vmatpush1.bf16.msra.mxu0 0
    %491 = vmatprep.mubr.bf16.mxu0 0
    %492 = vmatmul.mubr.bf16.gmra.mrb[0].mxu0 %v457
    %v493 = vpop.f32.mrb[0].mxu0
    %v494 = vadd.f32 0.0, %v493
    %v495 = vpop.f32.mrb[0].mxu0
    %v496 = vpop.f32.mrb[0].mxu0
    %v497 = vpop.f32.mrb[0].mxu0
    %498 = vdwg.mxu0
    %v499 = vadd.f32 %v451, %v494
    %v500 = vxor.u32 %v499, 2147483648
    %v501 = vmul.f32 %v500, 1.442695
    %v502 = vpow.pop %v501
    %v503 = vadd.f32 %v502, 1.0
    %v504 = vrcp.pop %v503
    %v505 = vmul.f32 1.0, %v504
    %v506 = vtanh.pop %v499
    %v507 = vmul.f32 %v505, %v437
    %509 = vrot.lane.b32.xlu0 %v506, 64
    %v510 = vpop.permute.xlu0 %509
    %v512 = vmul.f32 %v505, %v510
    %514 = vrot.lane.b32.xlu0 %v512, 32
    %v515 = vpop.permute.xlu0 %514
    %v517 = vadd.f32 %v507, %v515
    %v518 = vtanh.pop %v517
    %520 = vrot.lane.b32.xlu0 %v518, 64
    %v521 = vpop.permute.xlu0 %520
    %v523 = vmul.f32 %v505, %v521
    %525 = vrot.lane.b32.xlu0 %v523, 32
    %v526 = vpop.permute.xlu0 %525
    %s528 = scalar_lea.vmem %s5, 20
    %529 = vst.msk [vmem:[%s528] sm:$0xf] %vm128, %v526
    %s530 = scalar_lea.vmem %s0, 48
    %v531 = vld [vmem:[%s530] sm:$0xff]
    %v532 = vpack.c.bf16 %v523, %v523
    %534 = vrot.lane.b32.xlu0 %v532, 32
    %v535 = vpop.permute.xlu0 %534
    %v537 = vsel %vm51, %v535, 0
    %539 = vmatprep.subr.bf16.mxu0 0
    %540 = vmatpush1.bf16.msra.mxu0 %v47
    %541 = vmatprep.subr.bf16.mxu0 0
    %542 = vmatpush1.bf16.msra.mxu0 %v48
    %543 = vmatprep.subr.bf16.mxu0 0
    %544 = vmatpush1.bf16.msra.mxu0 0
    %545 = vmatprep.subr.bf16.mxu0 0
    %546 = vmatpush1.bf16.msra.mxu0 0
    %547 = vmatprep.subr.bf16.mxu0 0
    %548 = vmatpush1.bf16.msra.mxu0 0
    %549 = vmatprep.subr.bf16.mxu0 0
    %550 = vmatpush1.bf16.msra.mxu0 0
    %551 = vmatprep.subr.bf16.mxu0 0
    %552 = vmatpush1.bf16.msra.mxu0 0
    %553 = vmatprep.subr.bf16.mxu0 0
    %554 = vmatpush1.bf16.msra.mxu0 0
    %555 = vmatprep.subr.bf16.mxu0 0
    %556 = vmatpush1.bf16.msra.mxu0 0
    %557 = vmatprep.subr.bf16.mxu0 0
    %558 = vmatpush1.bf16.msra.mxu0 0
    %559 = vmatprep.subr.bf16.mxu0 0
    %560 = vmatpush1.bf16.msra.mxu0 0
    %561 = vmatprep.subr.bf16.mxu0 0
    %562 = vmatpush1.bf16.msra.mxu0 0
    %563 = vmatprep.subr.bf16.mxu0 0
    %564 = vmatpush1.bf16.msra.mxu0 0
    %565 = vmatprep.subr.bf16.mxu0 0
    %566 = vmatpush1.bf16.msra.mxu0 0
    %567 = vmatprep.subr.bf16.mxu0 0
    %568 = vmatpush1.bf16.msra.mxu0 0
    %569 = vmatprep.subr.bf16.mxu0 0
    %570 = vmatpush1.bf16.msra.mxu0 0
    %571 = vmatprep.mubr.bf16.mxu0 0
    %572 = vmatmul.mubr.bf16.gmra.mrb[0].mxu0 %v537
    %v573 = vpop.f32.mrb[0].mxu0
    %v574 = vadd.f32 0.0, %v573
    %v575 = vpop.f32.mrb[0].mxu0
    %v576 = vpop.f32.mrb[0].mxu0
    %v577 = vpop.f32.mrb[0].mxu0
    %578 = vdwg.mxu0
    %v579 = vadd.f32 %v531, %v574
    %v580 = vxor.u32 %v579, 2147483648
    %v581 = vmul.f32 %v580, 1.442695
    %v582 = vpow.pop %v581
    %v583 = vadd.f32 %v582, 1.0
    %v584 = vrcp.pop %v583
    %v585 = vmul.f32 1.0, %v584
    %v586 = vtanh.pop %v579
    %v587 = vmul.f32 %v585, %v517
    %589 = vrot.lane.b32.xlu0 %v586, 64
    %v590 = vpop.permute.xlu0 %589
    %v592 = vmul.f32 %v585, %v590
    %594 = vrot.lane.b32.xlu0 %v592, 32
    %v595 = vpop.permute.xlu0 %594
    %v597 = vadd.f32 %v587, %v595
    %v598 = vtanh.pop %v597
    %600 = vrot.lane.b32.xlu0 %v598, 64
    %v601 = vpop.permute.xlu0 %600
    %v603 = vmul.f32 %v585, %v601
    %605 = vrot.lane.b32.xlu0 %v603, 32
    %v606 = vpop.permute.xlu0 %605
    %s608 = scalar_lea.vmem %s5, 24
    %609 = vst.msk [vmem:[%s608] sm:$0xf] %vm128, %v606
    %s610 = scalar_lea.vmem %s0, 56
    %v611 = vld [vmem:[%s610] sm:$0xff]
    %v612 = vpack.c.bf16 %v603, %v603
    %614 = vrot.lane.b32.xlu0 %v612, 32
    %v615 = vpop.permute.xlu0 %614
    %v617 = vsel %vm51, %v615, 0
    %619 = vmatprep.subr.bf16.mxu0 0
    %620 = vmatpush1.bf16.msra.mxu0 %v47
    %621 = vmatprep.subr.bf16.mxu0 0
    %622 = vmatpush1.bf16.msra.mxu0 %v48
    %623 = vmatprep.subr.bf16.mxu0 0
    %624 = vmatpush1.bf16.msra.mxu0 0
    %625 = vmatprep.subr.bf16.mxu0 0
    %626 = vmatpush1.bf16.msra.mxu0 0
    %627 = vmatprep.subr.bf16.mxu0 0
    %628 = vmatpush1.bf16.msra.mxu0 0
    %629 = vmatprep.subr.bf16.mxu0 0
    %630 = vmatpush1.bf16.msra.mxu0 0
    %631 = vmatprep.subr.bf16.mxu0 0
    %632 = vmatpush1.bf16.msra.mxu0 0
    %633 = vmatprep.subr.bf16.mxu0 0
    %634 = vmatpush1.bf16.msra.mxu0 0
    %635 = vmatprep.subr.bf16.mxu0 0
    %636 = vmatpush1.bf16.msra.mxu0 0
    %637 = vmatprep.subr.bf16.mxu0 0
    %638 = vmatpush1.bf16.msra.mxu0 0
    %639 = vmatprep.subr.bf16.mxu0 0
    %640 = vmatpush1.bf16.msra.mxu0 0
    %641 = vmatprep.subr.bf16.mxu0 0
    %642 = vmatpush1.bf16.msra.mxu0 0
    %643 = vmatprep.subr.bf16.mxu0 0
    %644 = vmatpush1.bf16.msra.mxu0 0
    %645 = vmatprep.subr.bf16.mxu0 0
    %646 = vmatpush1.bf16.msra.mxu0 0
    %647 = vmatprep.subr.bf16.mxu0 0
    %648 = vmatpush1.bf16.msra.mxu0 0
    %649 = vmatprep.subr.bf16.mxu0 0
    %650 = vmatpush1.bf16.msra.mxu0 0
    %651 = vmatprep.mubr.bf16.mxu0 0
    %652 = vmatmul.mubr.bf16.gmra.mrb[0].mxu0 %v617
    %v653 = vpop.f32.mrb[0].mxu0
    %v654 = vadd.f32 0.0, %v653
    %v655 = vpop.f32.mrb[0].mxu0
    %v656 = vpop.f32.mrb[0].mxu0
    %v657 = vpop.f32.mrb[0].mxu0
    %658 = vdwg.mxu0
    %v659 = vadd.f32 %v611, %v654
    %v660 = vxor.u32 %v659, 2147483648
    %v661 = vmul.f32 %v660, 1.442695
    %v662 = vpow.pop %v661
    %v663 = vadd.f32 %v662, 1.0
    %v664 = vrcp.pop %v663
    %v665 = vmul.f32 1.0, %v664
    %v666 = vtanh.pop %v659
    %v667 = vmul.f32 %v665, %v597
    %669 = vrot.lane.b32.xlu0 %v666, 64
    %v670 = vpop.permute.xlu0 %669
    %v672 = vmul.f32 %v665, %v670
    %674 = vrot.lane.b32.xlu0 %v672, 32
    %v675 = vpop.permute.xlu0 %674
    %v677 = vadd.f32 %v667, %v675
    %v678 = vtanh.pop %v677
    %680 = vrot.lane.b32.xlu0 %v678, 64
    %v681 = vpop.permute.xlu0 %680
    %v683 = vmul.f32 %v665, %v681
    %685 = vrot.lane.b32.xlu0 %v683, 32
    %v686 = vpop.permute.xlu0 %685
    %s688 = scalar_lea.vmem %s5, 28
    %689 = vst.msk [vmem:[%s688] sm:$0xf] %vm128, %v686
    %690 = vst.msk [vmem:[#allocation2] sm:$0xf] %vm128, %v686
    %692 = vrot.lane.b32.xlu0 %v677, 96
    %v693 = vpop.permute.xlu0 %692
    %695 = vst.msk [vmem:[#allocation4] sm:$0xf] %vm128, %v693
    %s696 = scalar_lea.vmem %s3, 4
    %v697 = vld [vmem:[%s696] sm:$0xf]
    %s698 = scalar_lea.vmem %s4, 4
    %v699 = vld [vmem:[%s698] sm:$0xf]
    %v700 = vld [vmem:[%s610] sm:$0xff]
    %v701 = vpack.c.bf16 %v697, %v697
    %v706 = vunpack.c.l.b16 %v31
    %v707 = vunpack.c.l.b16 %v32
    %v708 = vunpack.c.l.b16 %v33
    %v709 = vunpack.c.l.b16 %v34
    %v710 = vpack.c.b16 %v707, %v706
    %v711 = vpack.c.b16 %v709, %v708
    %v715 = vsel %vm51, %v701, 0
    %717 = vmatprep.subr.bf16.mxu0 0
    %718 = vmatpush1.bf16.msra.mxu0 %v710
    %719 = vmatprep.subr.bf16.mxu0 0
    %720 = vmatpush1.bf16.msra.mxu0 %v711
    %721 = vmatprep.subr.bf16.mxu0 0
    %722 = vmatpush1.bf16.msra.mxu0 0
    %723 = vmatprep.subr.bf16.mxu0 0
    %724 = vmatpush1.bf16.msra.mxu0 0
    %725 = vmatprep.subr.bf16.mxu0 0
    %726 = vmatpush1.bf16.msra.mxu0 0
    %727 = vmatprep.subr.bf16.mxu0 0
    %728 = vmatpush1.bf16.msra.mxu0 0
    %729 = vmatprep.subr.bf16.mxu0 0
    %730 = vmatpush1.bf16.msra.mxu0 0
    %731 = vmatprep.subr.bf16.mxu0 0
    %732 = vmatpush1.bf16.msra.mxu0 0
    %733 = vmatprep.subr.bf16.mxu0 0
    %734 = vmatpush1.bf16.msra.mxu0 0
    %735 = vmatprep.subr.bf16.mxu0 0
    %736 = vmatpush1.bf16.msra.mxu0 0
    %737 = vmatprep.subr.bf16.mxu0 0
    %738 = vmatpush1.bf16.msra.mxu0 0
    %739 = vmatprep.subr.bf16.mxu0 0
    %740 = vmatpush1.bf16.msra.mxu0 0
    %741 = vmatprep.subr.bf16.mxu0 0
    %742 = vmatpush1.bf16.msra.mxu0 0
    %743 = vmatprep.subr.bf16.mxu0 0
    %744 = vmatpush1.bf16.msra.mxu0 0
    %745 = vmatprep.subr.bf16.mxu0 0
    %746 = vmatpush1.bf16.msra.mxu0 0
    %747 = vmatprep.subr.bf16.mxu0 0
    %748 = vmatpush1.bf16.msra.mxu0 0
    %749 = vmatprep.mubr.bf16.mxu0 0
    %750 = vmatmul.mubr.bf16.gmra.mrb[0].mxu0 %v715
    %v751 = vpop.f32.mrb[0].mxu0
    %v752 = vadd.f32 0.0, %v751
    %v753 = vpop.f32.mrb[0].mxu0
    %v754 = vpop.f32.mrb[0].mxu0
    %v755 = vpop.f32.mrb[0].mxu0
    %756 = vdwg.mxu0
    %v758 = vrot.slane %v700, 4
    %v760 = vadd.f32 %v758, %v752
    %v761 = vxor.u32 %v760, 2147483648
    %v762 = vmul.f32 %v761, 1.442695
    %v763 = vpow.pop %v762
    %v764 = vadd.f32 %v763, 1.0
    %v765 = vrcp.pop %v764
    %v766 = vmul.f32 1.0, %v765
    %v767 = vtanh.pop %v760
    %769 = vrot.lane.b32.xlu0 %v699, 32
    %v770 = vpop.permute.xlu0 %769
    %v772 = vmul.f32 %v766, %v770
    %774 = vrot.lane.b32.xlu0 %v767, 64
    %v775 = vpop.permute.xlu0 %774
    %v777 = vmul.f32 %v766, %v775
    %779 = vrot.lane.b32.xlu0 %v777, 32
    %v780 = vpop.permute.xlu0 %779
    %v782 = vadd.f32 %v772, %v780
    %v783 = vtanh.pop %v782
    %785 = vrot.lane.b32.xlu0 %v783, 64
    %v786 = vpop.permute.xlu0 %785
    %v788 = vmul.f32 %v766, %v786
    %790 = vrot.lane.b32.xlu0 %v788, 32
    %v791 = vpop.permute.xlu0 %790
    %s793 = scalar_lea.vmem %s6, 28
    %794 = vst.msk [vmem:[%s793] sm:$0xf] %vm128, %v791
    %v795 = vld [vmem:[%s530] sm:$0xff]
    %v796 = vpack.c.bf16 %v788, %v788
    %798 = vrot.lane.b32.xlu0 %v796, 32
    %v799 = vpop.permute.xlu0 %798
    %v801 = vsel %vm51, %v799, 0
    %803 = vmatprep.subr.bf16.mxu0 0
    %804 = vmatpush1.bf16.msra.mxu0 %v710
    %805 = vmatprep.subr.bf16.mxu0 0
    %806 = vmatpush1.bf16.msra.mxu0 %v711
    %807 = vmatprep.subr.bf16.mxu0 0
    %808 = vmatpush1.bf16.msra.mxu0 0
    %809 = vmatprep.subr.bf16.mxu0 0
    %810 = vmatpush1.bf16.msra.mxu0 0
    %811 = vmatprep.subr.bf16.mxu0 0
    %812 = vmatpush1.bf16.msra.mxu0 0
    %813 = vmatprep.subr.bf16.mxu0 0
    %814 = vmatpush1.bf16.msra.mxu0 0
    %815 = vmatprep.subr.bf16.mxu0 0
    %816 = vmatpush1.bf16.msra.mxu0 0
    %817 = vmatprep.subr.bf16.mxu0 0
    %818 = vmatpush1.bf16.msra.mxu0 0
    %819 = vmatprep.subr.bf16.mxu0 0
    %820 = vmatpush1.bf16.msra.mxu0 0
    %821 = vmatprep.subr.bf16.mxu0 0
    %822 = vmatpush1.bf16.msra.mxu0 0
    %823 = vmatprep.subr.bf16.mxu0 0
    %824 = vmatpush1.bf16.msra.mxu0 0
    %825 = vmatprep.subr.bf16.mxu0 0
    %826 = vmatpush1.bf16.msra.mxu0 0
    %827 = vmatprep.subr.bf16.mxu0 0
    %828 = vmatpush1.bf16.msra.mxu0 0
    %829 = vmatprep.subr.bf16.mxu0 0
    %830 = vmatpush1.bf16.msra.mxu0 0
    %831 = vmatprep.subr.bf16.mxu0 0
    %832 = vmatpush1.bf16.msra.mxu0 0
    %833 = vmatprep.subr.bf16.mxu0 0
    %834 = vmatpush1.bf16.msra.mxu0 0
    %835 = vmatprep.mubr.bf16.mxu0 0
    %836 = vmatmul.mubr.bf16.gmra.mrb[0].mxu0 %v801
    %v837 = vpop.f32.mrb[0].mxu0
    %v838 = vadd.f32 0.0, %v837
    %v839 = vpop.f32.mrb[0].mxu0
    %v840 = vpop.f32.mrb[0].mxu0
    %v841 = vpop.f32.mrb[0].mxu0
    %842 = vdwg.mxu0
    %v844 = vrot.slane %v795, 4
    %v846 = vadd.f32 %v844, %v838
    %v847 = vxor.u32 %v846, 2147483648
    %v848 = vmul.f32 %v847, 1.442695
    %v849 = vpow.pop %v848
    %v850 = vadd.f32 %v849, 1.0
    %v851 = vrcp.pop %v850
    %v852 = vmul.f32 1.0, %v851
    %v853 = vtanh.pop %v846
    %v854 = vmul.f32 %v852, %v782
    %856 = vrot.lane.b32.xlu0 %v853, 64
    %v857 = vpop.permute.xlu0 %856
    %v859 = vmul.f32 %v852, %v857
    %861 = vrot.lane.b32.xlu0 %v859, 32
    %v862 = vpop.permute.xlu0 %861
    %v864 = vadd.f32 %v854, %v862
    %v865 = vtanh.pop %v864
    %867 = vrot.lane.b32.xlu0 %v865, 64
    %v868 = vpop.permute.xlu0 %867
    %v870 = vmul.f32 %v852, %v868
    %872 = vrot.lane.b32.xlu0 %v870, 32
    %v873 = vpop.permute.xlu0 %872
    %s875 = scalar_lea.vmem %s6, 24
    %876 = vst.msk [vmem:[%s875] sm:$0xf] %vm128, %v873
    %v877 = vld [vmem:[%s450] sm:$0xff]
    %v878 = vpack.c.bf16 %v870, %v870
    %880 = vrot.lane.b32.xlu0 %v878, 32
    %v881 = vpop.permute.xlu0 %880
    %v883 = vsel %vm51, %v881, 0
    %885 = vmatprep.subr.bf16.mxu0 0
    %886 = vmatpush1.bf16.msra.mxu0 %v710
    %887 = vmatprep.subr.bf16.mxu0 0
    %888 = vmatpush1.bf16.msra.mxu0 %v711
    %889 = vmatprep.subr.bf16.mxu0 0
    %890 = vmatpush1.bf16.msra.mxu0 0
    %891 = vmatprep.subr.bf16.mxu0 0
    %892 = vmatpush1.bf16.msra.mxu0 0
    %893 = vmatprep.subr.bf16.mxu0 0
    %894 = vmatpush1.bf16.msra.mxu0 0
    %895 = vmatprep.subr.bf16.mxu0 0
    %896 = vmatpush1.bf16.msra.mxu0 0
    %897 = vmatprep.subr.bf16.mxu0 0
    %898 = vmatpush1.bf16.msra.mxu0 0
    %899 = vmatprep.subr.bf16.mxu0 0
    %900 = vmatpush1.bf16.msra.mxu0 0
    %901 = vmatprep.subr.bf16.mxu0 0
    %902 = vmatpush1.bf16.msra.mxu0 0
    %903 = vmatprep.subr.bf16.mxu0 0
    %904 = vmatpush1.bf16.msra.mxu0 0
    %905 = vmatprep.subr.bf16.mxu0 0
    %906 = vmatpush1.bf16.msra.mxu0 0
    %907 = vmatprep.subr.bf16.mxu0 0
    %908 = vmatpush1.bf16.msra.mxu0 0
    %909 = vmatprep.subr.bf16.mxu0 0
    %910 = vmatpush1.bf16.msra.mxu0 0
    %911 = vmatprep.subr.bf16.mxu0 0
    %912 = vmatpush1.bf16.msra.mxu0 0
    %913 = vmatprep.subr.bf16.mxu0 0
    %914 = vmatpush1.bf16.msra.mxu0 0
    %915 = vmatprep.subr.bf16.mxu0 0
    %916 = vmatpush1.bf16.msra.mxu0 0
    %917 = vmatprep.mubr.bf16.mxu0 0
    %918 = vmatmul.mubr.bf16.gmra.mrb[0].mxu0 %v883
    %v919 = vpop.f32.mrb[0].mxu0
    %v920 = vadd.f32 0.0, %v919
    %v921 = vpop.f32.mrb[0].mxu0
    %v922 = vpop.f32.mrb[0].mxu0
    %v923 = vpop.f32.mrb[0].mxu0
    %924 = vdwg.mxu0
    %v926 = vrot.slane %v877, 4
    %v928 = vadd.f32 %v926, %v920
    %v929 = vxor.u32 %v928, 2147483648
    %v930 = vmul.f32 %v929, 1.442695
    %v931 = vpow.pop %v930
    %v932 = vadd.f32 %v931, 1.0
    %v933 = vrcp.pop %v932
    %v934 = vmul.f32 1.0, %v933
    %v935 = vtanh.pop %v928
    %v936 = vmul.f32 %v934, %v864
    %938 = vrot.lane.b32.xlu0 %v935, 64
    %v939 = vpop.permute.xlu0 %938
    %v941 = vmul.f32 %v934, %v939
    %943 = vrot.lane.b32.xlu0 %v941, 32
    %v944 = vpop.permute.xlu0 %943
    %v946 = vadd.f32 %v936, %v944
    %v947 = vtanh.pop %v946
    %949 = vrot.lane.b32.xlu0 %v947, 64
    %v950 = vpop.permute.xlu0 %949
    %v952 = vmul.f32 %v934, %v950
    %954 = vrot.lane.b32.xlu0 %v952, 32
    %v955 = vpop.permute.xlu0 %954
    %s957 = scalar_lea.vmem %s6, 20
    %958 = vst.msk [vmem:[%s957] sm:$0xf] %vm128, %v955
    %v959 = vld [vmem:[%s370] sm:$0xff]
    %v960 = vpack.c.bf16 %v952, %v952
    %962 = vrot.lane.b32.xlu0 %v960, 32
    %v963 = vpop.permute.xlu0 %962
    %v965 = vsel %vm51, %v963, 0
    %967 = vmatprep.subr.bf16.mxu0 0
    %968 = vmatpush1.bf16.msra.mxu0 %v710
    %969 = vmatprep.subr.bf16.mxu0 0
    %970 = vmatpush1.bf16.msra.mxu0 %v711
    %971 = vmatprep.subr.bf16.mxu0 0
    %972 = vmatpush1.bf16.msra.mxu0 0
    %973 = vmatprep.subr.bf16.mxu0 0
    %974 = vmatpush1.bf16.msra.mxu0 0
    %975 = vmatprep.subr.bf16.mxu0 0
    %976 = vmatpush1.bf16.msra.mxu0 0
    %977 = vmatprep.subr.bf16.mxu0 0
    %978 = vmatpush1.bf16.msra.mxu0 0
    %979 = vmatprep.subr.bf16.mxu0 0
    %980 = vmatpush1.bf16.msra.mxu0 0
    %981 = vmatprep.subr.bf16.mxu0 0
    %982 = vmatpush1.bf16.msra.mxu0 0
    %983 = vmatprep.subr.bf16.mxu0 0
    %984 = vmatpush1.bf16.msra.mxu0 0
    %985 = vmatprep.subr.bf16.mxu0 0
    %986 = vmatpush1.bf16.msra.mxu0 0
    %987 = vmatprep.subr.bf16.mxu0 0
    %988 = vmatpush1.bf16.msra.mxu0 0
    %989 = vmatprep.subr.bf16.mxu0 0
    %990 = vmatpush1.bf16.msra.mxu0 0
    %991 = vmatprep.subr.bf16.mxu0 0
    %992 = vmatpush1.bf16.msra.mxu0 0
    %993 = vmatprep.subr.bf16.mxu0 0
    %994 = vmatpush1.bf16.msra.mxu0 0
    %995 = vmatprep.subr.bf16.mxu0 0
    %996 = vmatpush1.bf16.msra.mxu0 0
    %997 = vmatprep.subr.bf16.mxu0 0
    %998 = vmatpush1.bf16.msra.mxu0 0
    %999 = vmatprep.mubr.bf16.mxu0 0
    %1000 = vmatmul.mubr.bf16.gmra.mrb[0].mxu0 %v965
    %v1001 = vpop.f32.mrb[0].mxu0
    %v1002 = vadd.f32 0.0, %v1001
    %v1003 = vpop.f32.mrb[0].mxu0
    %v1004 = vpop.f32.mrb[0].mxu0
    %v1005 = vpop.f32.mrb[0].mxu0
    %1006 = vdwg.mxu0
    %v1008 = vrot.slane %v959, 4
    %v1010 = vadd.f32 %v1008, %v1002
    %v1011 = vxor.u32 %v1010, 2147483648
    %v1012 = vmul.f32 %v1011, 1.442695
    %v1013 = vpow.pop %v1012
    %v1014 = vadd.f32 %v1013, 1.0
    %v1015 = vrcp.pop %v1014
    %v1016 = vmul.f32 1.0, %v1015
    %v1017 = vtanh.pop %v1010
    %v1018 = vmul.f32 %v1016, %v946
    %1020 = vrot.lane.b32.xlu0 %v1017, 64
    %v1021 = vpop.permute.xlu0 %1020
    %v1023 = vmul.f32 %v1016, %v1021
    %1025 = vrot.lane.b32.xlu0 %v1023, 32
    %v1026 = vpop.permute.xlu0 %1025
    %v1028 = vadd.f32 %v1018, %v1026
    %v1029 = vtanh.pop %v1028
    %1031 = vrot.lane.b32.xlu0 %v1029, 64
    %v1032 = vpop.permute.xlu0 %1031
    %v1034 = vmul.f32 %v1016, %v1032
    %1036 = vrot.lane.b32.xlu0 %v1034, 32
    %v1037 = vpop.permute.xlu0 %1036
    %s1039 = scalar_lea.vmem %s6, 16
    %1040 = vst.msk [vmem:[%s1039] sm:$0xf] %vm128, %v1037
    %v1041 = vld [vmem:[%s290] sm:$0xff]
    %v1042 = vpack.c.bf16 %v1034, %v1034
    %1044 = vrot.lane.b32.xlu0 %v1042, 32
    %v1045 = vpop.permute.xlu0 %1044
    %v1047 = vsel %vm51, %v1045, 0
    %1049 = vmatprep.subr.bf16.mxu0 0
    %1050 = vmatpush1.bf16.msra.mxu0 %v710
    %1051 = vmatprep.subr.bf16.mxu0 0
    %1052 = vmatpush1.bf16.msra.mxu0 %v711
    %1053 = vmatprep.subr.bf16.mxu0 0
    %1054 = vmatpush1.bf16.msra.mxu0 0
    %1055 = vmatprep.subr.bf16.mxu0 0
    %1056 = vmatpush1.bf16.msra.mxu0 0
    %1057 = vmatprep.subr.bf16.mxu0 0
    %1058 = vmatpush1.bf16.msra.mxu0 0
    %1059 = vmatprep.subr.bf16.mxu0 0
    %1060 = vmatpush1.bf16.msra.mxu0 0
    %1061 = vmatprep.subr.bf16.mxu0 0
    %1062 = vmatpush1.bf16.msra.mxu0 0
    %1063 = vmatprep.subr.bf16.mxu0 0
    %1064 = vmatpush1.bf16.msra.mxu0 0
    %1065 = vmatprep.subr.bf16.mxu0 0
    %1066 = vmatpush1.bf16.msra.mxu0 0
    %1067 = vmatprep.subr.bf16.mxu0 0
    %1068 = vmatpush1.bf16.msra.mxu0 0
    %1069 = vmatprep.subr.bf16.mxu0 0
    %1070 = vmatpush1.bf16.msra.mxu0 0
    %1071 = vmatprep.subr.bf16.mxu0 0
    %1072 = vmatpush1.bf16.msra.mxu0 0
    %1073 = vmatprep.subr.bf16.mxu0 0
    %1074 = vmatpush1.bf16.msra.mxu0 0
    %1075 = vmatprep.subr.bf16.mxu0 0
    %1076 = vmatpush1.bf16.msra.mxu0 0
    %1077 = vmatprep.subr.bf16.mxu0 0
    %1078 = vmatpush1.bf16.msra.mxu0 0
    %1079 = vmatprep.subr.bf16.mxu0 0
    %1080 = vmatpush1.bf16.msra.mxu0 0
    %1081 = vmatprep.mubr.bf16.mxu0 0
    %1082 = vmatmul.mubr.bf16.gmra.mrb[0].mxu0 %v1047
    %v1083 = vpop.f32.mrb[0].mxu0
    %v1084 = vadd.f32 0.0, %v1083
    %v1085 = vpop.f32.mrb[0].mxu0
    %v1086 = vpop.f32.mrb[0].mxu0
    %v1087 = vpop.f32.mrb[0].mxu0
    %1088 = vdwg.mxu0
    %v1090 = vrot.slane %v1041, 4
    %v1092 = vadd.f32 %v1090, %v1084
    %v1093 = vxor.u32 %v1092, 2147483648
    %v1094 = vmul.f32 %v1093, 1.442695
    %v1095 = vpow.pop %v1094
    %v1096 = vadd.f32 %v1095, 1.0
    %v1097 = vrcp.pop %v1096
    %v1098 = vmul.f32 1.0, %v1097
    %v1099 = vtanh.pop %v1092
    %v1100 = vmul.f32 %v1098, %v1028
    %1102 = vrot.lane.b32.xlu0 %v1099, 64
    %v1103 = vpop.permute.xlu0 %1102
    %v1105 = vmul.f32 %v1098, %v1103
    %1107 = vrot.lane.b32.xlu0 %v1105, 32
    %v1108 = vpop.permute.xlu0 %1107
    %v1110 = vadd.f32 %v1100, %v1108
    %v1111 = vtanh.pop %v1110
    %1113 = vrot.lane.b32.xlu0 %v1111, 64
    %v1114 = vpop.permute.xlu0 %1113
    %v1116 = vmul.f32 %v1098, %v1114
    %1118 = vrot.lane.b32.xlu0 %v1116, 32
    %v1119 = vpop.permute.xlu0 %1118
    %s1121 = scalar_lea.vmem %s6, 12
    %1122 = vst.msk [vmem:[%s1121] sm:$0xf] %vm128, %v1119
    %v1123 = vld [vmem:[%s210] sm:$0xff]
    %v1124 = vpack.c.bf16 %v1116, %v1116
    %1126 = vrot.lane.b32.xlu0 %v1124, 32
    %v1127 = vpop.permute.xlu0 %1126
    %v1129 = vsel %vm51, %v1127, 0
    %1131 = vmatprep.subr.bf16.mxu0 0
    %1132 = vmatpush1.bf16.msra.mxu0 %v710
    %1133 = vmatprep.subr.bf16.mxu0 0
    %1134 = vmatpush1.bf16.msra.mxu0 %v711
    %1135 = vmatprep.subr.bf16.mxu0 0
    %1136 = vmatpush1.bf16.msra.mxu0 0
    %1137 = vmatprep.subr.bf16.mxu0 0
    %1138 = vmatpush1.bf16.msra.mxu0 0
    %1139 = vmatprep.subr.bf16.mxu0 0
    %1140 = vmatpush1.bf16.msra.mxu0 0
    %1141 = vmatprep.subr.bf16.mxu0 0
    %1142 = vmatpush1.bf16.msra.mxu0 0
    %1143 = vmatprep.subr.bf16.mxu0 0
    %1144 = vmatpush1.bf16.msra.mxu0 0
    %1145 = vmatprep.subr.bf16.mxu0 0
    %1146 = vmatpush1.bf16.msra.mxu0 0
    %1147 = vmatprep.subr.bf16.mxu0 0
    %1148 = vmatpush1.bf16.msra.mxu0 0
    %1149 = vmatprep.subr.bf16.mxu0 0
    %1150 = vmatpush1.bf16.msra.mxu0 0
    %1151 = vmatprep.subr.bf16.mxu0 0
    %1152 = vmatpush1.bf16.msra.mxu0 0
    %1153 = vmatprep.subr.bf16.mxu0 0
    %1154 = vmatpush1.bf16.msra.mxu0 0
    %1155 = vmatprep.subr.bf16.mxu0 0
    %1156 = vmatpush1.bf16.msra.mxu0 0
    %1157 = vmatprep.subr.bf16.mxu0 0
    %1158 = vmatpush1.bf16.msra.mxu0 0
    %1159 = vmatprep.subr.bf16.mxu0 0
    %1160 = vmatpush1.bf16.msra.mxu0 0
    %1161 = vmatprep.subr.bf16.mxu0 0
    %1162 = vmatpush1.bf16.msra.mxu0 0
    %1163 = vmatprep.mubr.bf16.mxu0 0
    %1164 = vmatmul.mubr.bf16.gmra.mrb[0].mxu0 %v1129
    %v1165 = vpop.f32.mrb[0].mxu0
    %v1166 = vadd.f32 0.0, %v1165
    %v1167 = vpop.f32.mrb[0].mxu0
    %v1168 = vpop.f32.mrb[0].mxu0
    %v1169 = vpop.f32.mrb[0].mxu0
    %1170 = vdwg.mxu0
    %v1172 = vrot.slane %v1123, 4
    %v1174 = vadd.f32 %v1172, %v1166
    %v1175 = vxor.u32 %v1174, 2147483648
    %v1176 = vmul.f32 %v1175, 1.442695
    %v1177 = vpow.pop %v1176
    %v1178 = vadd.f32 %v1177, 1.0
    %v1179 = vrcp.pop %v1178
    %v1180 = vmul.f32 1.0, %v1179
    %v1181 = vtanh.pop %v1174
    %v1182 = vmul.f32 %v1180, %v1110
    %1184 = vrot.lane.b32.xlu0 %v1181, 64
    %v1185 = vpop.permute.xlu0 %1184
    %v1187 = vmul.f32 %v1180, %v1185
    %1189 = vrot.lane.b32.xlu0 %v1187, 32
    %v1190 = vpop.permute.xlu0 %1189
    %v1192 = vadd.f32 %v1182, %v1190
    %v1193 = vtanh.pop %v1192
    %1195 = vrot.lane.b32.xlu0 %v1193, 64
    %v1196 = vpop.permute.xlu0 %1195
    %v1198 = vmul.f32 %v1180, %v1196
    %1200 = vrot.lane.b32.xlu0 %v1198, 32
    %v1201 = vpop.permute.xlu0 %1200
    %s1203 = scalar_lea.vmem %s6, 8
    %1204 = vst.msk [vmem:[%s1203] sm:$0xf] %vm128, %v1201
    %v1205 = vld [vmem:[%s130] sm:$0xff]
    %v1206 = vpack.c.bf16 %v1198, %v1198
    %1208 = vrot.lane.b32.xlu0 %v1206, 32
    %v1209 = vpop.permute.xlu0 %1208
    %v1211 = vsel %vm51, %v1209, 0
    %1213 = vmatprep.subr.bf16.mxu0 0
    %1214 = vmatpush1.bf16.msra.mxu0 %v710
    %1215 = vmatprep.subr.bf16.mxu0 0
    %1216 = vmatpush1.bf16.msra.mxu0 %v711
    %1217 = vmatprep.subr.bf16.mxu0 0
    %1218 = vmatpush1.bf16.msra.mxu0 0
    %1219 = vmatprep.subr.bf16.mxu0 0
    %1220 = vmatpush1.bf16.msra.mxu0 0
    %1221 = vmatprep.subr.bf16.mxu0 0
    %1222 = vmatpush1.bf16.msra.mxu0 0
    %1223 = vmatprep.subr.bf16.mxu0 0
    %1224 = vmatpush1.bf16.msra.mxu0 0
    %1225 = vmatprep.subr.bf16.mxu0 0
    %1226 = vmatpush1.bf16.msra.mxu0 0
    %1227 = vmatprep.subr.bf16.mxu0 0
    %1228 = vmatpush1.bf16.msra.mxu0 0
    %1229 = vmatprep.subr.bf16.mxu0 0
    %1230 = vmatpush1.bf16.msra.mxu0 0
    %1231 = vmatprep.subr.bf16.mxu0 0
    %1232 = vmatpush1.bf16.msra.mxu0 0
    %1233 = vmatprep.subr.bf16.mxu0 0
    %1234 = vmatpush1.bf16.msra.mxu0 0
    %1235 = vmatprep.subr.bf16.mxu0 0
    %1236 = vmatpush1.bf16.msra.mxu0 0
    %1237 = vmatprep.subr.bf16.mxu0 0
    %1238 = vmatpush1.bf16.msra.mxu0 0
    %1239 = vmatprep.subr.bf16.mxu0 0
    %1240 = vmatpush1.bf16.msra.mxu0 0
    %1241 = vmatprep.subr.bf16.mxu0 0
    %1242 = vmatpush1.bf16.msra.mxu0 0
    %1243 = vmatprep.subr.bf16.mxu0 0
    %1244 = vmatpush1.bf16.msra.mxu0 0
    %1245 = vmatprep.mubr.bf16.mxu0 0
    %1246 = vmatmul.mubr.bf16.gmra.mrb[0].mxu0 %v1211
    %v1247 = vpop.f32.mrb[0].mxu0
    %v1248 = vadd.f32 0.0, %v1247
    %v1249 = vpop.f32.mrb[0].mxu0
    %v1250 = vpop.f32.mrb[0].mxu0
    %v1251 = vpop.f32.mrb[0].mxu0
    %1252 = vdwg.mxu0
    %v1254 = vrot.slane %v1205, 4
    %v1256 = vadd.f32 %v1254, %v1248
    %v1257 = vxor.u32 %v1256, 2147483648
    %v1258 = vmul.f32 %v1257, 1.442695
    %v1259 = vpow.pop %v1258
    %v1260 = vadd.f32 %v1259, 1.0
    %v1261 = vrcp.pop %v1260
    %v1262 = vmul.f32 1.0, %v1261
    %v1263 = vtanh.pop %v1256
    %v1264 = vmul.f32 %v1262, %v1192
    %1266 = vrot.lane.b32.xlu0 %v1263, 64
    %v1267 = vpop.permute.xlu0 %1266
    %v1269 = vmul.f32 %v1262, %v1267
    %1271 = vrot.lane.b32.xlu0 %v1269, 32
    %v1272 = vpop.permute.xlu0 %1271
    %v1274 = vadd.f32 %v1264, %v1272
    %v1275 = vtanh.pop %v1274
    %1277 = vrot.lane.b32.xlu0 %v1275, 64
    %v1278 = vpop.permute.xlu0 %1277
    %v1280 = vmul.f32 %v1262, %v1278
    %1282 = vrot.lane.b32.xlu0 %v1280, 32
    %v1283 = vpop.permute.xlu0 %1282
    %s1285 = scalar_lea.vmem %s6, 4
    %1286 = vst.msk [vmem:[%s1285] sm:$0xf] %vm128, %v1283
    %v1287 = vld [vmem:[%s0] sm:$0xff]
    %v1288 = vpack.c.bf16 %v1280, %v1280
    %1290 = vrot.lane.b32.xlu0 %v1288, 32
    %v1291 = vpop.permute.xlu0 %1290
    %v1293 = vsel %vm51, %v1291, 0
    %1295 = vmatprep.subr.bf16.mxu0 0
    %1296 = vmatpush1.bf16.msra.mxu0 %v710
    %1297 = vmatprep.subr.bf16.mxu0 0
    %1298 = vmatpush1.bf16.msra.mxu0 %v711
    %1299 = vmatprep.subr.bf16.mxu0 0
    %1300 = vmatpush1.bf16.msra.mxu0 0
    %1301 = vmatprep.subr.bf16.mxu0 0
    %1302 = vmatpush1.bf16.msra.mxu0 0
    %1303 = vmatprep.subr.bf16.mxu0 0
    %1304 = vmatpush1.bf16.msra.mxu0 0
    %1305 = vmatprep.subr.bf16.mxu0 0
    %1306 = vmatpush1.bf16.msra.mxu0 0
    %1307 = vmatprep.subr.bf16.mxu0 0
    %1308 = vmatpush1.bf16.msra.mxu0 0
    %1309 = vmatprep.subr.bf16.mxu0 0
    %1310 = vmatpush1.bf16.msra.mxu0 0
    %1311 = vmatprep.subr.bf16.mxu0 0
    %1312 = vmatpush1.bf16.msra.mxu0 0
    %1313 = vmatprep.subr.bf16.mxu0 0
    %1314 = vmatpush1.bf16.msra.mxu0 0
    %1315 = vmatprep.subr.bf16.mxu0 0
    %1316 = vmatpush1.bf16.msra.mxu0 0
    %1317 = vmatprep.subr.bf16.mxu0 0
    %1318 = vmatpush1.bf16.msra.mxu0 0
    %1319 = vmatprep.subr.bf16.mxu0 0
    %1320 = vmatpush1.bf16.msra.mxu0 0
    %1321 = vmatprep.subr.bf16.mxu0 0
    %1322 = vmatpush1.bf16.msra.mxu0 0
    %1323 = vmatprep.subr.bf16.mxu0 0
    %1324 = vmatpush1.bf16.msra.mxu0 0
    %1325 = vmatprep.subr.bf16.mxu0 0
    %1326 = vmatpush1.bf16.msra.mxu0 0
    %1327 = vmatprep.mubr.bf16.mxu0 0
    %1328 = vmatmul.mubr.bf16.gmra.mrb[0].mxu0 %v1293
    %v1329 = vpop.f32.mrb[0].mxu0
    %v1330 = vadd.f32 0.0, %v1329
    %v1331 = vpop.f32.mrb[0].mxu0
    %v1332 = vpop.f32.mrb[0].mxu0
    %v1333 = vpop.f32.mrb[0].mxu0
    %1334 = vdwg.mxu0
    %v1336 = vrot.slane %v1287, 4
    %v1338 = vadd.f32 %v1336, %v1330
    %v1339 = vxor.u32 %v1338, 2147483648
    %v1340 = vmul.f32 %v1339, 1.442695
    %v1341 = vpow.pop %v1340
    %v1342 = vadd.f32 %v1341, 1.0
    %v1343 = vrcp.pop %v1342
    %v1344 = vmul.f32 1.0, %v1343
    %v1345 = vtanh.pop %v1338
    %v1346 = vmul.f32 %v1344, %v1274
    %1348 = vrot.lane.b32.xlu0 %v1345, 64
    %v1349 = vpop.permute.xlu0 %1348
    %v1351 = vmul.f32 %v1344, %v1349
    %1353 = vrot.lane.b32.xlu0 %v1351, 32
    %v1354 = vpop.permute.xlu0 %1353
    %v1356 = vadd.f32 %v1346, %v1354
    %v1357 = vtanh.pop %v1356
    %1359 = vrot.lane.b32.xlu0 %v1357, 64
    %v1360 = vpop.permute.xlu0 %1359
    %v1362 = vmul.f32 %v1344, %v1360
    %1364 = vrot.lane.b32.xlu0 %v1362, 32
    %v1365 = vpop.permute.xlu0 %1364
    %1367 = vst.msk [vmem:[%s6] sm:$0xf] %vm128, %v1365
    %s1368 = scalar_lea.vmem [#allocation2], 4
    %1369 = vst.msk [vmem:[%s1368] sm:$0xf] %vm128, %v1365
    %1371 = vrot.lane.b32.xlu0 %v1356, 96
    %v1372 = vpop.permute.xlu0 %1371
    %s1374 = scalar_lea.vmem [#allocation4], 4
    %1375 = vst.msk [vmem:[%s1374] sm:$0xf] %vm128, %v1372
    // Predicated region
    $region22: #{drcn_forward.24} parent=1 // pred_check
      _
    $region23: #{drcn_forward.24} parent=1 // pred_check_branch
      %1377 = sbr.rel (0) target = $region25
    $region24: #{drcn_forward.24} parent=1 // pred_region
      _
    $region25: #{drcn_forward.24} parent=1 // pred_fallthru
      _
    // Predicated region
    $region26: #{drcn_forward.24} parent=1 // pred_check
      _
    $region27: #{drcn_forward.24} parent=1 // pred_check_branch
      %1379 = sbr.rel (0) target = $region29
    $region28: #{drcn_forward.24} parent=1 // pred_region
      _
    $region29: #{drcn_forward.24} parent=1 // pred_fallthru
      _
    // Predicated region
    $region30: #{drcn_forward.24} parent=1 // pred_check
      _
    $region31: #{drcn_forward.24} parent=1 // pred_check_branch
      %1381 = sbr.rel (0) target = $region33
    $region32: #{drcn_forward.24} parent=1 // pred_region
      %s1383 = ssub.s32 128, 128
      %1384 = vsyncadd [#allocation3], %s1383
      %s1385 = sshll.u32 [#allocation2], 4
      %s1386 = int_to_ptr.vmem [resolvable:$true] %s1385
      %1391 = dma.vmem_to_hbm [thread:$0]  %s1386, 128, %s7, [#allocation3], 64, 64, 4
    $region33: #{drcn_forward.24} parent=1 // pred_fallthru
      _
    // Predicated region
    $region34: #{drcn_forward.24} parent=1 // pred_check
      _
    $region35: #{drcn_forward.24} parent=1 // pred_check_branch
      %1393 = sbr.rel (0) target = $region37
    $region36: #{drcn_forward.24} parent=1 // pred_region
      %s1395 = ssub.s32 128, 128
      %1396 = vsyncadd [#allocation5], %s1395
      %s1397 = sshll.u32 [#allocation4], 4
      %s1398 = int_to_ptr.vmem [resolvable:$true] %s1397
      %1403 = dma.vmem_to_hbm [thread:$0]  %s1398, 128, %s8, [#allocation5], 64, 64, 4
    $region37: #{drcn_forward.24} parent=1 // pred_fallthru
      _
    // Predicated region
    $region38: #{drcn_forward.24} parent=1 // pred_check
      _
    $region39: #{drcn_forward.24} parent=1 // pred_check_branch
      %1405 = sbr.rel (0) target = $region41
    $region40: #{drcn_forward.24} parent=1 // pred_region
      _
    $region41: #{drcn_forward.24} parent=1 // pred_fallthru
      _
    // Predicated region
    $region42: #{drcn_forward.24} parent=1 // pred_check
      _
    $region43: #{drcn_forward.24} parent=1 // pred_check_branch
      %1407 = sbr.rel (0) target = $region45
    $region44: #{drcn_forward.24} parent=1 // pred_region
      _
    $region45: #{drcn_forward.24} parent=1 // pred_fallthru
      _
    // Predicated region
    $region46: #{drcn_forward.24} parent=1 // pred_check
      _
    $region47: #{drcn_forward.24} parent=1 // pred_check_branch
      %1409 = sbr.rel (0) target = $region49
    $region48: #{drcn_forward.24} parent=1 // pred_region
      %1410 = dma.done [#allocation3], 128
    $region49: #{drcn_forward.24} parent=1 // pred_fallthru
      _
    // Predicated region
    $region50: #{drcn_forward.24} parent=1 // pred_check
      _
    $region51: #{drcn_forward.24} parent=1 // pred_check_branch
      %1412 = sbr.rel (0) target = $region53
    $region52: #{drcn_forward.24} parent=1 // pred_region
      %1413 = dma.done [#allocation5], 128
    $region53: #{drcn_forward.24} parent=1 // pred_fallthru
      _
    %1414 = vsyncpa [#allocation3], 1
    %1415 = vsyncpa [#allocation5], 1

// kernel: drcn_forward.28
$region0: #{drcn_forward.28}
  #allocation0 [shape = 'u32[]', space=smem, size = 0x4, offset = 0x4, fixed_abs, tag = 'smem constant byte address 0x4 - core index']
  #allocation1 [shape = 'u32[144,128]{1,0:T(1,128)}', space=vmem, size = 0x12000, scoped, tag = 'internal scratch']
  %s0 = inlined_call_operand.vmem [shape: bf16[2,640], index: 0, kind: input, shape index: {}]
  %s1 = inlined_call_operand.vmem [shape: bf16[640,320], index: 1, kind: input, shape index: {}]
  %s2 = inlined_call_operand.vmem [shape: f32[1,320], index: 2, kind: input, shape index: {}]
  %s3 = inlined_call_operand.vmem [shape: f32[2,320], index: 3, kind: output, shape index: {}]
  %s4 = sld [smem:[#allocation0]]
  $region22: #{drcn_forward.28} parent=0
    _
  %s6 = ssub.s32 1, %s4
  %s7 = scalar_select 0, %s6, %s4
  // Predicated region
  $region2: #{drcn_forward.28} parent=0 // pred_check
    _
  $region3: #{drcn_forward.28} parent=0 // pred_check_branch
    %9 = sbr.rel (0) target = $region5
  $region4: #{drcn_forward.28} parent=0 // pred_region
    _
  $region5: #{drcn_forward.28} parent=0 // pred_fallthru
    _
  // Predicated region
  $region6: #{drcn_forward.28} parent=0 // pred_check
    _
  $region7: #{drcn_forward.28} parent=0 // pred_check_branch
    %11 = sbr.rel (0) target = $region9
  $region8: #{drcn_forward.28} parent=0 // pred_region
    _
  $region9: #{drcn_forward.28} parent=0 // pred_fallthru
    _
  // Predicated region
  $region10: #{drcn_forward.28} parent=0 // pred_check
    _
  $region11: #{drcn_forward.28} parent=0 // pred_check_branch
    %13 = sbr.rel (0) target = $region13
  $region12: #{drcn_forward.28} parent=0 // pred_region
    _
  $region13: #{drcn_forward.28} parent=0 // pred_fallthru
    _
  %v15 = vld [vmem:[%s0] sm:$0x1f]
  %v16 = vld [vmem:[%s1] sm:$0xff]
  %v17 = vld [vmem:[%s1 + $0x8] sm:$0xf]
  %v18 = vld [vmem:[%s1 + $0xc] sm:$0xff]
  %v19 = vld [vmem:[%s1 + $0x14] sm:$0xf]
  %v20 = vld [vmem:[%s1 + $0x18] sm:$0xff]
  %v21 = vld [vmem:[%s1 + $0x20] sm:$0xf]
  %v22 = vld [vmem:[%s1 + $0x24] sm:$0xff]
  %v23 = vld [vmem:[%s1 + $0x2c] sm:$0xf]
  %v24 = vld [vmem:[%s1 + $0x30] sm:$0xff]
  %v25 = vld [vmem:[%s1 + $0x38] sm:$0xf]
  %v26 = vld [vmem:[%s1 + $0x3c] sm:$0xff]
  %v27 = vld [vmem:[%s1 + $0x44] sm:$0xf]
  %v28 = vld [vmem:[%s1 + $0x48] sm:$0xff]
  %v29 = vld [vmem:[%s1 + $0x50] sm:$0xf]
  %v30 = vld [vmem:[%s1 + $0x54] sm:$0xff]
  %v31 = vld [vmem:[%s1 + $0x5c] sm:$0xf]
  %v32 = vld [vmem:[%s1 + $0x60] sm:$0xff]
  %v33 = vld [vmem:[%s1 + $0x68] sm:$0xf]
  %v34 = vld [vmem:[%s1 + $0x6c] sm:$0xff]
  %v35 = vld [vmem:[%s1 + $0x74] sm:$0xf]
  %v36 = vld [vmem:[%s1 + $0x78] sm:$0xff]
  %v37 = vld [vmem:[%s1 + $0x80] sm:$0xf]
  %v38 = vld [vmem:[%s1 + $0x84] sm:$0xff]
  %v39 = vld [vmem:[%s1 + $0x8c] sm:$0xf]
  %v40 = vld [vmem:[%s1 + $0x90] sm:$0xff]
  %v41 = vld [vmem:[%s1 + $0x98] sm:$0xf]
  %v42 = vld [vmem:[%s1 + $0x9c] sm:$0xff]
  %v43 = vld [vmem:[%s1 + $0xa4] sm:$0xf]
  %v44 = vld [vmem:[%s1 + $0xa8] sm:$0xff]
  %v45 = vld [vmem:[%s1 + $0xb0] sm:$0xf]
  %v46 = vld [vmem:[%s1 + $0xb4] sm:$0xff]
  %v47 = vld [vmem:[%s1 + $0xbc] sm:$0xf]
  %v48 = vld [vmem:[%s1 + $0xc0] sm:$0xff]
  %v49 = vld [vmem:[%s1 + $0xc8] sm:$0xf]
  %v50 = vld [vmem:[%s1 + $0xcc] sm:$0xff]
  %v51 = vld [vmem:[%s1 + $0xd4] sm:$0xf]
  %v52 = vld [vmem:[%s1 + $0xd8] sm:$0xff]
  %v53 = vld [vmem:[%s1 + $0xe0] sm:$0xf]
  %v54 = vld [vmem:[%s1 + $0xe4] sm:$0xff]
  %v55 = vld [vmem:[%s1 + $0xec] sm:$0xf]
  %v56 = vld [vmem:[%s1 + $0xf0] sm:$0xff]
  %v57 = vld [vmem:[%s1 + $0xf8] sm:$0xf]
  %v58 = vld [vmem:[%s1 + $0xfc] sm:$0xff]
  %v59 = vld [vmem:[%s1 + $0x104] sm:$0xf]
  %v60 = vld [vmem:[%s1 + $0x108] sm:$0xff]
  %v61 = vld [vmem:[%s1 + $0x110] sm:$0xf]
  %v62 = vld [vmem:[%s1 + $0x114] sm:$0xff]
  %v63 = vld [vmem:[%s1 + $0x11c] sm:$0xf]
  %v64 = vld [vmem:[%s1 + $0x120] sm:$0xff]
  %v65 = vld [vmem:[%s1 + $0x128] sm:$0xf]
  %v66 = vld [vmem:[%s1 + $0x12c] sm:$0xff]
  %v67 = vld [vmem:[%s1 + $0x134] sm:$0xf]
  %v68 = vld [vmem:[%s1 + $0x138] sm:$0xff]
  %v69 = vld [vmem:[%s1 + $0x140] sm:$0xf]
  %v70 = vld [vmem:[%s1 + $0x144] sm:$0xff]
  %v71 = vld [vmem:[%s1 + $0x14c] sm:$0xf]
  %v72 = vld [vmem:[%s1 + $0x150] sm:$0xff]
  %v73 = vld [vmem:[%s1 + $0x158] sm:$0xf]
  %v74 = vld [vmem:[%s1 + $0x15c] sm:$0xff]
  %v75 = vld [vmem:[%s1 + $0x164] sm:$0xf]
  %v76 = vld [vmem:[%s1 + $0x168] sm:$0xff]
  %v77 = vld [vmem:[%s1 + $0x170] sm:$0xf]
  %v78 = vld [vmem:[%s1 + $0x174] sm:$0xff]
  %v79 = vld [vmem:[%s1 + $0x17c] sm:$0xf]
  %v80 = vld [vmem:[%s1 + $0x180] sm:$0xff]
  %v81 = vld [vmem:[%s1 + $0x188] sm:$0xf]
  %v82 = vld [vmem:[%s1 + $0x18c] sm:$0xff]
  %v83 = vld [vmem:[%s1 + $0x194] sm:$0xf]
  %v84 = vld [vmem:[%s1 + $0x198] sm:$0xff]
  %v85 = vld [vmem:[%s1 + $0x1a0] sm:$0xf]
  %v86 = vld [vmem:[%s1 + $0x1a4] sm:$0xff]
  %v87 = vld [vmem:[%s1 + $0x1ac] sm:$0xf]
  %v88 = vld [vmem:[%s1 + $0x1b0] sm:$0xff]
  %v89 = vld [vmem:[%s1 + $0x1b8] sm:$0xf]
  %v90 = vld [vmem:[%s1 + $0x1bc] sm:$0xff]
  %v91 = vld [vmem:[%s1 + $0x1c4] sm:$0xf]
  %v92 = vld [vmem:[%s1 + $0x1c8] sm:$0xff]
  %v93 = vld [vmem:[%s1 + $0x1d0] sm:$0xf]
  %v94 = vld [vmem:[%s1 + $0x1d4] sm:$0xff]
  %v95 = vld [vmem:[%s1 + $0x1dc] sm:$0xf]
  %v96 = vld [vmem:[%s1 + $0x1e0] sm:$0xff]
  %v97 = vld [vmem:[%s1 + $0x1e8] sm:$0xf]
  %v98 = vld [vmem:[%s1 + $0x1ec] sm:$0xff]
  %v99 = vld [vmem:[%s1 + $0x1f4] sm:$0xf]
  %v100 = vld [vmem:[%s1 + $0x1f8] sm:$0xff]
  %v101 = vld [vmem:[%s1 + $0x200] sm:$0xf]
  %v102 = vld [vmem:[%s1 + $0x204] sm:$0xff]
  %v103 = vld [vmem:[%s1 + $0x20c] sm:$0xf]
  %v104 = vld [vmem:[%s1 + $0x210] sm:$0xff]
  %v105 = vld [vmem:[%s1 + $0x218] sm:$0xf]
  %v106 = vld [vmem:[%s1 + $0x21c] sm:$0xff]
  %v107 = vld [vmem:[%s1 + $0x224] sm:$0xf]
  %v108 = vld [vmem:[%s1 + $0x228] sm:$0xff]
  %v109 = vld [vmem:[%s1 + $0x230] sm:$0xf]
  %v110 = vld [vmem:[%s1 + $0x234] sm:$0xff]
  %v111 = vld [vmem:[%s1 + $0x23c] sm:$0xf]
  %v112 = vld [vmem:[%s1 + $0x240] sm:$0xff]
  %v113 = vld [vmem:[%s1 + $0x248] sm:$0xf]
  %v114 = vld [vmem:[%s1 + $0x24c] sm:$0xff]
  %v115 = vld [vmem:[%s1 + $0x254] sm:$0xf]
  %v116 = vld [vmem:[%s1 + $0x258] sm:$0xff]
  %v117 = vld [vmem:[%s1 + $0x260] sm:$0xf]
  %v118 = vld [vmem:[%s1 + $0x264] sm:$0xff]
  %v119 = vld [vmem:[%s1 + $0x26c] sm:$0xf]
  %v120 = vld [vmem:[%s1 + $0x270] sm:$0xff]
  %v121 = vld [vmem:[%s1 + $0x278] sm:$0xf]
  %v122 = vld [vmem:[%s1 + $0x27c] sm:$0xff]
  %v123 = vld [vmem:[%s1 + $0x284] sm:$0xf]
  %v124 = vld [vmem:[%s1 + $0x288] sm:$0xff]
  %v125 = vld [vmem:[%s1 + $0x290] sm:$0xf]
  %v126 = vld [vmem:[%s1 + $0x294] sm:$0xff]
  %v127 = vld [vmem:[%s1 + $0x29c] sm:$0xf]
  %v128 = vld [vmem:[%s1 + $0x2a0] sm:$0xff]
  %v129 = vld [vmem:[%s1 + $0x2a8] sm:$0xf]
  %v130 = vld [vmem:[%s1 + $0x2ac] sm:$0xff]
  %v131 = vld [vmem:[%s1 + $0x2b4] sm:$0xf]
  %v132 = vld [vmem:[%s1 + $0x2b8] sm:$0xff]
  %v133 = vld [vmem:[%s1 + $0x2c0] sm:$0xf]
  %v134 = vld [vmem:[%s1 + $0x2c4] sm:$0xff]
  %v135 = vld [vmem:[%s1 + $0x2cc] sm:$0xf]
  %v136 = vld [vmem:[%s1 + $0x2d0] sm:$0xff]
  %v137 = vld [vmem:[%s1 + $0x2d8] sm:$0xf]
  %v138 = vld [vmem:[%s1 + $0x2dc] sm:$0xff]
  %v139 = vld [vmem:[%s1 + $0x2e4] sm:$0xf]
  %v140 = vld [vmem:[%s1 + $0x2e8] sm:$0xff]
  %v141 = vld [vmem:[%s1 + $0x2f0] sm:$0xf]
  %v142 = vld [vmem:[%s1 + $0x2f4] sm:$0xff]
  %v143 = vld [vmem:[%s1 + $0x2fc] sm:$0xf]
  %v144 = vld [vmem:[%s1 + $0x300] sm:$0xff]
  %v145 = vld [vmem:[%s1 + $0x308] sm:$0xf]
  %v146 = vld [vmem:[%s1 + $0x30c] sm:$0xff]
  %v147 = vld [vmem:[%s1 + $0x314] sm:$0xf]
  %v148 = vld [vmem:[%s1 + $0x318] sm:$0xff]
  %v149 = vld [vmem:[%s1 + $0x320] sm:$0xf]
  %v150 = vld [vmem:[%s1 + $0x324] sm:$0xff]
  %v151 = vld [vmem:[%s1 + $0x32c] sm:$0xf]
  %v152 = vld [vmem:[%s1 + $0x330] sm:$0xff]
  %v153 = vld [vmem:[%s1 + $0x338] sm:$0xf]
  %v154 = vld [vmem:[%s1 + $0x33c] sm:$0xff]
  %v155 = vld [vmem:[%s1 + $0x344] sm:$0xf]
  %v156 = vld [vmem:[%s1 + $0x348] sm:$0xff]
  %v157 = vld [vmem:[%s1 + $0x350] sm:$0xf]
  %v158 = vld [vmem:[%s1 + $0x354] sm:$0xff]
  %v159 = vld [vmem:[%s1 + $0x35c] sm:$0xf]
  %v160 = vld [vmem:[%s1 + $0x360] sm:$0xff]
  %v161 = vld [vmem:[%s1 + $0x368] sm:$0xf]
  %v162 = vld [vmem:[%s1 + $0x36c] sm:$0xff]
  %v163 = vld [vmem:[%s1 + $0x374] sm:$0xf]
  %v164 = vld [vmem:[%s1 + $0x378] sm:$0xff]
  %v165 = vld [vmem:[%s1 + $0x380] sm:$0xf]
  %v166 = vld [vmem:[%s1 + $0x384] sm:$0xff]
  %v167 = vld [vmem:[%s1 + $0x38c] sm:$0xf]
  %v168 = vld [vmem:[%s1 + $0x390] sm:$0xff]
  %v169 = vld [vmem:[%s1 + $0x398] sm:$0xf]
  %v170 = vld [vmem:[%s1 + $0x39c] sm:$0xff]
  %v171 = vld [vmem:[%s1 + $0x3a4] sm:$0xf]
  %v172 = vld [vmem:[%s1 + $0x3a8] sm:$0xff]
  %v173 = vld [vmem:[%s1 + $0x3b0] sm:$0xf]
  %v174 = vld [vmem:[%s1 + $0x3b4] sm:$0xff]
  %v175 = vld [vmem:[%s1 + $0x3bc] sm:$0xf]
  %v176 = vld [vmem:[%s2] sm:$0x7]
  %v178 = vlaneseq
  %v179 = vshrl.u32 %v178, 7
  %v180 = vsub.s32 0, %v179
  %v181 = vrot.slane %v176, %v180
  %v182 = vlaneseq
  %v183 = vshrl.u32 %v182, 7
  %v184 = vsub.s32 1, %v183
  %v185 = vrot.slane %v176, %v184
  %v186 = vlaneseq
  %v187 = vshrl.u32 %v186, 7
  %v188 = vsub.s32 2, %v187
  %v189 = vrot.slane %v176, %v188
  %v194 = vcombine.high %v15, %v15
  %v196 = vunpack.c.l.s4 1966171168
  %v197 = vunpack.c.0.s8 %v196
  %v198 = vlaneseq
  %v199 = vshrl.u32 %v198, 7
  %v200 = vsub.s32 %v197, %v199
  %v201 = vrot.slane %v15, %v200
  %v203 = vunpack.c.l.s4 1966171168
  %v204 = vunpack.c.0.s8 %v203
  %v205 = vlaneseq
  %v206 = vshrl.u32 %v205, 7
  %v207 = vsub.s32 %v204, %v206
  %v208 = vrot.slane %v194, %v207
  %v209 = vcombine.high %v201, %v201
  %v211 = vunpack.c.l.s4 1966171168
  %v212 = vunpack.c.0.s8 %v211
  %v213 = vlaneseq
  %v214 = vshrl.u32 %v213, 7
  %v215 = vsub.s32 %v212, %v214
  %v216 = vrot.slane %v201, %v215
  %v218 = vunpack.c.l.s4 1966171168
  %v219 = vunpack.c.0.s8 %v218
  %v220 = vlaneseq
  %v221 = vshrl.u32 %v220, 7
  %v222 = vsub.s32 %v219, %v221
  %v223 = vrot.slane %v208, %v222
  %v225 = vunpack.c.l.s4 1966171168
  %v226 = vunpack.c.0.s8 %v225
  %v227 = vlaneseq
  %v228 = vshrl.u32 %v227, 7
  %v229 = vsub.s32 %v226, %v228
  %v230 = vrot.slane %v209, %v229
  %v231 = vcombine.high %v216, %v216
  %v232 = vcombine.high %v230, %v230
  %v398 = vunpack.c.l.b16 %v16
  %v399 = vunpack.c.h.b16 %v16
  %v400 = vunpack.c.l.b16 %v17
  %v401 = vunpack.c.l.b16 %v18
  %v402 = vunpack.c.h.b16 %v18
  %v403 = vunpack.c.l.b16 %v19
  %v404 = vunpack.c.l.b16 %v20
  %v405 = vunpack.c.h.b16 %v20
  %v406 = vunpack.c.l.b16 %v21
  %v407 = vunpack.c.l.b16 %v22
  %v408 = vunpack.c.h.b16 %v22
  %v409 = vunpack.c.l.b16 %v23
  %v410 = vunpack.c.l.b16 %v24
  %v411 = vunpack.c.h.b16 %v24
  %v412 = vunpack.c.l.b16 %v25
  %v413 = vunpack.c.l.b16 %v26
  %v414 = vunpack.c.h.b16 %v26
  %v415 = vunpack.c.l.b16 %v27
  %v416 = vunpack.c.l.b16 %v28
  %v417 = vunpack.c.h.b16 %v28
  %v418 = vunpack.c.l.b16 %v29
  %v419 = vunpack.c.l.b16 %v30
  %v420 = vunpack.c.h.b16 %v30
  %v421 = vunpack.c.l.b16 %v31
  %v422 = vunpack.c.l.b16 %v32
  %v423 = vunpack.c.h.b16 %v32
  %v424 = vunpack.c.l.b16 %v33
  %v425 = vunpack.c.l.b16 %v34
  %v426 = vunpack.c.h.b16 %v34
  %v427 = vunpack.c.l.b16 %v35
  %v428 = vunpack.c.l.b16 %v36
  %v429 = vunpack.c.h.b16 %v36
  %v430 = vunpack.c.l.b16 %v37
  %v431 = vunpack.c.l.b16 %v38
  %v432 = vunpack.c.h.b16 %v38
  %v433 = vunpack.c.l.b16 %v39
  %v434 = vunpack.c.l.b16 %v40
  %v435 = vunpack.c.h.b16 %v40
  %v436 = vunpack.c.l.b16 %v41
  %v437 = vunpack.c.l.b16 %v42
  %v438 = vunpack.c.h.b16 %v42
  %v439 = vunpack.c.l.b16 %v43
  %v440 = vunpack.c.l.b16 %v44
  %v441 = vunpack.c.h.b16 %v44
  %v442 = vunpack.c.l.b16 %v45
  %v443 = vunpack.c.l.b16 %v46
  %v444 = vunpack.c.h.b16 %v46
  %v445 = vunpack.c.l.b16 %v47
  %v446 = vunpack.c.l.b16 %v48
  %v447 = vunpack.c.h.b16 %v48
  %v448 = vunpack.c.l.b16 %v49
  %v449 = vunpack.c.l.b16 %v50
  %v450 = vunpack.c.h.b16 %v50
  %v451 = vunpack.c.l.b16 %v51
  %v452 = vunpack.c.l.b16 %v52
  %v453 = vunpack.c.h.b16 %v52
  %v454 = vunpack.c.l.b16 %v53
  %v455 = vunpack.c.l.b16 %v54
  %v456 = vunpack.c.h.b16 %v54
  %v457 = vunpack.c.l.b16 %v55
  %v458 = vunpack.c.l.b16 %v56
  %v459 = vunpack.c.h.b16 %v56
  %v460 = vunpack.c.l.b16 %v57
  %v461 = vunpack.c.l.b16 %v58
  %v462 = vunpack.c.h.b16 %v58
  %v463 = vunpack.c.l.b16 %v59
  %v464 = vunpack.c.l.b16 %v60
  %v465 = vunpack.c.h.b16 %v60
  %v466 = vunpack.c.l.b16 %v61
  %v467 = vunpack.c.l.b16 %v62
  %v468 = vunpack.c.h.b16 %v62
  %v469 = vunpack.c.l.b16 %v63
  %v470 = vunpack.c.l.b16 %v64
  %v471 = vunpack.c.h.b16 %v64
  %v472 = vunpack.c.l.b16 %v65
  %v473 = vunpack.c.l.b16 %v66
  %v474 = vunpack.c.h.b16 %v66
  %v475 = vunpack.c.l.b16 %v67
  %v476 = vunpack.c.l.b16 %v68
  %v477 = vunpack.c.h.b16 %v68
  %v478 = vunpack.c.l.b16 %v69
  %v479 = vunpack.c.l.b16 %v70
  %v480 = vunpack.c.h.b16 %v70
  %v481 = vunpack.c.l.b16 %v71
  %v482 = vunpack.c.l.b16 %v72
  %v483 = vunpack.c.h.b16 %v72
  %v484 = vunpack.c.l.b16 %v73
  %v485 = vunpack.c.l.b16 %v74
  %v486 = vunpack.c.h.b16 %v74
  %v487 = vunpack.c.l.b16 %v75
  %v488 = vunpack.c.l.b16 %v76
  %v489 = vunpack.c.h.b16 %v76
  %v490 = vunpack.c.l.b16 %v77
  %v491 = vunpack.c.l.b16 %v78
  %v492 = vunpack.c.h.b16 %v78
  %v493 = vunpack.c.l.b16 %v79
  %v494 = vunpack.c.l.b16 %v80
  %v495 = vunpack.c.h.b16 %v80
  %v496 = vunpack.c.l.b16 %v81
  %v497 = vunpack.c.l.b16 %v82
  %v498 = vunpack.c.h.b16 %v82
  %v499 = vunpack.c.l.b16 %v83
  %v500 = vunpack.c.l.b16 %v84
  %v501 = vunpack.c.h.b16 %v84
  %v502 = vunpack.c.l.b16 %v85
  %v503 = vunpack.c.l.b16 %v86
  %v504 = vunpack.c.h.b16 %v86
  %v505 = vunpack.c.l.b16 %v87
  %v506 = vunpack.c.l.b16 %v88
  %v507 = vunpack.c.h.b16 %v88
  %v508 = vunpack.c.l.b16 %v89
  %v509 = vunpack.c.l.b16 %v90
  %v510 = vunpack.c.h.b16 %v90
  %v511 = vunpack.c.l.b16 %v91
  %v512 = vunpack.c.l.b16 %v92
  %v513 = vunpack.c.h.b16 %v92
  %v514 = vunpack.c.l.b16 %v93
  %v515 = vunpack.c.l.b16 %v94
  %v516 = vunpack.c.h.b16 %v94
  %v517 = vunpack.c.l.b16 %v95
  %v518 = vunpack.c.l.b16 %v96
  %v519 = vunpack.c.h.b16 %v96
  %v520 = vunpack.c.l.b16 %v97
  %v521 = vunpack.c.l.b16 %v98
  %v522 = vunpack.c.h.b16 %v98
  %v523 = vunpack.c.l.b16 %v99
  %v524 = vunpack.c.l.b16 %v100
  %v525 = vunpack.c.h.b16 %v100
  %v526 = vunpack.c.l.b16 %v101
  %v527 = vunpack.c.l.b16 %v102
  %v528 = vunpack.c.h.b16 %v102
  %v529 = vunpack.c.l.b16 %v103
  %v530 = vunpack.c.l.b16 %v104
  %v531 = vunpack.c.h.b16 %v104
  %v532 = vunpack.c.l.b16 %v105
  %v533 = vunpack.c.l.b16 %v106
  %v534 = vunpack.c.h.b16 %v106
  %v535 = vunpack.c.l.b16 %v107
  %v536 = vunpack.c.l.b16 %v108
  %v537 = vunpack.c.h.b16 %v108
  %v538 = vunpack.c.l.b16 %v109
  %v539 = vunpack.c.l.b16 %v110
  %v540 = vunpack.c.h.b16 %v110
  %v541 = vunpack.c.l.b16 %v111
  %v542 = vunpack.c.l.b16 %v112
  %v543 = vunpack.c.h.b16 %v112
  %v544 = vunpack.c.l.b16 %v113
  %v545 = vunpack.c.l.b16 %v114
  %v546 = vunpack.c.h.b16 %v114
  %v547 = vunpack.c.l.b16 %v115
  %v548 = vunpack.c.l.b16 %v116
  %v549 = vunpack.c.h.b16 %v116
  %v550 = vunpack.c.l.b16 %v117
  %v551 = vunpack.c.l.b16 %v118
  %v552 = vunpack.c.h.b16 %v118
  %v553 = vunpack.c.l.b16 %v119
  %v554 = vunpack.c.l.b16 %v120
  %v555 = vunpack.c.h.b16 %v120
  %v556 = vunpack.c.l.b16 %v121
  %v557 = vunpack.c.l.b16 %v122
  %v558 = vunpack.c.h.b16 %v122
  %v559 = vunpack.c.l.b16 %v123
  %v560 = vunpack.c.l.b16 %v124
  %v561 = vunpack.c.h.b16 %v124
  %v562 = vunpack.c.l.b16 %v125
  %v563 = vunpack.c.l.b16 %v126
  %v564 = vunpack.c.h.b16 %v126
  %v565 = vunpack.c.l.b16 %v127
  %v566 = vunpack.c.l.b16 %v128
  %v567 = vunpack.c.h.b16 %v128
  %v568 = vunpack.c.l.b16 %v129
  %v569 = vunpack.c.l.b16 %v130
  %v570 = vunpack.c.h.b16 %v130
  %v571 = vunpack.c.l.b16 %v131
  %v572 = vunpack.c.l.b16 %v132
  %v573 = vunpack.c.h.b16 %v132
  %v574 = vunpack.c.l.b16 %v133
  %v575 = vunpack.c.l.b16 %v134
  %v576 = vunpack.c.h.b16 %v134
  %v577 = vunpack.c.l.b16 %v135
  %v578 = vunpack.c.l.b16 %v136
  %v579 = vunpack.c.h.b16 %v136
  %v580 = vunpack.c.l.b16 %v137
  %v581 = vunpack.c.l.b16 %v138
  %v582 = vunpack.c.h.b16 %v138
  %v583 = vunpack.c.l.b16 %v139
  %v584 = vunpack.c.l.b16 %v140
  %v585 = vunpack.c.h.b16 %v140
  %v586 = vunpack.c.l.b16 %v141
  %v587 = vunpack.c.l.b16 %v142
  %v588 = vunpack.c.h.b16 %v142
  %v589 = vunpack.c.l.b16 %v143
  %v590 = vunpack.c.l.b16 %v144
  %v591 = vunpack.c.h.b16 %v144
  %v592 = vunpack.c.l.b16 %v145
  %v593 = vunpack.c.l.b16 %v146
  %v594 = vunpack.c.h.b16 %v146
  %v595 = vunpack.c.l.b16 %v147
  %v596 = vunpack.c.l.b16 %v148
  %v597 = vunpack.c.h.b16 %v148
  %v598 = vunpack.c.l.b16 %v149
  %v599 = vunpack.c.l.b16 %v150
  %v600 = vunpack.c.h.b16 %v150
  %v601 = vunpack.c.l.b16 %v151
  %v602 = vunpack.c.l.b16 %v152
  %v603 = vunpack.c.h.b16 %v152
  %v604 = vunpack.c.l.b16 %v153
  %v605 = vunpack.c.l.b16 %v154
  %v606 = vunpack.c.h.b16 %v154
  %v607 = vunpack.c.l.b16 %v155
  %v608 = vunpack.c.l.b16 %v156
  %v609 = vunpack.c.h.b16 %v156
  %v610 = vunpack.c.l.b16 %v157
  %v611 = vunpack.c.l.b16 %v158
  %v612 = vunpack.c.h.b16 %v158
  %v613 = vunpack.c.l.b16 %v159
  %v614 = vunpack.c.l.b16 %v160
  %v615 = vunpack.c.h.b16 %v160
  %v616 = vunpack.c.l.b16 %v161
  %v617 = vunpack.c.l.b16 %v162
  %v618 = vunpack.c.h.b16 %v162
  %v619 = vunpack.c.l.b16 %v163
  %v620 = vunpack.c.l.b16 %v164
  %v621 = vunpack.c.h.b16 %v164
  %v622 = vunpack.c.l.b16 %v165
  %v623 = vunpack.c.l.b16 %v166
  %v624 = vunpack.c.h.b16 %v166
  %v625 = vunpack.c.l.b16 %v167
  %v626 = vunpack.c.l.b16 %v168
  %v627 = vunpack.c.h.b16 %v168
  %v628 = vunpack.c.l.b16 %v169
  %v629 = vunpack.c.l.b16 %v170
  %v630 = vunpack.c.h.b16 %v170
  %v631 = vunpack.c.l.b16 %v171
  %v632 = vunpack.c.l.b16 %v172
  %v633 = vunpack.c.h.b16 %v172
  %v634 = vunpack.c.l.b16 %v173
  %v635 = vunpack.c.l.b16 %v174
  %v636 = vunpack.c.h.b16 %v174
  %v637 = vunpack.c.l.b16 %v175
  %v638 = vpack.c.b16 %v401, %v398
  %v639 = vpack.c.b16 %v402, %v399
  %v640 = vpack.c.b16 %v403, %v400
  %v641 = vpack.c.b16 %v407, %v404
  %v642 = vpack.c.b16 %v408, %v405
  %v643 = vpack.c.b16 %v409, %v406
  %v644 = vpack.c.b16 %v413, %v410
  %v645 = vpack.c.b16 %v414, %v411
  %v646 = vpack.c.b16 %v415, %v412
  %v647 = vpack.c.b16 %v419, %v416
  %v648 = vpack.c.b16 %v420, %v417
  %v649 = vpack.c.b16 %v421, %v418
  %v650 = vpack.c.b16 %v425, %v422
  %v651 = vpack.c.b16 %v426, %v423
  %v652 = vpack.c.b16 %v427, %v424
  %v653 = vpack.c.b16 %v431, %v428
  %v654 = vpack.c.b16 %v432, %v429
  %v655 = vpack.c.b16 %v433, %v430
  %v656 = vpack.c.b16 %v437, %v434
  %v657 = vpack.c.b16 %v438, %v435
  %v658 = vpack.c.b16 %v439, %v436
  %v659 = vpack.c.b16 %v443, %v440
  %v660 = vpack.c.b16 %v444, %v441
  %v661 = vpack.c.b16 %v445, %v442
  %v662 = vpack.c.b16 %v449, %v446
  %v663 = vpack.c.b16 %v450, %v447
  %v664 = vpack.c.b16 %v451, %v448
  %v665 = vpack.c.b16 %v455, %v452
  %v666 = vpack.c.b16 %v456, %v453
  %v667 = vpack.c.b16 %v457, %v454
  %v668 = vpack.c.b16 %v461, %v458
  %v669 = vpack.c.b16 %v462, %v459
  %v670 = vpack.c.b16 %v463, %v460
  %v671 = vpack.c.b16 %v467, %v464
  %v672 = vpack.c.b16 %v468, %v465
  %v673 = vpack.c.b16 %v469, %v466
  %v674 = vpack.c.b16 %v473, %v470
  %v675 = vpack.c.b16 %v474, %v471
  %v676 = vpack.c.b16 %v475, %v472
  %v677 = vpack.c.b16 %v479, %v476
  %v678 = vpack.c.b16 %v480, %v477
  %v679 = vpack.c.b16 %v481, %v478
  %v680 = vpack.c.b16 %v485, %v482
  %v681 = vpack.c.b16 %v486, %v483
  %v682 = vpack.c.b16 %v487, %v484
  %v683 = vpack.c.b16 %v491, %v488
  %v684 = vpack.c.b16 %v492, %v489
  %v685 = vpack.c.b16 %v493, %v490
  %v686 = vpack.c.b16 %v497, %v494
  %v687 = vpack.c.b16 %v498, %v495
  %v688 = vpack.c.b16 %v499, %v496
  %v689 = vpack.c.b16 %v503, %v500
  %v690 = vpack.c.b16 %v504, %v501
  %v691 = vpack.c.b16 %v505, %v502
  %v692 = vpack.c.b16 %v509, %v506
  %v693 = vpack.c.b16 %v510, %v507
  %v694 = vpack.c.b16 %v511, %v508
  %v695 = vpack.c.b16 %v515, %v512
  %v696 = vpack.c.b16 %v516, %v513
  %v697 = vpack.c.b16 %v517, %v514
  %v698 = vpack.c.b16 %v521, %v518
  %v699 = vpack.c.b16 %v522, %v519
  %v700 = vpack.c.b16 %v523, %v520
  %v701 = vpack.c.b16 %v527, %v524
  %v702 = vpack.c.b16 %v528, %v525
  %v703 = vpack.c.b16 %v529, %v526
  %v704 = vpack.c.b16 %v533, %v530
  %v705 = vpack.c.b16 %v534, %v531
  %v706 = vpack.c.b16 %v535, %v532
  %v707 = vpack.c.b16 %v539, %v536
  %v708 = vpack.c.b16 %v540, %v537
  %v709 = vpack.c.b16 %v541, %v538
  %v710 = vpack.c.b16 %v545, %v542
  %v711 = vpack.c.b16 %v546, %v543
  %v712 = vpack.c.b16 %v547, %v544
  %v713 = vpack.c.b16 %v551, %v548
  %v714 = vpack.c.b16 %v552, %v549
  %v715 = vpack.c.b16 %v553, %v550
  %v716 = vpack.c.b16 %v557, %v554
  %v717 = vpack.c.b16 %v558, %v555
  %v718 = vpack.c.b16 %v559, %v556
  %v719 = vpack.c.b16 %v563, %v560
  %v720 = vpack.c.b16 %v564, %v561
  %v721 = vpack.c.b16 %v565, %v562
  %v722 = vpack.c.b16 %v569, %v566
  %v723 = vpack.c.b16 %v570, %v567
  %v724 = vpack.c.b16 %v571, %v568
  %v725 = vpack.c.b16 %v575, %v572
  %v726 = vpack.c.b16 %v576, %v573
  %v727 = vpack.c.b16 %v577, %v574
  %v728 = vpack.c.b16 %v581, %v578
  %v729 = vpack.c.b16 %v582, %v579
  %v730 = vpack.c.b16 %v583, %v580
  %v731 = vpack.c.b16 %v587, %v584
  %v732 = vpack.c.b16 %v588, %v585
  %v733 = vpack.c.b16 %v589, %v586
  %v734 = vpack.c.b16 %v593, %v590
  %v735 = vpack.c.b16 %v594, %v591
  %v736 = vpack.c.b16 %v595, %v592
  %v737 = vpack.c.b16 %v599, %v596
  %v738 = vpack.c.b16 %v600, %v597
  %v739 = vpack.c.b16 %v601, %v598
  %v740 = vpack.c.b16 %v605, %v602
  %v741 = vpack.c.b16 %v606, %v603
  %v742 = vpack.c.b16 %v607, %v604
  %v743 = vpack.c.b16 %v611, %v608
  %v744 = vpack.c.b16 %v612, %v609
  %v745 = vpack.c.b16 %v613, %v610
  %v746 = vpack.c.b16 %v617, %v614
  %v747 = vpack.c.b16 %v618, %v615
  %v748 = vpack.c.b16 %v619, %v616
  %v749 = vpack.c.b16 %v623, %v620
  %v750 = vpack.c.b16 %v624, %v621
  %v751 = vpack.c.b16 %v625, %v622
  %v752 = vpack.c.b16 %v629, %v626
  %v753 = vpack.c.b16 %v630, %v627
  %v754 = vpack.c.b16 %v631, %v628
  %v755 = vpack.c.b16 %v635, %v632
  %v756 = vpack.c.b16 %v636, %v633
  %v757 = vpack.c.b16 %v637, %v634
  %878 = vmatprep.subr.bf16.mxu0 %v639
  %879 = vmatpush1.bf16.msra.mxu0 %v638
  %880 = vmatprep.subr.bf16.mxu0 %v642
  %881 = vmatpush1.bf16.msra.mxu0 %v641
  %882 = vmatprep.subr.bf16.mxu0 %v645
  %883 = vmatpush1.bf16.msra.mxu0 %v644
  %884 = vmatprep.subr.bf16.mxu0 %v648
  %885 = vmatpush1.bf16.msra.mxu0 %v647
  %886 = vmatprep.subr.bf16.mxu0 %v651
  %887 = vmatpush1.bf16.msra.mxu0 %v650
  %888 = vmatprep.subr.bf16.mxu0 %v654
  %889 = vmatpush1.bf16.msra.mxu0 %v653
  %890 = vmatprep.subr.bf16.mxu0 %v657
  %891 = vmatpush1.bf16.msra.mxu0 %v656
  %892 = vmatprep.subr.bf16.mxu0 %v660
  %893 = vmatpush1.bf16.msra.mxu0 %v659
  %894 = vmatprep.subr.bf16.mxu0 %v663
  %895 = vmatpush1.bf16.msra.mxu0 %v662
  %896 = vmatprep.subr.bf16.mxu0 %v666
  %897 = vmatpush1.bf16.msra.mxu0 %v665
  %898 = vmatprep.subr.bf16.mxu0 %v669
  %899 = vmatpush1.bf16.msra.mxu0 %v668
  %900 = vmatprep.subr.bf16.mxu0 %v672
  %901 = vmatpush1.bf16.msra.mxu0 %v671
  %902 = vmatprep.subr.bf16.mxu0 %v675
  %903 = vmatpush1.bf16.msra.mxu0 %v674
  %904 = vmatprep.subr.bf16.mxu0 %v678
  %905 = vmatpush1.bf16.msra.mxu0 %v677
  %906 = vmatprep.subr.bf16.mxu0 %v681
  %907 = vmatpush1.bf16.msra.mxu0 %v680
  %908 = vmatprep.subr.bf16.mxu0 %v684
  %909 = vmatpush1.bf16.msra.mxu0 %v683
  %910 = vmatprep.mubr.bf16.mxu0 %v230
  %911 = vmatmul.mubr.bf16.gmra.mrb[0].mxu0 %v216
  %v912 = vpop.f32.mrb[0].mxu0
  %v913 = vadd.f32 %v181, %v912
  %v914 = vpop.f32.mrb[0].mxu0
  %v915 = vadd.f32 %v185, %v914
  %v916 = vpop.f32.mrb[0].mxu0
  %v917 = vpop.f32.mrb[0].mxu0
  %918 = vdwg.mxu0
  %919 = vmatprep.subr.bf16.mxu0 %v687
  %920 = vmatpush1.bf16.msra.mxu0 %v686
  %921 = vmatprep.subr.bf16.mxu0 %v690
  %922 = vmatpush1.bf16.msra.mxu0 %v689
  %923 = vmatprep.subr.bf16.mxu0 %v693
  %924 = vmatpush1.bf16.msra.mxu0 %v692
  %925 = vmatprep.subr.bf16.mxu0 %v696
  %926 = vmatpush1.bf16.msra.mxu0 %v695
  %927 = vmatprep.subr.bf16.mxu0 %v699
  %928 = vmatpush1.bf16.msra.mxu0 %v698
  %929 = vmatprep.subr.bf16.mxu0 %v702
  %930 = vmatpush1.bf16.msra.mxu0 %v701
  %931 = vmatprep.subr.bf16.mxu0 %v705
  %932 = vmatpush1.bf16.msra.mxu0 %v704
  %933 = vmatprep.subr.bf16.mxu0 %v708
  %934 = vmatpush1.bf16.msra.mxu0 %v707
  %935 = vmatprep.subr.bf16.mxu0 %v711
  %936 = vmatpush1.bf16.msra.mxu0 %v710
  %937 = vmatprep.subr.bf16.mxu0 %v714
  %938 = vmatpush1.bf16.msra.mxu0 %v713
  %939 = vmatprep.subr.bf16.mxu0 %v717
  %940 = vmatpush1.bf16.msra.mxu0 %v716
  %941 = vmatprep.subr.bf16.mxu0 %v720
  %942 = vmatpush1.bf16.msra.mxu0 %v719
  %943 = vmatprep.subr.bf16.mxu0 %v723
  %944 = vmatpush1.bf16.msra.mxu0 %v722
  %945 = vmatprep.subr.bf16.mxu0 %v726
  %946 = vmatpush1.bf16.msra.mxu0 %v725
  %947 = vmatprep.subr.bf16.mxu0 %v729
  %948 = vmatpush1.bf16.msra.mxu0 %v728
  %949 = vmatprep.subr.bf16.mxu0 %v732
  %950 = vmatpush1.bf16.msra.mxu0 %v731
  %951 = vmatprep.mubr.bf16.mxu0 %v232
  %952 = vmatmul.mubr.bf16.gmra.mrb[0].mxu0 %v231
  %v953 = vpop.f32.mrb[0].mxu0
  %v954 = vadd.f32 %v913, %v953
  %v955 = vpop.f32.mrb[0].mxu0
  %v956 = vadd.f32 %v915, %v955
  %v957 = vpop.f32.mrb[0].mxu0
  %v958 = vpop.f32.mrb[0].mxu0
  %959 = vdwg.mxu0
  %960 = vmatprep.subr.bf16.mxu0 %v735
  %961 = vmatpush1.bf16.msra.mxu0 %v734
  %962 = vmatprep.subr.bf16.mxu0 %v738
  %963 = vmatpush1.bf16.msra.mxu0 %v737
  %964 = vmatprep.subr.bf16.mxu0 %v741
  %965 = vmatpush1.bf16.msra.mxu0 %v740
  %966 = vmatprep.subr.bf16.mxu0 %v744
  %967 = vmatpush1.bf16.msra.mxu0 %v743
  %968 = vmatprep.subr.bf16.mxu0 %v747
  %969 = vmatpush1.bf16.msra.mxu0 %v746
  %970 = vmatprep.subr.bf16.mxu0 %v750
  %971 = vmatpush1.bf16.msra.mxu0 %v749
  %972 = vmatprep.subr.bf16.mxu0 %v753
  %973 = vmatpush1.bf16.msra.mxu0 %v752
  %974 = vmatprep.subr.bf16.mxu0 %v756
  %975 = vmatpush1.bf16.msra.mxu0 %v755
  %976 = vmatprep.subr.bf16.mxu0 0
  %977 = vmatpush1.bf16.msra.mxu0 0
  %978 = vmatprep.subr.bf16.mxu0 0
  %979 = vmatpush1.bf16.msra.mxu0 0
  %980 = vmatprep.subr.bf16.mxu0 0
  %981 = vmatpush1.bf16.msra.mxu0 0
  %982 = vmatprep.subr.bf16.mxu0 0
  %983 = vmatpush1.bf16.msra.mxu0 0
  %984 = vmatprep.subr.bf16.mxu0 0
  %985 = vmatpush1.bf16.msra.mxu0 0
  %986 = vmatprep.subr.bf16.mxu0 0
  %987 = vmatpush1.bf16.msra.mxu0 0
  %988 = vmatprep.subr.bf16.mxu0 0
  %989 = vmatpush1.bf16.msra.mxu0 0
  %990 = vmatprep.subr.bf16.mxu0 0
  %991 = vmatpush1.bf16.msra.mxu0 0
  %992 = vmatprep.mubr.bf16.mxu0 0
  %993 = vmatmul.mubr.bf16.gmra.mrb[0].mxu0 %v223
  %v994 = vpop.f32.mrb[0].mxu0
  %v995 = vadd.f32 %v954, %v994
  %v996 = vpop.f32.mrb[0].mxu0
  %v997 = vadd.f32 %v956, %v996
  %v998 = vpop.f32.mrb[0].mxu0
  %v999 = vpop.f32.mrb[0].mxu0
  %1000 = vdwg.mxu0
  %1001 = vmatprep.subr.bf16.mxu0 0
  %1002 = vmatpush1.bf16.msra.mxu0 %v640
  %1003 = vmatprep.subr.bf16.mxu0 0
  %1004 = vmatpush1.bf16.msra.mxu0 %v643
  %1005 = vmatprep.subr.bf16.mxu0 0
  %1006 = vmatpush1.bf16.msra.mxu0 %v646
  %1007 = vmatprep.subr.bf16.mxu0 0
  %1008 = vmatpush1.bf16.msra.mxu0 %v649
  %1009 = vmatprep.subr.bf16.mxu0 0
  %1010 = vmatpush1.bf16.msra.mxu0 %v652
  %1011 = vmatprep.subr.bf16.mxu0 0
  %1012 = vmatpush1.bf16.msra.mxu0 %v655
  %1013 = vmatprep.subr.bf16.mxu0 0
  %1014 = vmatpush1.bf16.msra.mxu0 %v658
  %1015 = vmatprep.subr.bf16.mxu0 0
  %1016 = vmatpush1.bf16.msra.mxu0 %v661
  %1017 = vmatprep.subr.bf16.mxu0 0
  %1018 = vmatpush1.bf16.msra.mxu0 %v664
  %1019 = vmatprep.subr.bf16.mxu0 0
  %1020 = vmatpush1.bf16.msra.mxu0 %v667
  %1021 = vmatprep.subr.bf16.mxu0 0
  %1022 = vmatpush1.bf16.msra.mxu0 %v670
  %1023 = vmatprep.subr.bf16.mxu0 0
  %1024 = vmatpush1.bf16.msra.mxu0 %v673
  %1025 = vmatprep.subr.bf16.mxu0 0
  %1026 = vmatpush1.bf16.msra.mxu0 %v676
  %1027 = vmatprep.subr.bf16.mxu0 0
  %1028 = vmatpush1.bf16.msra.mxu0 %v679
  %1029 = vmatprep.subr.bf16.mxu0 0
  %1030 = vmatpush1.bf16.msra.mxu0 %v682
  %1031 = vmatprep.subr.bf16.mxu0 0
  %1032 = vmatpush1.bf16.msra.mxu0 %v685
  %1033 = vmatprep.mubr.bf16.mxu0 %v230
  %1034 = vmatmul.mubr.bf16.gmra.mrb[0].mxu0 %v216
  %v1035 = vpop.f32.mrb[0].mxu0
  %v1036 = vadd.f32 %v189, %v1035
  %v1037 = vpop.f32.mrb[0].mxu0
  %v1038 = vpop.f32.mrb[0].mxu0
  %v1039 = vpop.f32.mrb[0].mxu0
  %1040 = vdwg.mxu0
  %1041 = vmatprep.subr.bf16.mxu0 0
  %1042 = vmatpush1.bf16.msra.mxu0 %v688
  %1043 = vmatprep.subr.bf16.mxu0 0
  %1044 = vmatpush1.bf16.msra.mxu0 %v691
  %1045 = vmatprep.subr.bf16.mxu0 0
  %1046 = vmatpush1.bf16.msra.mxu0 %v694
  %1047 = vmatprep.subr.bf16.mxu0 0
  %1048 = vmatpush1.bf16.msra.mxu0 %v697
  %1049 = vmatprep.subr.bf16.mxu0 0
  %1050 = vmatpush1.bf16.msra.mxu0 %v700
  %1051 = vmatprep.subr.bf16.mxu0 0
  %1052 = vmatpush1.bf16.msra.mxu0 %v703
  %1053 = vmatprep.subr.bf16.mxu0 0
  %1054 = vmatpush1.bf16.msra.mxu0 %v706
  %1055 = vmatprep.subr.bf16.mxu0 0
  %1056 = vmatpush1.bf16.msra.mxu0 %v709
  %1057 = vmatprep.subr.bf16.mxu0 0
  %1058 = vmatpush1.bf16.msra.mxu0 %v712
  %1059 = vmatprep.subr.bf16.mxu0 0
  %1060 = vmatpush1.bf16.msra.mxu0 %v715
  %1061 = vmatprep.subr.bf16.mxu0 0
  %1062 = vmatpush1.bf16.msra.mxu0 %v718
  %1063 = vmatprep.subr.bf16.mxu0 0
  %1064 = vmatpush1.bf16.msra.mxu0 %v721
  %1065 = vmatprep.subr.bf16.mxu0 0
  %1066 = vmatpush1.bf16.msra.mxu0 %v724
  %1067 = vmatprep.subr.bf16.mxu0 0
  %1068 = vmatpush1.bf16.msra.mxu0 %v727
  %1069 = vmatprep.subr.bf16.mxu0 0
  %1070 = vmatpush1.bf16.msra.mxu0 %v730
  %1071 = vmatprep.subr.bf16.mxu0 0
  %1072 = vmatpush1.bf16.msra.mxu0 %v733
  %1073 = vmatprep.mubr.bf16.mxu0 %v232
  %1074 = vmatmul.mubr.bf16.gmra.mrb[0].mxu0 %v231
  %v1075 = vpop.f32.mrb[0].mxu0
  %v1076 = vadd.f32 %v1036, %v1075
  %v1077 = vpop.f32.mrb[0].mxu0
  %v1078 = vpop.f32.mrb[0].mxu0
  %v1079 = vpop.f32.mrb[0].mxu0
  %1080 = vdwg.mxu0
  %1081 = vmatprep.subr.bf16.mxu0 0
  %1082 = vmatpush1.bf16.msra.mxu0 %v736
  %1083 = vmatprep.subr.bf16.mxu0 0
  %1084 = vmatpush1.bf16.msra.mxu0 %v739
  %1085 = vmatprep.subr.bf16.mxu0 0
  %1086 = vmatpush1.bf16.msra.mxu0 %v742
  %1087 = vmatprep.subr.bf16.mxu0 0
  %1088 = vmatpush1.bf16.msra.mxu0 %v745
  %1089 = vmatprep.subr.bf16.mxu0 0
  %1090 = vmatpush1.bf16.msra.mxu0 %v748
  %1091 = vmatprep.subr.bf16.mxu0 0
  %1092 = vmatpush1.bf16.msra.mxu0 %v751
  %1093 = vmatprep.subr.bf16.mxu0 0
  %1094 = vmatpush1.bf16.msra.mxu0 %v754
  %1095 = vmatprep.subr.bf16.mxu0 0
  %1096 = vmatpush1.bf16.msra.mxu0 %v757
  %1097 = vmatprep.subr.bf16.mxu0 0
  %1098 = vmatpush1.bf16.msra.mxu0 0
  %1099 = vmatprep.subr.bf16.mxu0 0
  %1100 = vmatpush1.bf16.msra.mxu0 0
  %1101 = vmatprep.subr.bf16.mxu0 0
  %1102 = vmatpush1.bf16.msra.mxu0 0
  %1103 = vmatprep.subr.bf16.mxu0 0
  %1104 = vmatpush1.bf16.msra.mxu0 0
  %1105 = vmatprep.subr.bf16.mxu0 0
  %1106 = vmatpush1.bf16.msra.mxu0 0
  %1107 = vmatprep.subr.bf16.mxu0 0
  %1108 = vmatpush1.bf16.msra.mxu0 0
  %1109 = vmatprep.subr.bf16.mxu0 0
  %1110 = vmatpush1.bf16.msra.mxu0 0
  %1111 = vmatprep.subr.bf16.mxu0 0
  %1112 = vmatpush1.bf16.msra.mxu0 0
  %1113 = vmatprep.mubr.bf16.mxu0 0
  %1114 = vmatmul.mubr.bf16.gmra.mrb[0].mxu0 %v223
  %v1115 = vpop.f32.mrb[0].mxu0
  %v1116 = vadd.f32 %v1076, %v1115
  %v1117 = vpop.f32.mrb[0].mxu0
  %v1118 = vpop.f32.mrb[0].mxu0
  %v1119 = vpop.f32.mrb[0].mxu0
  %1120 = vdwg.mxu0
  %v1121 = vmax.f32 %v995, 0.0
  %v1122 = vmax.f32 %v997, 0.0
  %v1123 = vmax.f32 %v1116, 0.0
  %v1127 = vcombine.low %v1121, %v1122
  %v1129 = vunpack.c.l.s4 1983009808
  %v1130 = vunpack.c.0.s8 %v1129
  %v1131 = vlaneseq
  %v1132 = vshrl.u32 %v1131, 7
  %v1133 = vsub.s32 %v1130, %v1132
  %v1134 = vrot.slane %v1127, %v1133
  %v1136 = vunpack.c.l.s4 1983009808
  %v1137 = vunpack.c.0.s8 %v1136
  %v1138 = vlaneseq
  %v1139 = vshrl.u32 %v1138, 7
  %v1140 = vsub.s32 %v1137, %v1139
  %v1141 = vrot.slane %v1123, %v1140
  %v1142 = vcombine.low %v1134, %v1141
  %vm1144 = vcmask 1041408
  %vm1145 = vcmask 1043458
  %vm1146 = vmor %vm1145, %vm1144
  %vm1147 = vcmask 521220
  %vm1148 = vmor %vm1147, %vm1146
  %1149 = vst.msk [vmem:[%s3] sm:$0x3f] %vm1148, %v1142
  // Predicated region
  $region14: #{drcn_forward.28} parent=0 // pred_check
    _
  $region15: #{drcn_forward.28} parent=0 // pred_check_branch
    %1151 = sbr.rel (0) target = $region17
  $region16: #{drcn_forward.28} parent=0 // pred_region
    _
  $region17: #{drcn_forward.28} parent=0 // pred_fallthru
    _
  // Predicated region
  $region18: #{drcn_forward.28} parent=0 // pred_check
    _
  $region19: #{drcn_forward.28} parent=0 // pred_check_branch
    %1153 = sbr.rel (0) target = $region21
  $region20: #{drcn_forward.28} parent=0 // pred_region
    _
  $region21: #{drcn_forward.28} parent=0 // pred_fallthru
    _

</llo_original>
